<compile_context>
chip_gen: v5e
topology: v5e:2x2
jax: 0.10.0
libtpu: 0.0.40
codegen_flags: <defaults>
</compile_context>

<pallas_src>
import functools
import math

import jax
import jax.numpy as jnp
from jax.experimental import pallas as pl
from jax.experimental.pallas import tpu as pltpu

# ---------------- model hyper-parameters (small, consistent with the module) ----------------
HIDDEN = 128          # hidden_size
HEAD = 32             # head_size
NHEADS = 4            # num_heads  (NHEADS * HEAD == HIDDEN)
NLAYERS = 2           # num_layers
EPS = 1e-8            # the module passes eps=1e-08 to its Transformer
LATENT_CHANNELS = 12  # in_conv / out_conv channels in the PyTorch module
LATENT_SCALE = 0.125
NUM_TRAIN_TIMESTEPS = 1000

# DDIM scheduler constants (linear beta schedule, diffusers defaults)
_BETAS = jnp.linspace(1e-4, 0.02, NUM_TRAIN_TIMESTEPS, dtype=jnp.float32)
ALPHAS_CUMPROD = jnp.cumprod(1.0 - _BETAS)


def _round_up(x, m):
    return (x + m - 1) // m * m


# ==================== 3x3 conv: in-kernel 9-tap reduction ====================

def _conv3x3_kernel(x_ref, w_ref, o_ref, *, hh, ww, cin, cout):
    """x_ref: (1, hh+2, ww+2, cin) f32; w_ref: (9, cin, cout) bf16; o_ref: (1, hh, ww, cout)."""
    x = x_ref[0]                                             # (hh+2, ww+2, cin)
    acc = jnp.zeros((hh * ww, cout), jnp.float32)
    for t in range(9):                                       # static 9-tap accumulation
        dy, dx = divmod(t, 3)
        patch = x[dy:dy + hh, dx:dx + ww, :].reshape(hh * ww, cin)
        acc = acc + jnp.dot(patch.astype(jnp.bfloat16), w_ref[t],
                            preferred_element_type=jnp.float32)
    o_ref[0] = acc.reshape(hh, ww, cout)


def conv3x3(x_nhwc, w9):
    """3x3 conv, padding=1, stride=1, no bias.  x: (B,H,W,Cin) NHWC; w9: (9,Cin,Cout) bf16."""
    B, H, W, cin = x_nhwc.shape
    cout = w9.shape[-1]
    xp = jnp.pad(x_nhwc.astype(jnp.float32), ((0, 0), (1, 1), (1, 1), (0, 0)))
    return pl.pallas_call(
        functools.partial(_conv3x3_kernel, hh=H, ww=W, cin=cin, cout=cout),
        out_shape=jax.ShapeDtypeStruct((B, H, W, cout), jnp.float32),
        grid_spec=pltpu.PrefetchScalarGridSpec(
            num_scalar_prefetch=0,
            grid=(B,),
            in_specs=[
                pl.BlockSpec((1, H + 2, W + 2, cin), lambda b: (b, 0, 0, 0)),
                pl.BlockSpec((9, cin, cout), lambda b: (0, 0, 0)),
            ],
            out_specs=pl.BlockSpec((1, H, W, cout), lambda b: (b, 0, 0, 0)),
        ),
        compiler_params=pltpu.CompilerParams(dimension_semantics=("parallel",)),
    )(xp, w9)


# ==================== fused transformer decoder (all ops of a layer in one kernel) ====================

def _transformer_kernel(x_ref, ln1_g, ln1_b, w_qkv, b_qkv, w_o, b_o,
                        ln2_g, ln2_b, w_fc1, b_fc1, w_fc2, b_fc2,
                        lnf_g, lnf_b, o_ref, *, seq_len, eps):
    """grid = (batch, layer).  The activation is carried in o_ref across the layer axis."""
    layer = pl.program_id(1)
    last = pl.num_programs(1) - 1

    @pl.when(layer == 0)
    def _():
        o_ref[...] = x_ref[...]

    x = o_ref[0]                                             # (Sp, H) f32, resident in VMEM
    sp = x.shape[0]

    def layernorm(v, g, b):
        mu = jnp.mean(v, axis=-1, keepdims=True)
        vc = v - mu
        var = jnp.mean(vc * vc, axis=-1, keepdims=True)
        return vc * jax.lax.rsqrt(var + eps) * g + b

    # ---- multi-head self attention (pre-LN, bidirectional) ----
    h = layernorm(x, ln1_g[0], ln1_b[0])
    qkv = jnp.dot(h.astype(jnp.bfloat16), w_qkv[0],
                  preferred_element_type=jnp.float32) + b_qkv[0]        # (Sp, 3H)
    key_bias = jnp.where(
        jax.lax.broadcasted_iota(jnp.int32, (1, sp), 1) < seq_len,
        0.0, -1e30).astype(jnp.float32)                                 # mask padded keys
    scale = 1.0 / math.sqrt(HEAD)
    wo = w_o[0]                                                         # (H, H) bf16
    attn_proj = jnp.zeros((sp, HIDDEN), jnp.float32)
    for hd in range(NHEADS):
        q_h = qkv[:, hd * HEAD:(hd + 1) * HEAD]
        k_h = qkv[:, HIDDEN + hd * HEAD:HIDDEN + (hd + 1) * HEAD]
        v_h = qkv[:, 2 * HIDDEN + hd * HEAD:2 * HIDDEN + (hd + 1) * HEAD]
        s = jax.lax.dot_general(q_h, k_h, (((1,), (1,)), ((), ())),
                                preferred_element_type=jnp.float32) * scale
        s = s + key_bias
        m = jnp.max(s, axis=-1, keepdims=True)
        p = jnp.exp(s - m)
        p = p / jnp.sum(p, axis=-1, keepdims=True)
        o_h = jnp.dot(p.astype(jnp.bfloat16), v_h.astype(jnp.bfloat16),
                      preferred_element_type=jnp.float32)               # (Sp, HEAD)
        # fold head output straight into the 128-lane out-projection (lane-dense)
        attn_proj = attn_proj + jnp.dot(
            o_h.astype(jnp.bfloat16), wo[hd * HEAD:(hd + 1) * HEAD, :],
            preferred_element_type=jnp.float32)
    x = x + attn_proj + b_o[0]

    # ---- MLP (pre-LN, GELU, 4x) ----
    h2 = layernorm(x, ln2_g[0], ln2_b[0])
    ff = jnp.dot(h2.astype(jnp.bfloat16), w_fc1[0],
                 preferred_element_type=jnp.float32) + b_fc1[0]
    # TODO(synk): PyTorch nn.GELU defaults to exact erf; tanh approximation used here.
    ff = jax.nn.gelu(ff, approximate=True)
    x = x + jnp.dot(ff.astype(jnp.bfloat16), w_fc2[0],
                    preferred_element_type=jnp.float32) + b_fc2[0]

    @pl.when(layer < last)
    def _():
        o_ref[0] = x

    @pl.when(layer == last)
    def _():                                                  # fuse final LayerNorm
        o_ref[0] = layernorm(x, lnf_g[...], lnf_b[...])


def transformer_decoder(p, tokens):
    """tokens: (B, S, HIDDEN) f32 -> (B, S, HIDDEN) f32 after NLAYERS blocks + final LN."""
    B, S, Hd = tokens.shape
    Sp = _round_up(S, 8)
    x = jnp.pad(tokens, ((0, 0), (0, Sp - S), (0, 0)))
    vec = lambda: pl.BlockSpec((1, 1, Hd), lambda b, l: (l, 0, 0))
    out = pl.pallas_call(
        functools.partial(_transformer_kernel, seq_len=S, eps=EPS),
        out_shape=jax.ShapeDtypeStruct((B, Sp, Hd), jnp.float32),
        grid_spec=pltpu.PrefetchScalarGridSpec(
            num_scalar_prefetch=0,
            grid=(B, NLAYERS),
            in_specs=[
                pl.BlockSpec((1, Sp, Hd), lambda b, l: (b, 0, 0)),            # x
                vec(), vec(),                                                 # ln1 g/b
                pl.BlockSpec((1, Hd, 3 * Hd), lambda b, l: (l, 0, 0)),        # w_qkv
                pl.BlockSpec((1, 1, 3 * Hd), lambda b, l: (l, 0, 0)),         # b_qkv
                pl.BlockSpec((1, Hd, Hd), lambda b, l: (l, 0, 0)),            # w_o
                vec(),                                                        # b_o
                vec(), vec(),                                                 # ln2 g/b
                pl.BlockSpec((1, Hd, 4 * Hd), lambda b, l: (l, 0, 0)),        # w_fc1
                pl.BlockSpec((1, 1, 4 * Hd), lambda b, l: (l, 0, 0)),         # b_fc1
                pl.BlockSpec((1, 4 * Hd, Hd), lambda b, l: (l, 0, 0)),        # w_fc2
                vec(),                                                        # b_fc2
                pl.BlockSpec((1, Hd), lambda b, l: (0, 0)),                   # lnf_g
                pl.BlockSpec((1, Hd), lambda b, l: (0, 0)),                   # lnf_b
            ],
            out_specs=pl.BlockSpec((1, Sp, Hd), lambda b, l: (b, 0, 0)),
        ),
        compiler_params=pltpu.CompilerParams(
            dimension_semantics=("parallel", "arbitrary")),
    )(x, p["ln1_g"], p["ln1_b"], p["w_qkv"], p["b_qkv"], p["w_o"], p["b_o"],
      p["ln2_g"], p["ln2_b"], p["w_fc1"], p["b_fc1"], p["w_fc2"], p["b_fc2"],
      p["lnf_g"], p["lnf_b"])
    return out[:, :S]


# ==================== MSE loss reduction ====================

def _mse_kernel(a_ref, b_ref, o_ref, *, denom):
    d = a_ref[...] - b_ref[...]
    o_ref[0, 0] = jnp.sum(d * d) / denom


def pallas_mse(a, b):
    af = a.reshape(-1).astype(jnp.float32)
    bf = b.reshape(-1).astype(jnp.float32)
    n = af.shape[0]
    npad = _round_up(n, 1024)
    af = jnp.pad(af, (0, npad - n)).reshape(npad // 128, 128)
    bf = jnp.pad(bf, (0, npad - n)).reshape(npad // 128, 128)
    out = pl.pallas_call(
        functools.partial(_mse_kernel, denom=float(n)),
        out_shape=jax.ShapeDtypeStruct((1, 1), jnp.float32),
        in_specs=[pl.BlockSpec(memory_space=pltpu.MemorySpace.VMEM),
                  pl.BlockSpec(memory_space=pltpu.MemorySpace.VMEM)],
        out_specs=pl.BlockSpec(memory_space=pltpu.MemorySpace.SMEM),
    )(af, bf)
    return out[0, 0]


# ==================== parameters (pre-padded / pre-cast kernel-ready layouts) ====================

def init_params(key, img_channels):
    ks = iter(jax.random.split(key, 24))

    def dense(shape, fan_in):
        return (jax.random.normal(next(ks), shape, jnp.float32)
                / math.sqrt(fan_in)).astype(jnp.bfloat16)

    def conv_w(cout, cin):
        w = jax.random.normal(next(ks), (cout, cin, 3, 3), jnp.float32) / math.sqrt(cin * 9)
        # (Cout, Cin, 3, 3) -> (9, Cin, Cout), tap order t = dy*3+dx
        return jnp.transpose(w, (2, 3, 1, 0)).reshape(9, cin, cout).astype(jnp.bfloat16)

    p = {}
    # TODO(synk): real module uses a frozen pretrained autoencoder; replaced by a
    # synthetic stride-2 conv encoder and nearest-upsample + conv decoder.
    p["enc_w"] = conv_w(LATENT_CHANNELS, img_channels)
    p["dec_w"] = conv_w(img_channels, LATENT_CHANNELS)
    # LatentDiffusionTransformer convs (bias=False, as in the module)
    p["in_conv_w"] = conv_w(HIDDEN, LATENT_CHANNELS)
    p["out_conv_w"] = conv_w(LATENT_CHANNELS, HIDDEN)
    # nn.Embedding(1000, hidden, padding_idx=0)
    tt = jax.random.normal(next(ks), (NUM_TRAIN_TIMESTEPS, HIDDEN), jnp.float32) * 0.02
    p["timestep_table"] = tt.at[0].set(0.0)

    # TODO(synk): `Transformer` internals were not provided; assumed pre-LN blocks of
    # multi-head self-attention + 4x GELU MLP, with a final LayerNorm.
    w_qkv, w_o, w_fc1, w_fc2 = [], [], [], []
    for _ in range(NLAYERS):
        w_qkv.append(dense((HIDDEN, 3 * HIDDEN), HIDDEN))
        w_o.append(dense((HIDDEN, HIDDEN), HIDDEN))
        w_fc1.append(dense((HIDDEN, 4 * HIDDEN), HIDDEN))
        w_fc2.append(dense((4 * HIDDEN, HIDDEN), 4 * HIDDEN))
    p["w_qkv"], p["w_o"] = jnp.stack(w_qkv), jnp.stack(w_o)
    p["w_fc1"], p["w_fc2"] = jnp.stack(w_fc1), jnp.stack(w_fc2)
    zeros = lambda n: jnp.zeros((NLAYERS, 1, n), jnp.float32)
    ones = lambda n: jnp.ones((NLAYERS, 1, n), jnp.float32)
    p["ln1_g"], p["ln1_b"] = ones(HIDDEN), zeros(HIDDEN)
    p["ln2_g"], p["ln2_b"] = ones(HIDDEN), zeros(HIDDEN)
    p["b_qkv"], p["b_o"] = zeros(3 * HIDDEN), zeros(HIDDEN)
    p["b_fc1"], p["b_fc2"] = zeros(4 * HIDDEN), zeros(HIDDEN)
    p["lnf_g"] = jnp.ones((1, HIDDEN), jnp.float32)
    p["lnf_b"] = jnp.zeros((1, HIDDEN), jnp.float32)
    return p


# ==================== LatentDiffusionTransformer forward ====================

def diffusion_model(params, z_t, text_emb, t_bx1):
    """z_t: (B, 12, Hl, Wl) NCHW; text_emb: (B, HIDDEN); t_bx1: (B, 1) int."""
    B, _, Hl, Wl = z_t.shape
    temb = params["timestep_table"][t_bx1]                          # (B, 1, HIDDEN)
    z_nhwc = jnp.transpose(z_t, (0, 2, 3, 1))
    img_tok = conv3x3(z_nhwc, params["in_conv_w"]).reshape(B, Hl * Wl, HIDDEN)
    tokens = jnp.concatenate([img_tok, text_emb[:, None, :], temb], axis=1)
    out_tok = transformer_decoder(params, tokens)                   # fused decoder
    x_nhwc = out_tok[:, :Hl * Wl].reshape(B, Hl, Wl, HIDDEN)        # keep image tokens
    out_nhwc = conv3x3(x_nhwc, params["out_conv_w"])
    return jnp.transpose(out_nhwc, (0, 3, 1, 2))                    # (B, 12, Hl, Wl)


# ==================== LatentDiffusionText2Image forward ====================

def latent_diffusion_forward(params, image, text_emb, t, noise_key):
    B = image.shape[0]
    # --- frozen autoencoder encode (synthetic): stride-2 3x3 conv (stride-1 + subsample) ---
    x_nhwc = jnp.transpose(image, (0, 2, 3, 1))
    z_nhwc = conv3x3(x_nhwc, params["enc_w"])[:, ::2, ::2, :]       # (B, H/2, W/2, 12)
    z = jnp.transpose(z_nhwc, (0, 3, 1, 2)) * LATENT_SCALE
    # --- DDIM add_noise (scale_model_input is identity for DDIM) ---
    eps_t = jax.random.normal(noise_key, z.shape, jnp.float32)
    acp = ALPHAS_CUMPROD[t[0]]
    z_t = jnp.sqrt(acp) * z + jnp.sqrt(1.0 - acp) * eps_t
    # --- diffusion transformer predicts the noise ---
    t_bx1 = jnp.broadcast_to(t, (B, 1))
    eps_hat = diffusion_model(params, z_t, text_emb, t_bx1)
    # --- MSE loss (Pallas reduction) ---
    loss = pallas_mse(eps_hat, eps_t)
    # --- DDIM step -> pred_original_sample, then decode ---
    z0 = (z_t - jnp.sqrt(1.0 - acp) * eps_hat) / jnp.sqrt(acp)
    z0 = z0 / LATENT_SCALE
    z0_nhwc = jnp.transpose(z0, (0, 2, 3, 1))
    up = jnp.repeat(jnp.repeat(z0_nhwc, 2, axis=1), 2, axis=2)      # nearest-neighbour x2
    pred_nhwc = conv3x3(up, params["dec_w"])                        # (B, H, W, C)
    pred = jnp.transpose(pred_nhwc, (0, 3, 1, 2))
    return loss, t, image, pred


if __name__ == "__main__":
    key = jax.random.PRNGKey(0)
    k_img, k_text, k_t, k_eps, k_params = jax.random.split(key, 5)

    B, C, H, W = 2, 3, 16, 16
    image = jax.random.normal(k_img, (B, C, H, W), jnp.float32)
    # TODO(synk): real module uses a frozen open_clip text encoder + tokenizer; we
    # synthesize a deterministic text embedding of width HIDDEN instead.
    text_emb = jax.random.normal(k_text, (B, HIDDEN), jnp.float32)
    t = jax.random.randint(k_t, (1,), 0, NUM_TRAIN_TIMESTEPS)

    params = init_params(k_params, C)

    fwd = jax.jit(latent_diffusion_forward)
    loss, t_out, orig, pred = fwd(params, image, text_emb, t, k_eps)
    jax.block_until_ready((loss, t_out, orig, pred))
    assert loss.shape == () and pred.shape == (B, C, H, W)
    assert bool(jnp.isfinite(loss))
    print("KERNEL_OK")
</pallas_src>

<mosaic_0001>
module attributes {stable_mosaic.version = 11 : i64} {
  func.func @_conv3x3_kernel(%arg0: i32, %arg1: memref<1x18x18x3xf32, #tpu.memory_space<vmem>>, %arg2: memref<9x3x12xbf16, #tpu.memory_space<vmem>>, %arg3: memref<1x16x16x12xf32, #tpu.memory_space<vmem>>) attributes {dimension_semantics = [#tpu.dimension_semantics<parallel>], iteration_bounds = array<i64: 2>, scalar_prefetch = 0 : i64, scratch_operands = 0 : i64, tpu.core_type = #tpu.core_type<tc>, window_params = [{transform_indices = @transform_0, window_bounds = array<i64: 1, 18, 18, 3>}, {pipeline_mode = #tpu.pipeline_mode<synchronous>, transform_indices = @transform_1, window_bounds = array<i64: 9, 3, 12>}, {transform_indices = @transform_2, window_bounds = array<i64: 1, 16, 16, 12>}]} {
    %c0 = arith.constant 0 : index
    %c0_0 = arith.constant 0 : index
    %c0_1 = arith.constant 0 : index
    %c0_2 = arith.constant 0 : index
    %0 = vector.load %arg1[%c0, %c0_0, %c0_1, %c0_2] : memref<1x18x18x3xf32, #tpu.memory_space<vmem>>, vector<1x18x18x3xf32>
    %1 = vector.shape_cast %0 : vector<1x18x18x3xf32> to vector<18x18x3xf32>
    %cst = arith.constant 0.000000e+00 : f32
    %2 = vector.broadcast %cst : f32 to vector<256x12xf32>
    %3 = vector.extract_strided_slice %1 {offsets = [0, 0, 0], sizes = [16, 16, 3], strides = [1, 1, 1]} : vector<18x18x3xf32> to vector<16x16x3xf32>
    %4 = vector.shape_cast %3 : vector<16x16x3xf32> to vector<256x3xf32>
    %5 = arith.truncf %4 : vector<256x3xf32> to vector<256x3xbf16>
    %c0_3 = arith.constant 0 : index
    %c0_4 = arith.constant 0 : index
    %c0_5 = arith.constant 0 : index
    %6 = vector.load %arg2[%c0_3, %c0_4, %c0_5] : memref<9x3x12xbf16, #tpu.memory_space<vmem>>, vector<1x3x12xbf16>
    %7 = vector.shape_cast %6 : vector<1x3x12xbf16> to vector<3x12xbf16>
    %cst_6 = arith.constant dense<0.000000e+00> : vector<256x12xf32>
    %8 = tpu.matmul %5, %7, %cst_6 {dimension_numbers = #tpu.dot_dimension_numbers<[1], [0], [0], [1], [0, 0, 1, 1], [], []>} : vector<256x3xbf16>, vector<3x12xbf16>, vector<256x12xf32> -> vector<256x12xf32>
    %9 = arith.addf %2, %8 : vector<256x12xf32>
    %10 = vector.extract_strided_slice %1 {offsets = [0, 1, 0], sizes = [16, 16, 3], strides = [1, 1, 1]} : vector<18x18x3xf32> to vector<16x16x3xf32>
    %11 = vector.shape_cast %10 : vector<16x16x3xf32> to vector<256x3xf32>
    %12 = arith.truncf %11 : vector<256x3xf32> to vector<256x3xbf16>
    %c1 = arith.constant 1 : index
    %c0_7 = arith.constant 0 : index
    %c0_8 = arith.constant 0 : index
    %13 = vector.load %arg2[%c1, %c0_7, %c0_8] : memref<9x3x12xbf16, #tpu.memory_space<vmem>>, vector<1x3x12xbf16>
    %14 = vector.shape_cast %13 : vector<1x3x12xbf16> to vector<3x12xbf16>
    %cst_9 = arith.constant dense<0.000000e+00> : vector<256x12xf32>
    %15 = tpu.matmul %12, %14, %cst_9 {dimension_numbers = #tpu.dot_dimension_numbers<[1], [0], [0], [1], [0, 0, 1, 1], [], []>} : vector<256x3xbf16>, vector<3x12xbf16>, vector<256x12xf32> -> vector<256x12xf32>
    %16 = arith.addf %9, %15 : vector<256x12xf32>
    %17 = vector.extract_strided_slice %1 {offsets = [0, 2, 0], sizes = [16, 16, 3], strides = [1, 1, 1]} : vector<18x18x3xf32> to vector<16x16x3xf32>
    %18 = vector.shape_cast %17 : vector<16x16x3xf32> to vector<256x3xf32>
    %19 = arith.truncf %18 : vector<256x3xf32> to vector<256x3xbf16>
    %c2 = arith.constant 2 : index
    %c0_10 = arith.constant 0 : index
    %c0_11 = arith.constant 0 : index
    %20 = vector.load %arg2[%c2, %c0_10, %c0_11] : memref<9x3x12xbf16, #tpu.memory_space<vmem>>, vector<1x3x12xbf16>
    %21 = vector.shape_cast %20 : vector<1x3x12xbf16> to vector<3x12xbf16>
    %cst_12 = arith.constant dense<0.000000e+00> : vector<256x12xf32>
    %22 = tpu.matmul %19, %21, %cst_12 {dimension_numbers = #tpu.dot_dimension_numbers<[1], [0], [0], [1], [0, 0, 1, 1], [], []>} : vector<256x3xbf16>, vector<3x12xbf16>, vector<256x12xf32> -> vector<256x12xf32>
    %23 = arith.addf %16, %22 : vector<256x12xf32>
    %24 = vector.extract_strided_slice %1 {offsets = [1, 0, 0], sizes = [16, 16, 3], strides = [1, 1, 1]} : vector<18x18x3xf32> to vector<16x16x3xf32>
    %25 = vector.shape_cast %24 : vector<16x16x3xf32> to vector<256x3xf32>
    %26 = arith.truncf %25 : vector<256x3xf32> to vector<256x3xbf16>
    %c3 = arith.constant 3 : index
    %c0_13 = arith.constant 0 : index
    %c0_14 = arith.constant 0 : index
    %27 = vector.load %arg2[%c3, %c0_13, %c0_14] : memref<9x3x12xbf16, #tpu.memory_space<vmem>>, vector<1x3x12xbf16>
    %28 = vector.shape_cast %27 : vector<1x3x12xbf16> to vector<3x12xbf16>
    %cst_15 = arith.constant dense<0.000000e+00> : vector<256x12xf32>
    %29 = tpu.matmul %26, %28, %cst_15 {dimension_numbers = #tpu.dot_dimension_numbers<[1], [0], [0], [1], [0, 0, 1, 1], [], []>} : vector<256x3xbf16>, vector<3x12xbf16>, vector<256x12xf32> -> vector<256x12xf32>
    %30 = arith.addf %23, %29 : vector<256x12xf32>
    %31 = vector.extract_strided_slice %1 {offsets = [1, 1, 0], sizes = [16, 16, 3], strides = [1, 1, 1]} : vector<18x18x3xf32> to vector<16x16x3xf32>
    %32 = vector.shape_cast %31 : vector<16x16x3xf32> to vector<256x3xf32>
    %33 = arith.truncf %32 : vector<256x3xf32> to vector<256x3xbf16>
    %c4 = arith.constant 4 : index
    %c0_16 = arith.constant 0 : index
    %c0_17 = arith.constant 0 : index
    %34 = vector.load %arg2[%c4, %c0_16, %c0_17] : memref<9x3x12xbf16, #tpu.memory_space<vmem>>, vector<1x3x12xbf16>
    %35 = vector.shape_cast %34 : vector<1x3x12xbf16> to vector<3x12xbf16>
    %cst_18 = arith.constant dense<0.000000e+00> : vector<256x12xf32>
    %36 = tpu.matmul %33, %35, %cst_18 {dimension_numbers = #tpu.dot_dimension_numbers<[1], [0], [0], [1], [0, 0, 1, 1], [], []>} : vector<256x3xbf16>, vector<3x12xbf16>, vector<256x12xf32> -> vector<256x12xf32>
    %37 = arith.addf %30, %36 : vector<256x12xf32>
    %38 = vector.extract_strided_slice %1 {offsets = [1, 2, 0], sizes = [16, 16, 3], strides = [1, 1, 1]} : vector<18x18x3xf32> to vector<16x16x3xf32>
    %39 = vector.shape_cast %38 : vector<16x16x3xf32> to vector<256x3xf32>
    %40 = arith.truncf %39 : vector<256x3xf32> to vector<256x3xbf16>
    %c5 = arith.constant 5 : index
    %c0_19 = arith.constant 0 : index
    %c0_20 = arith.constant 0 : index
    %41 = vector.load %arg2[%c5, %c0_19, %c0_20] : memref<9x3x12xbf16, #tpu.memory_space<vmem>>, vector<1x3x12xbf16>
    %42 = vector.shape_cast %41 : vector<1x3x12xbf16> to vector<3x12xbf16>
    %cst_21 = arith.constant dense<0.000000e+00> : vector<256x12xf32>
    %43 = tpu.matmul %40, %42, %cst_21 {dimension_numbers = #tpu.dot_dimension_numbers<[1], [0], [0], [1], [0, 0, 1, 1], [], []>} : vector<256x3xbf16>, vector<3x12xbf16>, vector<256x12xf32> -> vector<256x12xf32>
    %44 = arith.addf %37, %43 : vector<256x12xf32>
    %45 = vector.extract_strided_slice %1 {offsets = [2, 0, 0], sizes = [16, 16, 3], strides = [1, 1, 1]} : vector<18x18x3xf32> to vector<16x16x3xf32>
    %46 = vector.shape_cast %45 : vector<16x16x3xf32> to vector<256x3xf32>
    %47 = arith.truncf %46 : vector<256x3xf32> to vector<256x3xbf16>
    %c6 = arith.constant 6 : index
    %c0_22 = arith.constant 0 : index
    %c0_23 = arith.constant 0 : index
    %48 = vector.load %arg2[%c6, %c0_22, %c0_23] : memref<9x3x12xbf16, #tpu.memory_space<vmem>>, vector<1x3x12xbf16>
    %49 = vector.shape_cast %48 : vector<1x3x12xbf16> to vector<3x12xbf16>
    %cst_24 = arith.constant dense<0.000000e+00> : vector<256x12xf32>
    %50 = tpu.matmul %47, %49, %cst_24 {dimension_numbers = #tpu.dot_dimension_numbers<[1], [0], [0], [1], [0, 0, 1, 1], [], []>} : vector<256x3xbf16>, vector<3x12xbf16>, vector<256x12xf32> -> vector<256x12xf32>
    %51 = arith.addf %44, %50 : vector<256x12xf32>
    %52 = vector.extract_strided_slice %1 {offsets = [2, 1, 0], sizes = [16, 16, 3], strides = [1, 1, 1]} : vector<18x18x3xf32> to vector<16x16x3xf32>
    %53 = vector.shape_cast %52 : vector<16x16x3xf32> to vector<256x3xf32>
    %54 = arith.truncf %53 : vector<256x3xf32> to vector<256x3xbf16>
    %c7 = arith.constant 7 : index
    %c0_25 = arith.constant 0 : index
    %c0_26 = arith.constant 0 : index
    %55 = vector.load %arg2[%c7, %c0_25, %c0_26] : memref<9x3x12xbf16, #tpu.memory_space<vmem>>, vector<1x3x12xbf16>
    %56 = vector.shape_cast %55 : vector<1x3x12xbf16> to vector<3x12xbf16>
    %cst_27 = arith.constant dense<0.000000e+00> : vector<256x12xf32>
    %57 = tpu.matmul %54, %56, %cst_27 {dimension_numbers = #tpu.dot_dimension_numbers<[1], [0], [0], [1], [0, 0, 1, 1], [], []>} : vector<256x3xbf16>, vector<3x12xbf16>, vector<256x12xf32> -> vector<256x12xf32>
    %58 = arith.addf %51, %57 : vector<256x12xf32>
    %59 = vector.extract_strided_slice %1 {offsets = [2, 2, 0], sizes = [16, 16, 3], strides = [1, 1, 1]} : vector<18x18x3xf32> to vector<16x16x3xf32>
    %60 = vector.shape_cast %59 : vector<16x16x3xf32> to vector<256x3xf32>
    %61 = arith.truncf %60 : vector<256x3xf32> to vector<256x3xbf16>
    %c8 = arith.constant 8 : index
    %c0_28 = arith.constant 0 : index
    %c0_29 = arith.constant 0 : index
    %62 = vector.load %arg2[%c8, %c0_28, %c0_29] : memref<9x3x12xbf16, #tpu.memory_space<vmem>>, vector<1x3x12xbf16>
    %63 = vector.shape_cast %62 : vector<1x3x12xbf16> to vector<3x12xbf16>
    %cst_30 = arith.constant dense<0.000000e+00> : vector<256x12xf32>
    %64 = tpu.matmul %61, %63, %cst_30 {dimension_numbers = #tpu.dot_dimension_numbers<[1], [0], [0], [1], [0, 0, 1, 1], [], []>} : vector<256x3xbf16>, vector<3x12xbf16>, vector<256x12xf32> -> vector<256x12xf32>
    %65 = arith.addf %58, %64 : vector<256x12xf32>
    %66 = vector.shape_cast %65 : vector<256x12xf32> to vector<16x16x12xf32>
    %c0_31 = arith.constant 0 : index
    %c0_32 = arith.constant 0 : index
    %c0_33 = arith.constant 0 : index
    %c0_34 = arith.constant 0 : index
    %67 = vector.load %arg3[%c0_31, %c0_32, %c0_33, %c0_34] : memref<1x16x16x12xf32, #tpu.memory_space<vmem>>, vector<1x16x16x12xf32>
    %68 = vector.shape_cast %67 : vector<1x16x16x12xf32> to vector<16x16x12xf32>
    %69 = vector.shape_cast %66 : vector<16x16x12xf32> to vector<1x16x16x12xf32>
    tpu.vector_store %arg3[%c0_31, %c0_32, %c0_33, %c0_34], %69 {strides = array<i32>} : memref<1x16x16x12xf32, #tpu.memory_space<vmem>>, vector<1x16x16x12xf32>,
    return
  }
  func.func @transform_0(%arg0: i32) -> (i32, i32, i32, i32) {
    %c0_i32 = arith.constant 0 : i32
    %c0_i32_0 = arith.constant 0 : i32
    %c0_i32_1 = arith.constant 0 : i32
    %c0_i32_2 = arith.constant 0 : i32
    return %arg0, %c0_i32, %c0_i32_0, %c0_i32_1 : i32, i32, i32, i32
  }
  func.func @transform_1(%arg0: i32) -> (i32, i32, i32) {
    %c0_i32 = arith.constant 0 : i32
    %c0_i32_0 = arith.constant 0 : i32
    %c0_i32_1 = arith.constant 0 : i32
    %c0_i32_2 = arith.constant 0 : i32
    return %c0_i32, %c0_i32_0, %c0_i32_1 : i32, i32, i32
  }
  func.func @transform_2(%arg0: i32) -> (i32, i32, i32, i32) {
    %c0_i32 = arith.constant 0 : i32
    %c0_i32_0 = arith.constant 0 : i32
    %c0_i32_1 = arith.constant 0 : i32
    %c0_i32_2 = arith.constant 0 : i32
    return %arg0, %c0_i32, %c0_i32_0, %c0_i32_1 : i32, i32, i32, i32
  }
}

module attributes {stable_mosaic.version = 11 : i64} {
  func.func @_conv3x3_kernel(%arg0: i32, %arg1: memref<1x10x10x12xf32, #tpu.memory_space<vmem>>, %arg2: memref<9x12x128xbf16, #tpu.memory_space<vmem>>, %arg3: memref<1x8x8x128xf32, #tpu.memory_space<vmem>>) attributes {dimension_semantics = [#tpu.dimension_semantics<parallel>], iteration_bounds = array<i64: 2>, scalar_prefetch = 0 : i64, scratch_operands = 0 : i64, tpu.core_type = #tpu.core_type<tc>, window_params = [{transform_indices = @transform_0, window_bounds = array<i64: 1, 10, 10, 12>}, {pipeline_mode = #tpu.pipeline_mode<synchronous>, transform_indices = @transform_1, window_bounds = array<i64: 9, 12, 128>}, {transform_indices = @transform_2, window_bounds = array<i64: 1, 8, 8, 128>}]} {
    %c0 = arith.constant 0 : index
    %c0_0 = arith.constant 0 : index
    %c0_1 = arith.constant 0 : index
    %c0_2 = arith.constant 0 : index
    %0 = vector.load %arg1[%c0, %c0_0, %c0_1, %c0_2] : memref<1x10x10x12xf32, #tpu.memory_space<vmem>>, vector<1x10x10x12xf32>
    %1 = vector.shape_cast %0 : vector<1x10x10x12xf32> to vector<10x10x12xf32>
    %cst = arith.constant 0.000000e+00 : f32
    %2 = vector.broadcast %cst : f32 to vector<64x128xf32>
    %3 = vector.extract_strided_slice %1 {offsets = [0, 0, 0], sizes = [8, 8, 12], strides = [1, 1, 1]} : vector<10x10x12xf32> to vector<8x8x12xf32>
    %4 = vector.shape_cast %3 : vector<8x8x12xf32> to vector<64x12xf32>
    %5 = arith.truncf %4 : vector<64x12xf32> to vector<64x12xbf16>
    %c0_3 = arith.constant 0 : index
    %c0_4 = arith.constant 0 : index
    %c0_5 = arith.constant 0 : index
    %6 = vector.load %arg2[%c0_3, %c0_4, %c0_5] : memref<9x12x128xbf16, #tpu.memory_space<vmem>>, vector<1x12x128xbf16>
    %7 = vector.shape_cast %6 : vector<1x12x128xbf16> to vector<12x128xbf16>
    %cst_6 = arith.constant dense<0.000000e+00> : vector<64x128xf32>
    %8 = tpu.matmul %5, %7, %cst_6 {dimension_numbers = #tpu.dot_dimension_numbers<[1], [0], [0], [1], [0, 0, 1, 1], [], []>} : vector<64x12xbf16>, vector<12x128xbf16>, vector<64x128xf32> -> vector<64x128xf32>
    %9 = arith.addf %2, %8 : vector<64x128xf32>
    %10 = vector.extract_strided_slice %1 {offsets = [0, 1, 0], sizes = [8, 8, 12], strides = [1, 1, 1]} : vector<10x10x12xf32> to vector<8x8x12xf32>
    %11 = vector.shape_cast %10 : vector<8x8x12xf32> to vector<64x12xf32>
    %12 = arith.truncf %11 : vector<64x12xf32> to vector<64x12xbf16>
    %c1 = arith.constant 1 : index
    %c0_7 = arith.constant 0 : index
    %c0_8 = arith.constant 0 : index
    %13 = vector.load %arg2[%c1, %c0_7, %c0_8] : memref<9x12x128xbf16, #tpu.memory_space<vmem>>, vector<1x12x128xbf16>
    %14 = vector.shape_cast %13 : vector<1x12x128xbf16> to vector<12x128xbf16>
    %cst_9 = arith.constant dense<0.000000e+00> : vector<64x128xf32>
    %15 = tpu.matmul %12, %14, %cst_9 {dimension_numbers = #tpu.dot_dimension_numbers<[1], [0], [0], [1], [0, 0, 1, 1], [], []>} : vector<64x12xbf16>, vector<12x128xbf16>, vector<64x128xf32> -> vector<64x128xf32>
    %16 = arith.addf %9, %15 : vector<64x128xf32>
    %17 = vector.extract_strided_slice %1 {offsets = [0, 2, 0], sizes = [8, 8, 12], strides = [1, 1, 1]} : vector<10x10x12xf32> to vector<8x8x12xf32>
    %18 = vector.shape_cast %17 : vector<8x8x12xf32> to vector<64x12xf32>
    %19 = arith.truncf %18 : vector<64x12xf32> to vector<64x12xbf16>
    %c2 = arith.constant 2 : index
    %c0_10 = arith.constant 0 : index
    %c0_11 = arith.constant 0 : index
    %20 = vector.load %arg2[%c2, %c0_10, %c0_11] : memref<9x12x128xbf16, #tpu.memory_space<vmem>>, vector<1x12x128xbf16>
    %21 = vector.shape_cast %20 : vector<1x12x128xbf16> to vector<12x128xbf16>
    %cst_12 = arith.constant dense<0.000000e+00> : vector<64x128xf32>
    %22 = tpu.matmul %19, %21, %cst_12 {dimension_numbers = #tpu.dot_dimension_numbers<[1], [0], [0], [1], [0, 0, 1, 1], [], []>} : vector<64x12xbf16>, vector<12x128xbf16>, vector<64x128xf32> -> vector<64x128xf32>
    %23 = arith.addf %16, %22 : vector<64x128xf32>
    %24 = vector.extract_strided_slice %1 {offsets = [1, 0, 0], sizes = [8, 8, 12], strides = [1, 1, 1]} : vector<10x10x12xf32> to vector<8x8x12xf32>
    %25 = vector.shape_cast %24 : vector<8x8x12xf32> to vector<64x12xf32>
    %26 = arith.truncf %25 : vector<64x12xf32> to vector<64x12xbf16>
    %c3 = arith.constant 3 : index
    %c0_13 = arith.constant 0 : index
    %c0_14 = arith.constant 0 : index
    %27 = vector.load %arg2[%c3, %c0_13, %c0_14] : memref<9x12x128xbf16, #tpu.memory_space<vmem>>, vector<1x12x128xbf16>
    %28 = vector.shape_cast %27 : vector<1x12x128xbf16> to vector<12x128xbf16>
    %cst_15 = arith.constant dense<0.000000e+00> : vector<64x128xf32>
    %29 = tpu.matmul %26, %28, %cst_15 {dimension_numbers = #tpu.dot_dimension_numbers<[1], [0], [0], [1], [0, 0, 1, 1], [], []>} : vector<64x12xbf16>, vector<12x128xbf16>, vector<64x128xf32> -> vector<64x128xf32>
    %30 = arith.addf %23, %29 : vector<64x128xf32>
    %31 = vector.extract_strided_slice %1 {offsets = [1, 1, 0], sizes = [8, 8, 12], strides = [1, 1, 1]} : vector<10x10x12xf32> to vector<8x8x12xf32>
    %32 = vector.shape_cast %31 : vector<8x8x12xf32> to vector<64x12xf32>
    %33 = arith.truncf %32 : vector<64x12xf32> to vector<64x12xbf16>
    %c4 = arith.constant 4 : index
    %c0_16 = arith.constant 0 : index
    %c0_17 = arith.constant 0 : index
    %34 = vector.load %arg2[%c4, %c0_16, %c0_17] : memref<9x12x128xbf16, #tpu.memory_space<vmem>>, vector<1x12x128xbf16>
    %35 = vector.shape_cast %34 : vector<1x12x128xbf16> to vector<12x128xbf16>
    %cst_18 = arith.constant dense<0.000000e+00> : vector<64x128xf32>
    %36 = tpu.matmul %33, %35, %cst_18 {dimension_numbers = #tpu.dot_dimension_numbers<[1], [0], [0], [1], [0, 0, 1, 1], [], []>} : vector<64x12xbf16>, vector<12x128xbf16>, vector<64x128xf32> -> vector<64x128xf32>
    %37 = arith.addf %30, %36 : vector<64x128xf32>
    %38 = vector.extract_strided_slice %1 {offsets = [1, 2, 0], sizes = [8, 8, 12], strides = [1, 1, 1]} : vector<10x10x12xf32> to vector<8x8x12xf32>
    %39 = vector.shape_cast %38 : vector<8x8x12xf32> to vector<64x12xf32>
    %40 = arith.truncf %39 : vector<64x12xf32> to vector<64x12xbf16>
    %c5 = arith.constant 5 : index
    %c0_19 = arith.constant 0 : index
    %c0_20 = arith.constant 0 : index
    %41 = vector.load %arg2[%c5, %c0_19, %c0_20] : memref<9x12x128xbf16, #tpu.memory_space<vmem>>, vector<1x12x128xbf16>
    %42 = vector.shape_cast %41 : vector<1x12x128xbf16> to vector<12x128xbf16>
    %cst_21 = arith.constant dense<0.000000e+00> : vector<64x128xf32>
    %43 = tpu.matmul %40, %42, %cst_21 {dimension_numbers = #tpu.dot_dimension_numbers<[1], [0], [0], [1], [0, 0, 1, 1], [], []>} : vector<64x12xbf16>, vector<12x128xbf16>, vector<64x128xf32> -> vector<64x128xf32>
    %44 = arith.addf %37, %43 : vector<64x128xf32>
    %45 = vector.extract_strided_slice %1 {offsets = [2, 0, 0], sizes = [8, 8, 12], strides = [1, 1, 1]} : vector<10x10x12xf32> to vector<8x8x12xf32>
    %46 = vector.shape_cast %45 : vector<8x8x12xf32> to vector<64x12xf32>
    %47 = arith.truncf %46 : vector<64x12xf32> to vector<64x12xbf16>
    %c6 = arith.constant 6 : index
    %c0_22 = arith.constant 0 : index
    %c0_23 = arith.constant 0 : index
    %48 = vector.load %arg2[%c6, %c0_22, %c0_23] : memref<9x12x128xbf16, #tpu.memory_space<vmem>>, vector<1x12x128xbf16>
    %49 = vector.shape_cast %48 : vector<1x12x128xbf16> to vector<12x128xbf16>
    %cst_24 = arith.constant dense<0.000000e+00> : vector<64x128xf32>
    %50 = tpu.matmul %47, %49, %cst_24 {dimension_numbers = #tpu.dot_dimension_numbers<[1], [0], [0], [1], [0, 0, 1, 1], [], []>} : vector<64x12xbf16>, vector<12x128xbf16>, vector<64x128xf32> -> vector<64x128xf32>
    %51 = arith.addf %44, %50 : vector<64x128xf32>
    %52 = vector.extract_strided_slice %1 {offsets = [2, 1, 0], sizes = [8, 8, 12], strides = [1, 1, 1]} : vector<10x10x12xf32> to vector<8x8x12xf32>
    %53 = vector.shape_cast %52 : vector<8x8x12xf32> to vector<64x12xf32>
    %54 = arith.truncf %53 : vector<64x12xf32> to vector<64x12xbf16>
    %c7 = arith.constant 7 : index
    %c0_25 = arith.constant 0 : index
    %c0_26 = arith.constant 0 : index
    %55 = vector.load %arg2[%c7, %c0_25, %c0_26] : memref<9x12x128xbf16, #tpu.memory_space<vmem>>, vector<1x12x128xbf16>
    %56 = vector.shape_cast %55 : vector<1x12x128xbf16> to vector<12x128xbf16>
    %cst_27 = arith.constant dense<0.000000e+00> : vector<64x128xf32>
    %57 = tpu.matmul %54, %56, %cst_27 {dimension_numbers = #tpu.dot_dimension_numbers<[1], [0], [0], [1], [0, 0, 1, 1], [], []>} : vector<64x12xbf16>, vector<12x128xbf16>, vector<64x128xf32> -> vector<64x128xf32>
    %58 = arith.addf %51, %57 : vector<64x128xf32>
    %59 = vector.extract_strided_slice %1 {offsets = [2, 2, 0], sizes = [8, 8, 12], strides = [1, 1, 1]} : vector<10x10x12xf32> to vector<8x8x12xf32>
    %60 = vector.shape_cast %59 : vector<8x8x12xf32> to vector<64x12xf32>
    %61 = arith.truncf %60 : vector<64x12xf32> to vector<64x12xbf16>
    %c8 = arith.constant 8 : index
    %c0_28 = arith.constant 0 : index
    %c0_29 = arith.constant 0 : index
    %62 = vector.load %arg2[%c8, %c0_28, %c0_29] : memref<9x12x128xbf16, #tpu.memory_space<vmem>>, vector<1x12x128xbf16>
    %63 = vector.shape_cast %62 : vector<1x12x128xbf16> to vector<12x128xbf16>
    %cst_30 = arith.constant dense<0.000000e+00> : vector<64x128xf32>
    %64 = tpu.matmul %61, %63, %cst_30 {dimension_numbers = #tpu.dot_dimension_numbers<[1], [0], [0], [1], [0, 0, 1, 1], [], []>} : vector<64x12xbf16>, vector<12x128xbf16>, vector<64x128xf32> -> vector<64x128xf32>
    %65 = arith.addf %58, %64 : vector<64x128xf32>
    %66 = vector.shape_cast %65 : vector<64x128xf32> to vector<8x8x128xf32>
    %c0_31 = arith.constant 0 : index
    %c0_32 = arith.constant 0 : index
    %c0_33 = arith.constant 0 : index
    %c0_34 = arith.constant 0 : index
    %67 = vector.load %arg3[%c0_31, %c0_32, %c0_33, %c0_34] : memref<1x8x8x128xf32, #tpu.memory_space<vmem>>, vector<1x8x8x128xf32>
    %68 = vector.shape_cast %67 : vector<1x8x8x128xf32> to vector<8x8x128xf32>
    %69 = vector.shape_cast %66 : vector<8x8x128xf32> to vector<1x8x8x128xf32>
    tpu.vector_store %arg3[%c0_31, %c0_32, %c0_33, %c0_34], %69 {strides = array<i32>} : memref<1x8x8x128xf32, #tpu.memory_space<vmem>>, vector<1x8x8x128xf32>,
    return
  }
  func.func @transform_0(%arg0: i32) -> (i32, i32, i32, i32) {
    %c0_i32 = arith.constant 0 : i32
    %c0_i32_0 = arith.constant 0 : i32
    %c0_i32_1 = arith.constant 0 : i32
    %c0_i32_2 = arith.constant 0 : i32
    return %arg0, %c0_i32, %c0_i32_0, %c0_i32_1 : i32, i32, i32, i32
  }
  func.func @transform_1(%arg0: i32) -> (i32, i32, i32) {
    %c0_i32 = arith.constant 0 : i32
    %c0_i32_0 = arith.constant 0 : i32
    %c0_i32_1 = arith.constant 0 : i32
    %c0_i32_2 = arith.constant 0 : i32
    return %c0_i32, %c0_i32_0, %c0_i32_1 : i32, i32, i32
  }
  func.func @transform_2(%arg0: i32) -> (i32, i32, i32, i32) {
    %c0_i32 = arith.constant 0 : i32
    %c0_i32_0 = arith.constant 0 : i32
    %c0_i32_1 = arith.constant 0 : i32
    %c0_i32_2 = arith.constant 0 : i32
    return %arg0, %c0_i32, %c0_i32_0, %c0_i32_1 : i32, i32, i32, i32
  }
}

module attributes {stable_mosaic.version = 11 : i64} {
  func.func @_transformer_kernel(%arg0: i32, %arg1: i32, %arg2: memref<1x72x128xf32, #tpu.memory_space<vmem>>, %arg3: memref<1x1x128xf32, #tpu.memory_space<vmem>>, %arg4: memref<1x1x128xf32, #tpu.memory_space<vmem>>, %arg5: memref<1x128x384xbf16, #tpu.memory_space<vmem>>, %arg6: memref<1x1x384xf32, #tpu.memory_space<vmem>>, %arg7: memref<1x128x128xbf16, #tpu.memory_space<vmem>>, %arg8: memref<1x1x128xf32, #tpu.memory_space<vmem>>, %arg9: memref<1x1x128xf32, #tpu.memory_space<vmem>>, %arg10: memref<1x1x128xf32, #tpu.memory_space<vmem>>, %arg11: memref<1x128x512xbf16, #tpu.memory_space<vmem>>, %arg12: memref<1x1x512xf32, #tpu.memory_space<vmem>>, %arg13: memref<1x512x128xbf16, #tpu.memory_space<vmem>>, %arg14: memref<1x1x128xf32, #tpu.memory_space<vmem>>, %arg15: memref<1x128xf32, #tpu.memory_space<vmem>>, %arg16: memref<1x128xf32, #tpu.memory_space<vmem>>, %arg17: memref<1x72x128xf32, #tpu.memory_space<vmem>>) attributes {dimension_semantics = [#tpu.dimension_semantics<parallel>, #tpu.dimension_semantics<arbitrary>], iteration_bounds = array<i64: 2, 2>, scalar_prefetch = 0 : i64, scratch_operands = 0 : i64, tpu.core_type = #tpu.core_type<tc>, window_params = [{transform_indices = @transform_0, window_bounds = array<i64: 1, 72, 128>}, {transform_indices = @transform_1, window_bounds = array<i64: 1, 1, 128>}, {transform_indices = @transform_2, window_bounds = array<i64: 1, 1, 128>}, {transform_indices = @transform_3, window_bounds = array<i64: 1, 128, 384>}, {transform_indices = @transform_4, window_bounds = array<i64: 1, 1, 384>}, {transform_indices = @transform_5, window_bounds = array<i64: 1, 128, 128>}, {transform_indices = @transform_6, window_bounds = array<i64: 1, 1, 128>}, {transform_indices = @transform_7, window_bounds = array<i64: 1, 1, 128>}, {transform_indices = @transform_8, window_bounds = array<i64: 1, 1, 128>}, {transform_indices = @transform_9, window_bounds = array<i64: 1, 128, 512>}, {transform_indices = @transform_10, window_bounds = array<i64: 1, 1, 512>}, {transform_indices = @transform_11, window_bounds = array<i64: 1, 512, 128>}, {transform_indices = @transform_12, window_bounds = array<i64: 1, 1, 128>}, {pipeline_mode = #tpu.pipeline_mode<synchronous>, transform_indices = @transform_13, window_bounds = array<i64: 1, 128>}, {pipeline_mode = #tpu.pipeline_mode<synchronous>, transform_indices = @transform_14, window_bounds = array<i64: 1, 128>}, {transform_indices = @transform_15, window_bounds = array<i64: 1, 72, 128>}]} {
    %c0_i32 = arith.constant 0 : i32
    %0 = arith.cmpi eq, %arg1, %c0_i32 : i32
    %1 = arith.extui %0 : i1 to i32
    %c0_i32_0 = arith.constant 0 : i32
    %2 = arith.cmpi ne, %1, %c0_i32_0 : i32
    scf.if %2 {
      %c0_85 = arith.constant 0 : index
      %c0_86 = arith.constant 0 : index
      %c0_87 = arith.constant 0 : index
      %207 = vector.load %arg2[%c0_85, %c0_86, %c0_87] : memref<1x72x128xf32, #tpu.memory_space<vmem>>, vector<1x72x128xf32>
      %c0_88 = arith.constant 0 : index
      %c0_89 = arith.constant 0 : index
      %c0_90 = arith.constant 0 : index
      %208 = vector.load %arg17[%c0_88, %c0_89, %c0_90] : memref<1x72x128xf32, #tpu.memory_space<vmem>>, vector<1x72x128xf32>
      tpu.vector_store %arg17[%c0_88, %c0_89, %c0_90], %207 {strides = array<i32>} : memref<1x72x128xf32, #tpu.memory_space<vmem>>, vector<1x72x128xf32>,
    } else {
    }
    %c0 = arith.constant 0 : index
    %c0_1 = arith.constant 0 : index
    %c0_2 = arith.constant 0 : index
    %3 = vector.load %arg17[%c0, %c0_1, %c0_2] : memref<1x72x128xf32, #tpu.memory_space<vmem>>, vector<1x72x128xf32>
    %4 = vector.shape_cast %3 : vector<1x72x128xf32> to vector<72x128xf32>
    %c0_3 = arith.constant 0 : index
    %c0_4 = arith.constant 0 : index
    %c0_5 = arith.constant 0 : index
    %5 = vector.load %arg3[%c0_3, %c0_4, %c0_5] : memref<1x1x128xf32, #tpu.memory_space<vmem>>, vector<1x1x128xf32>
    %6 = vector.shape_cast %5 : vector<1x1x128xf32> to vector<1x128xf32>
    %c0_6 = arith.constant 0 : index
    %c0_7 = arith.constant 0 : index
    %c0_8 = arith.constant 0 : index
    %7 = vector.load %arg4[%c0_6, %c0_7, %c0_8] : memref<1x1x128xf32, #tpu.memory_space<vmem>>, vector<1x1x128xf32>
    %8 = vector.shape_cast %7 : vector<1x1x128xf32> to vector<1x128xf32>
    %cst = arith.constant dense<0.000000e+00> : vector<72xf32>
    %9 = vector.multi_reduction <add>, %4, %cst [1] : vector<72x128xf32> to vector<72xf32>
    %10 = vector.shape_cast %9 : vector<72xf32> to vector<72x1xf32>
    %cst_9 = arith.constant 1.280000e+02 : f32
    %11 = vector.broadcast %cst_9 : f32 to vector<72x1xf32>
    %12 = arith.divf %10, %11 : vector<72x1xf32>
    %13 = vector.broadcast %12 : vector<72x1xf32> to vector<72x128xf32>
    %14 = arith.subf %4, %13 : vector<72x128xf32>
    %15 = arith.mulf %14, %14 : vector<72x128xf32>
    %cst_10 = arith.constant dense<0.000000e+00> : vector<72xf32>
    %16 = vector.multi_reduction <add>, %15, %cst_10 [1] : vector<72x128xf32> to vector<72xf32>
    %17 = vector.shape_cast %16 : vector<72xf32> to vector<72x1xf32>
    %cst_11 = arith.constant 1.280000e+02 : f32
    %18 = vector.broadcast %cst_11 : f32 to vector<72x1xf32>
    %19 = arith.divf %17, %18 : vector<72x1xf32>
    %cst_12 = arith.constant 9.99999993E-9 : f32
    %20 = vector.broadcast %cst_12 : f32 to vector<72x1xf32>
    %21 = arith.addf %19, %20 : vector<72x1xf32>
    %22 = math.rsqrt %21 : vector<72x1xf32>
    %23 = vector.broadcast %22 : vector<72x1xf32> to vector<72x128xf32>
    %24 = arith.mulf %14, %23 : vector<72x128xf32>
    %25 = vector.broadcast %6 : vector<1x128xf32> to vector<72x128xf32>
    %26 = arith.mulf %24, %25 : vector<72x128xf32>
    %27 = vector.broadcast %8 : vector<1x128xf32> to vector<72x128xf32>
    %28 = arith.addf %26, %27 : vector<72x128xf32>
    %29 = arith.truncf %28 : vector<72x128xf32> to vector<72x128xbf16>
    %c0_13 = arith.constant 0 : index
    %c0_14 = arith.constant 0 : index
    %c0_15 = arith.constant 0 : index
    %30 = vector.load %arg5[%c0_13, %c0_14, %c0_15] : memref<1x128x384xbf16, #tpu.memory_space<vmem>>, vector<1x128x384xbf16>
    %31 = vector.shape_cast %30 : vector<1x128x384xbf16> to vector<128x384xbf16>
    %cst_16 = arith.constant dense<0.000000e+00> : vector<72x384xf32>
    %32 = tpu.matmul %29, %31, %cst_16 {dimension_numbers = #tpu.dot_dimension_numbers<[1], [0], [0], [1], [0, 0, 1, 1], [], []>} : vector<72x128xbf16>, vector<128x384xbf16>, vector<72x384xf32> -> vector<72x384xf32>
    %c0_17 = arith.constant 0 : index
    %c0_18 = arith.constant 0 : index
    %c0_19 = arith.constant 0 : index
    %33 = vector.load %arg6[%c0_17, %c0_18, %c0_19] : memref<1x1x384xf32, #tpu.memory_space<vmem>>, vector<1x1x384xf32>
    %34 = vector.shape_cast %33 : vector<1x1x384xf32> to vector<1x384xf32>
    %35 = vector.broadcast %34 : vector<1x384xf32> to vector<72x384xf32>
    %36 = arith.addf %32, %35 : vector<72x384xf32>
    %37 = tpu.iota {dimensions = array<i32: 1>} : vector<1x72xi32>
    %c66_i32 = arith.constant 66 : i32
    %38 = vector.broadcast %c66_i32 : i32 to vector<1x72xi32>
    %39 = arith.cmpi slt, %37, %38 : vector<1x72xi32>
    %cst_20 = arith.constant 0.000000e+00 : f32
    %cst_21 = arith.constant -1.000000e+30 : f32
    %40 = vector.broadcast %cst_20 : f32 to vector<1x72xf32>
    %41 = vector.broadcast %cst_21 : f32 to vector<1x72xf32>
    %42 = arith.select %39, %40, %41 : vector<1x72xi1>, vector<1x72xf32>
    %c0_22 = arith.constant 0 : index
    %c0_23 = arith.constant 0 : index
    %c0_24 = arith.constant 0 : index
    %43 = vector.load %arg7[%c0_22, %c0_23, %c0_24] : memref<1x128x128xbf16, #tpu.memory_space<vmem>>, vector<1x128x128xbf16>
    %44 = vector.shape_cast %43 : vector<1x128x128xbf16> to vector<128x128xbf16>
    %cst_25 = arith.constant 0.000000e+00 : f32
    %45 = vector.broadcast %cst_25 : f32 to vector<72x128xf32>
    %46 = vector.extract_strided_slice %36 {offsets = [0, 0], sizes = [72, 32], strides = [1, 1]} : vector<72x384xf32> to vector<72x32xf32>
    %47 = vector.extract_strided_slice %36 {offsets = [0, 128], sizes = [72, 32], strides = [1, 1]} : vector<72x384xf32> to vector<72x32xf32>
    %48 = vector.extract_strided_slice %36 {offsets = [0, 256], sizes = [72, 32], strides = [1, 1]} : vector<72x384xf32> to vector<72x32xf32>
    %cst_26 = arith.constant dense<0.000000e+00> : vector<72x72xf32>
    %49 = tpu.matmul %46, %47, %cst_26 {dimension_numbers = #tpu.dot_dimension_numbers<[1], [1], [0], [0], [0, 0, 1, 0], [], []>} : vector<72x32xf32>, vector<72x32xf32>, vector<72x72xf32> -> vector<72x72xf32>
    %cst_27 = arith.constant 0.176776692 : f32
    %50 = vector.broadcast %cst_27 : f32 to vector<72x72xf32>
    %51 = arith.mulf %49, %50 : vector<72x72xf32>
    %52 = vector.broadcast %42 : vector<1x72xf32> to vector<72x72xf32>
    %53 = arith.addf %51, %52 : vector<72x72xf32>
    %cst_28 = arith.constant dense<0xFF800000> : vector<72xf32>
    %54 = vector.multi_reduction <maximumf>, %53, %cst_28 [1] : vector<72x72xf32> to vector<72xf32>
    %55 = vector.shape_cast %54 : vector<72xf32> to vector<72x1xf32>
    %56 = vector.broadcast %55 : vector<72x1xf32> to vector<72x72xf32>
    %57 = arith.subf %53, %56 : vector<72x72xf32>
    %58 = math.exp %57 : vector<72x72xf32>
    %cst_29 = arith.constant dense<0.000000e+00> : vector<72xf32>
    %59 = vector.multi_reduction <add>, %58, %cst_29 [1] : vector<72x72xf32> to vector<72xf32>
    %60 = vector.shape_cast %59 : vector<72xf32> to vector<72x1xf32>
    %61 = vector.broadcast %60 : vector<72x1xf32> to vector<72x72xf32>
    %62 = arith.divf %58, %61 : vector<72x72xf32>
    %63 = arith.truncf %62 : vector<72x72xf32> to vector<72x72xbf16>
    %64 = arith.truncf %48 : vector<72x32xf32> to vector<72x32xbf16>
    %cst_30 = arith.constant dense<0.000000e+00> : vector<72x32xf32>
    %65 = tpu.matmul %63, %64, %cst_30 {dimension_numbers = #tpu.dot_dimension_numbers<[1], [0], [0], [1], [0, 0, 1, 1], [], []>} : vector<72x72xbf16>, vector<72x32xbf16>, vector<72x32xf32> -> vector<72x32xf32>
    %66 = arith.truncf %65 : vector<72x32xf32> to vector<72x32xbf16>
    %67 = vector.extract_strided_slice %44 {offsets = [0, 0], sizes = [32, 128], strides = [1, 1]} : vector<128x128xbf16> to vector<32x128xbf16>
    %cst_31 = arith.constant dense<0.000000e+00> : vector<72x128xf32>
    %68 = tpu.matmul %66, %67, %cst_31 {dimension_numbers = #tpu.dot_dimension_numbers<[1], [0], [0], [1], [0, 0, 1, 1], [], []>} : vector<72x32xbf16>, vector<32x128xbf16>, vector<72x128xf32> -> vector<72x128xf32>
    %69 = arith.addf %45, %68 : vector<72x128xf32>
    %70 = vector.extract_strided_slice %36 {offsets = [0, 32], sizes = [72, 32], strides = [1, 1]} : vector<72x384xf32> to vector<72x32xf32>
    %71 = vector.extract_strided_slice %36 {offsets = [0, 160], sizes = [72, 32], strides = [1, 1]} : vector<72x384xf32> to vector<72x32xf32>
    %72 = vector.extract_strided_slice %36 {offsets = [0, 288], sizes = [72, 32], strides = [1, 1]} : vector<72x384xf32> to vector<72x32xf32>
    %cst_32 = arith.constant dense<0.000000e+00> : vector<72x72xf32>
    %73 = tpu.matmul %70, %71, %cst_32 {dimension_numbers = #tpu.dot_dimension_numbers<[1], [1], [0], [0], [0, 0, 1, 0], [], []>} : vector<72x32xf32>, vector<72x32xf32>, vector<72x72xf32> -> vector<72x72xf32>
    %cst_33 = arith.constant 0.176776692 : f32
    %74 = vector.broadcast %cst_33 : f32 to vector<72x72xf32>
    %75 = arith.mulf %73, %74 : vector<72x72xf32>
    %76 = vector.broadcast %42 : vector<1x72xf32> to vector<72x72xf32>
    %77 = arith.addf %75, %76 : vector<72x72xf32>
    %cst_34 = arith.constant dense<0xFF800000> : vector<72xf32>
    %78 = vector.multi_reduction <maximumf>, %77, %cst_34 [1] : vector<72x72xf32> to vector<72xf32>
    %79 = vector.shape_cast %78 : vector<72xf32> to vector<72x1xf32>
    %80 = vector.broadcast %79 : vector<72x1xf32> to vector<72x72xf32>
    %81 = arith.subf %77, %80 : vector<72x72xf32>
    %82 = math.exp %81 : vector<72x72xf32>
    %cst_35 = arith.constant dense<0.000000e+00> : vector<72xf32>
    %83 = vector.multi_reduction <add>, %82, %cst_35 [1] : vector<72x72xf32> to vector<72xf32>
    %84 = vector.shape_cast %83 : vector<72xf32> to vector<72x1xf32>
    %85 = vector.broadcast %84 : vector<72x1xf32> to vector<72x72xf32>
    %86 = arith.divf %82, %85 : vector<72x72xf32>
    %87 = arith.truncf %86 : vector<72x72xf32> to vector<72x72xbf16>
    %88 = arith.truncf %72 : vector<72x32xf32> to vector<72x32xbf16>
    %cst_36 = arith.constant dense<0.000000e+00> : vector<72x32xf32>
    %89 = tpu.matmul %87, %88, %cst_36 {dimension_numbers = #tpu.dot_dimension_numbers<[1], [0], [0], [1], [0, 0, 1, 1], [], []>} : vector<72x72xbf16>, vector<72x32xbf16>, vector<72x32xf32> -> vector<72x32xf32>
    %90 = arith.truncf %89 : vector<72x32xf32> to vector<72x32xbf16>
    %91 = vector.extract_strided_slice %44 {offsets = [32, 0], sizes = [32, 128], strides = [1, 1]} : vector<128x128xbf16> to vector<32x128xbf16>
    %cst_37 = arith.constant dense<0.000000e+00> : vector<72x128xf32>
    %92 = tpu.matmul %90, %91, %cst_37 {dimension_numbers = #tpu.dot_dimension_numbers<[1], [0], [0], [1], [0, 0, 1, 1], [], []>} : vector<72x32xbf16>, vector<32x128xbf16>, vector<72x128xf32> -> vector<72x128xf32>
    %93 = arith.addf %69, %92 : vector<72x128xf32>
    %94 = vector.extract_strided_slice %36 {offsets = [0, 64], sizes = [72, 32], strides = [1, 1]} : vector<72x384xf32> to vector<72x32xf32>
    %95 = vector.extract_strided_slice %36 {offsets = [0, 192], sizes = [72, 32], strides = [1, 1]} : vector<72x384xf32> to vector<72x32xf32>
    %96 = vector.extract_strided_slice %36 {offsets = [0, 320], sizes = [72, 32], strides = [1, 1]} : vector<72x384xf32> to vector<72x32xf32>
    %cst_38 = arith.constant dense<0.000000e+00> : vector<72x72xf32>
    %97 = tpu.matmul %94, %95, %cst_38 {dimension_numbers = #tpu.dot_dimension_numbers<[1], [1], [0], [0], [0, 0, 1, 0], [], []>} : vector<72x32xf32>, vector<72x32xf32>, vector<72x72xf32> -> vector<72x72xf32>
    %cst_39 = arith.constant 0.176776692 : f32
    %98 = vector.broadcast %cst_39 : f32 to vector<72x72xf32>
    %99 = arith.mulf %97, %98 : vector<72x72xf32>
    %100 = vector.broadcast %42 : vector<1x72xf32> to vector<72x72xf32>
    %101 = arith.addf %99, %100 : vector<72x72xf32>
    %cst_40 = arith.constant dense<0xFF800000> : vector<72xf32>
    %102 = vector.multi_reduction <maximumf>, %101, %cst_40 [1] : vector<72x72xf32> to vector<72xf32>
    %103 = vector.shape_cast %102 : vector<72xf32> to vector<72x1xf32>
    %104 = vector.broadcast %103 : vector<72x1xf32> to vector<72x72xf32>
    %105 = arith.subf %101, %104 : vector<72x72xf32>
    %106 = math.exp %105 : vector<72x72xf32>
    %cst_41 = arith.constant dense<0.000000e+00> : vector<72xf32>
    %107 = vector.multi_reduction <add>, %106, %cst_41 [1] : vector<72x72xf32> to vector<72xf32>
    %108 = vector.shape_cast %107 : vector<72xf32> to vector<72x1xf32>
    %109 = vector.broadcast %108 : vector<72x1xf32> to vector<72x72xf32>
    %110 = arith.divf %106, %109 : vector<72x72xf32>
    %111 = arith.truncf %110 : vector<72x72xf32> to vector<72x72xbf16>
    %112 = arith.truncf %96 : vector<72x32xf32> to vector<72x32xbf16>
    %cst_42 = arith.constant dense<0.000000e+00> : vector<72x32xf32>
    %113 = tpu.matmul %111, %112, %cst_42 {dimension_numbers = #tpu.dot_dimension_numbers<[1], [0], [0], [1], [0, 0, 1, 1], [], []>} : vector<72x72xbf16>, vector<72x32xbf16>, vector<72x32xf32> -> vector<72x32xf32>
    %114 = arith.truncf %113 : vector<72x32xf32> to vector<72x32xbf16>
    %115 = vector.extract_strided_slice %44 {offsets = [64, 0], sizes = [32, 128], strides = [1, 1]} : vector<128x128xbf16> to vector<32x128xbf16>
    %cst_43 = arith.constant dense<0.000000e+00> : vector<72x128xf32>
    %116 = tpu.matmul %114, %115, %cst_43 {dimension_numbers = #tpu.dot_dimension_numbers<[1], [0], [0], [1], [0, 0, 1, 1], [], []>} : vector<72x32xbf16>, vector<32x128xbf16>, vector<72x128xf32> -> vector<72x128xf32>
    %117 = arith.addf %93, %116 : vector<72x128xf32>
    %118 = vector.extract_strided_slice %36 {offsets = [0, 96], sizes = [72, 32], strides = [1, 1]} : vector<72x384xf32> to vector<72x32xf32>
    %119 = vector.extract_strided_slice %36 {offsets = [0, 224], sizes = [72, 32], strides = [1, 1]} : vector<72x384xf32> to vector<72x32xf32>
    %120 = vector.extract_strided_slice %36 {offsets = [0, 352], sizes = [72, 32], strides = [1, 1]} : vector<72x384xf32> to vector<72x32xf32>
    %cst_44 = arith.constant dense<0.000000e+00> : vector<72x72xf32>
    %121 = tpu.matmul %118, %119, %cst_44 {dimension_numbers = #tpu.dot_dimension_numbers<[1], [1], [0], [0], [0, 0, 1, 0], [], []>} : vector<72x32xf32>, vector<72x32xf32>, vector<72x72xf32> -> vector<72x72xf32>
    %cst_45 = arith.constant 0.176776692 : f32
    %122 = vector.broadcast %cst_45 : f32 to vector<72x72xf32>
    %123 = arith.mulf %121, %122 : vector<72x72xf32>
    %124 = vector.broadcast %42 : vector<1x72xf32> to vector<72x72xf32>
    %125 = arith.addf %123, %124 : vector<72x72xf32>
    %cst_46 = arith.constant dense<0xFF800000> : vector<72xf32>
    %126 = vector.multi_reduction <maximumf>, %125, %cst_46 [1] : vector<72x72xf32> to vector<72xf32>
    %127 = vector.shape_cast %126 : vector<72xf32> to vector<72x1xf32>
    %128 = vector.broadcast %127 : vector<72x1xf32> to vector<72x72xf32>
    %129 = arith.subf %125, %128 : vector<72x72xf32>
    %130 = math.exp %129 : vector<72x72xf32>
    %cst_47 = arith.constant dense<0.000000e+00> : vector<72xf32>
    %131 = vector.multi_reduction <add>, %130, %cst_47 [1] : vector<72x72xf32> to vector<72xf32>
    %132 = vector.shape_cast %131 : vector<72xf32> to vector<72x1xf32>
    %133 = vector.broadcast %132 : vector<72x1xf32> to vector<72x72xf32>
    %134 = arith.divf %130, %133 : vector<72x72xf32>
    %135 = arith.truncf %134 : vector<72x72xf32> to vector<72x72xbf16>
    %136 = arith.truncf %120 : vector<72x32xf32> to vector<72x32xbf16>
    %cst_48 = arith.constant dense<0.000000e+00> : vector<72x32xf32>
    %137 = tpu.matmul %135, %136, %cst_48 {dimension_numbers = #tpu.dot_dimension_numbers<[1], [0], [0], [1], [0, 0, 1, 1], [], []>} : vector<72x72xbf16>, vector<72x32xbf16>, vector<72x32xf32> -> vector<72x32xf32>
    %138 = arith.truncf %137 : vector<72x32xf32> to vector<72x32xbf16>
    %139 = vector.extract_strided_slice %44 {offsets = [96, 0], sizes = [32, 128], strides = [1, 1]} : vector<128x128xbf16> to vector<32x128xbf16>
    %cst_49 = arith.constant dense<0.000000e+00> : vector<72x128xf32>
    %140 = tpu.matmul %138, %139, %cst_49 {dimension_numbers = #tpu.dot_dimension_numbers<[1], [0], [0], [1], [0, 0, 1, 1], [], []>} : vector<72x32xbf16>, vector<32x128xbf16>, vector<72x128xf32> -> vector<72x128xf32>
    %141 = arith.addf %117, %140 : vector<72x128xf32>
    %142 = arith.addf %4, %141 : vector<72x128xf32>
    %c0_50 = arith.constant 0 : index
    %c0_51 = arith.constant 0 : index
    %c0_52 = arith.constant 0 : index
    %143 = vector.load %arg8[%c0_50, %c0_51, %c0_52] : memref<1x1x128xf32, #tpu.memory_space<vmem>>, vector<1x1x128xf32>
    %144 = vector.shape_cast %143 : vector<1x1x128xf32> to vector<1x128xf32>
    %145 = vector.broadcast %144 : vector<1x128xf32> to vector<72x128xf32>
    %146 = arith.addf %142, %145 : vector<72x128xf32>
    %c0_53 = arith.constant 0 : index
    %c0_54 = arith.constant 0 : index
    %c0_55 = arith.constant 0 : index
    %147 = vector.load %arg9[%c0_53, %c0_54, %c0_55] : memref<1x1x128xf32, #tpu.memory_space<vmem>>, vector<1x1x128xf32>
    %148 = vector.shape_cast %147 : vector<1x1x128xf32> to vector<1x128xf32>
    %c0_56 = arith.constant 0 : index
    %c0_57 = arith.constant 0 : index
    %c0_58 = arith.constant 0 : index
    %149 = vector.load %arg10[%c0_56, %c0_57, %c0_58] : memref<1x1x128xf32, #tpu.memory_space<vmem>>, vector<1x1x128xf32>
    %150 = vector.shape_cast %149 : vector<1x1x128xf32> to vector<1x128xf32>
    %cst_59 = arith.constant dense<0.000000e+00> : vector<72xf32>
    %151 = vector.multi_reduction <add>, %146, %cst_59 [1] : vector<72x128xf32> to vector<72xf32>
    %152 = vector.shape_cast %151 : vector<72xf32> to vector<72x1xf32>
    %cst_60 = arith.constant 1.280000e+02 : f32
    %153 = vector.broadcast %cst_60 : f32 to vector<72x1xf32>
    %154 = arith.divf %152, %153 : vector<72x1xf32>
    %155 = vector.broadcast %154 : vector<72x1xf32> to vector<72x128xf32>
    %156 = arith.subf %146, %155 : vector<72x128xf32>
    %157 = arith.mulf %156, %156 : vector<72x128xf32>
    %cst_61 = arith.constant dense<0.000000e+00> : vector<72xf32>
    %158 = vector.multi_reduction <add>, %157, %cst_61 [1] : vector<72x128xf32> to vector<72xf32>
    %159 = vector.shape_cast %158 : vector<72xf32> to vector<72x1xf32>
    %cst_62 = arith.constant 1.280000e+02 : f32
    %160 = vector.broadcast %cst_62 : f32 to vector<72x1xf32>
    %161 = arith.divf %159, %160 : vector<72x1xf32>
    %cst_63 = arith.constant 9.99999993E-9 : f32
    %162 = vector.broadcast %cst_63 : f32 to vector<72x1xf32>
    %163 = arith.addf %161, %162 : vector<72x1xf32>
    %164 = math.rsqrt %163 : vector<72x1xf32>
    %165 = vector.broadcast %164 : vector<72x1xf32> to vector<72x128xf32>
    %166 = arith.mulf %156, %165 : vector<72x128xf32>
    %167 = vector.broadcast %148 : vector<1x128xf32> to vector<72x128xf32>
    %168 = arith.mulf %166, %167 : vector<72x128xf32>
    %169 = vector.broadcast %150 : vector<1x128xf32> to vector<72x128xf32>
    %170 = arith.addf %168, %169 : vector<72x128xf32>
    %171 = arith.truncf %170 : vector<72x128xf32> to vector<72x128xbf16>
    %c0_64 = arith.constant 0 : index
    %c0_65 = arith.constant 0 : index
    %c0_66 = arith.constant 0 : index
    %172 = vector.load %arg11[%c0_64, %c0_65, %c0_66] : memref<1x128x512xbf16, #tpu.memory_space<vmem>>, vector<1x128x512xbf16>
    %173 = vector.shape_cast %172 : vector<1x128x512xbf16> to vector<128x512xbf16>
    %cst_67 = arith.constant dense<0.000000e+00> : vector<72x512xf32>
    %174 = tpu.matmul %171, %173, %cst_67 {dimension_numbers = #tpu.dot_dimension_numbers<[1], [0], [0], [1], [0, 0, 1, 1], [], []>} : vector<72x128xbf16>, vector<128x512xbf16>, vector<72x512xf32> -> vector<72x512xf32>
    %c0_68 = arith.constant 0 : index
    %c0_69 = arith.constant 0 : index
    %c0_70 = arith.constant 0 : index
    %175 = vector.load %arg12[%c0_68, %c0_69, %c0_70] : memref<1x1x512xf32, #tpu.memory_space<vmem>>, vector<1x1x512xf32>
    %176 = vector.shape_cast %175 : vector<1x1x512xf32> to vector<1x512xf32>
    %177 = vector.broadcast %176 : vector<1x512xf32> to vector<72x512xf32>
    %178 = arith.addf %174, %177 : vector<72x512xf32>
    %179 = arith.mulf %178, %178 : vector<72x512xf32>
    %180 = arith.mulf %178, %179 : vector<72x512xf32>
    %cst_71 = arith.constant 4.471500e-02 : f32
    %181 = vector.broadcast %cst_71 : f32 to vector<72x512xf32>
    %182 = arith.mulf %181, %180 : vector<72x512xf32>
    %183 = arith.addf %178, %182 : vector<72x512xf32>
    %cst_72 = arith.constant 0.797884583 : f32
    %184 = vector.broadcast %cst_72 : f32 to vector<72x512xf32>
    %185 = arith.mulf %184, %183 : vector<72x512xf32>
    %186 = math.tanh %185 : vector<72x512xf32>
    %cst_73 = arith.constant 1.000000e+00 : f32
    %187 = vector.broadcast %cst_73 : f32 to vector<72x512xf32>
    %188 = arith.addf %187, %186 : vector<72x512xf32>
    %cst_74 = arith.constant 5.000000e-01 : f32
    %189 = vector.broadcast %cst_74 : f32 to vector<72x512xf32>
    %190 = arith.mulf %189, %188 : vector<72x512xf32>
    %191 = arith.mulf %178, %190 : vector<72x512xf32>
    %192 = arith.truncf %191 : vector<72x512xf32> to vector<72x512xbf16>
    %c0_75 = arith.constant 0 : index
    %c0_76 = arith.constant 0 : index
    %c0_77 = arith.constant 0 : index
    %193 = vector.load %arg13[%c0_75, %c0_76, %c0_77] : memref<1x512x128xbf16, #tpu.memory_space<vmem>>, vector<1x512x128xbf16>
    %194 = vector.shape_cast %193 : vector<1x512x128xbf16> to vector<512x128xbf16>
    %cst_78 = arith.constant dense<0.000000e+00> : vector<72x128xf32>
    %195 = tpu.matmul %192, %194, %cst_78 {dimension_numbers = #tpu.dot_dimension_numbers<[1], [0], [0], [1], [0, 0, 1, 1], [], []>} : vector<72x512xbf16>, vector<512x128xbf16>, vector<72x128xf32> -> vector<72x128xf32>
    %196 = arith.addf %146, %195 : vector<72x128xf32>
    %c0_79 = arith.constant 0 : index
    %c0_80 = arith.constant 0 : index
    %c0_81 = arith.constant 0 : index
    %197 = vector.load %arg14[%c0_79, %c0_80, %c0_81] : memref<1x1x128xf32, #tpu.memory_space<vmem>>, vector<1x1x128xf32>
    %198 = vector.shape_cast %197 : vector<1x1x128xf32> to vector<1x128xf32>
    %199 = vector.broadcast %198 : vector<1x128xf32> to vector<72x128xf32>
    %200 = arith.addf %196, %199 : vector<72x128xf32>
    %c1_i32 = arith.constant 1 : i32
    %201 = arith.cmpi slt, %arg1, %c1_i32 : i32
    %202 = arith.extui %201 : i1 to i32
    %c0_i32_82 = arith.constant 0 : i32
    %203 = arith.cmpi ne, %202, %c0_i32_82 : i32
    scf.if %203 {
      %c0_85 = arith.constant 0 : index
      %c0_86 = arith.constant 0 : index
      %c0_87 = arith.constant 0 : index
      %207 = vector.load %arg17[%c0_85, %c0_86, %c0_87] : memref<1x72x128xf32, #tpu.memory_space<vmem>>, vector<1x72x128xf32>
      %208 = vector.shape_cast %207 : vector<1x72x128xf32> to vector<72x128xf32>
      %209 = vector.shape_cast %200 : vector<72x128xf32> to vector<1x72x128xf32>
      tpu.vector_store %arg17[%c0_85, %c0_86, %c0_87], %209 {strides = array<i32>} : memref<1x72x128xf32, #tpu.memory_space<vmem>>, vector<1x72x128xf32>,
    } else {
    }
    %c1_i32_83 = arith.constant 1 : i32
    %204 = arith.cmpi eq, %arg1, %c1_i32_83 : i32
    %205 = arith.extui %204 : i1 to i32
    %c0_i32_84 = arith.constant 0 : i32
    %206 = arith.cmpi ne, %205, %c0_i32_84 : i32
    scf.if %206 {
      %c0_85 = arith.constant 0 : index
      %c0_86 = arith.constant 0 : index
      %207 = vector.load %arg15[%c0_85, %c0_86] : memref<1x128xf32, #tpu.memory_space<vmem>>, vector<1x128xf32>
      %c0_87 = arith.constant 0 : index
      %c0_88 = arith.constant 0 : index
      %208 = vector.load %arg16[%c0_87, %c0_88] : memref<1x128xf32, #tpu.memory_space<vmem>>, vector<1x128xf32>
      %cst_89 = arith.constant dense<0.000000e+00> : vector<72xf32>
      %209 = vector.multi_reduction <add>, %200, %cst_89 [1] : vector<72x128xf32> to vector<72xf32>
      %210 = vector.shape_cast %209 : vector<72xf32> to vector<72x1xf32>
      %cst_90 = arith.constant 1.280000e+02 : f32
      %211 = vector.broadcast %cst_90 : f32 to vector<72x1xf32>
      %212 = arith.divf %210, %211 : vector<72x1xf32>
      %213 = vector.broadcast %212 : vector<72x1xf32> to vector<72x128xf32>
      %214 = arith.subf %200, %213 : vector<72x128xf32>
      %215 = arith.mulf %214, %214 : vector<72x128xf32>
      %cst_91 = arith.constant dense<0.000000e+00> : vector<72xf32>
      %216 = vector.multi_reduction <add>, %215, %cst_91 [1] : vector<72x128xf32> to vector<72xf32>
      %217 = vector.shape_cast %216 : vector<72xf32> to vector<72x1xf32>
      %cst_92 = arith.constant 1.280000e+02 : f32
      %218 = vector.broadcast %cst_92 : f32 to vector<72x1xf32>
      %219 = arith.divf %217, %218 : vector<72x1xf32>
      %cst_93 = arith.constant 9.99999993E-9 : f32
      %220 = vector.broadcast %cst_93 : f32 to vector<72x1xf32>
      %221 = arith.addf %219, %220 : vector<72x1xf32>
      %222 = math.rsqrt %221 : vector<72x1xf32>
      %223 = vector.broadcast %222 : vector<72x1xf32> to vector<72x128xf32>
      %224 = arith.mulf %214, %223 : vector<72x128xf32>
      %225 = vector.broadcast %207 : vector<1x128xf32> to vector<72x128xf32>
      %226 = arith.mulf %224, %225 : vector<72x128xf32>
      %227 = vector.broadcast %208 : vector<1x128xf32> to vector<72x128xf32>
      %228 = arith.addf %226, %227 : vector<72x128xf32>
      %c0_94 = arith.constant 0 : index
      %c0_95 = arith.constant 0 : index
      %c0_96 = arith.constant 0 : index
      %229 = vector.load %arg17[%c0_94, %c0_95, %c0_96] : memref<1x72x128xf32, #tpu.memory_space<vmem>>, vector<1x72x128xf32>
      %230 = vector.shape_cast %229 : vector<1x72x128xf32> to vector<72x128xf32>
      %231 = vector.shape_cast %228 : vector<72x128xf32> to vector<1x72x128xf32>
      tpu.vector_store %arg17[%c0_94, %c0_95, %c0_96], %231 {strides = array<i32>} : memref<1x72x128xf32, #tpu.memory_space<vmem>>, vector<1x72x128xf32>,
    } else {
    }
    return
  }
  func.func @transform_0(%arg0: i32, %arg1: i32) -> (i32, i32, i32) {
    %c0_i32 = arith.constant 0 : i32
    %c0_i32_0 = arith.constant 0 : i32
    %c0_i32_1 = arith.constant 0 : i32
    return %arg0, %c0_i32, %c0_i32_0 : i32, i32, i32
  }
  func.func @transform_1(%arg0: i32, %arg1: i32) -> (i32, i32, i32) {
    %c0_i32 = arith.constant 0 : i32
    %c0_i32_0 = arith.constant 0 : i32
    %c0_i32_1 = arith.constant 0 : i32
    return %arg1, %c0_i32, %c0_i32_0 : i32, i32, i32
  }
  func.func @transform_2(%arg0: i32, %arg1: i32) -> (i32, i32, i32) {
    %c0_i32 = arith.constant 0 : i32
    %c0_i32_0 = arith.constant 0 : i32
    %c0_i32_1 = arith.constant 0 : i32
    return %arg1, %c0_i32, %c0_i32_0 : i32, i32, i32
  }
  func.func @transform_3(%arg0: i32, %arg1: i32) -> (i32, i32, i32) {
    %c0_i32 = arith.constant 0 : i32
    %c0_i32_0 = arith.constant 0 : i32
    %c0_i32_1 = arith.constant 0 : i32
    return %arg1, %c0_i32, %c0_i32_0 : i32, i32, i32
  }
  func.func @transform_4(%arg0: i32, %arg1: i32) -> (i32, i32, i32) {
    %c0_i32 = arith.constant 0 : i32
    %c0_i32_0 = arith.constant 0 : i32
    %c0_i32_1 = arith.constant 0 : i32
    return %arg1, %c0_i32, %c0_i32_0 : i32, i32, i32
  }
  func.func @transform_5(%arg0: i32, %arg1: i32) -> (i32, i32, i32) {
    %c0_i32 = arith.constant 0 : i32
    %c0_i32_0 = arith.constant 0 : i32
    %c0_i32_1 = arith.constant 0 : i32
    return %arg1, %c0_i32, %c0_i32_0 : i32, i32, i32
  }
  func.func @transform_6(%arg0: i32, %arg1: i32) -> (i32, i32, i32) {
    %c0_i32 = arith.constant 0 : i32
    %c0_i32_0 = arith.constant 0 : i32
    %c0_i32_1 = arith.constant 0 : i32
    return %arg1, %c0_i32, %c0_i32_0 : i32, i32, i32
  }
  func.func @transform_7(%arg0: i32, %arg1: i32) -> (i32, i32, i32) {
    %c0_i32 = arith.constant 0 : i32
    %c0_i32_0 = arith.constant 0 : i32
    %c0_i32_1 = arith.constant 0 : i32
    return %arg1, %c0_i32, %c0_i32_0 : i32, i32, i32
  }
  func.func @transform_8(%arg0: i32, %arg1: i32) -> (i32, i32, i32) {
    %c0_i32 = arith.constant 0 : i32
    %c0_i32_0 = arith.constant 0 : i32
    %c0_i32_1 = arith.constant 0 : i32
    return %arg1, %c0_i32, %c0_i32_0 : i32, i32, i32
  }
  func.func @transform_9(%arg0: i32, %arg1: i32) -> (i32, i32, i32) {
    %c0_i32 = arith.constant 0 : i32
    %c0_i32_0 = arith.constant 0 : i32
    %c0_i32_1 = arith.constant 0 : i32
    return %arg1, %c0_i32, %c0_i32_0 : i32, i32, i32
  }
  func.func @transform_10(%arg0: i32, %arg1: i32) -> (i32, i32, i32) {
    %c0_i32 = arith.constant 0 : i32
    %c0_i32_0 = arith.constant 0 : i32
    %c0_i32_1 = arith.constant 0 : i32
    return %arg1, %c0_i32, %c0_i32_0 : i32, i32, i32
  }
  func.func @transform_11(%arg0: i32, %arg1: i32) -> (i32, i32, i32) {
    %c0_i32 = arith.constant 0 : i32
    %c0_i32_0 = arith.constant 0 : i32
    %c0_i32_1 = arith.constant 0 : i32
    return %arg1, %c0_i32, %c0_i32_0 : i32, i32, i32
  }
  func.func @transform_12(%arg0: i32, %arg1: i32) -> (i32, i32, i32) {
    %c0_i32 = arith.constant 0 : i32
    %c0_i32_0 = arith.constant 0 : i32
    %c0_i32_1 = arith.constant 0 : i32
    return %arg1, %c0_i32, %c0_i32_0 : i32, i32, i32
  }
  func.func @transform_13(%arg0: i32, %arg1: i32) -> (i32, i32) {
    %c0_i32 = arith.constant 0 : i32
    %c0_i32_0 = arith.constant 0 : i32
    %c0_i32_1 = arith.constant 0 : i32
    return %c0_i32, %c0_i32_0 : i32, i32
  }
  func.func @transform_14(%arg0: i32, %arg1: i32) -> (i32, i32) {
    %c0_i32 = arith.constant 0 : i32
    %c0_i32_0 = arith.constant 0 : i32
    %c0_i32_1 = arith.constant 0 : i32
    return %c0_i32, %c0_i32_0 : i32, i32
  }
  func.func @transform_15(%arg0: i32, %arg1: i32) -> (i32, i32, i32) {
    %c0_i32 = arith.constant 0 : i32
    %c0_i32_0 = arith.constant 0 : i32
    %c0_i32_1 = arith.constant 0 : i32
    return %arg0, %c0_i32, %c0_i32_0 : i32, i32, i32
  }
}

module attributes {stable_mosaic.version = 11 : i64} {
  func.func @_conv3x3_kernel(%arg0: i32, %arg1: memref<1x10x10x128xf32, #tpu.memory_space<vmem>>, %arg2: memref<9x128x12xbf16, #tpu.memory_space<vmem>>, %arg3: memref<1x8x8x12xf32, #tpu.memory_space<vmem>>) attributes {dimension_semantics = [#tpu.dimension_semantics<parallel>], iteration_bounds = array<i64: 2>, scalar_prefetch = 0 : i64, scratch_operands = 0 : i64, tpu.core_type = #tpu.core_type<tc>, window_params = [{transform_indices = @transform_0, window_bounds = array<i64: 1, 10, 10, 128>}, {pipeline_mode = #tpu.pipeline_mode<synchronous>, transform_indices = @transform_1, window_bounds = array<i64: 9, 128, 12>}, {transform_indices = @transform_2, window_bounds = array<i64: 1, 8, 8, 12>}]} {
    %c0 = arith.constant 0 : index
    %c0_0 = arith.constant 0 : index
    %c0_1 = arith.constant 0 : index
    %c0_2 = arith.constant 0 : index
    %0 = vector.load %arg1[%c0, %c0_0, %c0_1, %c0_2] : memref<1x10x10x128xf32, #tpu.memory_space<vmem>>, vector<1x10x10x128xf32>
    %1 = vector.shape_cast %0 : vector<1x10x10x128xf32> to vector<10x10x128xf32>
    %cst = arith.constant 0.000000e+00 : f32
    %2 = vector.broadcast %cst : f32 to vector<64x12xf32>
    %3 = vector.extract_strided_slice %1 {offsets = [0, 0, 0], sizes = [8, 8, 128], strides = [1, 1, 1]} : vector<10x10x128xf32> to vector<8x8x128xf32>
    %4 = vector.shape_cast %3 : vector<8x8x128xf32> to vector<64x128xf32>
    %5 = arith.truncf %4 : vector<64x128xf32> to vector<64x128xbf16>
    %c0_3 = arith.constant 0 : index
    %c0_4 = arith.constant 0 : index
    %c0_5 = arith.constant 0 : index
    %6 = vector.load %arg2[%c0_3, %c0_4, %c0_5] : memref<9x128x12xbf16, #tpu.memory_space<vmem>>, vector<1x128x12xbf16>
    %7 = vector.shape_cast %6 : vector<1x128x12xbf16> to vector<128x12xbf16>
    %cst_6 = arith.constant dense<0.000000e+00> : vector<64x12xf32>
    %8 = tpu.matmul %5, %7, %cst_6 {dimension_numbers = #tpu.dot_dimension_numbers<[1], [0], [0], [1], [0, 0, 1, 1], [], []>} : vector<64x128xbf16>, vector<128x12xbf16>, vector<64x12xf32> -> vector<64x12xf32>
    %9 = arith.addf %2, %8 : vector<64x12xf32>
    %10 = vector.extract_strided_slice %1 {offsets = [0, 1, 0], sizes = [8, 8, 128], strides = [1, 1, 1]} : vector<10x10x128xf32> to vector<8x8x128xf32>
    %11 = vector.shape_cast %10 : vector<8x8x128xf32> to vector<64x128xf32>
    %12 = arith.truncf %11 : vector<64x128xf32> to vector<64x128xbf16>
    %c1 = arith.constant 1 : index
    %c0_7 = arith.constant 0 : index
    %c0_8 = arith.constant 0 : index
    %13 = vector.load %arg2[%c1, %c0_7, %c0_8] : memref<9x128x12xbf16, #tpu.memory_space<vmem>>, vector<1x128x12xbf16>
    %14 = vector.shape_cast %13 : vector<1x128x12xbf16> to vector<128x12xbf16>
    %cst_9 = arith.constant dense<0.000000e+00> : vector<64x12xf32>
    %15 = tpu.matmul %12, %14, %cst_9 {dimension_numbers = #tpu.dot_dimension_numbers<[1], [0], [0], [1], [0, 0, 1, 1], [], []>} : vector<64x128xbf16>, vector<128x12xbf16>, vector<64x12xf32> -> vector<64x12xf32>
    %16 = arith.addf %9, %15 : vector<64x12xf32>
    %17 = vector.extract_strided_slice %1 {offsets = [0, 2, 0], sizes = [8, 8, 128], strides = [1, 1, 1]} : vector<10x10x128xf32> to vector<8x8x128xf32>
    %18 = vector.shape_cast %17 : vector<8x8x128xf32> to vector<64x128xf32>
    %19 = arith.truncf %18 : vector<64x128xf32> to vector<64x128xbf16>
    %c2 = arith.constant 2 : index
    %c0_10 = arith.constant 0 : index
    %c0_11 = arith.constant 0 : index
    %20 = vector.load %arg2[%c2, %c0_10, %c0_11] : memref<9x128x12xbf16, #tpu.memory_space<vmem>>, vector<1x128x12xbf16>
    %21 = vector.shape_cast %20 : vector<1x128x12xbf16> to vector<128x12xbf16>
    %cst_12 = arith.constant dense<0.000000e+00> : vector<64x12xf32>
    %22 = tpu.matmul %19, %21, %cst_12 {dimension_numbers = #tpu.dot_dimension_numbers<[1], [0], [0], [1], [0, 0, 1, 1], [], []>} : vector<64x128xbf16>, vector<128x12xbf16>, vector<64x12xf32> -> vector<64x12xf32>
    %23 = arith.addf %16, %22 : vector<64x12xf32>
    %24 = vector.extract_strided_slice %1 {offsets = [1, 0, 0], sizes = [8, 8, 128], strides = [1, 1, 1]} : vector<10x10x128xf32> to vector<8x8x128xf32>
    %25 = vector.shape_cast %24 : vector<8x8x128xf32> to vector<64x128xf32>
    %26 = arith.truncf %25 : vector<64x128xf32> to vector<64x128xbf16>
    %c3 = arith.constant 3 : index
    %c0_13 = arith.constant 0 : index
    %c0_14 = arith.constant 0 : index
    %27 = vector.load %arg2[%c3, %c0_13, %c0_14] : memref<9x128x12xbf16, #tpu.memory_space<vmem>>, vector<1x128x12xbf16>
    %28 = vector.shape_cast %27 : vector<1x128x12xbf16> to vector<128x12xbf16>
    %cst_15 = arith.constant dense<0.000000e+00> : vector<64x12xf32>
    %29 = tpu.matmul %26, %28, %cst_15 {dimension_numbers = #tpu.dot_dimension_numbers<[1], [0], [0], [1], [0, 0, 1, 1], [], []>} : vector<64x128xbf16>, vector<128x12xbf16>, vector<64x12xf32> -> vector<64x12xf32>
    %30 = arith.addf %23, %29 : vector<64x12xf32>
    %31 = vector.extract_strided_slice %1 {offsets = [1, 1, 0], sizes = [8, 8, 128], strides = [1, 1, 1]} : vector<10x10x128xf32> to vector<8x8x128xf32>
    %32 = vector.shape_cast %31 : vector<8x8x128xf32> to vector<64x128xf32>
    %33 = arith.truncf %32 : vector<64x128xf32> to vector<64x128xbf16>
    %c4 = arith.constant 4 : index
    %c0_16 = arith.constant 0 : index
    %c0_17 = arith.constant 0 : index
    %34 = vector.load %arg2[%c4, %c0_16, %c0_17] : memref<9x128x12xbf16, #tpu.memory_space<vmem>>, vector<1x128x12xbf16>
    %35 = vector.shape_cast %34 : vector<1x128x12xbf16> to vector<128x12xbf16>
    %cst_18 = arith.constant dense<0.000000e+00> : vector<64x12xf32>
    %36 = tpu.matmul %33, %35, %cst_18 {dimension_numbers = #tpu.dot_dimension_numbers<[1], [0], [0], [1], [0, 0, 1, 1], [], []>} : vector<64x128xbf16>, vector<128x12xbf16>, vector<64x12xf32> -> vector<64x12xf32>
    %37 = arith.addf %30, %36 : vector<64x12xf32>
    %38 = vector.extract_strided_slice %1 {offsets = [1, 2, 0], sizes = [8, 8, 128], strides = [1, 1, 1]} : vector<10x10x128xf32> to vector<8x8x128xf32>
    %39 = vector.shape_cast %38 : vector<8x8x128xf32> to vector<64x128xf32>
    %40 = arith.truncf %39 : vector<64x128xf32> to vector<64x128xbf16>
    %c5 = arith.constant 5 : index
    %c0_19 = arith.constant 0 : index
    %c0_20 = arith.constant 0 : index
    %41 = vector.load %arg2[%c5, %c0_19, %c0_20] : memref<9x128x12xbf16, #tpu.memory_space<vmem>>, vector<1x128x12xbf16>
    %42 = vector.shape_cast %41 : vector<1x128x12xbf16> to vector<128x12xbf16>
    %cst_21 = arith.constant dense<0.000000e+00> : vector<64x12xf32>
    %43 = tpu.matmul %40, %42, %cst_21 {dimension_numbers = #tpu.dot_dimension_numbers<[1], [0], [0], [1], [0, 0, 1, 1], [], []>} : vector<64x128xbf16>, vector<128x12xbf16>, vector<64x12xf32> -> vector<64x12xf32>
    %44 = arith.addf %37, %43 : vector<64x12xf32>
    %45 = vector.extract_strided_slice %1 {offsets = [2, 0, 0], sizes = [8, 8, 128], strides = [1, 1, 1]} : vector<10x10x128xf32> to vector<8x8x128xf32>
    %46 = vector.shape_cast %45 : vector<8x8x128xf32> to vector<64x128xf32>
    %47 = arith.truncf %46 : vector<64x128xf32> to vector<64x128xbf16>
    %c6 = arith.constant 6 : index
    %c0_22 = arith.constant 0 : index
    %c0_23 = arith.constant 0 : index
    %48 = vector.load %arg2[%c6, %c0_22, %c0_23] : memref<9x128x12xbf16, #tpu.memory_space<vmem>>, vector<1x128x12xbf16>
    %49 = vector.shape_cast %48 : vector<1x128x12xbf16> to vector<128x12xbf16>
    %cst_24 = arith.constant dense<0.000000e+00> : vector<64x12xf32>
    %50 = tpu.matmul %47, %49, %cst_24 {dimension_numbers = #tpu.dot_dimension_numbers<[1], [0], [0], [1], [0, 0, 1, 1], [], []>} : vector<64x128xbf16>, vector<128x12xbf16>, vector<64x12xf32> -> vector<64x12xf32>
    %51 = arith.addf %44, %50 : vector<64x12xf32>
    %52 = vector.extract_strided_slice %1 {offsets = [2, 1, 0], sizes = [8, 8, 128], strides = [1, 1, 1]} : vector<10x10x128xf32> to vector<8x8x128xf32>
    %53 = vector.shape_cast %52 : vector<8x8x128xf32> to vector<64x128xf32>
    %54 = arith.truncf %53 : vector<64x128xf32> to vector<64x128xbf16>
    %c7 = arith.constant 7 : index
    %c0_25 = arith.constant 0 : index
    %c0_26 = arith.constant 0 : index
    %55 = vector.load %arg2[%c7, %c0_25, %c0_26] : memref<9x128x12xbf16, #tpu.memory_space<vmem>>, vector<1x128x12xbf16>
    %56 = vector.shape_cast %55 : vector<1x128x12xbf16> to vector<128x12xbf16>
    %cst_27 = arith.constant dense<0.000000e+00> : vector<64x12xf32>
    %57 = tpu.matmul %54, %56, %cst_27 {dimension_numbers = #tpu.dot_dimension_numbers<[1], [0], [0], [1], [0, 0, 1, 1], [], []>} : vector<64x128xbf16>, vector<128x12xbf16>, vector<64x12xf32> -> vector<64x12xf32>
    %58 = arith.addf %51, %57 : vector<64x12xf32>
    %59 = vector.extract_strided_slice %1 {offsets = [2, 2, 0], sizes = [8, 8, 128], strides = [1, 1, 1]} : vector<10x10x128xf32> to vector<8x8x128xf32>
    %60 = vector.shape_cast %59 : vector<8x8x128xf32> to vector<64x128xf32>
    %61 = arith.truncf %60 : vector<64x128xf32> to vector<64x128xbf16>
    %c8 = arith.constant 8 : index
    %c0_28 = arith.constant 0 : index
    %c0_29 = arith.constant 0 : index
    %62 = vector.load %arg2[%c8, %c0_28, %c0_29] : memref<9x128x12xbf16, #tpu.memory_space<vmem>>, vector<1x128x12xbf16>
    %63 = vector.shape_cast %62 : vector<1x128x12xbf16> to vector<128x12xbf16>
    %cst_30 = arith.constant dense<0.000000e+00> : vector<64x12xf32>
    %64 = tpu.matmul %61, %63, %cst_30 {dimension_numbers = #tpu.dot_dimension_numbers<[1], [0], [0], [1], [0, 0, 1, 1], [], []>} : vector<64x128xbf16>, vector<128x12xbf16>, vector<64x12xf32> -> vector<64x12xf32>
    %65 = arith.addf %58, %64 : vector<64x12xf32>
    %66 = vector.shape_cast %65 : vector<64x12xf32> to vector<8x8x12xf32>
    %c0_31 = arith.constant 0 : index
    %c0_32 = arith.constant 0 : index
    %c0_33 = arith.constant 0 : index
    %c0_34 = arith.constant 0 : index
    %67 = vector.load %arg3[%c0_31, %c0_32, %c0_33, %c0_34] : memref<1x8x8x12xf32, #tpu.memory_space<vmem>>, vector<1x8x8x12xf32>
    %68 = vector.shape_cast %67 : vector<1x8x8x12xf32> to vector<8x8x12xf32>
    %69 = vector.shape_cast %66 : vector<8x8x12xf32> to vector<1x8x8x12xf32>
    tpu.vector_store %arg3[%c0_31, %c0_32, %c0_33, %c0_34], %69 {strides = array<i32>} : memref<1x8x8x12xf32, #tpu.memory_space<vmem>>, vector<1x8x8x12xf32>,
    return
  }
  func.func @transform_0(%arg0: i32) -> (i32, i32, i32, i32) {
    %c0_i32 = arith.constant 0 : i32
    %c0_i32_0 = arith.constant 0 : i32
    %c0_i32_1 = arith.constant 0 : i32
    %c0_i32_2 = arith.constant 0 : i32
    return %arg0, %c0_i32, %c0_i32_0, %c0_i32_1 : i32, i32, i32, i32
  }
  func.func @transform_1(%arg0: i32) -> (i32, i32, i32) {
    %c0_i32 = arith.constant 0 : i32
    %c0_i32_0 = arith.constant 0 : i32
    %c0_i32_1 = arith.constant 0 : i32
    %c0_i32_2 = arith.constant 0 : i32
    return %c0_i32, %c0_i32_0, %c0_i32_1 : i32, i32, i32
  }
  func.func @transform_2(%arg0: i32) -> (i32, i32, i32, i32) {
    %c0_i32 = arith.constant 0 : i32
    %c0_i32_0 = arith.constant 0 : i32
    %c0_i32_1 = arith.constant 0 : i32
    %c0_i32_2 = arith.constant 0 : i32
    return %arg0, %c0_i32, %c0_i32_0, %c0_i32_1 : i32, i32, i32, i32
  }
}

module attributes {stable_mosaic.version = 11 : i64} {
  func.func @_mse_kernel(%arg0: memref<16x128xf32, #tpu.memory_space<vmem>>, %arg1: memref<16x128xf32, #tpu.memory_space<vmem>>, %arg2: memref<1x1xf32, #tpu.memory_space<smem>>) attributes {dimension_semantics = [], scalar_prefetch = 0 : i64, scratch_operands = 0 : i64, tpu.core_type = #tpu.core_type<tc>} {
    %c0 = arith.constant 0 : index
    %c0_0 = arith.constant 0 : index
    %0 = vector.load %arg0[%c0, %c0_0] : memref<16x128xf32, #tpu.memory_space<vmem>>, vector<16x128xf32>
    %c0_1 = arith.constant 0 : index
    %c0_2 = arith.constant 0 : index
    %1 = vector.load %arg1[%c0_1, %c0_2] : memref<16x128xf32, #tpu.memory_space<vmem>>, vector<16x128xf32>
    %2 = arith.subf %0, %1 : vector<16x128xf32>
    %3 = arith.mulf %2, %2 : vector<16x128xf32>
    %4 = vector.shape_cast %3 : vector<16x128xf32> to vector<1x16x128xf32>
    %cst = arith.constant dense<0.000000e+00> : vector<1xf32>
    %5 = vector.multi_reduction <add>, %4, %cst [1, 2] : vector<1x16x128xf32> to vector<1xf32>
    %6 = vector.shape_cast %5 : vector<1xf32> to vector<1x1x1xf32>
    %7 = vector.extract %6[0, 0, 0] : f32 from vector<1x1x1xf32>
    %cst_3 = arith.constant 1.536000e+03 : f32
    %8 = arith.divf %7, %cst_3 : f32
    %c0_4 = arith.constant 0 : index
    %c0_5 = arith.constant 0 : index
    %9 = memref.load %arg2[%c0_4, %c0_5] : memref<1x1xf32, #tpu.memory_space<smem>>
    memref.store %8, %arg2[%c0_4, %c0_5] : memref<1x1xf32, #tpu.memory_space<smem>>
    return
  }
}

module attributes {stable_mosaic.version = 11 : i64} {
  func.func @_conv3x3_kernel(%arg0: i32, %arg1: memref<1x18x18x12xf32, #tpu.memory_space<vmem>>, %arg2: memref<9x12x3xbf16, #tpu.memory_space<vmem>>, %arg3: memref<1x16x16x3xf32, #tpu.memory_space<vmem>>) attributes {dimension_semantics = [#tpu.dimension_semantics<parallel>], iteration_bounds = array<i64: 2>, scalar_prefetch = 0 : i64, scratch_operands = 0 : i64, tpu.core_type = #tpu.core_type<tc>, window_params = [{transform_indices = @transform_0, window_bounds = array<i64: 1, 18, 18, 12>}, {pipeline_mode = #tpu.pipeline_mode<synchronous>, transform_indices = @transform_1, window_bounds = array<i64: 9, 12, 3>}, {transform_indices = @transform_2, window_bounds = array<i64: 1, 16, 16, 3>}]} {
    %c0 = arith.constant 0 : index
    %c0_0 = arith.constant 0 : index
    %c0_1 = arith.constant 0 : index
    %c0_2 = arith.constant 0 : index
    %0 = vector.load %arg1[%c0, %c0_0, %c0_1, %c0_2] : memref<1x18x18x12xf32, #tpu.memory_space<vmem>>, vector<1x18x18x12xf32>
    %1 = vector.shape_cast %0 : vector<1x18x18x12xf32> to vector<18x18x12xf32>
    %cst = arith.constant 0.000000e+00 : f32
    %2 = vector.broadcast %cst : f32 to vector<256x3xf32>
    %3 = vector.extract_strided_slice %1 {offsets = [0, 0, 0], sizes = [16, 16, 12], strides = [1, 1, 1]} : vector<18x18x12xf32> to vector<16x16x12xf32>
    %4 = vector.shape_cast %3 : vector<16x16x12xf32> to vector<256x12xf32>
    %5 = arith.truncf %4 : vector<256x12xf32> to vector<256x12xbf16>
    %c0_3 = arith.constant 0 : index
    %c0_4 = arith.constant 0 : index
    %c0_5 = arith.constant 0 : index
    %6 = vector.load %arg2[%c0_3, %c0_4, %c0_5] : memref<9x12x3xbf16, #tpu.memory_space<vmem>>, vector<1x12x3xbf16>
    %7 = vector.shape_cast %6 : vector<1x12x3xbf16> to vector<12x3xbf16>
    %cst_6 = arith.constant dense<0.000000e+00> : vector<256x3xf32>
    %8 = tpu.matmul %5, %7, %cst_6 {dimension_numbers = #tpu.dot_dimension_numbers<[1], [0], [0], [1], [0, 0, 1, 1], [], []>} : vector<256x12xbf16>, vector<12x3xbf16>, vector<256x3xf32> -> vector<256x3xf32>
    %9 = arith.addf %2, %8 : vector<256x3xf32>
    %10 = vector.extract_strided_slice %1 {offsets = [0, 1, 0], sizes = [16, 16, 12], strides = [1, 1, 1]} : vector<18x18x12xf32> to vector<16x16x12xf32>
    %11 = vector.shape_cast %10 : vector<16x16x12xf32> to vector<256x12xf32>
    %12 = arith.truncf %11 : vector<256x12xf32> to vector<256x12xbf16>
    %c1 = arith.constant 1 : index
    %c0_7 = arith.constant 0 : index
    %c0_8 = arith.constant 0 : index
    %13 = vector.load %arg2[%c1, %c0_7, %c0_8] : memref<9x12x3xbf16, #tpu.memory_space<vmem>>, vector<1x12x3xbf16>
    %14 = vector.shape_cast %13 : vector<1x12x3xbf16> to vector<12x3xbf16>
    %cst_9 = arith.constant dense<0.000000e+00> : vector<256x3xf32>
    %15 = tpu.matmul %12, %14, %cst_9 {dimension_numbers = #tpu.dot_dimension_numbers<[1], [0], [0], [1], [0, 0, 1, 1], [], []>} : vector<256x12xbf16>, vector<12x3xbf16>, vector<256x3xf32> -> vector<256x3xf32>
    %16 = arith.addf %9, %15 : vector<256x3xf32>
    %17 = vector.extract_strided_slice %1 {offsets = [0, 2, 0], sizes = [16, 16, 12], strides = [1, 1, 1]} : vector<18x18x12xf32> to vector<16x16x12xf32>
    %18 = vector.shape_cast %17 : vector<16x16x12xf32> to vector<256x12xf32>
    %19 = arith.truncf %18 : vector<256x12xf32> to vector<256x12xbf16>
    %c2 = arith.constant 2 : index
    %c0_10 = arith.constant 0 : index
    %c0_11 = arith.constant 0 : index
    %20 = vector.load %arg2[%c2, %c0_10, %c0_11] : memref<9x12x3xbf16, #tpu.memory_space<vmem>>, vector<1x12x3xbf16>
    %21 = vector.shape_cast %20 : vector<1x12x3xbf16> to vector<12x3xbf16>
    %cst_12 = arith.constant dense<0.000000e+00> : vector<256x3xf32>
    %22 = tpu.matmul %19, %21, %cst_12 {dimension_numbers = #tpu.dot_dimension_numbers<[1], [0], [0], [1], [0, 0, 1, 1], [], []>} : vector<256x12xbf16>, vector<12x3xbf16>, vector<256x3xf32> -> vector<256x3xf32>
    %23 = arith.addf %16, %22 : vector<256x3xf32>
    %24 = vector.extract_strided_slice %1 {offsets = [1, 0, 0], sizes = [16, 16, 12], strides = [1, 1, 1]} : vector<18x18x12xf32> to vector<16x16x12xf32>
    %25 = vector.shape_cast %24 : vector<16x16x12xf32> to vector<256x12xf32>
    %26 = arith.truncf %25 : vector<256x12xf32> to vector<256x12xbf16>
    %c3 = arith.constant 3 : index
    %c0_13 = arith.constant 0 : index
    %c0_14 = arith.constant 0 : index
    %27 = vector.load %arg2[%c3, %c0_13, %c0_14] : memref<9x12x3xbf16, #tpu.memory_space<vmem>>, vector<1x12x3xbf16>
    %28 = vector.shape_cast %27 : vector<1x12x3xbf16> to vector<12x3xbf16>
    %cst_15 = arith.constant dense<0.000000e+00> : vector<256x3xf32>
    %29 = tpu.matmul %26, %28, %cst_15 {dimension_numbers = #tpu.dot_dimension_numbers<[1], [0], [0], [1], [0, 0, 1, 1], [], []>} : vector<256x12xbf16>, vector<12x3xbf16>, vector<256x3xf32> -> vector<256x3xf32>
    %30 = arith.addf %23, %29 : vector<256x3xf32>
    %31 = vector.extract_strided_slice %1 {offsets = [1, 1, 0], sizes = [16, 16, 12], strides = [1, 1, 1]} : vector<18x18x12xf32> to vector<16x16x12xf32>
    %32 = vector.shape_cast %31 : vector<16x16x12xf32> to vector<256x12xf32>
    %33 = arith.truncf %32 : vector<256x12xf32> to vector<256x12xbf16>
    %c4 = arith.constant 4 : index
    %c0_16 = arith.constant 0 : index
    %c0_17 = arith.constant 0 : index
    %34 = vector.load %arg2[%c4, %c0_16, %c0_17] : memref<9x12x3xbf16, #tpu.memory_space<vmem>>, vector<1x12x3xbf16>
    %35 = vector.shape_cast %34 : vector<1x12x3xbf16> to vector<12x3xbf16>
    %cst_18 = arith.constant dense<0.000000e+00> : vector<256x3xf32>
    %36 = tpu.matmul %33, %35, %cst_18 {dimension_numbers = #tpu.dot_dimension_numbers<[1], [0], [0], [1], [0, 0, 1, 1], [], []>} : vector<256x12xbf16>, vector<12x3xbf16>, vector<256x3xf32> -> vector<256x3xf32>
    %37 = arith.addf %30, %36 : vector<256x3xf32>
    %38 = vector.extract_strided_slice %1 {offsets = [1, 2, 0], sizes = [16, 16, 12], strides = [1, 1, 1]} : vector<18x18x12xf32> to vector<16x16x12xf32>
    %39 = vector.shape_cast %38 : vector<16x16x12xf32> to vector<256x12xf32>
    %40 = arith.truncf %39 : vector<256x12xf32> to vector<256x12xbf16>
    %c5 = arith.constant 5 : index
    %c0_19 = arith.constant 0 : index
    %c0_20 = arith.constant 0 : index
    %41 = vector.load %arg2[%c5, %c0_19, %c0_20] : memref<9x12x3xbf16, #tpu.memory_space<vmem>>, vector<1x12x3xbf16>
    %42 = vector.shape_cast %41 : vector<1x12x3xbf16> to vector<12x3xbf16>
    %cst_21 = arith.constant dense<0.000000e+00> : vector<256x3xf32>
    %43 = tpu.matmul %40, %42, %cst_21 {dimension_numbers = #tpu.dot_dimension_numbers<[1], [0], [0], [1], [0, 0, 1, 1], [], []>} : vector<256x12xbf16>, vector<12x3xbf16>, vector<256x3xf32> -> vector<256x3xf32>
    %44 = arith.addf %37, %43 : vector<256x3xf32>
    %45 = vector.extract_strided_slice %1 {offsets = [2, 0, 0], sizes = [16, 16, 12], strides = [1, 1, 1]} : vector<18x18x12xf32> to vector<16x16x12xf32>
    %46 = vector.shape_cast %45 : vector<16x16x12xf32> to vector<256x12xf32>
    %47 = arith.truncf %46 : vector<256x12xf32> to vector<256x12xbf16>
    %c6 = arith.constant 6 : index
    %c0_22 = arith.constant 0 : index
    %c0_23 = arith.constant 0 : index
    %48 = vector.load %arg2[%c6, %c0_22, %c0_23] : memref<9x12x3xbf16, #tpu.memory_space<vmem>>, vector<1x12x3xbf16>
    %49 = vector.shape_cast %48 : vector<1x12x3xbf16> to vector<12x3xbf16>
    %cst_24 = arith.constant dense<0.000000e+00> : vector<256x3xf32>
    %50 = tpu.matmul %47, %49, %cst_24 {dimension_numbers = #tpu.dot_dimension_numbers<[1], [0], [0], [1], [0, 0, 1, 1], [], []>} : vector<256x12xbf16>, vector<12x3xbf16>, vector<256x3xf32> -> vector<256x3xf32>
    %51 = arith.addf %44, %50 : vector<256x3xf32>
    %52 = vector.extract_strided_slice %1 {offsets = [2, 1, 0], sizes = [16, 16, 12], strides = [1, 1, 1]} : vector<18x18x12xf32> to vector<16x16x12xf32>
    %53 = vector.shape_cast %52 : vector<16x16x12xf32> to vector<256x12xf32>
    %54 = arith.truncf %53 : vector<256x12xf32> to vector<256x12xbf16>
    %c7 = arith.constant 7 : index
    %c0_25 = arith.constant 0 : index
    %c0_26 = arith.constant 0 : index
    %55 = vector.load %arg2[%c7, %c0_25, %c0_26] : memref<9x12x3xbf16, #tpu.memory_space<vmem>>, vector<1x12x3xbf16>
    %56 = vector.shape_cast %55 : vector<1x12x3xbf16> to vector<12x3xbf16>
    %cst_27 = arith.constant dense<0.000000e+00> : vector<256x3xf32>
    %57 = tpu.matmul %54, %56, %cst_27 {dimension_numbers = #tpu.dot_dimension_numbers<[1], [0], [0], [1], [0, 0, 1, 1], [], []>} : vector<256x12xbf16>, vector<12x3xbf16>, vector<256x3xf32> -> vector<256x3xf32>
    %58 = arith.addf %51, %57 : vector<256x3xf32>
    %59 = vector.extract_strided_slice %1 {offsets = [2, 2, 0], sizes = [16, 16, 12], strides = [1, 1, 1]} : vector<18x18x12xf32> to vector<16x16x12xf32>
    %60 = vector.shape_cast %59 : vector<16x16x12xf32> to vector<256x12xf32>
    %61 = arith.truncf %60 : vector<256x12xf32> to vector<256x12xbf16>
    %c8 = arith.constant 8 : index
    %c0_28 = arith.constant 0 : index
    %c0_29 = arith.constant 0 : index
    %62 = vector.load %arg2[%c8, %c0_28, %c0_29] : memref<9x12x3xbf16, #tpu.memory_space<vmem>>, vector<1x12x3xbf16>
    %63 = vector.shape_cast %62 : vector<1x12x3xbf16> to vector<12x3xbf16>
    %cst_30 = arith.constant dense<0.000000e+00> : vector<256x3xf32>
    %64 = tpu.matmul %61, %63, %cst_30 {dimension_numbers = #tpu.dot_dimension_numbers<[1], [0], [0], [1], [0, 0, 1, 1], [], []>} : vector<256x12xbf16>, vector<12x3xbf16>, vector<256x3xf32> -> vector<256x3xf32>
    %65 = arith.addf %58, %64 : vector<256x3xf32>
    %66 = vector.shape_cast %65 : vector<256x3xf32> to vector<16x16x3xf32>
    %c0_31 = arith.constant 0 : index
    %c0_32 = arith.constant 0 : index
    %c0_33 = arith.constant 0 : index
    %c0_34 = arith.constant 0 : index
    %67 = vector.load %arg3[%c0_31, %c0_32, %c0_33, %c0_34] : memref<1x16x16x3xf32, #tpu.memory_space<vmem>>, vector<1x16x16x3xf32>
    %68 = vector.shape_cast %67 : vector<1x16x16x3xf32> to vector<16x16x3xf32>
    %69 = vector.shape_cast %66 : vector<16x16x3xf32> to vector<1x16x16x3xf32>
    tpu.vector_store %arg3[%c0_31, %c0_32, %c0_33, %c0_34], %69 {strides = array<i32>} : memref<1x16x16x3xf32, #tpu.memory_space<vmem>>, vector<1x16x16x3xf32>,
    return
  }
  func.func @transform_0(%arg0: i32) -> (i32, i32, i32, i32) {
    %c0_i32 = arith.constant 0 : i32
    %c0_i32_0 = arith.constant 0 : i32
    %c0_i32_1 = arith.constant 0 : i32
    %c0_i32_2 = arith.constant 0 : i32
    return %arg0, %c0_i32, %c0_i32_0, %c0_i32_1 : i32, i32, i32, i32
  }
  func.func @transform_1(%arg0: i32) -> (i32, i32, i32) {
    %c0_i32 = arith.constant 0 : i32
    %c0_i32_0 = arith.constant 0 : i32
    %c0_i32_1 = arith.constant 0 : i32
    %c0_i32_2 = arith.constant 0 : i32
    return %c0_i32, %c0_i32_0, %c0_i32_1 : i32, i32, i32
  }
  func.func @transform_2(%arg0: i32) -> (i32, i32, i32, i32) {
    %c0_i32 = arith.constant 0 : i32
    %c0_i32_0 = arith.constant 0 : i32
    %c0_i32_1 = arith.constant 0 : i32
    %c0_i32_2 = arith.constant 0 : i32
    return %arg0, %c0_i32, %c0_i32_0, %c0_i32_1 : i32, i32, i32, i32
  }
}

</mosaic_0001>

<llo_original>
// kernel: latent_diffusion_forward.7
$region0: #{latent_diffusion_forward.7}
  #allocation0 [shape = 'u32[]', space=smem, size = 0x4, offset = 0x4, fixed_abs, tag = 'smem constant byte address 0x4 - core index']
  #allocation1 [shape = 'u32[72,128]{1,0:T(1,128)}', space=vmem, size = 0x9000, scoped, tag = 'internal scratch']
  %s0 = inlined_call_operand.vmem [shape: f32[2,10,10,12], index: 0, kind: input, shape index: {}]
  %s1 = inlined_call_operand.vmem [shape: bf16[9,12,128], index: 1, kind: input, shape index: {}]
  %s2 = inlined_call_operand.vmem [shape: f32[2,8,8,128], index: 2, kind: output, shape index: {}]
  %s3 = sld [smem:[#allocation0]]
  $region41: #{latent_diffusion_forward.7} parent=0
    _
  %s5 = ssub.s32 1, %s3
  %s6 = scalar_select 0, %s5, %s3
  loop: start=0, step=1, limit=4
  $region2: #{latent_diffusion_forward.7} parent=0 // loop_pre_header
    _
  $region3: #{latent_diffusion_forward.7} parent=0 // loop_header
    %s8 = sphi 0, %s12
    %p9 = scmp.ge.s32.totalorder %s8, 4
    %s18 = sphi 0, %s20
    %s21 = sphi 0, %s18
    %s22 = sphi 0, %s21
    %s38 = sphi 0, %s22
    %s42 = sphi 0, %s42
    %s44 = sphi 0, %s42
    %s45 = sphi 0, %s44
    %s59 = sphi 0, %s45
    %s65 = sphi 0, %s67
    %s68 = sphi 0, %s65
    %s69 = sphi 0, %s68
    %s85 = sphi 0, %s69
  $region4: #{latent_diffusion_forward.7} parent=0 // loop_header_branch
    %11 = sbr.rel (%p9) target = $region8
  $region5: #{latent_diffusion_forward.7} parent=0 // loop_body
    %s13 = ssub.s32 %s8, 1
    %s14 = ssub.s32 %s8, 2
    %s15 = sadd.s32 %s8, 1
    %s16 = ssub.s32 %s8, %s15
    %p17 = scmp.eq.s32.totalorder %s16, 0
    %s19 = sadd.s32 %s18, 1
    %s20 = scalar_select %p17, %s18, %s19
    %p23 = pneg %p17
    %p24 = scmp.eq.s32.totalorder %s8, 1
    %p25 = por %p23, %p24
    %p26 = scmp.ne.s32.totalorder %s18, %s21
    %p27 = scmp.eq.s32.totalorder %s8, 0
    %p28 = por %p26, %p27
    %p29 = scmp.ne.s32.totalorder %s18, %s21
    %p30 = scmp.eq.s32.totalorder %s13, 1
    %p31 = por %p29, %p30
    %p32 = scmp.ne.s32.totalorder %s21, %s22
    %p33 = scmp.eq.s32.totalorder %s13, 0
    %p34 = por %p32, %p33
    %p35 = scmp.ne.s32.totalorder %s21, %s22
    %p36 = scmp.eq.s32.totalorder %s14, 1
    %p37 = por %p35, %p36
    %p39 = scmp.ne.s32.totalorder %s22, %s38
    %p40 = scmp.eq.s32.totalorder %s14, 0
    %p41 = por %p39, %p40
    %s43 = sadd.s32 %s42, 1
    %p46 = scmp.eq.s32.totalorder %s8, 1
    %p47 = scmp.ne.s32.totalorder %s42, %s44
    %p48 = scmp.eq.s32.totalorder %s8, 0
    %p49 = por %p47, %p48
    %p50 = scmp.ne.s32.totalorder %s42, %s44
    %p51 = scmp.eq.s32.totalorder %s13, 1
    %p52 = por %p50, %p51
    %p53 = scmp.ne.s32.totalorder %s44, %s45
    %p54 = scmp.eq.s32.totalorder %s13, 0
    %p55 = por %p53, %p54
    %p56 = scmp.ne.s32.totalorder %s44, %s45
    %p57 = scmp.eq.s32.totalorder %s14, 1
    %p58 = por %p56, %p57
    %p60 = scmp.ne.s32.totalorder %s45, %s59
    %p61 = scmp.eq.s32.totalorder %s14, 0
    %p62 = por %p60, %p61
    %s63 = ssub.s32 %s8, %s15
    %p64 = scmp.eq.s32.totalorder %s63, 0
    %s66 = sadd.s32 %s65, 1
    %s67 = scalar_select %p64, %s65, %s66
    %p70 = pneg %p64
    %p71 = scmp.eq.s32.totalorder %s8, 1
    %p72 = por %p70, %p71
    %p73 = scmp.ne.s32.totalorder %s65, %s68
    %p74 = scmp.eq.s32.totalorder %s8, 0
    %p75 = por %p73, %p74
    %p76 = scmp.ne.s32.totalorder %s65, %s68
    %p77 = scmp.eq.s32.totalorder %s13, 1
    %p78 = por %p76, %p77
    %p79 = scmp.ne.s32.totalorder %s68, %s69
    %p80 = scmp.eq.s32.totalorder %s13, 0
    %p81 = por %p79, %p80
    %p82 = scmp.ne.s32.totalorder %s68, %s69
    %p83 = scmp.eq.s32.totalorder %s14, 1
    %p84 = por %p82, %p83
    %p86 = scmp.ne.s32.totalorder %s69, %s85
    %p87 = scmp.eq.s32.totalorder %s14, 0
    %p88 = por %p86, %p87
    %p89 = scmp.le.s32.totalorder 1, %s8
    %p90 = scmp.lt.s32.totalorder %s8, 3
    %p91 = pnand %p89, %p90
    %p92 = pneg %p91
    // Predicated region
    $region9: #{latent_diffusion_forward.7} parent=5 // pred_check
      _
    $region10: #{latent_diffusion_forward.7} parent=5 // pred_check_branch
      %94 = sbr.rel (%p91) target = $region12
    $region11: #{latent_diffusion_forward.7} parent=5 // pred_region
      %s95 = ssub.s32 %s8, 1
      // Predicated region
      $region13: #{latent_diffusion_forward.7} parent=11 // pred_check
        %p96 = pneg %p55
      $region14: #{latent_diffusion_forward.7} parent=11 // pred_check_branch
        %98 = sbr.rel (%p96) target = $region16
      $region15: #{latent_diffusion_forward.7} parent=11 // pred_region
        _
      $region16: #{latent_diffusion_forward.7} parent=11 // pred_fallthru
        _
    $region12: #{latent_diffusion_forward.7} parent=5 // pred_fallthru
      _
    %p99 = scmp.lt.s32.totalorder %s8, 2
    // Predicated region
    $region17: #{latent_diffusion_forward.7} parent=5 // pred_check
      %p100 = pneg %p99
    $region18: #{latent_diffusion_forward.7} parent=5 // pred_check_branch
      %102 = sbr.rel (%p100) target = $region20
    $region19: #{latent_diffusion_forward.7} parent=5 // pred_region
      // Predicated region
      $region21: #{latent_diffusion_forward.7} parent=19 // pred_check
        %p103 = pneg %p28
      $region22: #{latent_diffusion_forward.7} parent=19 // pred_check_branch
        %105 = sbr.rel (%p103) target = $region24
      $region23: #{latent_diffusion_forward.7} parent=19 // pred_region
        %p106 = scmp.lt.s32.totalorder %s8, 1
        %s107 = scalar_select %p106, %s8, 1
        %s108 = smul.addr %s107, 20
        %s109 = smul.addr %s108, 8
        %s110 = scalar_lea.vmem %s0, %s109
      $region24: #{latent_diffusion_forward.7} parent=19 // pred_fallthru
        _
    $region20: #{latent_diffusion_forward.7} parent=5 // pred_fallthru
      _
    %p111 = scmp.le.s32.totalorder 1, %s8
    %p112 = scmp.lt.s32.totalorder %s8, 3
    %p113 = pnand %p111, %p112
    %p114 = pneg %p113
    // Predicated region
    $region25: #{latent_diffusion_forward.7} parent=5 // pred_check
      _
    $region26: #{latent_diffusion_forward.7} parent=5 // pred_check_branch
      %116 = sbr.rel (%p113) target = $region28
    $region27: #{latent_diffusion_forward.7} parent=5 // pred_region
      %s117 = ssub.s32 %s8, 1
      %p118 = scmp.lt.s32.totalorder %s13, 1
      %s119 = scalar_select %p118, %s13, 1
      %s120 = smul.addr %s119, 20
      %s121 = smul.addr %s120, 8
      %s122 = scalar_lea.vmem %s0, %s121
      %p123 = pneg %p34
      %p124 = pneg %p31
      %p125 = pneg %p55
      %p126 = pneg %p52
      %p127 = pneg %p81
      %p128 = pneg %p78
      %p129 = scmp.lt.s32.totalorder %s13, 1
      %s130 = scalar_select %p129, %s13, 1
      %s131 = smul.addr %s130, 8
      %s132 = smul.addr %s131, 8
      %s133 = scalar_lea.vmem %s2, %s132
      %p134 = scmp.lt.s32.totalorder %s13, 1
      %s135 = scalar_select %p134, %s13, 1
      %s136 = smul.addr %s135, 20
      %s137 = smul.addr %s136, 8
      %s138 = scalar_lea.vmem %s0, %s137
      %p139 = scmp.lt.s32.totalorder %s13, 1
      %s140 = scalar_select %p139, %s13, 1
      %s141 = smul.addr %s140, 8
      %s142 = smul.addr %s141, 8
      %s143 = scalar_lea.vmem %s2, %s142
      %v145 = vld [vmem:[%s138] sm:$0xff]
      %v146 = vld [vmem:[%s138 + $0x8] sm:$0x3]
      %v147 = vld [vmem:[%s138 + $0x10] sm:$0xff]
      %v148 = vld [vmem:[%s138 + $0x18] sm:$0x3]
      %v149 = vld [vmem:[%s138 + $0x20] sm:$0xff]
      %v150 = vld [vmem:[%s138 + $0x28] sm:$0x3]
      %v151 = vld [vmem:[%s138 + $0x30] sm:$0xff]
      %v152 = vld [vmem:[%s138 + $0x38] sm:$0x3]
      %v153 = vld [vmem:[%s138 + $0x40] sm:$0xff]
      %v154 = vld [vmem:[%s138 + $0x48] sm:$0x3]
      %v155 = vld [vmem:[%s138 + $0x50] sm:$0xff]
      %v156 = vld [vmem:[%s138 + $0x58] sm:$0x3]
      %v157 = vld [vmem:[%s138 + $0x60] sm:$0xff]
      %v158 = vld [vmem:[%s138 + $0x68] sm:$0x3]
      %v159 = vld [vmem:[%s138 + $0x70] sm:$0xff]
      %v160 = vld [vmem:[%s138 + $0x78] sm:$0x3]
      %v161 = vld [vmem:[%s138 + $0x80] sm:$0xff]
      %v162 = vld [vmem:[%s138 + $0x88] sm:$0x3]
      %v163 = vld [vmem:[%s138 + $0x90] sm:$0xff]
      %v164 = vld [vmem:[%s138 + $0x98] sm:$0x3]
      %v165 = vpack.c.bf16 %v147, %v145
      %v166 = vpack.c.bf16 %v151, %v149
      %v167 = vpack.c.bf16 %v155, %v153
      %v168 = vpack.c.bf16 %v159, %v157
      %v169 = vld [vmem:[%s1] sm:$0xf]
      %v170 = vld [vmem:[%s1 + $0x4] sm:$0x3]
      %vm187 = vcmask 1046528
      %v188 = vrot.slane %v145, 1
      %v189 = vrot.slane %v146, 1
      %v190 = vsel %vm187, %v188, %v189
      %v191 = vrot.slane %v147, 1
      %v192 = vrot.slane %v148, 1
      %v193 = vsel %vm187, %v191, %v192
      %v194 = vrot.slane %v149, 1
      %v195 = vrot.slane %v150, 1
      %v196 = vsel %vm187, %v194, %v195
      %v197 = vrot.slane %v151, 1
      %v198 = vrot.slane %v152, 1
      %v199 = vsel %vm187, %v197, %v198
      %v200 = vrot.slane %v153, 1
      %v201 = vrot.slane %v154, 1
      %v202 = vsel %vm187, %v200, %v201
      %v203 = vrot.slane %v155, 1
      %v204 = vrot.slane %v156, 1
      %v205 = vsel %vm187, %v203, %v204
      %v206 = vrot.slane %v157, 1
      %v207 = vrot.slane %v158, 1
      %v208 = vsel %vm187, %v206, %v207
      %v209 = vrot.slane %v159, 1
      %v210 = vrot.slane %v160, 1
      %v211 = vsel %vm187, %v209, %v210
      %v220 = vpack.c.bf16 %v193, %v190
      %v221 = vpack.c.bf16 %v199, %v196
      %v222 = vpack.c.bf16 %v205, %v202
      %v223 = vpack.c.bf16 %v211, %v208
      %s224 = scalar_lea.vmem %s1, 8
      %v225 = vld [vmem:[%s224] sm:$0xf]
      %v226 = vld [vmem:[%s224 + $0x4] sm:$0x3]
      %v229 = vunpack.c.l.b16 %v225
      %v230 = vunpack.c.l.b16 %v226
      %v231 = vpack.c.b16 %v230, %v229
      %vm232 = vcmask 97280
      %v234 = vsel %vm232, %v220, 0
      %v237 = vsel %vm232, %v221, 0
      %v240 = vsel %vm232, %v222, 0
      %v243 = vsel %vm232, %v223, 0
      %vm245 = vcmask 1045504
      %v247 = vsel %vm245, %v231, 0
      %249 = vmatpush.bf16.msra.mxu0 0
      %250 = vmatpush.bf16.msra.mxu0 0
      %251 = vmatpush.bf16.msra.mxu0 0
      %252 = vmatpush.bf16.msra.mxu0 0
      %253 = vmatpush.bf16.msra.mxu0 0
      %254 = vmatpush.bf16.msra.mxu0 0
      %255 = vmatpush.bf16.msra.mxu0 0
      %256 = vmatpush.bf16.msra.mxu0 %v247
      %257 = vmatmul.bf16.gmra.mxu0 %v234
      %v258 = vpop.f32.mrf.mxu0
      %v259 = vadd.f32 0.0, %v258
      %v260 = vpop.f32.mrf.mxu0
      %v261 = vadd.f32 0.0, %v260
      %262 = vmatmul.bf16.gmra.mxu0 %v237
      %v263 = vpop.f32.mrf.mxu0
      %v264 = vadd.f32 0.0, %v263
      %v265 = vpop.f32.mrf.mxu0
      %v266 = vadd.f32 0.0, %v265
      %267 = vmatmul.bf16.gmra.mxu0 %v240
      %v268 = vpop.f32.mrf.mxu0
      %v269 = vadd.f32 0.0, %v268
      %v270 = vpop.f32.mrf.mxu0
      %v271 = vadd.f32 0.0, %v270
      %272 = vmatmul.bf16.gmra.mxu0 %v243
      %v273 = vpop.f32.mrf.mxu0
      %v274 = vadd.f32 0.0, %v273
      %v275 = vpop.f32.mrf.mxu0
      %v276 = vadd.f32 0.0, %v275
      %277 = vdwg.mxu0
      %v280 = vunpack.c.l.b16 %v169
      %v281 = vunpack.c.l.b16 %v170
      %v282 = vpack.c.b16 %v281, %v280
      %v284 = vsel %vm232, %v165, 0
      %v287 = vsel %vm232, %v166, 0
      %v290 = vsel %vm232, %v167, 0
      %v293 = vsel %vm232, %v168, 0
      %v296 = vsel %vm245, %v282, 0
      %298 = vmatpush.bf16.msra.mxu0 0
      %299 = vmatpush.bf16.msra.mxu0 0
      %300 = vmatpush.bf16.msra.mxu0 0
      %301 = vmatpush.bf16.msra.mxu0 0
      %302 = vmatpush.bf16.msra.mxu0 0
      %303 = vmatpush.bf16.msra.mxu0 0
      %304 = vmatpush.bf16.msra.mxu0 0
      %305 = vmatpush.bf16.msra.mxu0 %v296
      %306 = vmatmul.bf16.gmra.mxu0 %v284
      %v307 = vpop.f32.mrf.mxu0
      %v308 = vadd.f32 %v259, %v307
      %v309 = vpop.f32.mrf.mxu0
      %v310 = vadd.f32 %v261, %v309
      %311 = vmatmul.bf16.gmra.mxu0 %v287
      %v312 = vpop.f32.mrf.mxu0
      %v313 = vadd.f32 %v264, %v312
      %v314 = vpop.f32.mrf.mxu0
      %v315 = vadd.f32 %v266, %v314
      %316 = vmatmul.bf16.gmra.mxu0 %v290
      %v317 = vpop.f32.mrf.mxu0
      %v318 = vadd.f32 %v269, %v317
      %v319 = vpop.f32.mrf.mxu0
      %v320 = vadd.f32 %v271, %v319
      %321 = vmatmul.bf16.gmra.mxu0 %v293
      %v322 = vpop.f32.mrf.mxu0
      %v323 = vadd.f32 %v274, %v322
      %v324 = vpop.f32.mrf.mxu0
      %v325 = vadd.f32 %v276, %v324
      %326 = vdwg.mxu0
      %v327 = vrot.slane %v145, 2
      %v328 = vrot.slane %v146, 2
      %v329 = vsel %vm245, %v327, %v328
      %v330 = vrot.slane %v147, 2
      %v331 = vrot.slane %v148, 2
      %v332 = vsel %vm245, %v330, %v331
      %v333 = vrot.slane %v149, 2
      %v334 = vrot.slane %v150, 2
      %v335 = vsel %vm245, %v333, %v334
      %v336 = vrot.slane %v151, 2
      %v337 = vrot.slane %v152, 2
      %v338 = vsel %vm245, %v336, %v337
      %v339 = vrot.slane %v153, 2
      %v340 = vrot.slane %v154, 2
      %v341 = vsel %vm245, %v339, %v340
      %v342 = vrot.slane %v155, 2
      %v343 = vrot.slane %v156, 2
      %v344 = vsel %vm245, %v342, %v343
      %v345 = vrot.slane %v157, 2
      %v346 = vrot.slane %v158, 2
      %v347 = vsel %vm245, %v345, %v346
      %v348 = vrot.slane %v159, 2
      %v349 = vrot.slane %v160, 2
      %v350 = vsel %vm245, %v348, %v349
      %v359 = vpack.c.bf16 %v332, %v329
      %v360 = vpack.c.bf16 %v338, %v335
      %v361 = vpack.c.bf16 %v344, %v341
      %v362 = vpack.c.bf16 %v350, %v347
      %s363 = scalar_lea.vmem %s1, 16
      %v364 = vld [vmem:[%s363] sm:$0xf]
      %v365 = vld [vmem:[%s363 + $0x4] sm:$0x3]
      %v368 = vunpack.c.l.b16 %v364
      %v369 = vunpack.c.l.b16 %v365
      %v370 = vpack.c.b16 %v369, %v368
      %v372 = vsel %vm232, %v359, 0
      %v375 = vsel %vm232, %v360, 0
      %v378 = vsel %vm232, %v361, 0
      %v381 = vsel %vm232, %v362, 0
      %v384 = vsel %vm245, %v370, 0
      %386 = vmatpush.bf16.msra.mxu0 0
      %387 = vmatpush.bf16.msra.mxu0 0
      %388 = vmatpush.bf16.msra.mxu0 0
      %389 = vmatpush.bf16.msra.mxu0 0
      %390 = vmatpush.bf16.msra.mxu0 0
      %391 = vmatpush.bf16.msra.mxu0 0
      %392 = vmatpush.bf16.msra.mxu0 0
      %393 = vmatpush.bf16.msra.mxu0 %v384
      %394 = vmatmul.bf16.gmra.mxu0 %v372
      %v395 = vpop.f32.mrf.mxu0
      %v396 = vadd.f32 0.0, %v395
      %v397 = vpop.f32.mrf.mxu0
      %v398 = vadd.f32 0.0, %v397
      %399 = vmatmul.bf16.gmra.mxu0 %v375
      %v400 = vpop.f32.mrf.mxu0
      %v401 = vadd.f32 0.0, %v400
      %v402 = vpop.f32.mrf.mxu0
      %v403 = vadd.f32 0.0, %v402
      %404 = vmatmul.bf16.gmra.mxu0 %v378
      %v405 = vpop.f32.mrf.mxu0
      %v406 = vadd.f32 0.0, %v405
      %v407 = vpop.f32.mrf.mxu0
      %v408 = vadd.f32 0.0, %v407
      %409 = vmatmul.bf16.gmra.mxu0 %v381
      %v410 = vpop.f32.mrf.mxu0
      %v411 = vadd.f32 0.0, %v410
      %v412 = vpop.f32.mrf.mxu0
      %v413 = vadd.f32 0.0, %v412
      %414 = vdwg.mxu0
      %v415 = vadd.f32 %v308, %v396
      %v416 = vadd.f32 %v310, %v398
      %v417 = vadd.f32 %v313, %v401
      %v418 = vadd.f32 %v315, %v403
      %v419 = vadd.f32 %v318, %v406
      %v420 = vadd.f32 %v320, %v408
      %v421 = vadd.f32 %v323, %v411
      %v422 = vadd.f32 %v325, %v413
      %v423 = vpack.c.bf16 %v149, %v147
      %v424 = vpack.c.bf16 %v153, %v151
      %v425 = vpack.c.bf16 %v157, %v155
      %v426 = vpack.c.bf16 %v161, %v159
      %s427 = scalar_lea.vmem %s1, 24
      %v428 = vld [vmem:[%s427] sm:$0xf]
      %v429 = vld [vmem:[%s427 + $0x4] sm:$0x3]
      %v432 = vunpack.c.l.b16 %v428
      %v433 = vunpack.c.l.b16 %v429
      %v434 = vpack.c.b16 %v433, %v432
      %v436 = vsel %vm232, %v423, 0
      %v439 = vsel %vm232, %v424, 0
      %v442 = vsel %vm232, %v425, 0
      %v445 = vsel %vm232, %v426, 0
      %v448 = vsel %vm245, %v434, 0
      %450 = vmatpush.bf16.msra.mxu0 0
      %451 = vmatpush.bf16.msra.mxu0 0
      %452 = vmatpush.bf16.msra.mxu0 0
      %453 = vmatpush.bf16.msra.mxu0 0
      %454 = vmatpush.bf16.msra.mxu0 0
      %455 = vmatpush.bf16.msra.mxu0 0
      %456 = vmatpush.bf16.msra.mxu0 0
      %457 = vmatpush.bf16.msra.mxu0 %v448
      %458 = vmatmul.bf16.gmra.mxu0 %v436
      %v459 = vpop.f32.mrf.mxu0
      %v460 = vadd.f32 0.0, %v459
      %v461 = vpop.f32.mrf.mxu0
      %v462 = vadd.f32 0.0, %v461
      %463 = vmatmul.bf16.gmra.mxu0 %v439
      %v464 = vpop.f32.mrf.mxu0
      %v465 = vadd.f32 0.0, %v464
      %v466 = vpop.f32.mrf.mxu0
      %v467 = vadd.f32 0.0, %v466
      %468 = vmatmul.bf16.gmra.mxu0 %v442
      %v469 = vpop.f32.mrf.mxu0
      %v470 = vadd.f32 0.0, %v469
      %v471 = vpop.f32.mrf.mxu0
      %v472 = vadd.f32 0.0, %v471
      %473 = vmatmul.bf16.gmra.mxu0 %v445
      %v474 = vpop.f32.mrf.mxu0
      %v475 = vadd.f32 0.0, %v474
      %v476 = vpop.f32.mrf.mxu0
      %v477 = vadd.f32 0.0, %v476
      %478 = vdwg.mxu0
      %v479 = vadd.f32 %v415, %v460
      %v480 = vadd.f32 %v416, %v462
      %v481 = vadd.f32 %v417, %v465
      %v482 = vadd.f32 %v418, %v467
      %v483 = vadd.f32 %v419, %v470
      %v484 = vadd.f32 %v420, %v472
      %v485 = vadd.f32 %v421, %v475
      %v486 = vadd.f32 %v422, %v477
      %v489 = vrot.slane %v161, 1
      %v490 = vrot.slane %v162, 1
      %v491 = vsel %vm187, %v489, %v490
      %v493 = vpack.c.bf16 %v196, %v193
      %v494 = vpack.c.bf16 %v202, %v199
      %v495 = vpack.c.bf16 %v208, %v205
      %v496 = vpack.c.bf16 %v491, %v211
      %s497 = scalar_lea.vmem %s1, 32
      %v498 = vld [vmem:[%s497] sm:$0xf]
      %v499 = vld [vmem:[%s497 + $0x4] sm:$0x3]
      %v502 = vunpack.c.l.b16 %v498
      %v503 = vunpack.c.l.b16 %v499
      %v504 = vpack.c.b16 %v503, %v502
      %v506 = vsel %vm232, %v493, 0
      %v509 = vsel %vm232, %v494, 0
      %v512 = vsel %vm232, %v495, 0
      %v515 = vsel %vm232, %v496, 0
      %v518 = vsel %vm245, %v504, 0
      %520 = vmatpush.bf16.msra.mxu0 0
      %521 = vmatpush.bf16.msra.mxu0 0
      %522 = vmatpush.bf16.msra.mxu0 0
      %523 = vmatpush.bf16.msra.mxu0 0
      %524 = vmatpush.bf16.msra.mxu0 0
      %525 = vmatpush.bf16.msra.mxu0 0
      %526 = vmatpush.bf16.msra.mxu0 0
      %527 = vmatpush.bf16.msra.mxu0 %v518
      %528 = vmatmul.bf16.gmra.mxu0 %v506
      %v529 = vpop.f32.mrf.mxu0
      %v530 = vadd.f32 0.0, %v529
      %v531 = vpop.f32.mrf.mxu0
      %v532 = vadd.f32 0.0, %v531
      %533 = vmatmul.bf16.gmra.mxu0 %v509
      %v534 = vpop.f32.mrf.mxu0
      %v535 = vadd.f32 0.0, %v534
      %v536 = vpop.f32.mrf.mxu0
      %v537 = vadd.f32 0.0, %v536
      %538 = vmatmul.bf16.gmra.mxu0 %v512
      %v539 = vpop.f32.mrf.mxu0
      %v540 = vadd.f32 0.0, %v539
      %v541 = vpop.f32.mrf.mxu0
      %v542 = vadd.f32 0.0, %v541
      %543 = vmatmul.bf16.gmra.mxu0 %v515
      %v544 = vpop.f32.mrf.mxu0
      %v545 = vadd.f32 0.0, %v544
      %v546 = vpop.f32.mrf.mxu0
      %v547 = vadd.f32 0.0, %v546
      %548 = vdwg.mxu0
      %v549 = vadd.f32 %v479, %v530
      %v550 = vadd.f32 %v480, %v532
      %v551 = vadd.f32 %v481, %v535
      %v552 = vadd.f32 %v482, %v537
      %v553 = vadd.f32 %v483, %v540
      %v554 = vadd.f32 %v484, %v542
      %v555 = vadd.f32 %v485, %v545
      %v556 = vadd.f32 %v486, %v547
      %v557 = vrot.slane %v161, 2
      %v558 = vrot.slane %v162, 2
      %v559 = vsel %vm245, %v557, %v558
      %v561 = vpack.c.bf16 %v335, %v332
      %v562 = vpack.c.bf16 %v341, %v338
      %v563 = vpack.c.bf16 %v347, %v344
      %v564 = vpack.c.bf16 %v559, %v350
      %s565 = scalar_lea.vmem %s1, 40
      %v566 = vld [vmem:[%s565] sm:$0xf]
      %v567 = vld [vmem:[%s565 + $0x4] sm:$0x3]
      %v570 = vunpack.c.l.b16 %v566
      %v571 = vunpack.c.l.b16 %v567
      %v572 = vpack.c.b16 %v571, %v570
      %v574 = vsel %vm232, %v561, 0
      %v577 = vsel %vm232, %v562, 0
      %v580 = vsel %vm232, %v563, 0
      %v583 = vsel %vm232, %v564, 0
      %v586 = vsel %vm245, %v572, 0
      %588 = vmatpush.bf16.msra.mxu0 0
      %589 = vmatpush.bf16.msra.mxu0 0
      %590 = vmatpush.bf16.msra.mxu0 0
      %591 = vmatpush.bf16.msra.mxu0 0
      %592 = vmatpush.bf16.msra.mxu0 0
      %593 = vmatpush.bf16.msra.mxu0 0
      %594 = vmatpush.bf16.msra.mxu0 0
      %595 = vmatpush.bf16.msra.mxu0 %v586
      %596 = vmatmul.bf16.gmra.mxu0 %v574
      %v597 = vpop.f32.mrf.mxu0
      %v598 = vadd.f32 0.0, %v597
      %v599 = vpop.f32.mrf.mxu0
      %v600 = vadd.f32 0.0, %v599
      %601 = vmatmul.bf16.gmra.mxu0 %v577
      %v602 = vpop.f32.mrf.mxu0
      %v603 = vadd.f32 0.0, %v602
      %v604 = vpop.f32.mrf.mxu0
      %v605 = vadd.f32 0.0, %v604
      %606 = vmatmul.bf16.gmra.mxu0 %v580
      %v607 = vpop.f32.mrf.mxu0
      %v608 = vadd.f32 0.0, %v607
      %v609 = vpop.f32.mrf.mxu0
      %v610 = vadd.f32 0.0, %v609
      %611 = vmatmul.bf16.gmra.mxu0 %v583
      %v612 = vpop.f32.mrf.mxu0
      %v613 = vadd.f32 0.0, %v612
      %v614 = vpop.f32.mrf.mxu0
      %v615 = vadd.f32 0.0, %v614
      %616 = vdwg.mxu0
      %v617 = vadd.f32 %v549, %v598
      %v618 = vadd.f32 %v550, %v600
      %v619 = vadd.f32 %v551, %v603
      %v620 = vadd.f32 %v552, %v605
      %v621 = vadd.f32 %v553, %v608
      %v622 = vadd.f32 %v554, %v610
      %v623 = vadd.f32 %v555, %v613
      %v624 = vadd.f32 %v556, %v615
      %v625 = vpack.c.bf16 %v163, %v161
      %s626 = scalar_lea.vmem %s1, 48
      %v627 = vld [vmem:[%s626] sm:$0xf]
      %v628 = vld [vmem:[%s626 + $0x4] sm:$0x3]
      %v631 = vunpack.c.l.b16 %v627
      %v632 = vunpack.c.l.b16 %v628
      %v633 = vpack.c.b16 %v632, %v631
      %v635 = vsel %vm232, %v625, 0
      %v638 = vsel %vm245, %v633, 0
      %640 = vmatpush.bf16.msra.mxu0 0
      %641 = vmatpush.bf16.msra.mxu0 0
      %642 = vmatpush.bf16.msra.mxu0 0
      %643 = vmatpush.bf16.msra.mxu0 0
      %644 = vmatpush.bf16.msra.mxu0 0
      %645 = vmatpush.bf16.msra.mxu0 0
      %646 = vmatpush.bf16.msra.mxu0 0
      %647 = vmatpush.bf16.msra.mxu0 %v638
      %648 = vmatmul.bf16.gmra.mxu0 %v287
      %v649 = vpop.f32.mrf.mxu0
      %v650 = vadd.f32 0.0, %v649
      %v651 = vpop.f32.mrf.mxu0
      %v652 = vadd.f32 0.0, %v651
      %653 = vmatmul.bf16.gmra.mxu0 %v290
      %v654 = vpop.f32.mrf.mxu0
      %v655 = vadd.f32 0.0, %v654
      %v656 = vpop.f32.mrf.mxu0
      %v657 = vadd.f32 0.0, %v656
      %658 = vmatmul.bf16.gmra.mxu0 %v293
      %v659 = vpop.f32.mrf.mxu0
      %v660 = vadd.f32 0.0, %v659
      %v661 = vpop.f32.mrf.mxu0
      %v662 = vadd.f32 0.0, %v661
      %663 = vmatmul.bf16.gmra.mxu0 %v635
      %v664 = vpop.f32.mrf.mxu0
      %v665 = vadd.f32 0.0, %v664
      %v666 = vpop.f32.mrf.mxu0
      %v667 = vadd.f32 0.0, %v666
      %668 = vdwg.mxu0
      %v669 = vadd.f32 %v617, %v650
      %v670 = vadd.f32 %v618, %v652
      %v671 = vadd.f32 %v619, %v655
      %v672 = vadd.f32 %v620, %v657
      %v673 = vadd.f32 %v621, %v660
      %v674 = vadd.f32 %v622, %v662
      %v675 = vadd.f32 %v623, %v665
      %v676 = vadd.f32 %v624, %v667
      %v679 = vrot.slane %v163, 1
      %v680 = vrot.slane %v164, 1
      %v681 = vsel %vm187, %v679, %v680
      %v683 = vpack.c.bf16 %v681, %v491
      %s684 = scalar_lea.vmem %s1, 56
      %v685 = vld [vmem:[%s684] sm:$0xf]
      %v686 = vld [vmem:[%s684 + $0x4] sm:$0x3]
      %v689 = vunpack.c.l.b16 %v685
      %v690 = vunpack.c.l.b16 %v686
      %v691 = vpack.c.b16 %v690, %v689
      %v693 = vsel %vm232, %v683, 0
      %v696 = vsel %vm245, %v691, 0
      %698 = vmatpush.bf16.msra.mxu0 0
      %699 = vmatpush.bf16.msra.mxu0 0
      %700 = vmatpush.bf16.msra.mxu0 0
      %701 = vmatpush.bf16.msra.mxu0 0
      %702 = vmatpush.bf16.msra.mxu0 0
      %703 = vmatpush.bf16.msra.mxu0 0
      %704 = vmatpush.bf16.msra.mxu0 0
      %705 = vmatpush.bf16.msra.mxu0 %v696
      %706 = vmatmul.bf16.gmra.mxu0 %v237
      %v707 = vpop.f32.mrf.mxu0
      %v708 = vadd.f32 0.0, %v707
      %v709 = vpop.f32.mrf.mxu0
      %v710 = vadd.f32 0.0, %v709
      %711 = vmatmul.bf16.gmra.mxu0 %v240
      %v712 = vpop.f32.mrf.mxu0
      %v713 = vadd.f32 0.0, %v712
      %v714 = vpop.f32.mrf.mxu0
      %v715 = vadd.f32 0.0, %v714
      %716 = vmatmul.bf16.gmra.mxu0 %v243
      %v717 = vpop.f32.mrf.mxu0
      %v718 = vadd.f32 0.0, %v717
      %v719 = vpop.f32.mrf.mxu0
      %v720 = vadd.f32 0.0, %v719
      %721 = vmatmul.bf16.gmra.mxu0 %v693
      %v722 = vpop.f32.mrf.mxu0
      %v723 = vadd.f32 0.0, %v722
      %v724 = vpop.f32.mrf.mxu0
      %v725 = vadd.f32 0.0, %v724
      %726 = vdwg.mxu0
      %v727 = vadd.f32 %v669, %v708
      %v728 = vadd.f32 %v670, %v710
      %v729 = vadd.f32 %v671, %v713
      %v730 = vadd.f32 %v672, %v715
      %v731 = vadd.f32 %v673, %v718
      %v732 = vadd.f32 %v674, %v720
      %v733 = vadd.f32 %v675, %v723
      %v734 = vadd.f32 %v676, %v725
      %v735 = vrot.slane %v163, 2
      %v736 = vrot.slane %v164, 2
      %v737 = vsel %vm245, %v735, %v736
      %v739 = vpack.c.bf16 %v737, %v559
      %s740 = scalar_lea.vmem %s1, 64
      %v741 = vld [vmem:[%s740] sm:$0xf]
      %v742 = vld [vmem:[%s740 + $0x4] sm:$0x3]
      %v745 = vunpack.c.l.b16 %v741
      %v746 = vunpack.c.l.b16 %v742
      %v747 = vpack.c.b16 %v746, %v745
      %v749 = vsel %vm232, %v739, 0
      %v752 = vsel %vm245, %v747, 0
      %754 = vmatpush.bf16.msra.mxu0 0
      %755 = vmatpush.bf16.msra.mxu0 0
      %756 = vmatpush.bf16.msra.mxu0 0
      %757 = vmatpush.bf16.msra.mxu0 0
      %758 = vmatpush.bf16.msra.mxu0 0
      %759 = vmatpush.bf16.msra.mxu0 0
      %760 = vmatpush.bf16.msra.mxu0 0
      %761 = vmatpush.bf16.msra.mxu0 %v752
      %762 = vmatmul.bf16.gmra.mxu0 %v375
      %v763 = vpop.f32.mrf.mxu0
      %v764 = vadd.f32 0.0, %v763
      %v765 = vpop.f32.mrf.mxu0
      %v766 = vadd.f32 0.0, %v765
      %767 = vmatmul.bf16.gmra.mxu0 %v378
      %v768 = vpop.f32.mrf.mxu0
      %v769 = vadd.f32 0.0, %v768
      %v770 = vpop.f32.mrf.mxu0
      %v771 = vadd.f32 0.0, %v770
      %772 = vmatmul.bf16.gmra.mxu0 %v381
      %v773 = vpop.f32.mrf.mxu0
      %v774 = vadd.f32 0.0, %v773
      %v775 = vpop.f32.mrf.mxu0
      %v776 = vadd.f32 0.0, %v775
      %777 = vmatmul.bf16.gmra.mxu0 %v749
      %v778 = vpop.f32.mrf.mxu0
      %v779 = vadd.f32 0.0, %v778
      %v780 = vpop.f32.mrf.mxu0
      %v781 = vadd.f32 0.0, %v780
      %782 = vdwg.mxu0
      %v783 = vadd.f32 %v727, %v764
      %v784 = vadd.f32 %v728, %v766
      %v785 = vadd.f32 %v729, %v769
      %v786 = vadd.f32 %v730, %v771
      %v787 = vadd.f32 %v731, %v774
      %v788 = vadd.f32 %v732, %v776
      %v789 = vadd.f32 %v733, %v779
      %v790 = vadd.f32 %v734, %v781
      %791 = vst [vmem:[%s143] sm:$0xff] %v783
      %792 = vst [vmem:[%s143 + $0x8] sm:$0xff] %v784
      %793 = vst [vmem:[%s143 + $0x10] sm:$0xff] %v785
      %794 = vst [vmem:[%s143 + $0x18] sm:$0xff] %v786
      %795 = vst [vmem:[%s143 + $0x20] sm:$0xff] %v787
      %796 = vst [vmem:[%s143 + $0x28] sm:$0xff] %v788
      %797 = vst [vmem:[%s143 + $0x30] sm:$0xff] %v789
      %798 = vst [vmem:[%s143 + $0x38] sm:$0xff] %v790
      %p799 = scmp.lt.s32.totalorder %s13, 1
      %s800 = scalar_select %p799, %s13, 1
      %s801 = smul.addr %s800, 8
      %s802 = smul.addr %s801, 8
      %s803 = scalar_lea.vmem %s2, %s802
      // Predicated region
      $region29: #{latent_diffusion_forward.7} parent=27 // pred_check
        %p804 = pneg %p78
      $region30: #{latent_diffusion_forward.7} parent=27 // pred_check_branch
        %806 = sbr.rel (%p804) target = $region32
      $region31: #{latent_diffusion_forward.7} parent=27 // pred_region
        _
      $region32: #{latent_diffusion_forward.7} parent=27 // pred_fallthru
        _
    $region28: #{latent_diffusion_forward.7} parent=5 // pred_fallthru
      _
    %p807 = scmp.le.s32.totalorder 2, %s8
    // Predicated region
    $region33: #{latent_diffusion_forward.7} parent=5 // pred_check
      %p808 = pneg %p807
    $region34: #{latent_diffusion_forward.7} parent=5 // pred_check_branch
      %810 = sbr.rel (%p808) target = $region36
    $region35: #{latent_diffusion_forward.7} parent=5 // pred_region
      %s811 = ssub.s32 %s8, 2
      // Predicated region
      $region37: #{latent_diffusion_forward.7} parent=35 // pred_check
        %p812 = pneg %p84
      $region38: #{latent_diffusion_forward.7} parent=35 // pred_check_branch
        %814 = sbr.rel (%p812) target = $region40
      $region39: #{latent_diffusion_forward.7} parent=35 // pred_region
        %p815 = scmp.lt.s32.totalorder %s14, 1
        %s816 = scalar_select %p815, %s14, 1
        %s817 = smul.addr %s816, 8
        %s818 = smul.addr %s817, 8
        %s819 = scalar_lea.vmem %s2, %s818
      $region40: #{latent_diffusion_forward.7} parent=35 // pred_fallthru
        _
    $region36: #{latent_diffusion_forward.7} parent=5 // pred_fallthru
      _
  $region6: #{latent_diffusion_forward.7} parent=0 // loop_footer
    %s12 = sadd.s32 1, %s8
  $region7: #{latent_diffusion_forward.7} parent=0 // loop_footer_branch
    %7 = sbr.rel target = $region3
  $region8: #{latent_diffusion_forward.7} parent=0 // loop_exit
    _

// kernel: latent_diffusion_forward.6
$region0: #{latent_diffusion_forward.6}
  #allocation0 [shape = 'u32[]', space=smem, size = 0x4, offset = 0x4, fixed_abs, tag = 'smem constant byte address 0x4 - core index']
  #allocation1 [shape = 'u32[72,128]{1,0:T(1,128)}', space=vmem, size = 0x9000, scoped, tag = 'internal scratch']
  %s0 = inlined_call_operand.vmem [shape: f32[2,18,18,3], index: 0, kind: input, shape index: {}]
  %s1 = inlined_call_operand.vmem [shape: bf16[9,3,12], index: 1, kind: input, shape index: {}]
  %s2 = inlined_call_operand.vmem [shape: f32[2,16,16,12], index: 2, kind: output, shape index: {}]
  %s3 = sld [smem:[#allocation0]]
  $region41: #{latent_diffusion_forward.6} parent=0
    _
  %s5 = ssub.s32 1, %s3
  %s6 = scalar_select 0, %s5, %s3
  loop: start=0, step=1, limit=4
  $region2: #{latent_diffusion_forward.6} parent=0 // loop_pre_header
    _
  $region3: #{latent_diffusion_forward.6} parent=0 // loop_header
    %s8 = sphi 0, %s12
    %p9 = scmp.ge.s32.totalorder %s8, 4
    %s18 = sphi 0, %s20
    %s21 = sphi 0, %s18
    %s22 = sphi 0, %s21
    %s38 = sphi 0, %s22
    %s42 = sphi 0, %s42
    %s44 = sphi 0, %s42
    %s45 = sphi 0, %s44
    %s59 = sphi 0, %s45
    %s65 = sphi 0, %s67
    %s68 = sphi 0, %s65
    %s69 = sphi 0, %s68
    %s85 = sphi 0, %s69
  $region4: #{latent_diffusion_forward.6} parent=0 // loop_header_branch
    %11 = sbr.rel (%p9) target = $region8
  $region5: #{latent_diffusion_forward.6} parent=0 // loop_body
    %s13 = ssub.s32 %s8, 1
    %s14 = ssub.s32 %s8, 2
    %s15 = sadd.s32 %s8, 1
    %s16 = ssub.s32 %s8, %s15
    %p17 = scmp.eq.s32.totalorder %s16, 0
    %s19 = sadd.s32 %s18, 1
    %s20 = scalar_select %p17, %s18, %s19
    %p23 = pneg %p17
    %p24 = scmp.eq.s32.totalorder %s8, 1
    %p25 = por %p23, %p24
    %p26 = scmp.ne.s32.totalorder %s18, %s21
    %p27 = scmp.eq.s32.totalorder %s8, 0
    %p28 = por %p26, %p27
    %p29 = scmp.ne.s32.totalorder %s18, %s21
    %p30 = scmp.eq.s32.totalorder %s13, 1
    %p31 = por %p29, %p30
    %p32 = scmp.ne.s32.totalorder %s21, %s22
    %p33 = scmp.eq.s32.totalorder %s13, 0
    %p34 = por %p32, %p33
    %p35 = scmp.ne.s32.totalorder %s21, %s22
    %p36 = scmp.eq.s32.totalorder %s14, 1
    %p37 = por %p35, %p36
    %p39 = scmp.ne.s32.totalorder %s22, %s38
    %p40 = scmp.eq.s32.totalorder %s14, 0
    %p41 = por %p39, %p40
    %s43 = sadd.s32 %s42, 1
    %p46 = scmp.eq.s32.totalorder %s8, 1
    %p47 = scmp.ne.s32.totalorder %s42, %s44
    %p48 = scmp.eq.s32.totalorder %s8, 0
    %p49 = por %p47, %p48
    %p50 = scmp.ne.s32.totalorder %s42, %s44
    %p51 = scmp.eq.s32.totalorder %s13, 1
    %p52 = por %p50, %p51
    %p53 = scmp.ne.s32.totalorder %s44, %s45
    %p54 = scmp.eq.s32.totalorder %s13, 0
    %p55 = por %p53, %p54
    %p56 = scmp.ne.s32.totalorder %s44, %s45
    %p57 = scmp.eq.s32.totalorder %s14, 1
    %p58 = por %p56, %p57
    %p60 = scmp.ne.s32.totalorder %s45, %s59
    %p61 = scmp.eq.s32.totalorder %s14, 0
    %p62 = por %p60, %p61
    %s63 = ssub.s32 %s8, %s15
    %p64 = scmp.eq.s32.totalorder %s63, 0
    %s66 = sadd.s32 %s65, 1
    %s67 = scalar_select %p64, %s65, %s66
    %p70 = pneg %p64
    %p71 = scmp.eq.s32.totalorder %s8, 1
    %p72 = por %p70, %p71
    %p73 = scmp.ne.s32.totalorder %s65, %s68
    %p74 = scmp.eq.s32.totalorder %s8, 0
    %p75 = por %p73, %p74
    %p76 = scmp.ne.s32.totalorder %s65, %s68
    %p77 = scmp.eq.s32.totalorder %s13, 1
    %p78 = por %p76, %p77
    %p79 = scmp.ne.s32.totalorder %s68, %s69
    %p80 = scmp.eq.s32.totalorder %s13, 0
    %p81 = por %p79, %p80
    %p82 = scmp.ne.s32.totalorder %s68, %s69
    %p83 = scmp.eq.s32.totalorder %s14, 1
    %p84 = por %p82, %p83
    %p86 = scmp.ne.s32.totalorder %s69, %s85
    %p87 = scmp.eq.s32.totalorder %s14, 0
    %p88 = por %p86, %p87
    %p89 = scmp.le.s32.totalorder 1, %s8
    %p90 = scmp.lt.s32.totalorder %s8, 3
    %p91 = pnand %p89, %p90
    %p92 = pneg %p91
    // Predicated region
    $region9: #{latent_diffusion_forward.6} parent=5 // pred_check
      _
    $region10: #{latent_diffusion_forward.6} parent=5 // pred_check_branch
      %94 = sbr.rel (%p91) target = $region12
    $region11: #{latent_diffusion_forward.6} parent=5 // pred_region
      %s95 = ssub.s32 %s8, 1
      // Predicated region
      $region13: #{latent_diffusion_forward.6} parent=11 // pred_check
        %p96 = pneg %p55
      $region14: #{latent_diffusion_forward.6} parent=11 // pred_check_branch
        %98 = sbr.rel (%p96) target = $region16
      $region15: #{latent_diffusion_forward.6} parent=11 // pred_region
        _
      $region16: #{latent_diffusion_forward.6} parent=11 // pred_fallthru
        _
    $region12: #{latent_diffusion_forward.6} parent=5 // pred_fallthru
      _
    %p99 = scmp.lt.s32.totalorder %s8, 2
    // Predicated region
    $region17: #{latent_diffusion_forward.6} parent=5 // pred_check
      %p100 = pneg %p99
    $region18: #{latent_diffusion_forward.6} parent=5 // pred_check_branch
      %102 = sbr.rel (%p100) target = $region20
    $region19: #{latent_diffusion_forward.6} parent=5 // pred_region
      // Predicated region
      $region21: #{latent_diffusion_forward.6} parent=19 // pred_check
        %p103 = pneg %p28
      $region22: #{latent_diffusion_forward.6} parent=19 // pred_check_branch
        %105 = sbr.rel (%p103) target = $region24
      $region23: #{latent_diffusion_forward.6} parent=19 // pred_region
        %p106 = scmp.lt.s32.totalorder %s8, 1
        %s107 = scalar_select %p106, %s8, 1
        %s108 = smul.addr %s107, 54
        %s109 = smul.addr %s108, 8
        %s110 = scalar_lea.vmem %s0, %s109
      $region24: #{latent_diffusion_forward.6} parent=19 // pred_fallthru
        _
    $region20: #{latent_diffusion_forward.6} parent=5 // pred_fallthru
      _
    %p111 = scmp.le.s32.totalorder 1, %s8
    %p112 = scmp.lt.s32.totalorder %s8, 3
    %p113 = pnand %p111, %p112
    %p114 = pneg %p113
    // Predicated region
    $region25: #{latent_diffusion_forward.6} parent=5 // pred_check
      _
    $region26: #{latent_diffusion_forward.6} parent=5 // pred_check_branch
      %116 = sbr.rel (%p113) target = $region28
    $region27: #{latent_diffusion_forward.6} parent=5 // pred_region
      %s117 = ssub.s32 %s8, 1
      %p118 = scmp.lt.s32.totalorder %s13, 1
      %s119 = scalar_select %p118, %s13, 1
      %s120 = smul.addr %s119, 54
      %s121 = smul.addr %s120, 8
      %s122 = scalar_lea.vmem %s0, %s121
      %p123 = pneg %p34
      %p124 = pneg %p31
      %p125 = pneg %p55
      %p126 = pneg %p52
      %p127 = pneg %p81
      %p128 = pneg %p78
      %p129 = scmp.lt.s32.totalorder %s13, 1
      %s130 = scalar_select %p129, %s13, 1
      %s131 = smul.addr %s130, 32
      %s132 = smul.addr %s131, 8
      %s133 = scalar_lea.vmem %s2, %s132
      %p134 = scmp.lt.s32.totalorder %s13, 1
      %s135 = scalar_select %p134, %s13, 1
      %s136 = smul.addr %s135, 54
      %s137 = smul.addr %s136, 8
      %s138 = scalar_lea.vmem %s0, %s137
      %p139 = scmp.lt.s32.totalorder %s13, 1
      %s140 = scalar_select %p139, %s13, 1
      %s141 = smul.addr %s140, 32
      %s142 = smul.addr %s141, 8
      %s143 = scalar_lea.vmem %s2, %s142
      %v145 = vld [vmem:[%s138] sm:$0xff]
      %v146 = vld [vmem:[%s138 + $0x8] sm:$0xff]
      %v147 = vld [vmem:[%s138 + $0x10] sm:$0x3]
      %v148 = vld [vmem:[%s138 + $0x18] sm:$0xff]
      %v149 = vld [vmem:[%s138 + $0x20] sm:$0xff]
      %v150 = vld [vmem:[%s138 + $0x28] sm:$0x3]
      %v151 = vld [vmem:[%s138 + $0x30] sm:$0xff]
      %v152 = vld [vmem:[%s138 + $0x38] sm:$0xff]
      %v153 = vld [vmem:[%s138 + $0x40] sm:$0x3]
      %v154 = vld [vmem:[%s138 + $0x48] sm:$0xff]
      %v155 = vld [vmem:[%s138 + $0x50] sm:$0xff]
      %v156 = vld [vmem:[%s138 + $0x58] sm:$0x3]
      %v157 = vld [vmem:[%s138 + $0x60] sm:$0xff]
      %v158 = vld [vmem:[%s138 + $0x68] sm:$0xff]
      %v159 = vld [vmem:[%s138 + $0x70] sm:$0x3]
      %v160 = vld [vmem:[%s138 + $0x78] sm:$0xff]
      %v161 = vld [vmem:[%s138 + $0x80] sm:$0xff]
      %v162 = vld [vmem:[%s138 + $0x88] sm:$0x3]
      %v163 = vld [vmem:[%s138 + $0x90] sm:$0xff]
      %v164 = vld [vmem:[%s138 + $0x98] sm:$0xff]
      %v165 = vld [vmem:[%s138 + $0xa0] sm:$0x3]
      %v166 = vld [vmem:[%s138 + $0xa8] sm:$0xff]
      %v167 = vld [vmem:[%s138 + $0xb0] sm:$0xff]
      %v168 = vld [vmem:[%s138 + $0xb8] sm:$0x3]
      %v169 = vld [vmem:[%s138 + $0xc0] sm:$0xff]
      %v170 = vld [vmem:[%s138 + $0xc8] sm:$0xff]
      %v171 = vld [vmem:[%s138 + $0xd0] sm:$0x3]
      %v172 = vld [vmem:[%s138 + $0xd8] sm:$0xff]
      %v173 = vld [vmem:[%s138 + $0xe0] sm:$0xff]
      %v174 = vld [vmem:[%s138 + $0xe8] sm:$0x3]
      %v175 = vld [vmem:[%s138 + $0xf0] sm:$0xff]
      %v176 = vld [vmem:[%s138 + $0xf8] sm:$0xff]
      %v177 = vld [vmem:[%s138 + $0x100] sm:$0x3]
      %v178 = vld [vmem:[%s138 + $0x108] sm:$0xff]
      %v179 = vld [vmem:[%s138 + $0x110] sm:$0xff]
      %v180 = vld [vmem:[%s138 + $0x118] sm:$0x3]
      %v181 = vld [vmem:[%s138 + $0x120] sm:$0xff]
      %v182 = vld [vmem:[%s138 + $0x128] sm:$0xff]
      %v183 = vld [vmem:[%s138 + $0x130] sm:$0x3]
      %v184 = vld [vmem:[%s138 + $0x138] sm:$0xff]
      %v185 = vld [vmem:[%s138 + $0x140] sm:$0xff]
      %v186 = vld [vmem:[%s138 + $0x148] sm:$0x3]
      %v187 = vld [vmem:[%s138 + $0x150] sm:$0xff]
      %v188 = vld [vmem:[%s138 + $0x158] sm:$0xff]
      %v189 = vld [vmem:[%s138 + $0x160] sm:$0x3]
      %v190 = vld [vmem:[%s138 + $0x168] sm:$0xff]
      %v191 = vld [vmem:[%s138 + $0x170] sm:$0xff]
      %v192 = vld [vmem:[%s138 + $0x178] sm:$0x3]
      %v193 = vld [vmem:[%s138 + $0x180] sm:$0xff]
      %v194 = vld [vmem:[%s138 + $0x188] sm:$0xff]
      %v195 = vld [vmem:[%s138 + $0x190] sm:$0x3]
      %v196 = vld [vmem:[%s138 + $0x198] sm:$0xff]
      %v197 = vld [vmem:[%s138 + $0x1a0] sm:$0xff]
      %v198 = vld [vmem:[%s138 + $0x1a8] sm:$0x3]
      %v199 = vpack.c.bf16 %v146, %v145
      %v200 = vpack.c.bf16 %v149, %v148
      %v201 = vpack.c.bf16 %v152, %v151
      %v202 = vpack.c.bf16 %v155, %v154
      %v203 = vpack.c.bf16 %v158, %v157
      %v204 = vpack.c.bf16 %v161, %v160
      %v205 = vpack.c.bf16 %v164, %v163
      %v206 = vpack.c.bf16 %v167, %v166
      %v207 = vpack.c.bf16 %v170, %v169
      %v208 = vpack.c.bf16 %v173, %v172
      %v209 = vpack.c.bf16 %v176, %v175
      %v210 = vpack.c.bf16 %v179, %v178
      %v211 = vpack.c.bf16 %v182, %v181
      %v212 = vpack.c.bf16 %v185, %v184
      %v213 = vpack.c.bf16 %v188, %v187
      %v214 = vpack.c.bf16 %v191, %v190
      %v215 = vld [vmem:[%s1] sm:$0x3]
      %vm264 = vcmask 1046528
      %v265 = vrot.slane %v145, 1
      %v266 = vrot.slane %v146, 1
      %v267 = vsel %vm264, %v265, %v266
      %v268 = vrot.slane %v147, 1
      %v269 = vsel %vm264, %v266, %v268
      %v270 = vrot.slane %v148, 1
      %v271 = vrot.slane %v149, 1
      %v272 = vsel %vm264, %v270, %v271
      %v273 = vrot.slane %v150, 1
      %v274 = vsel %vm264, %v271, %v273
      %v275 = vrot.slane %v151, 1
      %v276 = vrot.slane %v152, 1
      %v277 = vsel %vm264, %v275, %v276
      %v278 = vrot.slane %v153, 1
      %v279 = vsel %vm264, %v276, %v278
      %v280 = vrot.slane %v154, 1
      %v281 = vrot.slane %v155, 1
      %v282 = vsel %vm264, %v280, %v281
      %v283 = vrot.slane %v156, 1
      %v284 = vsel %vm264, %v281, %v283
      %v285 = vrot.slane %v157, 1
      %v286 = vrot.slane %v158, 1
      %v287 = vsel %vm264, %v285, %v286
      %v288 = vrot.slane %v159, 1
      %v289 = vsel %vm264, %v286, %v288
      %v290 = vrot.slane %v160, 1
      %v291 = vrot.slane %v161, 1
      %v292 = vsel %vm264, %v290, %v291
      %v293 = vrot.slane %v162, 1
      %v294 = vsel %vm264, %v291, %v293
      %v295 = vrot.slane %v163, 1
      %v296 = vrot.slane %v164, 1
      %v297 = vsel %vm264, %v295, %v296
      %v298 = vrot.slane %v165, 1
      %v299 = vsel %vm264, %v296, %v298
      %v300 = vrot.slane %v166, 1
      %v301 = vrot.slane %v167, 1
      %v302 = vsel %vm264, %v300, %v301
      %v303 = vrot.slane %v168, 1
      %v304 = vsel %vm264, %v301, %v303
      %v305 = vrot.slane %v169, 1
      %v306 = vrot.slane %v170, 1
      %v307 = vsel %vm264, %v305, %v306
      %v308 = vrot.slane %v171, 1
      %v309 = vsel %vm264, %v306, %v308
      %v310 = vrot.slane %v172, 1
      %v311 = vrot.slane %v173, 1
      %v312 = vsel %vm264, %v310, %v311
      %v313 = vrot.slane %v174, 1
      %v314 = vsel %vm264, %v311, %v313
      %v315 = vrot.slane %v175, 1
      %v316 = vrot.slane %v176, 1
      %v317 = vsel %vm264, %v315, %v316
      %v318 = vrot.slane %v177, 1
      %v319 = vsel %vm264, %v316, %v318
      %v320 = vrot.slane %v178, 1
      %v321 = vrot.slane %v179, 1
      %v322 = vsel %vm264, %v320, %v321
      %v323 = vrot.slane %v180, 1
      %v324 = vsel %vm264, %v321, %v323
      %v325 = vrot.slane %v181, 1
      %v326 = vrot.slane %v182, 1
      %v327 = vsel %vm264, %v325, %v326
      %v328 = vrot.slane %v183, 1
      %v329 = vsel %vm264, %v326, %v328
      %v330 = vrot.slane %v184, 1
      %v331 = vrot.slane %v185, 1
      %v332 = vsel %vm264, %v330, %v331
      %v333 = vrot.slane %v186, 1
      %v334 = vsel %vm264, %v331, %v333
      %v335 = vrot.slane %v187, 1
      %v336 = vrot.slane %v188, 1
      %v337 = vsel %vm264, %v335, %v336
      %v338 = vrot.slane %v189, 1
      %v339 = vsel %vm264, %v336, %v338
      %v340 = vrot.slane %v190, 1
      %v341 = vrot.slane %v191, 1
      %v342 = vsel %vm264, %v340, %v341
      %v343 = vrot.slane %v192, 1
      %v344 = vsel %vm264, %v341, %v343
      %v377 = vpack.c.bf16 %v269, %v267
      %v378 = vpack.c.bf16 %v274, %v272
      %v379 = vpack.c.bf16 %v279, %v277
      %v380 = vpack.c.bf16 %v284, %v282
      %v381 = vpack.c.bf16 %v289, %v287
      %v382 = vpack.c.bf16 %v294, %v292
      %v383 = vpack.c.bf16 %v299, %v297
      %v384 = vpack.c.bf16 %v304, %v302
      %v385 = vpack.c.bf16 %v309, %v307
      %v386 = vpack.c.bf16 %v314, %v312
      %v387 = vpack.c.bf16 %v319, %v317
      %v388 = vpack.c.bf16 %v324, %v322
      %v389 = vpack.c.bf16 %v329, %v327
      %v390 = vpack.c.bf16 %v334, %v332
      %v391 = vpack.c.bf16 %v339, %v337
      %v392 = vpack.c.bf16 %v344, %v342
      %s393 = scalar_lea.vmem %s1, 2
      %v394 = vld [vmem:[%s393] sm:$0x3]
      %vm395 = vcmask 23552
      %v397 = vsel %vm395, %v377, 0
      %v400 = vsel %vm395, %v378, 0
      %v403 = vsel %vm395, %v379, 0
      %v406 = vsel %vm395, %v380, 0
      %v409 = vsel %vm395, %v381, 0
      %v412 = vsel %vm395, %v382, 0
      %v415 = vsel %vm395, %v383, 0
      %v418 = vsel %vm395, %v384, 0
      %v421 = vsel %vm395, %v385, 0
      %v424 = vsel %vm395, %v386, 0
      %v427 = vsel %vm395, %v387, 0
      %v430 = vsel %vm395, %v388, 0
      %v433 = vsel %vm395, %v389, 0
      %v436 = vsel %vm395, %v390, 0
      %v439 = vsel %vm395, %v391, 0
      %v442 = vsel %vm395, %v392, 0
      %vm444 = vcmask 1040384
      %vm445 = vcmask 1041408
      %v446 = vsel %vm444, 4294967295, 65535
      %v447 = vsel %vm445, %v446, 0
      %v449 = vand.u32 %v394, %v447
      %451 = vmatpush.bf16.msra.mxu0 0
      %452 = vmatpush.bf16.msra.mxu0 0
      %453 = vmatpush.bf16.msra.mxu0 0
      %454 = vmatpush.bf16.msra.mxu0 0
      %455 = vmatpush.bf16.msra.mxu0 0
      %456 = vmatpush.bf16.msra.mxu0 0
      %457 = vmatpush.bf16.msra.mxu0 0
      %458 = vmatpush.bf16.msra.mxu0 %v449
      %459 = vmatmul.bf16.gmra.mxu0 %v397
      %v460 = vpop.f32.mrf.mxu0
      %v461 = vadd.f32 0.0, %v460
      %v462 = vpop.f32.mrf.mxu0
      %v463 = vadd.f32 0.0, %v462
      %464 = vmatmul.bf16.gmra.mxu0 %v400
      %v465 = vpop.f32.mrf.mxu0
      %v466 = vadd.f32 0.0, %v465
      %v467 = vpop.f32.mrf.mxu0
      %v468 = vadd.f32 0.0, %v467
      %469 = vmatmul.bf16.gmra.mxu0 %v403
      %v470 = vpop.f32.mrf.mxu0
      %v471 = vadd.f32 0.0, %v470
      %v472 = vpop.f32.mrf.mxu0
      %v473 = vadd.f32 0.0, %v472
      %474 = vmatmul.bf16.gmra.mxu0 %v406
      %v475 = vpop.f32.mrf.mxu0
      %v476 = vadd.f32 0.0, %v475
      %v477 = vpop.f32.mrf.mxu0
      %v478 = vadd.f32 0.0, %v477
      %479 = vmatmul.bf16.gmra.mxu0 %v409
      %v480 = vpop.f32.mrf.mxu0
      %v481 = vadd.f32 0.0, %v480
      %v482 = vpop.f32.mrf.mxu0
      %v483 = vadd.f32 0.0, %v482
      %484 = vmatmul.bf16.gmra.mxu0 %v412
      %v485 = vpop.f32.mrf.mxu0
      %v486 = vadd.f32 0.0, %v485
      %v487 = vpop.f32.mrf.mxu0
      %v488 = vadd.f32 0.0, %v487
      %489 = vmatmul.bf16.gmra.mxu0 %v415
      %v490 = vpop.f32.mrf.mxu0
      %v491 = vadd.f32 0.0, %v490
      %v492 = vpop.f32.mrf.mxu0
      %v493 = vadd.f32 0.0, %v492
      %494 = vmatmul.bf16.gmra.mxu0 %v418
      %v495 = vpop.f32.mrf.mxu0
      %v496 = vadd.f32 0.0, %v495
      %v497 = vpop.f32.mrf.mxu0
      %v498 = vadd.f32 0.0, %v497
      %499 = vmatmul.bf16.gmra.mxu0 %v421
      %v500 = vpop.f32.mrf.mxu0
      %v501 = vadd.f32 0.0, %v500
      %v502 = vpop.f32.mrf.mxu0
      %v503 = vadd.f32 0.0, %v502
      %504 = vmatmul.bf16.gmra.mxu0 %v424
      %v505 = vpop.f32.mrf.mxu0
      %v506 = vadd.f32 0.0, %v505
      %v507 = vpop.f32.mrf.mxu0
      %v508 = vadd.f32 0.0, %v507
      %509 = vmatmul.bf16.gmra.mxu0 %v427
      %v510 = vpop.f32.mrf.mxu0
      %v511 = vadd.f32 0.0, %v510
      %v512 = vpop.f32.mrf.mxu0
      %v513 = vadd.f32 0.0, %v512
      %514 = vmatmul.bf16.gmra.mxu0 %v430
      %v515 = vpop.f32.mrf.mxu0
      %v516 = vadd.f32 0.0, %v515
      %v517 = vpop.f32.mrf.mxu0
      %v518 = vadd.f32 0.0, %v517
      %519 = vmatmul.bf16.gmra.mxu0 %v433
      %v520 = vpop.f32.mrf.mxu0
      %v521 = vadd.f32 0.0, %v520
      %v522 = vpop.f32.mrf.mxu0
      %v523 = vadd.f32 0.0, %v522
      %524 = vmatmul.bf16.gmra.mxu0 %v436
      %v525 = vpop.f32.mrf.mxu0
      %v526 = vadd.f32 0.0, %v525
      %v527 = vpop.f32.mrf.mxu0
      %v528 = vadd.f32 0.0, %v527
      %529 = vmatmul.bf16.gmra.mxu0 %v439
      %v530 = vpop.f32.mrf.mxu0
      %v531 = vadd.f32 0.0, %v530
      %v532 = vpop.f32.mrf.mxu0
      %v533 = vadd.f32 0.0, %v532
      %534 = vmatmul.bf16.gmra.mxu0 %v442
      %v535 = vpop.f32.mrf.mxu0
      %v536 = vadd.f32 0.0, %v535
      %v537 = vpop.f32.mrf.mxu0
      %v538 = vadd.f32 0.0, %v537
      %539 = vdwg.mxu0
      %v541 = vsel %vm395, %v199, 0
      %v544 = vsel %vm395, %v200, 0
      %v547 = vsel %vm395, %v201, 0
      %v550 = vsel %vm395, %v202, 0
      %v553 = vsel %vm395, %v203, 0
      %v556 = vsel %vm395, %v204, 0
      %v559 = vsel %vm395, %v205, 0
      %v562 = vsel %vm395, %v206, 0
      %v565 = vsel %vm395, %v207, 0
      %v568 = vsel %vm395, %v208, 0
      %v571 = vsel %vm395, %v209, 0
      %v574 = vsel %vm395, %v210, 0
      %v577 = vsel %vm395, %v211, 0
      %v580 = vsel %vm395, %v212, 0
      %v583 = vsel %vm395, %v213, 0
      %v586 = vsel %vm395, %v214, 0
      %v589 = vand.u32 %v215, %v447
      %591 = vmatpush.bf16.msra.mxu0 0
      %592 = vmatpush.bf16.msra.mxu0 0
      %593 = vmatpush.bf16.msra.mxu0 0
      %594 = vmatpush.bf16.msra.mxu0 0
      %595 = vmatpush.bf16.msra.mxu0 0
      %596 = vmatpush.bf16.msra.mxu0 0
      %597 = vmatpush.bf16.msra.mxu0 0
      %598 = vmatpush.bf16.msra.mxu0 %v589
      %599 = vmatmul.bf16.gmra.mxu0 %v541
      %v600 = vpop.f32.mrf.mxu0
      %v601 = vadd.f32 %v461, %v600
      %v602 = vpop.f32.mrf.mxu0
      %v603 = vadd.f32 %v463, %v602
      %604 = vmatmul.bf16.gmra.mxu0 %v544
      %v605 = vpop.f32.mrf.mxu0
      %v606 = vadd.f32 %v466, %v605
      %v607 = vpop.f32.mrf.mxu0
      %v608 = vadd.f32 %v468, %v607
      %609 = vmatmul.bf16.gmra.mxu0 %v547
      %v610 = vpop.f32.mrf.mxu0
      %v611 = vadd.f32 %v471, %v610
      %v612 = vpop.f32.mrf.mxu0
      %v613 = vadd.f32 %v473, %v612
      %614 = vmatmul.bf16.gmra.mxu0 %v550
      %v615 = vpop.f32.mrf.mxu0
      %v616 = vadd.f32 %v476, %v615
      %v617 = vpop.f32.mrf.mxu0
      %v618 = vadd.f32 %v478, %v617
      %619 = vmatmul.bf16.gmra.mxu0 %v553
      %v620 = vpop.f32.mrf.mxu0
      %v621 = vadd.f32 %v481, %v620
      %v622 = vpop.f32.mrf.mxu0
      %v623 = vadd.f32 %v483, %v622
      %624 = vmatmul.bf16.gmra.mxu0 %v556
      %v625 = vpop.f32.mrf.mxu0
      %v626 = vadd.f32 %v486, %v625
      %v627 = vpop.f32.mrf.mxu0
      %v628 = vadd.f32 %v488, %v627
      %629 = vmatmul.bf16.gmra.mxu0 %v559
      %v630 = vpop.f32.mrf.mxu0
      %v631 = vadd.f32 %v491, %v630
      %v632 = vpop.f32.mrf.mxu0
      %v633 = vadd.f32 %v493, %v632
      %634 = vmatmul.bf16.gmra.mxu0 %v562
      %v635 = vpop.f32.mrf.mxu0
      %v636 = vadd.f32 %v496, %v635
      %v637 = vpop.f32.mrf.mxu0
      %v638 = vadd.f32 %v498, %v637
      %639 = vmatmul.bf16.gmra.mxu0 %v565
      %v640 = vpop.f32.mrf.mxu0
      %v641 = vadd.f32 %v501, %v640
      %v642 = vpop.f32.mrf.mxu0
      %v643 = vadd.f32 %v503, %v642
      %644 = vmatmul.bf16.gmra.mxu0 %v568
      %v645 = vpop.f32.mrf.mxu0
      %v646 = vadd.f32 %v506, %v645
      %v647 = vpop.f32.mrf.mxu0
      %v648 = vadd.f32 %v508, %v647
      %649 = vmatmul.bf16.gmra.mxu0 %v571
      %v650 = vpop.f32.mrf.mxu0
      %v651 = vadd.f32 %v511, %v650
      %v652 = vpop.f32.mrf.mxu0
      %v653 = vadd.f32 %v513, %v652
      %654 = vmatmul.bf16.gmra.mxu0 %v574
      %v655 = vpop.f32.mrf.mxu0
      %v656 = vadd.f32 %v516, %v655
      %v657 = vpop.f32.mrf.mxu0
      %v658 = vadd.f32 %v518, %v657
      %659 = vmatmul.bf16.gmra.mxu0 %v577
      %v660 = vpop.f32.mrf.mxu0
      %v661 = vadd.f32 %v521, %v660
      %v662 = vpop.f32.mrf.mxu0
      %v663 = vadd.f32 %v523, %v662
      %664 = vmatmul.bf16.gmra.mxu0 %v580
      %v665 = vpop.f32.mrf.mxu0
      %v666 = vadd.f32 %v526, %v665
      %v667 = vpop.f32.mrf.mxu0
      %v668 = vadd.f32 %v528, %v667
      %669 = vmatmul.bf16.gmra.mxu0 %v583
      %v670 = vpop.f32.mrf.mxu0
      %v671 = vadd.f32 %v531, %v670
      %v672 = vpop.f32.mrf.mxu0
      %v673 = vadd.f32 %v533, %v672
      %674 = vmatmul.bf16.gmra.mxu0 %v586
      %v675 = vpop.f32.mrf.mxu0
      %v676 = vadd.f32 %v536, %v675
      %v677 = vpop.f32.mrf.mxu0
      %v678 = vadd.f32 %v538, %v677
      %679 = vdwg.mxu0
      %vm680 = vcmask 1045504
      %v681 = vrot.slane %v145, 2
      %v682 = vrot.slane %v146, 2
      %v683 = vsel %vm680, %v681, %v682
      %v684 = vrot.slane %v147, 2
      %v685 = vsel %vm680, %v682, %v684
      %v686 = vrot.slane %v148, 2
      %v687 = vrot.slane %v149, 2
      %v688 = vsel %vm680, %v686, %v687
      %v689 = vrot.slane %v150, 2
      %v690 = vsel %vm680, %v687, %v689
      %v691 = vrot.slane %v151, 2
      %v692 = vrot.slane %v152, 2
      %v693 = vsel %vm680, %v691, %v692
      %v694 = vrot.slane %v153, 2
      %v695 = vsel %vm680, %v692, %v694
      %v696 = vrot.slane %v154, 2
      %v697 = vrot.slane %v155, 2
      %v698 = vsel %vm680, %v696, %v697
      %v699 = vrot.slane %v156, 2
      %v700 = vsel %vm680, %v697, %v699
      %v701 = vrot.slane %v157, 2
      %v702 = vrot.slane %v158, 2
      %v703 = vsel %vm680, %v701, %v702
      %v704 = vrot.slane %v159, 2
      %v705 = vsel %vm680, %v702, %v704
      %v706 = vrot.slane %v160, 2
      %v707 = vrot.slane %v161, 2
      %v708 = vsel %vm680, %v706, %v707
      %v709 = vrot.slane %v162, 2
      %v710 = vsel %vm680, %v707, %v709
      %v711 = vrot.slane %v163, 2
      %v712 = vrot.slane %v164, 2
      %v713 = vsel %vm680, %v711, %v712
      %v714 = vrot.slane %v165, 2
      %v715 = vsel %vm680, %v712, %v714
      %v716 = vrot.slane %v166, 2
      %v717 = vrot.slane %v167, 2
      %v718 = vsel %vm680, %v716, %v717
      %v719 = vrot.slane %v168, 2
      %v720 = vsel %vm680, %v717, %v719
      %v721 = vrot.slane %v169, 2
      %v722 = vrot.slane %v170, 2
      %v723 = vsel %vm680, %v721, %v722
      %v724 = vrot.slane %v171, 2
      %v725 = vsel %vm680, %v722, %v724
      %v726 = vrot.slane %v172, 2
      %v727 = vrot.slane %v173, 2
      %v728 = vsel %vm680, %v726, %v727
      %v729 = vrot.slane %v174, 2
      %v730 = vsel %vm680, %v727, %v729
      %v731 = vrot.slane %v175, 2
      %v732 = vrot.slane %v176, 2
      %v733 = vsel %vm680, %v731, %v732
      %v734 = vrot.slane %v177, 2
      %v735 = vsel %vm680, %v732, %v734
      %v736 = vrot.slane %v178, 2
      %v737 = vrot.slane %v179, 2
      %v738 = vsel %vm680, %v736, %v737
      %v739 = vrot.slane %v180, 2
      %v740 = vsel %vm680, %v737, %v739
      %v741 = vrot.slane %v181, 2
      %v742 = vrot.slane %v182, 2
      %v743 = vsel %vm680, %v741, %v742
      %v744 = vrot.slane %v183, 2
      %v745 = vsel %vm680, %v742, %v744
      %v746 = vrot.slane %v184, 2
      %v747 = vrot.slane %v185, 2
      %v748 = vsel %vm680, %v746, %v747
      %v749 = vrot.slane %v186, 2
      %v750 = vsel %vm680, %v747, %v749
      %v751 = vrot.slane %v187, 2
      %v752 = vrot.slane %v188, 2
      %v753 = vsel %vm680, %v751, %v752
      %v754 = vrot.slane %v189, 2
      %v755 = vsel %vm680, %v752, %v754
      %v756 = vrot.slane %v190, 2
      %v757 = vrot.slane %v191, 2
      %v758 = vsel %vm680, %v756, %v757
      %v759 = vrot.slane %v192, 2
      %v760 = vsel %vm680, %v757, %v759
      %v793 = vpack.c.bf16 %v685, %v683
      %v794 = vpack.c.bf16 %v690, %v688
      %v795 = vpack.c.bf16 %v695, %v693
      %v796 = vpack.c.bf16 %v700, %v698
      %v797 = vpack.c.bf16 %v705, %v703
      %v798 = vpack.c.bf16 %v710, %v708
      %v799 = vpack.c.bf16 %v715, %v713
      %v800 = vpack.c.bf16 %v720, %v718
      %v801 = vpack.c.bf16 %v725, %v723
      %v802 = vpack.c.bf16 %v730, %v728
      %v803 = vpack.c.bf16 %v735, %v733
      %v804 = vpack.c.bf16 %v740, %v738
      %v805 = vpack.c.bf16 %v745, %v743
      %v806 = vpack.c.bf16 %v750, %v748
      %v807 = vpack.c.bf16 %v755, %v753
      %v808 = vpack.c.bf16 %v760, %v758
      %s809 = scalar_lea.vmem %s1, 4
      %v810 = vld [vmem:[%s809] sm:$0x3]
      %v812 = vsel %vm395, %v793, 0
      %v815 = vsel %vm395, %v794, 0
      %v818 = vsel %vm395, %v795, 0
      %v821 = vsel %vm395, %v796, 0
      %v824 = vsel %vm395, %v797, 0
      %v827 = vsel %vm395, %v798, 0
      %v830 = vsel %vm395, %v799, 0
      %v833 = vsel %vm395, %v800, 0
      %v836 = vsel %vm395, %v801, 0
      %v839 = vsel %vm395, %v802, 0
      %v842 = vsel %vm395, %v803, 0
      %v845 = vsel %vm395, %v804, 0
      %v848 = vsel %vm395, %v805, 0
      %v851 = vsel %vm395, %v806, 0
      %v854 = vsel %vm395, %v807, 0
      %v857 = vsel %vm395, %v808, 0
      %v860 = vand.u32 %v810, %v447
      %862 = vmatpush.bf16.msra.mxu0 0
      %863 = vmatpush.bf16.msra.mxu0 0
      %864 = vmatpush.bf16.msra.mxu0 0
      %865 = vmatpush.bf16.msra.mxu0 0
      %866 = vmatpush.bf16.msra.mxu0 0
      %867 = vmatpush.bf16.msra.mxu0 0
      %868 = vmatpush.bf16.msra.mxu0 0
      %869 = vmatpush.bf16.msra.mxu0 %v860
      %870 = vmatmul.bf16.gmra.mxu0 %v812
      %v871 = vpop.f32.mrf.mxu0
      %v872 = vadd.f32 0.0, %v871
      %v873 = vpop.f32.mrf.mxu0
      %v874 = vadd.f32 0.0, %v873
      %875 = vmatmul.bf16.gmra.mxu0 %v815
      %v876 = vpop.f32.mrf.mxu0
      %v877 = vadd.f32 0.0, %v876
      %v878 = vpop.f32.mrf.mxu0
      %v879 = vadd.f32 0.0, %v878
      %880 = vmatmul.bf16.gmra.mxu0 %v818
      %v881 = vpop.f32.mrf.mxu0
      %v882 = vadd.f32 0.0, %v881
      %v883 = vpop.f32.mrf.mxu0
      %v884 = vadd.f32 0.0, %v883
      %885 = vmatmul.bf16.gmra.mxu0 %v821
      %v886 = vpop.f32.mrf.mxu0
      %v887 = vadd.f32 0.0, %v886
      %v888 = vpop.f32.mrf.mxu0
      %v889 = vadd.f32 0.0, %v888
      %890 = vmatmul.bf16.gmra.mxu0 %v824
      %v891 = vpop.f32.mrf.mxu0
      %v892 = vadd.f32 0.0, %v891
      %v893 = vpop.f32.mrf.mxu0
      %v894 = vadd.f32 0.0, %v893
      %895 = vmatmul.bf16.gmra.mxu0 %v827
      %v896 = vpop.f32.mrf.mxu0
      %v897 = vadd.f32 0.0, %v896
      %v898 = vpop.f32.mrf.mxu0
      %v899 = vadd.f32 0.0, %v898
      %900 = vmatmul.bf16.gmra.mxu0 %v830
      %v901 = vpop.f32.mrf.mxu0
      %v902 = vadd.f32 0.0, %v901
      %v903 = vpop.f32.mrf.mxu0
      %v904 = vadd.f32 0.0, %v903
      %905 = vmatmul.bf16.gmra.mxu0 %v833
      %v906 = vpop.f32.mrf.mxu0
      %v907 = vadd.f32 0.0, %v906
      %v908 = vpop.f32.mrf.mxu0
      %v909 = vadd.f32 0.0, %v908
      %910 = vmatmul.bf16.gmra.mxu0 %v836
      %v911 = vpop.f32.mrf.mxu0
      %v912 = vadd.f32 0.0, %v911
      %v913 = vpop.f32.mrf.mxu0
      %v914 = vadd.f32 0.0, %v913
      %915 = vmatmul.bf16.gmra.mxu0 %v839
      %v916 = vpop.f32.mrf.mxu0
      %v917 = vadd.f32 0.0, %v916
      %v918 = vpop.f32.mrf.mxu0
      %v919 = vadd.f32 0.0, %v918
      %920 = vmatmul.bf16.gmra.mxu0 %v842
      %v921 = vpop.f32.mrf.mxu0
      %v922 = vadd.f32 0.0, %v921
      %v923 = vpop.f32.mrf.mxu0
      %v924 = vadd.f32 0.0, %v923
      %925 = vmatmul.bf16.gmra.mxu0 %v845
      %v926 = vpop.f32.mrf.mxu0
      %v927 = vadd.f32 0.0, %v926
      %v928 = vpop.f32.mrf.mxu0
      %v929 = vadd.f32 0.0, %v928
      %930 = vmatmul.bf16.gmra.mxu0 %v848
      %v931 = vpop.f32.mrf.mxu0
      %v932 = vadd.f32 0.0, %v931
      %v933 = vpop.f32.mrf.mxu0
      %v934 = vadd.f32 0.0, %v933
      %935 = vmatmul.bf16.gmra.mxu0 %v851
      %v936 = vpop.f32.mrf.mxu0
      %v937 = vadd.f32 0.0, %v936
      %v938 = vpop.f32.mrf.mxu0
      %v939 = vadd.f32 0.0, %v938
      %940 = vmatmul.bf16.gmra.mxu0 %v854
      %v941 = vpop.f32.mrf.mxu0
      %v942 = vadd.f32 0.0, %v941
      %v943 = vpop.f32.mrf.mxu0
      %v944 = vadd.f32 0.0, %v943
      %945 = vmatmul.bf16.gmra.mxu0 %v857
      %v946 = vpop.f32.mrf.mxu0
      %v947 = vadd.f32 0.0, %v946
      %v948 = vpop.f32.mrf.mxu0
      %v949 = vadd.f32 0.0, %v948
      %950 = vdwg.mxu0
      %v951 = vadd.f32 %v601, %v872
      %v952 = vadd.f32 %v603, %v874
      %v953 = vadd.f32 %v606, %v877
      %v954 = vadd.f32 %v608, %v879
      %v955 = vadd.f32 %v611, %v882
      %v956 = vadd.f32 %v613, %v884
      %v957 = vadd.f32 %v616, %v887
      %v958 = vadd.f32 %v618, %v889
      %v959 = vadd.f32 %v621, %v892
      %v960 = vadd.f32 %v623, %v894
      %v961 = vadd.f32 %v626, %v897
      %v962 = vadd.f32 %v628, %v899
      %v963 = vadd.f32 %v631, %v902
      %v964 = vadd.f32 %v633, %v904
      %v965 = vadd.f32 %v636, %v907
      %v966 = vadd.f32 %v638, %v909
      %v967 = vadd.f32 %v641, %v912
      %v968 = vadd.f32 %v643, %v914
      %v969 = vadd.f32 %v646, %v917
      %v970 = vadd.f32 %v648, %v919
      %v971 = vadd.f32 %v651, %v922
      %v972 = vadd.f32 %v653, %v924
      %v973 = vadd.f32 %v656, %v927
      %v974 = vadd.f32 %v658, %v929
      %v975 = vadd.f32 %v661, %v932
      %v976 = vadd.f32 %v663, %v934
      %v977 = vadd.f32 %v666, %v937
      %v978 = vadd.f32 %v668, %v939
      %v979 = vadd.f32 %v671, %v942
      %v980 = vadd.f32 %v673, %v944
      %v981 = vadd.f32 %v676, %v947
      %v982 = vadd.f32 %v678, %v949
      %v983 = vpack.c.bf16 %v194, %v193
      %s984 = scalar_lea.vmem %s1, 6
      %v985 = vld [vmem:[%s984] sm:$0x3]
      %v987 = vsel %vm395, %v983, 0
      %v990 = vand.u32 %v985, %v447
      %992 = vmatpush.bf16.msra.mxu0 0
      %993 = vmatpush.bf16.msra.mxu0 0
      %994 = vmatpush.bf16.msra.mxu0 0
      %995 = vmatpush.bf16.msra.mxu0 0
      %996 = vmatpush.bf16.msra.mxu0 0
      %997 = vmatpush.bf16.msra.mxu0 0
      %998 = vmatpush.bf16.msra.mxu0 0
      %999 = vmatpush.bf16.msra.mxu0 %v990
      %1000 = vmatmul.bf16.gmra.mxu0 %v544
      %v1001 = vpop.f32.mrf.mxu0
      %v1002 = vadd.f32 0.0, %v1001
      %v1003 = vpop.f32.mrf.mxu0
      %v1004 = vadd.f32 0.0, %v1003
      %1005 = vmatmul.bf16.gmra.mxu0 %v547
      %v1006 = vpop.f32.mrf.mxu0
      %v1007 = vadd.f32 0.0, %v1006
      %v1008 = vpop.f32.mrf.mxu0
      %v1009 = vadd.f32 0.0, %v1008
      %1010 = vmatmul.bf16.gmra.mxu0 %v550
      %v1011 = vpop.f32.mrf.mxu0
      %v1012 = vadd.f32 0.0, %v1011
      %v1013 = vpop.f32.mrf.mxu0
      %v1014 = vadd.f32 0.0, %v1013
      %1015 = vmatmul.bf16.gmra.mxu0 %v553
      %v1016 = vpop.f32.mrf.mxu0
      %v1017 = vadd.f32 0.0, %v1016
      %v1018 = vpop.f32.mrf.mxu0
      %v1019 = vadd.f32 0.0, %v1018
      %1020 = vmatmul.bf16.gmra.mxu0 %v556
      %v1021 = vpop.f32.mrf.mxu0
      %v1022 = vadd.f32 0.0, %v1021
      %v1023 = vpop.f32.mrf.mxu0
      %v1024 = vadd.f32 0.0, %v1023
      %1025 = vmatmul.bf16.gmra.mxu0 %v559
      %v1026 = vpop.f32.mrf.mxu0
      %v1027 = vadd.f32 0.0, %v1026
      %v1028 = vpop.f32.mrf.mxu0
      %v1029 = vadd.f32 0.0, %v1028
      %1030 = vmatmul.bf16.gmra.mxu0 %v562
      %v1031 = vpop.f32.mrf.mxu0
      %v1032 = vadd.f32 0.0, %v1031
      %v1033 = vpop.f32.mrf.mxu0
      %v1034 = vadd.f32 0.0, %v1033
      %1035 = vmatmul.bf16.gmra.mxu0 %v565
      %v1036 = vpop.f32.mrf.mxu0
      %v1037 = vadd.f32 0.0, %v1036
      %v1038 = vpop.f32.mrf.mxu0
      %v1039 = vadd.f32 0.0, %v1038
      %1040 = vmatmul.bf16.gmra.mxu0 %v568
      %v1041 = vpop.f32.mrf.mxu0
      %v1042 = vadd.f32 0.0, %v1041
      %v1043 = vpop.f32.mrf.mxu0
      %v1044 = vadd.f32 0.0, %v1043
      %1045 = vmatmul.bf16.gmra.mxu0 %v571
      %v1046 = vpop.f32.mrf.mxu0
      %v1047 = vadd.f32 0.0, %v1046
      %v1048 = vpop.f32.mrf.mxu0
      %v1049 = vadd.f32 0.0, %v1048
      %1050 = vmatmul.bf16.gmra.mxu0 %v574
      %v1051 = vpop.f32.mrf.mxu0
      %v1052 = vadd.f32 0.0, %v1051
      %v1053 = vpop.f32.mrf.mxu0
      %v1054 = vadd.f32 0.0, %v1053
      %1055 = vmatmul.bf16.gmra.mxu0 %v577
      %v1056 = vpop.f32.mrf.mxu0
      %v1057 = vadd.f32 0.0, %v1056
      %v1058 = vpop.f32.mrf.mxu0
      %v1059 = vadd.f32 0.0, %v1058
      %1060 = vmatmul.bf16.gmra.mxu0 %v580
      %v1061 = vpop.f32.mrf.mxu0
      %v1062 = vadd.f32 0.0, %v1061
      %v1063 = vpop.f32.mrf.mxu0
      %v1064 = vadd.f32 0.0, %v1063
      %1065 = vmatmul.bf16.gmra.mxu0 %v583
      %v1066 = vpop.f32.mrf.mxu0
      %v1067 = vadd.f32 0.0, %v1066
      %v1068 = vpop.f32.mrf.mxu0
      %v1069 = vadd.f32 0.0, %v1068
      %1070 = vmatmul.bf16.gmra.mxu0 %v586
      %v1071 = vpop.f32.mrf.mxu0
      %v1072 = vadd.f32 0.0, %v1071
      %v1073 = vpop.f32.mrf.mxu0
      %v1074 = vadd.f32 0.0, %v1073
      %1075 = vmatmul.bf16.gmra.mxu0 %v987
      %v1076 = vpop.f32.mrf.mxu0
      %v1077 = vadd.f32 0.0, %v1076
      %v1078 = vpop.f32.mrf.mxu0
      %v1079 = vadd.f32 0.0, %v1078
      %1080 = vdwg.mxu0
      %v1081 = vadd.f32 %v951, %v1002
      %v1082 = vadd.f32 %v952, %v1004
      %v1083 = vadd.f32 %v953, %v1007
      %v1084 = vadd.f32 %v954, %v1009
      %v1085 = vadd.f32 %v955, %v1012
      %v1086 = vadd.f32 %v956, %v1014
      %v1087 = vadd.f32 %v957, %v1017
      %v1088 = vadd.f32 %v958, %v1019
      %v1089 = vadd.f32 %v959, %v1022
      %v1090 = vadd.f32 %v960, %v1024
      %v1091 = vadd.f32 %v961, %v1027
      %v1092 = vadd.f32 %v962, %v1029
      %v1093 = vadd.f32 %v963, %v1032
      %v1094 = vadd.f32 %v964, %v1034
      %v1095 = vadd.f32 %v965, %v1037
      %v1096 = vadd.f32 %v966, %v1039
      %v1097 = vadd.f32 %v967, %v1042
      %v1098 = vadd.f32 %v968, %v1044
      %v1099 = vadd.f32 %v969, %v1047
      %v1100 = vadd.f32 %v970, %v1049
      %v1101 = vadd.f32 %v971, %v1052
      %v1102 = vadd.f32 %v972, %v1054
      %v1103 = vadd.f32 %v973, %v1057
      %v1104 = vadd.f32 %v974, %v1059
      %v1105 = vadd.f32 %v975, %v1062
      %v1106 = vadd.f32 %v976, %v1064
      %v1107 = vadd.f32 %v977, %v1067
      %v1108 = vadd.f32 %v978, %v1069
      %v1109 = vadd.f32 %v979, %v1072
      %v1110 = vadd.f32 %v980, %v1074
      %v1111 = vadd.f32 %v981, %v1077
      %v1112 = vadd.f32 %v982, %v1079
      %v1116 = vrot.slane %v193, 1
      %v1117 = vrot.slane %v194, 1
      %v1118 = vsel %vm264, %v1116, %v1117
      %v1119 = vrot.slane %v195, 1
      %v1120 = vsel %vm264, %v1117, %v1119
      %v1123 = vpack.c.bf16 %v1120, %v1118
      %s1124 = scalar_lea.vmem %s1, 8
      %v1125 = vld [vmem:[%s1124] sm:$0x3]
      %v1127 = vsel %vm395, %v1123, 0
      %v1130 = vand.u32 %v1125, %v447
      %1132 = vmatpush.bf16.msra.mxu0 0
      %1133 = vmatpush.bf16.msra.mxu0 0
      %1134 = vmatpush.bf16.msra.mxu0 0
      %1135 = vmatpush.bf16.msra.mxu0 0
      %1136 = vmatpush.bf16.msra.mxu0 0
      %1137 = vmatpush.bf16.msra.mxu0 0
      %1138 = vmatpush.bf16.msra.mxu0 0
      %1139 = vmatpush.bf16.msra.mxu0 %v1130
      %1140 = vmatmul.bf16.gmra.mxu0 %v400
      %v1141 = vpop.f32.mrf.mxu0
      %v1142 = vadd.f32 0.0, %v1141
      %v1143 = vpop.f32.mrf.mxu0
      %v1144 = vadd.f32 0.0, %v1143
      %1145 = vmatmul.bf16.gmra.mxu0 %v403
      %v1146 = vpop.f32.mrf.mxu0
      %v1147 = vadd.f32 0.0, %v1146
      %v1148 = vpop.f32.mrf.mxu0
      %v1149 = vadd.f32 0.0, %v1148
      %1150 = vmatmul.bf16.gmra.mxu0 %v406
      %v1151 = vpop.f32.mrf.mxu0
      %v1152 = vadd.f32 0.0, %v1151
      %v1153 = vpop.f32.mrf.mxu0
      %v1154 = vadd.f32 0.0, %v1153
      %1155 = vmatmul.bf16.gmra.mxu0 %v409
      %v1156 = vpop.f32.mrf.mxu0
      %v1157 = vadd.f32 0.0, %v1156
      %v1158 = vpop.f32.mrf.mxu0
      %v1159 = vadd.f32 0.0, %v1158
      %1160 = vmatmul.bf16.gmra.mxu0 %v412
      %v1161 = vpop.f32.mrf.mxu0
      %v1162 = vadd.f32 0.0, %v1161
      %v1163 = vpop.f32.mrf.mxu0
      %v1164 = vadd.f32 0.0, %v1163
      %1165 = vmatmul.bf16.gmra.mxu0 %v415
      %v1166 = vpop.f32.mrf.mxu0
      %v1167 = vadd.f32 0.0, %v1166
      %v1168 = vpop.f32.mrf.mxu0
      %v1169 = vadd.f32 0.0, %v1168
      %1170 = vmatmul.bf16.gmra.mxu0 %v418
      %v1171 = vpop.f32.mrf.mxu0
      %v1172 = vadd.f32 0.0, %v1171
      %v1173 = vpop.f32.mrf.mxu0
      %v1174 = vadd.f32 0.0, %v1173
      %1175 = vmatmul.bf16.gmra.mxu0 %v421
      %v1176 = vpop.f32.mrf.mxu0
      %v1177 = vadd.f32 0.0, %v1176
      %v1178 = vpop.f32.mrf.mxu0
      %v1179 = vadd.f32 0.0, %v1178
      %1180 = vmatmul.bf16.gmra.mxu0 %v424
      %v1181 = vpop.f32.mrf.mxu0
      %v1182 = vadd.f32 0.0, %v1181
      %v1183 = vpop.f32.mrf.mxu0
      %v1184 = vadd.f32 0.0, %v1183
      %1185 = vmatmul.bf16.gmra.mxu0 %v427
      %v1186 = vpop.f32.mrf.mxu0
      %v1187 = vadd.f32 0.0, %v1186
      %v1188 = vpop.f32.mrf.mxu0
      %v1189 = vadd.f32 0.0, %v1188
      %1190 = vmatmul.bf16.gmra.mxu0 %v430
      %v1191 = vpop.f32.mrf.mxu0
      %v1192 = vadd.f32 0.0, %v1191
      %v1193 = vpop.f32.mrf.mxu0
      %v1194 = vadd.f32 0.0, %v1193
      %1195 = vmatmul.bf16.gmra.mxu0 %v433
      %v1196 = vpop.f32.mrf.mxu0
      %v1197 = vadd.f32 0.0, %v1196
      %v1198 = vpop.f32.mrf.mxu0
      %v1199 = vadd.f32 0.0, %v1198
      %1200 = vmatmul.bf16.gmra.mxu0 %v436
      %v1201 = vpop.f32.mrf.mxu0
      %v1202 = vadd.f32 0.0, %v1201
      %v1203 = vpop.f32.mrf.mxu0
      %v1204 = vadd.f32 0.0, %v1203
      %1205 = vmatmul.bf16.gmra.mxu0 %v439
      %v1206 = vpop.f32.mrf.mxu0
      %v1207 = vadd.f32 0.0, %v1206
      %v1208 = vpop.f32.mrf.mxu0
      %v1209 = vadd.f32 0.0, %v1208
      %1210 = vmatmul.bf16.gmra.mxu0 %v442
      %v1211 = vpop.f32.mrf.mxu0
      %v1212 = vadd.f32 0.0, %v1211
      %v1213 = vpop.f32.mrf.mxu0
      %v1214 = vadd.f32 0.0, %v1213
      %1215 = vmatmul.bf16.gmra.mxu0 %v1127
      %v1216 = vpop.f32.mrf.mxu0
      %v1217 = vadd.f32 0.0, %v1216
      %v1218 = vpop.f32.mrf.mxu0
      %v1219 = vadd.f32 0.0, %v1218
      %1220 = vdwg.mxu0
      %v1221 = vadd.f32 %v1081, %v1142
      %v1222 = vadd.f32 %v1082, %v1144
      %v1223 = vadd.f32 %v1083, %v1147
      %v1224 = vadd.f32 %v1084, %v1149
      %v1225 = vadd.f32 %v1085, %v1152
      %v1226 = vadd.f32 %v1086, %v1154
      %v1227 = vadd.f32 %v1087, %v1157
      %v1228 = vadd.f32 %v1088, %v1159
      %v1229 = vadd.f32 %v1089, %v1162
      %v1230 = vadd.f32 %v1090, %v1164
      %v1231 = vadd.f32 %v1091, %v1167
      %v1232 = vadd.f32 %v1092, %v1169
      %v1233 = vadd.f32 %v1093, %v1172
      %v1234 = vadd.f32 %v1094, %v1174
      %v1235 = vadd.f32 %v1095, %v1177
      %v1236 = vadd.f32 %v1096, %v1179
      %v1237 = vadd.f32 %v1097, %v1182
      %v1238 = vadd.f32 %v1098, %v1184
      %v1239 = vadd.f32 %v1099, %v1187
      %v1240 = vadd.f32 %v1100, %v1189
      %v1241 = vadd.f32 %v1101, %v1192
      %v1242 = vadd.f32 %v1102, %v1194
      %v1243 = vadd.f32 %v1103, %v1197
      %v1244 = vadd.f32 %v1104, %v1199
      %v1245 = vadd.f32 %v1105, %v1202
      %v1246 = vadd.f32 %v1106, %v1204
      %v1247 = vadd.f32 %v1107, %v1207
      %v1248 = vadd.f32 %v1108, %v1209
      %v1249 = vadd.f32 %v1109, %v1212
      %v1250 = vadd.f32 %v1110, %v1214
      %v1251 = vadd.f32 %v1111, %v1217
      %v1252 = vadd.f32 %v1112, %v1219
      %v1253 = vrot.slane %v193, 2
      %v1254 = vrot.slane %v194, 2
      %v1255 = vsel %vm680, %v1253, %v1254
      %v1256 = vrot.slane %v195, 2
      %v1257 = vsel %vm680, %v1254, %v1256
      %v1260 = vpack.c.bf16 %v1257, %v1255
      %s1261 = scalar_lea.vmem %s1, 10
      %v1262 = vld [vmem:[%s1261] sm:$0x3]
      %v1264 = vsel %vm395, %v1260, 0
      %v1267 = vand.u32 %v1262, %v447
      %1269 = vmatpush.bf16.msra.mxu0 0
      %1270 = vmatpush.bf16.msra.mxu0 0
      %1271 = vmatpush.bf16.msra.mxu0 0
      %1272 = vmatpush.bf16.msra.mxu0 0
      %1273 = vmatpush.bf16.msra.mxu0 0
      %1274 = vmatpush.bf16.msra.mxu0 0
      %1275 = vmatpush.bf16.msra.mxu0 0
      %1276 = vmatpush.bf16.msra.mxu0 %v1267
      %1277 = vmatmul.bf16.gmra.mxu0 %v815
      %v1278 = vpop.f32.mrf.mxu0
      %v1279 = vadd.f32 0.0, %v1278
      %v1280 = vpop.f32.mrf.mxu0
      %v1281 = vadd.f32 0.0, %v1280
      %1282 = vmatmul.bf16.gmra.mxu0 %v818
      %v1283 = vpop.f32.mrf.mxu0
      %v1284 = vadd.f32 0.0, %v1283
      %v1285 = vpop.f32.mrf.mxu0
      %v1286 = vadd.f32 0.0, %v1285
      %1287 = vmatmul.bf16.gmra.mxu0 %v821
      %v1288 = vpop.f32.mrf.mxu0
      %v1289 = vadd.f32 0.0, %v1288
      %v1290 = vpop.f32.mrf.mxu0
      %v1291 = vadd.f32 0.0, %v1290
      %1292 = vmatmul.bf16.gmra.mxu0 %v824
      %v1293 = vpop.f32.mrf.mxu0
      %v1294 = vadd.f32 0.0, %v1293
      %v1295 = vpop.f32.mrf.mxu0
      %v1296 = vadd.f32 0.0, %v1295
      %1297 = vmatmul.bf16.gmra.mxu0 %v827
      %v1298 = vpop.f32.mrf.mxu0
      %v1299 = vadd.f32 0.0, %v1298
      %v1300 = vpop.f32.mrf.mxu0
      %v1301 = vadd.f32 0.0, %v1300
      %1302 = vmatmul.bf16.gmra.mxu0 %v830
      %v1303 = vpop.f32.mrf.mxu0
      %v1304 = vadd.f32 0.0, %v1303
      %v1305 = vpop.f32.mrf.mxu0
      %v1306 = vadd.f32 0.0, %v1305
      %1307 = vmatmul.bf16.gmra.mxu0 %v833
      %v1308 = vpop.f32.mrf.mxu0
      %v1309 = vadd.f32 0.0, %v1308
      %v1310 = vpop.f32.mrf.mxu0
      %v1311 = vadd.f32 0.0, %v1310
      %1312 = vmatmul.bf16.gmra.mxu0 %v836
      %v1313 = vpop.f32.mrf.mxu0
      %v1314 = vadd.f32 0.0, %v1313
      %v1315 = vpop.f32.mrf.mxu0
      %v1316 = vadd.f32 0.0, %v1315
      %1317 = vmatmul.bf16.gmra.mxu0 %v839
      %v1318 = vpop.f32.mrf.mxu0
      %v1319 = vadd.f32 0.0, %v1318
      %v1320 = vpop.f32.mrf.mxu0
      %v1321 = vadd.f32 0.0, %v1320
      %1322 = vmatmul.bf16.gmra.mxu0 %v842
      %v1323 = vpop.f32.mrf.mxu0
      %v1324 = vadd.f32 0.0, %v1323
      %v1325 = vpop.f32.mrf.mxu0
      %v1326 = vadd.f32 0.0, %v1325
      %1327 = vmatmul.bf16.gmra.mxu0 %v845
      %v1328 = vpop.f32.mrf.mxu0
      %v1329 = vadd.f32 0.0, %v1328
      %v1330 = vpop.f32.mrf.mxu0
      %v1331 = vadd.f32 0.0, %v1330
      %1332 = vmatmul.bf16.gmra.mxu0 %v848
      %v1333 = vpop.f32.mrf.mxu0
      %v1334 = vadd.f32 0.0, %v1333
      %v1335 = vpop.f32.mrf.mxu0
      %v1336 = vadd.f32 0.0, %v1335
      %1337 = vmatmul.bf16.gmra.mxu0 %v851
      %v1338 = vpop.f32.mrf.mxu0
      %v1339 = vadd.f32 0.0, %v1338
      %v1340 = vpop.f32.mrf.mxu0
      %v1341 = vadd.f32 0.0, %v1340
      %1342 = vmatmul.bf16.gmra.mxu0 %v854
      %v1343 = vpop.f32.mrf.mxu0
      %v1344 = vadd.f32 0.0, %v1343
      %v1345 = vpop.f32.mrf.mxu0
      %v1346 = vadd.f32 0.0, %v1345
      %1347 = vmatmul.bf16.gmra.mxu0 %v857
      %v1348 = vpop.f32.mrf.mxu0
      %v1349 = vadd.f32 0.0, %v1348
      %v1350 = vpop.f32.mrf.mxu0
      %v1351 = vadd.f32 0.0, %v1350
      %1352 = vmatmul.bf16.gmra.mxu0 %v1264
      %v1353 = vpop.f32.mrf.mxu0
      %v1354 = vadd.f32 0.0, %v1353
      %v1355 = vpop.f32.mrf.mxu0
      %v1356 = vadd.f32 0.0, %v1355
      %1357 = vdwg.mxu0
      %v1358 = vadd.f32 %v1221, %v1279
      %v1359 = vadd.f32 %v1222, %v1281
      %v1360 = vadd.f32 %v1223, %v1284
      %v1361 = vadd.f32 %v1224, %v1286
      %v1362 = vadd.f32 %v1225, %v1289
      %v1363 = vadd.f32 %v1226, %v1291
      %v1364 = vadd.f32 %v1227, %v1294
      %v1365 = vadd.f32 %v1228, %v1296
      %v1366 = vadd.f32 %v1229, %v1299
      %v1367 = vadd.f32 %v1230, %v1301
      %v1368 = vadd.f32 %v1231, %v1304
      %v1369 = vadd.f32 %v1232, %v1306
      %v1370 = vadd.f32 %v1233, %v1309
      %v1371 = vadd.f32 %v1234, %v1311
      %v1372 = vadd.f32 %v1235, %v1314
      %v1373 = vadd.f32 %v1236, %v1316
      %v1374 = vadd.f32 %v1237, %v1319
      %v1375 = vadd.f32 %v1238, %v1321
      %v1376 = vadd.f32 %v1239, %v1324
      %v1377 = vadd.f32 %v1240, %v1326
      %v1378 = vadd.f32 %v1241, %v1329
      %v1379 = vadd.f32 %v1242, %v1331
      %v1380 = vadd.f32 %v1243, %v1334
      %v1381 = vadd.f32 %v1244, %v1336
      %v1382 = vadd.f32 %v1245, %v1339
      %v1383 = vadd.f32 %v1246, %v1341
      %v1384 = vadd.f32 %v1247, %v1344
      %v1385 = vadd.f32 %v1248, %v1346
      %v1386 = vadd.f32 %v1249, %v1349
      %v1387 = vadd.f32 %v1250, %v1351
      %v1388 = vadd.f32 %v1251, %v1354
      %v1389 = vadd.f32 %v1252, %v1356
      %v1390 = vpack.c.bf16 %v197, %v196
      %s1391 = scalar_lea.vmem %s1, 12
      %v1392 = vld [vmem:[%s1391] sm:$0x3]
      %v1394 = vsel %vm395, %v1390, 0
      %v1397 = vand.u32 %v1392, %v447
      %1399 = vmatpush.bf16.msra.mxu0 0
      %1400 = vmatpush.bf16.msra.mxu0 0
      %1401 = vmatpush.bf16.msra.mxu0 0
      %1402 = vmatpush.bf16.msra.mxu0 0
      %1403 = vmatpush.bf16.msra.mxu0 0
      %1404 = vmatpush.bf16.msra.mxu0 0
      %1405 = vmatpush.bf16.msra.mxu0 0
      %1406 = vmatpush.bf16.msra.mxu0 %v1397
      %1407 = vmatmul.bf16.gmra.mxu0 %v547
      %v1408 = vpop.f32.mrf.mxu0
      %v1409 = vadd.f32 0.0, %v1408
      %v1410 = vpop.f32.mrf.mxu0
      %v1411 = vadd.f32 0.0, %v1410
      %1412 = vmatmul.bf16.gmra.mxu0 %v550
      %v1413 = vpop.f32.mrf.mxu0
      %v1414 = vadd.f32 0.0, %v1413
      %v1415 = vpop.f32.mrf.mxu0
      %v1416 = vadd.f32 0.0, %v1415
      %1417 = vmatmul.bf16.gmra.mxu0 %v553
      %v1418 = vpop.f32.mrf.mxu0
      %v1419 = vadd.f32 0.0, %v1418
      %v1420 = vpop.f32.mrf.mxu0
      %v1421 = vadd.f32 0.0, %v1420
      %1422 = vmatmul.bf16.gmra.mxu0 %v556
      %v1423 = vpop.f32.mrf.mxu0
      %v1424 = vadd.f32 0.0, %v1423
      %v1425 = vpop.f32.mrf.mxu0
      %v1426 = vadd.f32 0.0, %v1425
      %1427 = vmatmul.bf16.gmra.mxu0 %v559
      %v1428 = vpop.f32.mrf.mxu0
      %v1429 = vadd.f32 0.0, %v1428
      %v1430 = vpop.f32.mrf.mxu0
      %v1431 = vadd.f32 0.0, %v1430
      %1432 = vmatmul.bf16.gmra.mxu0 %v562
      %v1433 = vpop.f32.mrf.mxu0
      %v1434 = vadd.f32 0.0, %v1433
      %v1435 = vpop.f32.mrf.mxu0
      %v1436 = vadd.f32 0.0, %v1435
      %1437 = vmatmul.bf16.gmra.mxu0 %v565
      %v1438 = vpop.f32.mrf.mxu0
      %v1439 = vadd.f32 0.0, %v1438
      %v1440 = vpop.f32.mrf.mxu0
      %v1441 = vadd.f32 0.0, %v1440
      %1442 = vmatmul.bf16.gmra.mxu0 %v568
      %v1443 = vpop.f32.mrf.mxu0
      %v1444 = vadd.f32 0.0, %v1443
      %v1445 = vpop.f32.mrf.mxu0
      %v1446 = vadd.f32 0.0, %v1445
      %1447 = vmatmul.bf16.gmra.mxu0 %v571
      %v1448 = vpop.f32.mrf.mxu0
      %v1449 = vadd.f32 0.0, %v1448
      %v1450 = vpop.f32.mrf.mxu0
      %v1451 = vadd.f32 0.0, %v1450
      %1452 = vmatmul.bf16.gmra.mxu0 %v574
      %v1453 = vpop.f32.mrf.mxu0
      %v1454 = vadd.f32 0.0, %v1453
      %v1455 = vpop.f32.mrf.mxu0
      %v1456 = vadd.f32 0.0, %v1455
      %1457 = vmatmul.bf16.gmra.mxu0 %v577
      %v1458 = vpop.f32.mrf.mxu0
      %v1459 = vadd.f32 0.0, %v1458
      %v1460 = vpop.f32.mrf.mxu0
      %v1461 = vadd.f32 0.0, %v1460
      %1462 = vmatmul.bf16.gmra.mxu0 %v580
      %v1463 = vpop.f32.mrf.mxu0
      %v1464 = vadd.f32 0.0, %v1463
      %v1465 = vpop.f32.mrf.mxu0
      %v1466 = vadd.f32 0.0, %v1465
      %1467 = vmatmul.bf16.gmra.mxu0 %v583
      %v1468 = vpop.f32.mrf.mxu0
      %v1469 = vadd.f32 0.0, %v1468
      %v1470 = vpop.f32.mrf.mxu0
      %v1471 = vadd.f32 0.0, %v1470
      %1472 = vmatmul.bf16.gmra.mxu0 %v586
      %v1473 = vpop.f32.mrf.mxu0
      %v1474 = vadd.f32 0.0, %v1473
      %v1475 = vpop.f32.mrf.mxu0
      %v1476 = vadd.f32 0.0, %v1475
      %1477 = vmatmul.bf16.gmra.mxu0 %v987
      %v1478 = vpop.f32.mrf.mxu0
      %v1479 = vadd.f32 0.0, %v1478
      %v1480 = vpop.f32.mrf.mxu0
      %v1481 = vadd.f32 0.0, %v1480
      %1482 = vmatmul.bf16.gmra.mxu0 %v1394
      %v1483 = vpop.f32.mrf.mxu0
      %v1484 = vadd.f32 0.0, %v1483
      %v1485 = vpop.f32.mrf.mxu0
      %v1486 = vadd.f32 0.0, %v1485
      %1487 = vdwg.mxu0
      %v1488 = vadd.f32 %v1358, %v1409
      %v1489 = vadd.f32 %v1359, %v1411
      %v1490 = vadd.f32 %v1360, %v1414
      %v1491 = vadd.f32 %v1361, %v1416
      %v1492 = vadd.f32 %v1362, %v1419
      %v1493 = vadd.f32 %v1363, %v1421
      %v1494 = vadd.f32 %v1364, %v1424
      %v1495 = vadd.f32 %v1365, %v1426
      %v1496 = vadd.f32 %v1366, %v1429
      %v1497 = vadd.f32 %v1367, %v1431
      %v1498 = vadd.f32 %v1368, %v1434
      %v1499 = vadd.f32 %v1369, %v1436
      %v1500 = vadd.f32 %v1370, %v1439
      %v1501 = vadd.f32 %v1371, %v1441
      %v1502 = vadd.f32 %v1372, %v1444
      %v1503 = vadd.f32 %v1373, %v1446
      %v1504 = vadd.f32 %v1374, %v1449
      %v1505 = vadd.f32 %v1375, %v1451
      %v1506 = vadd.f32 %v1376, %v1454
      %v1507 = vadd.f32 %v1377, %v1456
      %v1508 = vadd.f32 %v1378, %v1459
      %v1509 = vadd.f32 %v1379, %v1461
      %v1510 = vadd.f32 %v1380, %v1464
      %v1511 = vadd.f32 %v1381, %v1466
      %v1512 = vadd.f32 %v1382, %v1469
      %v1513 = vadd.f32 %v1383, %v1471
      %v1514 = vadd.f32 %v1384, %v1474
      %v1515 = vadd.f32 %v1385, %v1476
      %v1516 = vadd.f32 %v1386, %v1479
      %v1517 = vadd.f32 %v1387, %v1481
      %v1518 = vadd.f32 %v1388, %v1484
      %v1519 = vadd.f32 %v1389, %v1486
      %v1523 = vrot.slane %v196, 1
      %v1524 = vrot.slane %v197, 1
      %v1525 = vsel %vm264, %v1523, %v1524
      %v1526 = vrot.slane %v198, 1
      %v1527 = vsel %vm264, %v1524, %v1526
      %v1530 = vpack.c.bf16 %v1527, %v1525
      %s1531 = scalar_lea.vmem %s1, 14
      %v1532 = vld [vmem:[%s1531] sm:$0x3]
      %v1534 = vsel %vm395, %v1530, 0
      %v1537 = vand.u32 %v1532, %v447
      %1539 = vmatpush.bf16.msra.mxu0 0
      %1540 = vmatpush.bf16.msra.mxu0 0
      %1541 = vmatpush.bf16.msra.mxu0 0
      %1542 = vmatpush.bf16.msra.mxu0 0
      %1543 = vmatpush.bf16.msra.mxu0 0
      %1544 = vmatpush.bf16.msra.mxu0 0
      %1545 = vmatpush.bf16.msra.mxu0 0
      %1546 = vmatpush.bf16.msra.mxu0 %v1537
      %1547 = vmatmul.bf16.gmra.mxu0 %v403
      %v1548 = vpop.f32.mrf.mxu0
      %v1549 = vadd.f32 0.0, %v1548
      %v1550 = vpop.f32.mrf.mxu0
      %v1551 = vadd.f32 0.0, %v1550
      %1552 = vmatmul.bf16.gmra.mxu0 %v406
      %v1553 = vpop.f32.mrf.mxu0
      %v1554 = vadd.f32 0.0, %v1553
      %v1555 = vpop.f32.mrf.mxu0
      %v1556 = vadd.f32 0.0, %v1555
      %1557 = vmatmul.bf16.gmra.mxu0 %v409
      %v1558 = vpop.f32.mrf.mxu0
      %v1559 = vadd.f32 0.0, %v1558
      %v1560 = vpop.f32.mrf.mxu0
      %v1561 = vadd.f32 0.0, %v1560
      %1562 = vmatmul.bf16.gmra.mxu0 %v412
      %v1563 = vpop.f32.mrf.mxu0
      %v1564 = vadd.f32 0.0, %v1563
      %v1565 = vpop.f32.mrf.mxu0
      %v1566 = vadd.f32 0.0, %v1565
      %1567 = vmatmul.bf16.gmra.mxu0 %v415
      %v1568 = vpop.f32.mrf.mxu0
      %v1569 = vadd.f32 0.0, %v1568
      %v1570 = vpop.f32.mrf.mxu0
      %v1571 = vadd.f32 0.0, %v1570
      %1572 = vmatmul.bf16.gmra.mxu0 %v418
      %v1573 = vpop.f32.mrf.mxu0
      %v1574 = vadd.f32 0.0, %v1573
      %v1575 = vpop.f32.mrf.mxu0
      %v1576 = vadd.f32 0.0, %v1575
      %1577 = vmatmul.bf16.gmra.mxu0 %v421
      %v1578 = vpop.f32.mrf.mxu0
      %v1579 = vadd.f32 0.0, %v1578
      %v1580 = vpop.f32.mrf.mxu0
      %v1581 = vadd.f32 0.0, %v1580
      %1582 = vmatmul.bf16.gmra.mxu0 %v424
      %v1583 = vpop.f32.mrf.mxu0
      %v1584 = vadd.f32 0.0, %v1583
      %v1585 = vpop.f32.mrf.mxu0
      %v1586 = vadd.f32 0.0, %v1585
      %1587 = vmatmul.bf16.gmra.mxu0 %v427
      %v1588 = vpop.f32.mrf.mxu0
      %v1589 = vadd.f32 0.0, %v1588
      %v1590 = vpop.f32.mrf.mxu0
      %v1591 = vadd.f32 0.0, %v1590
      %1592 = vmatmul.bf16.gmra.mxu0 %v430
      %v1593 = vpop.f32.mrf.mxu0
      %v1594 = vadd.f32 0.0, %v1593
      %v1595 = vpop.f32.mrf.mxu0
      %v1596 = vadd.f32 0.0, %v1595
      %1597 = vmatmul.bf16.gmra.mxu0 %v433
      %v1598 = vpop.f32.mrf.mxu0
      %v1599 = vadd.f32 0.0, %v1598
      %v1600 = vpop.f32.mrf.mxu0
      %v1601 = vadd.f32 0.0, %v1600
      %1602 = vmatmul.bf16.gmra.mxu0 %v436
      %v1603 = vpop.f32.mrf.mxu0
      %v1604 = vadd.f32 0.0, %v1603
      %v1605 = vpop.f32.mrf.mxu0
      %v1606 = vadd.f32 0.0, %v1605
      %1607 = vmatmul.bf16.gmra.mxu0 %v439
      %v1608 = vpop.f32.mrf.mxu0
      %v1609 = vadd.f32 0.0, %v1608
      %v1610 = vpop.f32.mrf.mxu0
      %v1611 = vadd.f32 0.0, %v1610
      %1612 = vmatmul.bf16.gmra.mxu0 %v442
      %v1613 = vpop.f32.mrf.mxu0
      %v1614 = vadd.f32 0.0, %v1613
      %v1615 = vpop.f32.mrf.mxu0
      %v1616 = vadd.f32 0.0, %v1615
      %1617 = vmatmul.bf16.gmra.mxu0 %v1127
      %v1618 = vpop.f32.mrf.mxu0
      %v1619 = vadd.f32 0.0, %v1618
      %v1620 = vpop.f32.mrf.mxu0
      %v1621 = vadd.f32 0.0, %v1620
      %1622 = vmatmul.bf16.gmra.mxu0 %v1534
      %v1623 = vpop.f32.mrf.mxu0
      %v1624 = vadd.f32 0.0, %v1623
      %v1625 = vpop.f32.mrf.mxu0
      %v1626 = vadd.f32 0.0, %v1625
      %1627 = vdwg.mxu0
      %v1628 = vadd.f32 %v1488, %v1549
      %v1629 = vadd.f32 %v1489, %v1551
      %v1630 = vadd.f32 %v1490, %v1554
      %v1631 = vadd.f32 %v1491, %v1556
      %v1632 = vadd.f32 %v1492, %v1559
      %v1633 = vadd.f32 %v1493, %v1561
      %v1634 = vadd.f32 %v1494, %v1564
      %v1635 = vadd.f32 %v1495, %v1566
      %v1636 = vadd.f32 %v1496, %v1569
      %v1637 = vadd.f32 %v1497, %v1571
      %v1638 = vadd.f32 %v1498, %v1574
      %v1639 = vadd.f32 %v1499, %v1576
      %v1640 = vadd.f32 %v1500, %v1579
      %v1641 = vadd.f32 %v1501, %v1581
      %v1642 = vadd.f32 %v1502, %v1584
      %v1643 = vadd.f32 %v1503, %v1586
      %v1644 = vadd.f32 %v1504, %v1589
      %v1645 = vadd.f32 %v1505, %v1591
      %v1646 = vadd.f32 %v1506, %v1594
      %v1647 = vadd.f32 %v1507, %v1596
      %v1648 = vadd.f32 %v1508, %v1599
      %v1649 = vadd.f32 %v1509, %v1601
      %v1650 = vadd.f32 %v1510, %v1604
      %v1651 = vadd.f32 %v1511, %v1606
      %v1652 = vadd.f32 %v1512, %v1609
      %v1653 = vadd.f32 %v1513, %v1611
      %v1654 = vadd.f32 %v1514, %v1614
      %v1655 = vadd.f32 %v1515, %v1616
      %v1656 = vadd.f32 %v1516, %v1619
      %v1657 = vadd.f32 %v1517, %v1621
      %v1658 = vadd.f32 %v1518, %v1624
      %v1659 = vadd.f32 %v1519, %v1626
      %v1660 = vrot.slane %v196, 2
      %v1661 = vrot.slane %v197, 2
      %v1662 = vsel %vm680, %v1660, %v1661
      %v1663 = vrot.slane %v198, 2
      %v1664 = vsel %vm680, %v1661, %v1663
      %v1667 = vpack.c.bf16 %v1664, %v1662
      %s1668 = scalar_lea.vmem %s1, 16
      %v1669 = vld [vmem:[%s1668] sm:$0x3]
      %v1671 = vsel %vm395, %v1667, 0
      %v1674 = vand.u32 %v1669, %v447
      %1676 = vmatpush.bf16.msra.mxu0 0
      %1677 = vmatpush.bf16.msra.mxu0 0
      %1678 = vmatpush.bf16.msra.mxu0 0
      %1679 = vmatpush.bf16.msra.mxu0 0
      %1680 = vmatpush.bf16.msra.mxu0 0
      %1681 = vmatpush.bf16.msra.mxu0 0
      %1682 = vmatpush.bf16.msra.mxu0 0
      %1683 = vmatpush.bf16.msra.mxu0 %v1674
      %1684 = vmatmul.bf16.gmra.mxu0 %v818
      %v1685 = vpop.f32.mrf.mxu0
      %v1686 = vadd.f32 0.0, %v1685
      %v1687 = vpop.f32.mrf.mxu0
      %v1688 = vadd.f32 0.0, %v1687
      %1689 = vmatmul.bf16.gmra.mxu0 %v821
      %v1690 = vpop.f32.mrf.mxu0
      %v1691 = vadd.f32 0.0, %v1690
      %v1692 = vpop.f32.mrf.mxu0
      %v1693 = vadd.f32 0.0, %v1692
      %1694 = vmatmul.bf16.gmra.mxu0 %v824
      %v1695 = vpop.f32.mrf.mxu0
      %v1696 = vadd.f32 0.0, %v1695
      %v1697 = vpop.f32.mrf.mxu0
      %v1698 = vadd.f32 0.0, %v1697
      %1699 = vmatmul.bf16.gmra.mxu0 %v827
      %v1700 = vpop.f32.mrf.mxu0
      %v1701 = vadd.f32 0.0, %v1700
      %v1702 = vpop.f32.mrf.mxu0
      %v1703 = vadd.f32 0.0, %v1702
      %1704 = vmatmul.bf16.gmra.mxu0 %v830
      %v1705 = vpop.f32.mrf.mxu0
      %v1706 = vadd.f32 0.0, %v1705
      %v1707 = vpop.f32.mrf.mxu0
      %v1708 = vadd.f32 0.0, %v1707
      %1709 = vmatmul.bf16.gmra.mxu0 %v833
      %v1710 = vpop.f32.mrf.mxu0
      %v1711 = vadd.f32 0.0, %v1710
      %v1712 = vpop.f32.mrf.mxu0
      %v1713 = vadd.f32 0.0, %v1712
      %1714 = vmatmul.bf16.gmra.mxu0 %v836
      %v1715 = vpop.f32.mrf.mxu0
      %v1716 = vadd.f32 0.0, %v1715
      %v1717 = vpop.f32.mrf.mxu0
      %v1718 = vadd.f32 0.0, %v1717
      %1719 = vmatmul.bf16.gmra.mxu0 %v839
      %v1720 = vpop.f32.mrf.mxu0
      %v1721 = vadd.f32 0.0, %v1720
      %v1722 = vpop.f32.mrf.mxu0
      %v1723 = vadd.f32 0.0, %v1722
      %1724 = vmatmul.bf16.gmra.mxu0 %v842
      %v1725 = vpop.f32.mrf.mxu0
      %v1726 = vadd.f32 0.0, %v1725
      %v1727 = vpop.f32.mrf.mxu0
      %v1728 = vadd.f32 0.0, %v1727
      %1729 = vmatmul.bf16.gmra.mxu0 %v845
      %v1730 = vpop.f32.mrf.mxu0
      %v1731 = vadd.f32 0.0, %v1730
      %v1732 = vpop.f32.mrf.mxu0
      %v1733 = vadd.f32 0.0, %v1732
      %1734 = vmatmul.bf16.gmra.mxu0 %v848
      %v1735 = vpop.f32.mrf.mxu0
      %v1736 = vadd.f32 0.0, %v1735
      %v1737 = vpop.f32.mrf.mxu0
      %v1738 = vadd.f32 0.0, %v1737
      %1739 = vmatmul.bf16.gmra.mxu0 %v851
      %v1740 = vpop.f32.mrf.mxu0
      %v1741 = vadd.f32 0.0, %v1740
      %v1742 = vpop.f32.mrf.mxu0
      %v1743 = vadd.f32 0.0, %v1742
      %1744 = vmatmul.bf16.gmra.mxu0 %v854
      %v1745 = vpop.f32.mrf.mxu0
      %v1746 = vadd.f32 0.0, %v1745
      %v1747 = vpop.f32.mrf.mxu0
      %v1748 = vadd.f32 0.0, %v1747
      %1749 = vmatmul.bf16.gmra.mxu0 %v857
      %v1750 = vpop.f32.mrf.mxu0
      %v1751 = vadd.f32 0.0, %v1750
      %v1752 = vpop.f32.mrf.mxu0
      %v1753 = vadd.f32 0.0, %v1752
      %1754 = vmatmul.bf16.gmra.mxu0 %v1264
      %v1755 = vpop.f32.mrf.mxu0
      %v1756 = vadd.f32 0.0, %v1755
      %v1757 = vpop.f32.mrf.mxu0
      %v1758 = vadd.f32 0.0, %v1757
      %1759 = vmatmul.bf16.gmra.mxu0 %v1671
      %v1760 = vpop.f32.mrf.mxu0
      %v1761 = vadd.f32 0.0, %v1760
      %v1762 = vpop.f32.mrf.mxu0
      %v1763 = vadd.f32 0.0, %v1762
      %1764 = vdwg.mxu0
      %v1765 = vadd.f32 %v1628, %v1686
      %v1766 = vadd.f32 %v1629, %v1688
      %v1767 = vadd.f32 %v1630, %v1691
      %v1768 = vadd.f32 %v1631, %v1693
      %v1769 = vadd.f32 %v1632, %v1696
      %v1770 = vadd.f32 %v1633, %v1698
      %v1771 = vadd.f32 %v1634, %v1701
      %v1772 = vadd.f32 %v1635, %v1703
      %v1773 = vadd.f32 %v1636, %v1706
      %v1774 = vadd.f32 %v1637, %v1708
      %v1775 = vadd.f32 %v1638, %v1711
      %v1776 = vadd.f32 %v1639, %v1713
      %v1777 = vadd.f32 %v1640, %v1716
      %v1778 = vadd.f32 %v1641, %v1718
      %v1779 = vadd.f32 %v1642, %v1721
      %v1780 = vadd.f32 %v1643, %v1723
      %v1781 = vadd.f32 %v1644, %v1726
      %v1782 = vadd.f32 %v1645, %v1728
      %v1783 = vadd.f32 %v1646, %v1731
      %v1784 = vadd.f32 %v1647, %v1733
      %v1785 = vadd.f32 %v1648, %v1736
      %v1786 = vadd.f32 %v1649, %v1738
      %v1787 = vadd.f32 %v1650, %v1741
      %v1788 = vadd.f32 %v1651, %v1743
      %v1789 = vadd.f32 %v1652, %v1746
      %v1790 = vadd.f32 %v1653, %v1748
      %v1791 = vadd.f32 %v1654, %v1751
      %v1792 = vadd.f32 %v1655, %v1753
      %v1793 = vadd.f32 %v1656, %v1756
      %v1794 = vadd.f32 %v1657, %v1758
      %v1795 = vadd.f32 %v1658, %v1761
      %v1796 = vadd.f32 %v1659, %v1763
      %vm1797 = vcmask 97280
      %1798 = vst.msk [vmem:[%s143] sm:$0xff] %vm1797, %v1765
      %1799 = vst.msk [vmem:[%s143 + $0x8] sm:$0xff] %vm1797, %v1766
      %1800 = vst.msk [vmem:[%s143 + $0x10] sm:$0xff] %vm1797, %v1767
      %1801 = vst.msk [vmem:[%s143 + $0x18] sm:$0xff] %vm1797, %v1768
      %1802 = vst.msk [vmem:[%s143 + $0x20] sm:$0xff] %vm1797, %v1769
      %1803 = vst.msk [vmem:[%s143 + $0x28] sm:$0xff] %vm1797, %v1770
      %1804 = vst.msk [vmem:[%s143 + $0x30] sm:$0xff] %vm1797, %v1771
      %1805 = vst.msk [vmem:[%s143 + $0x38] sm:$0xff] %vm1797, %v1772
      %1806 = vst.msk [vmem:[%s143 + $0x40] sm:$0xff] %vm1797, %v1773
      %1807 = vst.msk [vmem:[%s143 + $0x48] sm:$0xff] %vm1797, %v1774
      %1808 = vst.msk [vmem:[%s143 + $0x50] sm:$0xff] %vm1797, %v1775
      %1809 = vst.msk [vmem:[%s143 + $0x58] sm:$0xff] %vm1797, %v1776
      %1810 = vst.msk [vmem:[%s143 + $0x60] sm:$0xff] %vm1797, %v1777
      %1811 = vst.msk [vmem:[%s143 + $0x68] sm:$0xff] %vm1797, %v1778
      %1812 = vst.msk [vmem:[%s143 + $0x70] sm:$0xff] %vm1797, %v1779
      %1813 = vst.msk [vmem:[%s143 + $0x78] sm:$0xff] %vm1797, %v1780
      %1814 = vst.msk [vmem:[%s143 + $0x80] sm:$0xff] %vm1797, %v1781
      %1815 = vst.msk [vmem:[%s143 + $0x88] sm:$0xff] %vm1797, %v1782
      %1816 = vst.msk [vmem:[%s143 + $0x90] sm:$0xff] %vm1797, %v1783
      %1817 = vst.msk [vmem:[%s143 + $0x98] sm:$0xff] %vm1797, %v1784
      %1818 = vst.msk [vmem:[%s143 + $0xa0] sm:$0xff] %vm1797, %v1785
      %1819 = vst.msk [vmem:[%s143 + $0xa8] sm:$0xff] %vm1797, %v1786
      %1820 = vst.msk [vmem:[%s143 + $0xb0] sm:$0xff] %vm1797, %v1787
      %1821 = vst.msk [vmem:[%s143 + $0xb8] sm:$0xff] %vm1797, %v1788
      %1822 = vst.msk [vmem:[%s143 + $0xc0] sm:$0xff] %vm1797, %v1789
      %1823 = vst.msk [vmem:[%s143 + $0xc8] sm:$0xff] %vm1797, %v1790
      %1824 = vst.msk [vmem:[%s143 + $0xd0] sm:$0xff] %vm1797, %v1791
      %1825 = vst.msk [vmem:[%s143 + $0xd8] sm:$0xff] %vm1797, %v1792
      %1826 = vst.msk [vmem:[%s143 + $0xe0] sm:$0xff] %vm1797, %v1793
      %1827 = vst.msk [vmem:[%s143 + $0xe8] sm:$0xff] %vm1797, %v1794
      %1828 = vst.msk [vmem:[%s143 + $0xf0] sm:$0xff] %vm1797, %v1795
      %1829 = vst.msk [vmem:[%s143 + $0xf8] sm:$0xff] %vm1797, %v1796
      %p1830 = scmp.lt.s32.totalorder %s13, 1
      %s1831 = scalar_select %p1830, %s13, 1
      %s1832 = smul.addr %s1831, 32
      %s1833 = smul.addr %s1832, 8
      %s1834 = scalar_lea.vmem %s2, %s1833
      // Predicated region
      $region29: #{latent_diffusion_forward.6} parent=27 // pred_check
        %p1835 = pneg %p78
      $region30: #{latent_diffusion_forward.6} parent=27 // pred_check_branch
        %1837 = sbr.rel (%p1835) target = $region32
      $region31: #{latent_diffusion_forward.6} parent=27 // pred_region
        _
      $region32: #{latent_diffusion_forward.6} parent=27 // pred_fallthru
        _
    $region28: #{latent_diffusion_forward.6} parent=5 // pred_fallthru
      _
    %p1838 = scmp.le.s32.totalorder 2, %s8
    // Predicated region
    $region33: #{latent_diffusion_forward.6} parent=5 // pred_check
      %p1839 = pneg %p1838
    $region34: #{latent_diffusion_forward.6} parent=5 // pred_check_branch
      %1841 = sbr.rel (%p1839) target = $region36
    $region35: #{latent_diffusion_forward.6} parent=5 // pred_region
      %s1842 = ssub.s32 %s8, 2
      // Predicated region
      $region37: #{latent_diffusion_forward.6} parent=35 // pred_check
        %p1843 = pneg %p84
      $region38: #{latent_diffusion_forward.6} parent=35 // pred_check_branch
        %1845 = sbr.rel (%p1843) target = $region40
      $region39: #{latent_diffusion_forward.6} parent=35 // pred_region
        %p1846 = scmp.lt.s32.totalorder %s14, 1
        %s1847 = scalar_select %p1846, %s14, 1
        %s1848 = smul.addr %s1847, 32
        %s1849 = smul.addr %s1848, 8
        %s1850 = scalar_lea.vmem %s2, %s1849
      $region40: #{latent_diffusion_forward.6} parent=35 // pred_fallthru
        _
    $region36: #{latent_diffusion_forward.6} parent=5 // pred_fallthru
      _
  $region6: #{latent_diffusion_forward.6} parent=0 // loop_footer
    %s12 = sadd.s32 1, %s8
  $region7: #{latent_diffusion_forward.6} parent=0 // loop_footer_branch
    %7 = sbr.rel target = $region3
  $region8: #{latent_diffusion_forward.6} parent=0 // loop_exit
    _

// kernel: latent_diffusion_forward.8
$region0: #{latent_diffusion_forward.8}
  #allocation0 [shape = 'u32[]', space=smem, size = 0x4, offset = 0x4, fixed_abs, tag = 'smem constant byte address 0x4 - core index']
  #allocation1 [shape = 'u32[72,128]{1,0:T(1,128)}', space=vmem, size = 0x9000, scoped, tag = 'internal scratch']
  %s0 = inlined_call_operand.vmem [shape: f32[2,72,128], index: 0, kind: input, shape index: {}]
  %s1 = inlined_call_operand.vmem [shape: f32[2,1,128], index: 1, kind: input, shape index: {}]
  %s2 = inlined_call_operand.vmem [shape: f32[2,1,128], index: 2, kind: input, shape index: {}]
  %s3 = inlined_call_operand.vmem [shape: bf16[2,128,384], index: 3, kind: input, shape index: {}]
  %s4 = inlined_call_operand.vmem [shape: f32[2,1,384], index: 4, kind: input, shape index: {}]
  %s5 = inlined_call_operand.vmem [shape: bf16[2,128,128], index: 5, kind: input, shape index: {}]
  %s6 = inlined_call_operand.vmem [shape: f32[2,1,128], index: 6, kind: input, shape index: {}]
  %s7 = inlined_call_operand.vmem [shape: f32[2,1,128], index: 7, kind: input, shape index: {}]
  %s8 = inlined_call_operand.vmem [shape: f32[2,1,128], index: 8, kind: input, shape index: {}]
  %s9 = inlined_call_operand.vmem [shape: bf16[2,128,512], index: 9, kind: input, shape index: {}]
  %s10 = inlined_call_operand.vmem [shape: f32[2,1,512], index: 10, kind: input, shape index: {}]
  %s11 = inlined_call_operand.vmem [shape: bf16[2,512,128], index: 11, kind: input, shape index: {}]
  %s12 = inlined_call_operand.vmem [shape: f32[2,1,128], index: 12, kind: input, shape index: {}]
  %s13 = inlined_call_operand.vmem [shape: f32[1,128], index: 13, kind: input, shape index: {}]
  %s14 = inlined_call_operand.vmem [shape: f32[1,128], index: 14, kind: input, shape index: {}]
  %s15 = inlined_call_operand.vmem [shape: f32[2,72,128], index: 15, kind: output, shape index: {}]
  %s16 = sld [smem:[#allocation0]]
  $region105: #{latent_diffusion_forward.8} parent=0
    _
  %s18 = ssub.s32 1, %s16
  %s19 = scalar_select 0, %s18, %s16
  loop: start=0, step=1, limit=6
  $region2: #{latent_diffusion_forward.8} parent=0 // loop_pre_header
    _
  $region3: #{latent_diffusion_forward.8} parent=0 // loop_header
    %s21 = sphi 0, %s25
    %p22 = scmp.ge.s32.totalorder %s21, 6
    %s28 = sphi 0, %s40
    %s29 = sphi 0, %s36
    %s30 = sphi 0, %s28
    %s31 = sphi 0, %s29
    %s32 = sphi 0, %s30
    %s33 = sphi 0, %s31
    %s43 = sphi 0, %s45
    %s46 = sphi 0, %s43
    %s47 = sphi 0, %s46
    %s63 = sphi 0, %s47
    %s69 = sphi 0, %s71
    %s72 = sphi 0, %s69
    %s73 = sphi 0, %s72
    %s89 = sphi 0, %s73
    %s95 = sphi 0, %s97
    %s98 = sphi 0, %s95
    %s99 = sphi 0, %s98
    %s115 = sphi 0, %s99
    %s121 = sphi 0, %s123
    %s124 = sphi 0, %s121
    %s125 = sphi 0, %s124
    %s141 = sphi 0, %s125
    %s147 = sphi 0, %s149
    %s150 = sphi 0, %s147
    %s151 = sphi 0, %s150
    %s167 = sphi 0, %s151
    %s173 = sphi 0, %s175
    %s176 = sphi 0, %s173
    %s177 = sphi 0, %s176
    %s193 = sphi 0, %s177
    %s199 = sphi 0, %s201
    %s202 = sphi 0, %s199
    %s203 = sphi 0, %s202
    %s219 = sphi 0, %s203
    %s225 = sphi 0, %s227
    %s228 = sphi 0, %s225
    %s229 = sphi 0, %s228
    %s245 = sphi 0, %s229
    %s251 = sphi 0, %s253
    %s254 = sphi 0, %s251
    %s255 = sphi 0, %s254
    %s271 = sphi 0, %s255
    %s277 = sphi 0, %s279
    %s280 = sphi 0, %s277
    %s281 = sphi 0, %s280
    %s297 = sphi 0, %s281
    %s303 = sphi 0, %s305
    %s306 = sphi 0, %s303
    %s307 = sphi 0, %s306
    %s323 = sphi 0, %s307
    %s329 = sphi 0, %s331
    %s332 = sphi 0, %s329
    %s333 = sphi 0, %s332
    %s349 = sphi 0, %s333
    %s355 = sphi 0, %s357
    %s358 = sphi 0, %s355
    %s359 = sphi 0, %s358
    %s375 = sphi 0, %s359
    %s379 = sphi 0, %s379
    %s381 = sphi 0, %s379
    %s382 = sphi 0, %s381
    %s396 = sphi 0, %s382
    %s400 = sphi 0, %s400
    %s402 = sphi 0, %s400
    %s403 = sphi 0, %s402
    %s417 = sphi 0, %s403
    %s423 = sphi 0, %s425
    %s426 = sphi 0, %s423
    %s427 = sphi 0, %s426
    %s443 = sphi 0, %s427
  $region4: #{latent_diffusion_forward.8} parent=0 // loop_header_branch
    %24 = sbr.rel (%p22) target = $region8
  $region5: #{latent_diffusion_forward.8} parent=0 // loop_body
    %s26 = ssub.s32 %s21, 1
    %s27 = ssub.s32 %s21, 2
    %s34 = sadd.s32 1, %s29
    %p35 = scmp.ge.s32.totalorder %s34, 2
    %s36 = scalar_select %p35, 0, %s34
    %s37 = sadd.s32 1, %s28
    %s38 = scalar_select %p35, %s37, %s28
    %p39 = scmp.ge.s32.totalorder %s38, 2
    %s40 = scalar_select %p39, 0, %s38
    %s41 = ssub.s32 %s28, %s40
    %p42 = scmp.eq.s32.totalorder %s41, 0
    %s44 = sadd.s32 %s43, 1
    %s45 = scalar_select %p42, %s43, %s44
    %p48 = pneg %p42
    %p49 = scmp.eq.s32.totalorder %s21, 3
    %p50 = por %p48, %p49
    %p51 = scmp.ne.s32.totalorder %s43, %s46
    %p52 = scmp.eq.s32.totalorder %s21, 0
    %p53 = por %p51, %p52
    %p54 = scmp.ne.s32.totalorder %s43, %s46
    %p55 = scmp.eq.s32.totalorder %s26, 3
    %p56 = por %p54, %p55
    %p57 = scmp.ne.s32.totalorder %s46, %s47
    %p58 = scmp.eq.s32.totalorder %s26, 0
    %p59 = por %p57, %p58
    %p60 = scmp.ne.s32.totalorder %s46, %s47
    %p61 = scmp.eq.s32.totalorder %s27, 3
    %p62 = por %p60, %p61
    %p64 = scmp.ne.s32.totalorder %s47, %s63
    %p65 = scmp.eq.s32.totalorder %s27, 0
    %p66 = por %p64, %p65
    %s67 = ssub.s32 %s29, %s36
    %p68 = scmp.eq.s32.totalorder %s67, 0
    %s70 = sadd.s32 %s69, 1
    %s71 = scalar_select %p68, %s69, %s70
    %p74 = pneg %p68
    %p75 = scmp.eq.s32.totalorder %s21, 3
    %p76 = por %p74, %p75
    %p77 = scmp.ne.s32.totalorder %s69, %s72
    %p78 = scmp.eq.s32.totalorder %s21, 0
    %p79 = por %p77, %p78
    %p80 = scmp.ne.s32.totalorder %s69, %s72
    %p81 = scmp.eq.s32.totalorder %s26, 3
    %p82 = por %p80, %p81
    %p83 = scmp.ne.s32.totalorder %s72, %s73
    %p84 = scmp.eq.s32.totalorder %s26, 0
    %p85 = por %p83, %p84
    %p86 = scmp.ne.s32.totalorder %s72, %s73
    %p87 = scmp.eq.s32.totalorder %s27, 3
    %p88 = por %p86, %p87
    %p90 = scmp.ne.s32.totalorder %s73, %s89
    %p91 = scmp.eq.s32.totalorder %s27, 0
    %p92 = por %p90, %p91
    %s93 = ssub.s32 %s29, %s36
    %p94 = scmp.eq.s32.totalorder %s93, 0
    %s96 = sadd.s32 %s95, 1
    %s97 = scalar_select %p94, %s95, %s96
    %p100 = pneg %p94
    %p101 = scmp.eq.s32.totalorder %s21, 3
    %p102 = por %p100, %p101
    %p103 = scmp.ne.s32.totalorder %s95, %s98
    %p104 = scmp.eq.s32.totalorder %s21, 0
    %p105 = por %p103, %p104
    %p106 = scmp.ne.s32.totalorder %s95, %s98
    %p107 = scmp.eq.s32.totalorder %s26, 3
    %p108 = por %p106, %p107
    %p109 = scmp.ne.s32.totalorder %s98, %s99
    %p110 = scmp.eq.s32.totalorder %s26, 0
    %p111 = por %p109, %p110
    %p112 = scmp.ne.s32.totalorder %s98, %s99
    %p113 = scmp.eq.s32.totalorder %s27, 3
    %p114 = por %p112, %p113
    %p116 = scmp.ne.s32.totalorder %s99, %s115
    %p117 = scmp.eq.s32.totalorder %s27, 0
    %p118 = por %p116, %p117
    %s119 = ssub.s32 %s29, %s36
    %p120 = scmp.eq.s32.totalorder %s119, 0
    %s122 = sadd.s32 %s121, 1
    %s123 = scalar_select %p120, %s121, %s122
    %p126 = pneg %p120
    %p127 = scmp.eq.s32.totalorder %s21, 3
    %p128 = por %p126, %p127
    %p129 = scmp.ne.s32.totalorder %s121, %s124
    %p130 = scmp.eq.s32.totalorder %s21, 0
    %p131 = por %p129, %p130
    %p132 = scmp.ne.s32.totalorder %s121, %s124
    %p133 = scmp.eq.s32.totalorder %s26, 3
    %p134 = por %p132, %p133
    %p135 = scmp.ne.s32.totalorder %s124, %s125
    %p136 = scmp.eq.s32.totalorder %s26, 0
    %p137 = por %p135, %p136
    %p138 = scmp.ne.s32.totalorder %s124, %s125
    %p139 = scmp.eq.s32.totalorder %s27, 3
    %p140 = por %p138, %p139
    %p142 = scmp.ne.s32.totalorder %s125, %s141
    %p143 = scmp.eq.s32.totalorder %s27, 0
    %p144 = por %p142, %p143
    %s145 = ssub.s32 %s29, %s36
    %p146 = scmp.eq.s32.totalorder %s145, 0
    %s148 = sadd.s32 %s147, 1
    %s149 = scalar_select %p146, %s147, %s148
    %p152 = pneg %p146
    %p153 = scmp.eq.s32.totalorder %s21, 3
    %p154 = por %p152, %p153
    %p155 = scmp.ne.s32.totalorder %s147, %s150
    %p156 = scmp.eq.s32.totalorder %s21, 0
    %p157 = por %p155, %p156
    %p158 = scmp.ne.s32.totalorder %s147, %s150
    %p159 = scmp.eq.s32.totalorder %s26, 3
    %p160 = por %p158, %p159
    %p161 = scmp.ne.s32.totalorder %s150, %s151
    %p162 = scmp.eq.s32.totalorder %s26, 0
    %p163 = por %p161, %p162
    %p164 = scmp.ne.s32.totalorder %s150, %s151
    %p165 = scmp.eq.s32.totalorder %s27, 3
    %p166 = por %p164, %p165
    %p168 = scmp.ne.s32.totalorder %s151, %s167
    %p169 = scmp.eq.s32.totalorder %s27, 0
    %p170 = por %p168, %p169
    %s171 = ssub.s32 %s29, %s36
    %p172 = scmp.eq.s32.totalorder %s171, 0
    %s174 = sadd.s32 %s173, 1
    %s175 = scalar_select %p172, %s173, %s174
    %p178 = pneg %p172
    %p179 = scmp.eq.s32.totalorder %s21, 3
    %p180 = por %p178, %p179
    %p181 = scmp.ne.s32.totalorder %s173, %s176
    %p182 = scmp.eq.s32.totalorder %s21, 0
    %p183 = por %p181, %p182
    %p184 = scmp.ne.s32.totalorder %s173, %s176
    %p185 = scmp.eq.s32.totalorder %s26, 3
    %p186 = por %p184, %p185
    %p187 = scmp.ne.s32.totalorder %s176, %s177
    %p188 = scmp.eq.s32.totalorder %s26, 0
    %p189 = por %p187, %p188
    %p190 = scmp.ne.s32.totalorder %s176, %s177
    %p191 = scmp.eq.s32.totalorder %s27, 3
    %p192 = por %p190, %p191
    %p194 = scmp.ne.s32.totalorder %s177, %s193
    %p195 = scmp.eq.s32.totalorder %s27, 0
    %p196 = por %p194, %p195
    %s197 = ssub.s32 %s29, %s36
    %p198 = scmp.eq.s32.totalorder %s197, 0
    %s200 = sadd.s32 %s199, 1
    %s201 = scalar_select %p198, %s199, %s200
    %p204 = pneg %p198
    %p205 = scmp.eq.s32.totalorder %s21, 3
    %p206 = por %p204, %p205
    %p207 = scmp.ne.s32.totalorder %s199, %s202
    %p208 = scmp.eq.s32.totalorder %s21, 0
    %p209 = por %p207, %p208
    %p210 = scmp.ne.s32.totalorder %s199, %s202
    %p211 = scmp.eq.s32.totalorder %s26, 3
    %p212 = por %p210, %p211
    %p213 = scmp.ne.s32.totalorder %s202, %s203
    %p214 = scmp.eq.s32.totalorder %s26, 0
    %p215 = por %p213, %p214
    %p216 = scmp.ne.s32.totalorder %s202, %s203
    %p217 = scmp.eq.s32.totalorder %s27, 3
    %p218 = por %p216, %p217
    %p220 = scmp.ne.s32.totalorder %s203, %s219
    %p221 = scmp.eq.s32.totalorder %s27, 0
    %p222 = por %p220, %p221
    %s223 = ssub.s32 %s29, %s36
    %p224 = scmp.eq.s32.totalorder %s223, 0
    %s226 = sadd.s32 %s225, 1
    %s227 = scalar_select %p224, %s225, %s226
    %p230 = pneg %p224
    %p231 = scmp.eq.s32.totalorder %s21, 3
    %p232 = por %p230, %p231
    %p233 = scmp.ne.s32.totalorder %s225, %s228
    %p234 = scmp.eq.s32.totalorder %s21, 0
    %p235 = por %p233, %p234
    %p236 = scmp.ne.s32.totalorder %s225, %s228
    %p237 = scmp.eq.s32.totalorder %s26, 3
    %p238 = por %p236, %p237
    %p239 = scmp.ne.s32.totalorder %s228, %s229
    %p240 = scmp.eq.s32.totalorder %s26, 0
    %p241 = por %p239, %p240
    %p242 = scmp.ne.s32.totalorder %s228, %s229
    %p243 = scmp.eq.s32.totalorder %s27, 3
    %p244 = por %p242, %p243
    %p246 = scmp.ne.s32.totalorder %s229, %s245
    %p247 = scmp.eq.s32.totalorder %s27, 0
    %p248 = por %p246, %p247
    %s249 = ssub.s32 %s29, %s36
    %p250 = scmp.eq.s32.totalorder %s249, 0
    %s252 = sadd.s32 %s251, 1
    %s253 = scalar_select %p250, %s251, %s252
    %p256 = pneg %p250
    %p257 = scmp.eq.s32.totalorder %s21, 3
    %p258 = por %p256, %p257
    %p259 = scmp.ne.s32.totalorder %s251, %s254
    %p260 = scmp.eq.s32.totalorder %s21, 0
    %p261 = por %p259, %p260
    %p262 = scmp.ne.s32.totalorder %s251, %s254
    %p263 = scmp.eq.s32.totalorder %s26, 3
    %p264 = por %p262, %p263
    %p265 = scmp.ne.s32.totalorder %s254, %s255
    %p266 = scmp.eq.s32.totalorder %s26, 0
    %p267 = por %p265, %p266
    %p268 = scmp.ne.s32.totalorder %s254, %s255
    %p269 = scmp.eq.s32.totalorder %s27, 3
    %p270 = por %p268, %p269
    %p272 = scmp.ne.s32.totalorder %s255, %s271
    %p273 = scmp.eq.s32.totalorder %s27, 0
    %p274 = por %p272, %p273
    %s275 = ssub.s32 %s29, %s36
    %p276 = scmp.eq.s32.totalorder %s275, 0
    %s278 = sadd.s32 %s277, 1
    %s279 = scalar_select %p276, %s277, %s278
    %p282 = pneg %p276
    %p283 = scmp.eq.s32.totalorder %s21, 3
    %p284 = por %p282, %p283
    %p285 = scmp.ne.s32.totalorder %s277, %s280
    %p286 = scmp.eq.s32.totalorder %s21, 0
    %p287 = por %p285, %p286
    %p288 = scmp.ne.s32.totalorder %s277, %s280
    %p289 = scmp.eq.s32.totalorder %s26, 3
    %p290 = por %p288, %p289
    %p291 = scmp.ne.s32.totalorder %s280, %s281
    %p292 = scmp.eq.s32.totalorder %s26, 0
    %p293 = por %p291, %p292
    %p294 = scmp.ne.s32.totalorder %s280, %s281
    %p295 = scmp.eq.s32.totalorder %s27, 3
    %p296 = por %p294, %p295
    %p298 = scmp.ne.s32.totalorder %s281, %s297
    %p299 = scmp.eq.s32.totalorder %s27, 0
    %p300 = por %p298, %p299
    %s301 = ssub.s32 %s29, %s36
    %p302 = scmp.eq.s32.totalorder %s301, 0
    %s304 = sadd.s32 %s303, 1
    %s305 = scalar_select %p302, %s303, %s304
    %p308 = pneg %p302
    %p309 = scmp.eq.s32.totalorder %s21, 3
    %p310 = por %p308, %p309
    %p311 = scmp.ne.s32.totalorder %s303, %s306
    %p312 = scmp.eq.s32.totalorder %s21, 0
    %p313 = por %p311, %p312
    %p314 = scmp.ne.s32.totalorder %s303, %s306
    %p315 = scmp.eq.s32.totalorder %s26, 3
    %p316 = por %p314, %p315
    %p317 = scmp.ne.s32.totalorder %s306, %s307
    %p318 = scmp.eq.s32.totalorder %s26, 0
    %p319 = por %p317, %p318
    %p320 = scmp.ne.s32.totalorder %s306, %s307
    %p321 = scmp.eq.s32.totalorder %s27, 3
    %p322 = por %p320, %p321
    %p324 = scmp.ne.s32.totalorder %s307, %s323
    %p325 = scmp.eq.s32.totalorder %s27, 0
    %p326 = por %p324, %p325
    %s327 = ssub.s32 %s29, %s36
    %p328 = scmp.eq.s32.totalorder %s327, 0
    %s330 = sadd.s32 %s329, 1
    %s331 = scalar_select %p328, %s329, %s330
    %p334 = pneg %p328
    %p335 = scmp.eq.s32.totalorder %s21, 3
    %p336 = por %p334, %p335
    %p337 = scmp.ne.s32.totalorder %s329, %s332
    %p338 = scmp.eq.s32.totalorder %s21, 0
    %p339 = por %p337, %p338
    %p340 = scmp.ne.s32.totalorder %s329, %s332
    %p341 = scmp.eq.s32.totalorder %s26, 3
    %p342 = por %p340, %p341
    %p343 = scmp.ne.s32.totalorder %s332, %s333
    %p344 = scmp.eq.s32.totalorder %s26, 0
    %p345 = por %p343, %p344
    %p346 = scmp.ne.s32.totalorder %s332, %s333
    %p347 = scmp.eq.s32.totalorder %s27, 3
    %p348 = por %p346, %p347
    %p350 = scmp.ne.s32.totalorder %s333, %s349
    %p351 = scmp.eq.s32.totalorder %s27, 0
    %p352 = por %p350, %p351
    %s353 = ssub.s32 %s29, %s36
    %p354 = scmp.eq.s32.totalorder %s353, 0
    %s356 = sadd.s32 %s355, 1
    %s357 = scalar_select %p354, %s355, %s356
    %p360 = pneg %p354
    %p361 = scmp.eq.s32.totalorder %s21, 3
    %p362 = por %p360, %p361
    %p363 = scmp.ne.s32.totalorder %s355, %s358
    %p364 = scmp.eq.s32.totalorder %s21, 0
    %p365 = por %p363, %p364
    %p366 = scmp.ne.s32.totalorder %s355, %s358
    %p367 = scmp.eq.s32.totalorder %s26, 3
    %p368 = por %p366, %p367
    %p369 = scmp.ne.s32.totalorder %s358, %s359
    %p370 = scmp.eq.s32.totalorder %s26, 0
    %p371 = por %p369, %p370
    %p372 = scmp.ne.s32.totalorder %s358, %s359
    %p373 = scmp.eq.s32.totalorder %s27, 3
    %p374 = por %p372, %p373
    %p376 = scmp.ne.s32.totalorder %s359, %s375
    %p377 = scmp.eq.s32.totalorder %s27, 0
    %p378 = por %p376, %p377
    %s380 = sadd.s32 %s379, 1
    %p383 = scmp.eq.s32.totalorder %s21, 3
    %p384 = scmp.ne.s32.totalorder %s379, %s381
    %p385 = scmp.eq.s32.totalorder %s21, 0
    %p386 = por %p384, %p385
    %p387 = scmp.ne.s32.totalorder %s379, %s381
    %p388 = scmp.eq.s32.totalorder %s26, 3
    %p389 = por %p387, %p388
    %p390 = scmp.ne.s32.totalorder %s381, %s382
    %p391 = scmp.eq.s32.totalorder %s26, 0
    %p392 = por %p390, %p391
    %p393 = scmp.ne.s32.totalorder %s381, %s382
    %p394 = scmp.eq.s32.totalorder %s27, 3
    %p395 = por %p393, %p394
    %p397 = scmp.ne.s32.totalorder %s382, %s396
    %p398 = scmp.eq.s32.totalorder %s27, 0
    %p399 = por %p397, %p398
    %s401 = sadd.s32 %s400, 1
    %p404 = scmp.eq.s32.totalorder %s21, 3
    %p405 = scmp.ne.s32.totalorder %s400, %s402
    %p406 = scmp.eq.s32.totalorder %s21, 0
    %p407 = por %p405, %p406
    %p408 = scmp.ne.s32.totalorder %s400, %s402
    %p409 = scmp.eq.s32.totalorder %s26, 3
    %p410 = por %p408, %p409
    %p411 = scmp.ne.s32.totalorder %s402, %s403
    %p412 = scmp.eq.s32.totalorder %s26, 0
    %p413 = por %p411, %p412
    %p414 = scmp.ne.s32.totalorder %s402, %s403
    %p415 = scmp.eq.s32.totalorder %s27, 3
    %p416 = por %p414, %p415
    %p418 = scmp.ne.s32.totalorder %s403, %s417
    %p419 = scmp.eq.s32.totalorder %s27, 0
    %p420 = por %p418, %p419
    %s421 = ssub.s32 %s28, %s40
    %p422 = scmp.eq.s32.totalorder %s421, 0
    %s424 = sadd.s32 %s423, 1
    %s425 = scalar_select %p422, %s423, %s424
    %p428 = pneg %p422
    %p429 = scmp.eq.s32.totalorder %s21, 3
    %p430 = por %p428, %p429
    %p431 = scmp.ne.s32.totalorder %s423, %s426
    %p432 = scmp.eq.s32.totalorder %s21, 0
    %p433 = por %p431, %p432
    %p434 = scmp.ne.s32.totalorder %s423, %s426
    %p435 = scmp.eq.s32.totalorder %s26, 3
    %p436 = por %p434, %p435
    %p437 = scmp.ne.s32.totalorder %s426, %s427
    %p438 = scmp.eq.s32.totalorder %s26, 0
    %p439 = por %p437, %p438
    %p440 = scmp.ne.s32.totalorder %s426, %s427
    %p441 = scmp.eq.s32.totalorder %s27, 3
    %p442 = por %p440, %p441
    %p444 = scmp.ne.s32.totalorder %s427, %s443
    %p445 = scmp.eq.s32.totalorder %s27, 0
    %p446 = por %p444, %p445
    %p447 = scmp.le.s32.totalorder 1, %s21
    %p448 = scmp.lt.s32.totalorder %s21, 5
    %p449 = pnand %p447, %p448
    %p450 = pneg %p449
    // Predicated region
    $region9: #{latent_diffusion_forward.8} parent=5 // pred_check
      _
    $region10: #{latent_diffusion_forward.8} parent=5 // pred_check_branch
      %452 = sbr.rel (%p449) target = $region12
    $region11: #{latent_diffusion_forward.8} parent=5 // pred_region
      %s453 = ssub.s32 %s21, 1
      // Predicated region
      $region13: #{latent_diffusion_forward.8} parent=11 // pred_check
        %p454 = pneg %p392
      $region14: #{latent_diffusion_forward.8} parent=11 // pred_check_branch
        %456 = sbr.rel (%p454) target = $region16
      $region15: #{latent_diffusion_forward.8} parent=11 // pred_region
        _
      $region16: #{latent_diffusion_forward.8} parent=11 // pred_fallthru
        _
      // Predicated region
      $region17: #{latent_diffusion_forward.8} parent=11 // pred_check
        %p457 = pneg %p413
      $region18: #{latent_diffusion_forward.8} parent=11 // pred_check_branch
        %459 = sbr.rel (%p457) target = $region20
      $region19: #{latent_diffusion_forward.8} parent=11 // pred_region
        _
      $region20: #{latent_diffusion_forward.8} parent=11 // pred_fallthru
        _
    $region12: #{latent_diffusion_forward.8} parent=5 // pred_fallthru
      _
    %p460 = scmp.lt.s32.totalorder %s21, 4
    // Predicated region
    $region21: #{latent_diffusion_forward.8} parent=5 // pred_check
      %p461 = pneg %p460
    $region22: #{latent_diffusion_forward.8} parent=5 // pred_check_branch
      %463 = sbr.rel (%p461) target = $region24
    $region23: #{latent_diffusion_forward.8} parent=5 // pred_region
      // Predicated region
      $region25: #{latent_diffusion_forward.8} parent=23 // pred_check
        %p464 = pneg %p53
      $region26: #{latent_diffusion_forward.8} parent=23 // pred_check_branch
        %466 = sbr.rel (%p464) target = $region28
      $region27: #{latent_diffusion_forward.8} parent=23 // pred_region
        %p467 = scmp.lt.s32.totalorder %s28, 1
        %s468 = scalar_select %p467, %s28, 1
        %s469 = smul.addr %s468, 9
        %s470 = smul.addr %s469, 8
        %s471 = scalar_lea.vmem %s0, %s470
      $region28: #{latent_diffusion_forward.8} parent=23 // pred_fallthru
        _
      // Predicated region
      $region29: #{latent_diffusion_forward.8} parent=23 // pred_check
        %p472 = pneg %p79
      $region30: #{latent_diffusion_forward.8} parent=23 // pred_check_branch
        %474 = sbr.rel (%p472) target = $region32
      $region31: #{latent_diffusion_forward.8} parent=23 // pred_region
        %p475 = scmp.lt.s32.totalorder %s29, 1
        %s476 = scalar_select %p475, %s29, 1
        %s477 = scalar_lea.vmem %s1, %s476
      $region32: #{latent_diffusion_forward.8} parent=23 // pred_fallthru
        _
      // Predicated region
      $region33: #{latent_diffusion_forward.8} parent=23 // pred_check
        %p478 = pneg %p105
      $region34: #{latent_diffusion_forward.8} parent=23 // pred_check_branch
        %480 = sbr.rel (%p478) target = $region36
      $region35: #{latent_diffusion_forward.8} parent=23 // pred_region
        %p481 = scmp.lt.s32.totalorder %s29, 1
        %s482 = scalar_select %p481, %s29, 1
        %s483 = scalar_lea.vmem %s2, %s482
      $region36: #{latent_diffusion_forward.8} parent=23 // pred_fallthru
        _
      // Predicated region
      $region37: #{latent_diffusion_forward.8} parent=23 // pred_check
        %p484 = pneg %p131
      $region38: #{latent_diffusion_forward.8} parent=23 // pred_check_branch
        %486 = sbr.rel (%p484) target = $region40
      $region39: #{latent_diffusion_forward.8} parent=23 // pred_region
        %p487 = scmp.lt.s32.totalorder %s29, 1
        %s488 = scalar_select %p487, %s29, 1
        %s489 = smul.addr %s488, 48
        %s490 = smul.addr %s489, 4
        %s491 = scalar_lea.vmem %s3, %s490
      $region40: #{latent_diffusion_forward.8} parent=23 // pred_fallthru
        _
      // Predicated region
      $region41: #{latent_diffusion_forward.8} parent=23 // pred_check
        %p492 = pneg %p157
      $region42: #{latent_diffusion_forward.8} parent=23 // pred_check_branch
        %494 = sbr.rel (%p492) target = $region44
      $region43: #{latent_diffusion_forward.8} parent=23 // pred_region
        %p495 = scmp.lt.s32.totalorder %s29, 1
        %s496 = scalar_select %p495, %s29, 1
        %s497 = smul.addr %s496, 3
        %s498 = scalar_lea.vmem %s4, %s497
      $region44: #{latent_diffusion_forward.8} parent=23 // pred_fallthru
        _
      // Predicated region
      $region45: #{latent_diffusion_forward.8} parent=23 // pred_check
        %p499 = pneg %p183
      $region46: #{latent_diffusion_forward.8} parent=23 // pred_check_branch
        %501 = sbr.rel (%p499) target = $region48
      $region47: #{latent_diffusion_forward.8} parent=23 // pred_region
        %p502 = scmp.lt.s32.totalorder %s29, 1
        %s503 = scalar_select %p502, %s29, 1
        %s504 = smul.addr %s503, 16
        %s505 = smul.addr %s504, 4
        %s506 = scalar_lea.vmem %s5, %s505
      $region48: #{latent_diffusion_forward.8} parent=23 // pred_fallthru
        _
      // Predicated region
      $region49: #{latent_diffusion_forward.8} parent=23 // pred_check
        %p507 = pneg %p209
      $region50: #{latent_diffusion_forward.8} parent=23 // pred_check_branch
        %509 = sbr.rel (%p507) target = $region52
      $region51: #{latent_diffusion_forward.8} parent=23 // pred_region
        %p510 = scmp.lt.s32.totalorder %s29, 1
        %s511 = scalar_select %p510, %s29, 1
        %s512 = scalar_lea.vmem %s6, %s511
      $region52: #{latent_diffusion_forward.8} parent=23 // pred_fallthru
        _
      // Predicated region
      $region53: #{latent_diffusion_forward.8} parent=23 // pred_check
        %p513 = pneg %p235
      $region54: #{latent_diffusion_forward.8} parent=23 // pred_check_branch
        %515 = sbr.rel (%p513) target = $region56
      $region55: #{latent_diffusion_forward.8} parent=23 // pred_region
        %p516 = scmp.lt.s32.totalorder %s29, 1
        %s517 = scalar_select %p516, %s29, 1
        %s518 = scalar_lea.vmem %s7, %s517
      $region56: #{latent_diffusion_forward.8} parent=23 // pred_fallthru
        _
      // Predicated region
      $region57: #{latent_diffusion_forward.8} parent=23 // pred_check
        %p519 = pneg %p261
      $region58: #{latent_diffusion_forward.8} parent=23 // pred_check_branch
        %521 = sbr.rel (%p519) target = $region60
      $region59: #{latent_diffusion_forward.8} parent=23 // pred_region
        %p522 = scmp.lt.s32.totalorder %s29, 1
        %s523 = scalar_select %p522, %s29, 1
        %s524 = scalar_lea.vmem %s8, %s523
      $region60: #{latent_diffusion_forward.8} parent=23 // pred_fallthru
        _
      // Predicated region
      $region61: #{latent_diffusion_forward.8} parent=23 // pred_check
        %p525 = pneg %p287
      $region62: #{latent_diffusion_forward.8} parent=23 // pred_check_branch
        %527 = sbr.rel (%p525) target = $region64
      $region63: #{latent_diffusion_forward.8} parent=23 // pred_region
        %p528 = scmp.lt.s32.totalorder %s29, 1
        %s529 = scalar_select %p528, %s29, 1
        %s530 = smul.addr %s529, 64
        %s531 = smul.addr %s530, 4
        %s532 = scalar_lea.vmem %s9, %s531
      $region64: #{latent_diffusion_forward.8} parent=23 // pred_fallthru
        _
      // Predicated region
      $region65: #{latent_diffusion_forward.8} parent=23 // pred_check
        %p533 = pneg %p313
      $region66: #{latent_diffusion_forward.8} parent=23 // pred_check_branch
        %535 = sbr.rel (%p533) target = $region68
      $region67: #{latent_diffusion_forward.8} parent=23 // pred_region
        %p536 = scmp.lt.s32.totalorder %s29, 1
        %s537 = scalar_select %p536, %s29, 1
        %s538 = smul.addr %s537, 4
        %s539 = scalar_lea.vmem %s10, %s538
      $region68: #{latent_diffusion_forward.8} parent=23 // pred_fallthru
        _
      // Predicated region
      $region69: #{latent_diffusion_forward.8} parent=23 // pred_check
        %p540 = pneg %p339
      $region70: #{latent_diffusion_forward.8} parent=23 // pred_check_branch
        %542 = sbr.rel (%p540) target = $region72
      $region71: #{latent_diffusion_forward.8} parent=23 // pred_region
        %p543 = scmp.lt.s32.totalorder %s29, 1
        %s544 = scalar_select %p543, %s29, 1
        %s545 = smul.addr %s544, 64
        %s546 = smul.addr %s545, 4
        %s547 = scalar_lea.vmem %s11, %s546
      $region72: #{latent_diffusion_forward.8} parent=23 // pred_fallthru
        _
      // Predicated region
      $region73: #{latent_diffusion_forward.8} parent=23 // pred_check
        %p548 = pneg %p365
      $region74: #{latent_diffusion_forward.8} parent=23 // pred_check_branch
        %550 = sbr.rel (%p548) target = $region76
      $region75: #{latent_diffusion_forward.8} parent=23 // pred_region
        %p551 = scmp.lt.s32.totalorder %s29, 1
        %s552 = scalar_select %p551, %s29, 1
        %s553 = scalar_lea.vmem %s12, %s552
      $region76: #{latent_diffusion_forward.8} parent=23 // pred_fallthru
        _
    $region24: #{latent_diffusion_forward.8} parent=5 // pred_fallthru
      _
    %p554 = scmp.le.s32.totalorder 1, %s21
    %p555 = scmp.lt.s32.totalorder %s21, 5
    %p556 = pnand %p554, %p555
    %p557 = pneg %p556
    // Predicated region
    $region77: #{latent_diffusion_forward.8} parent=5 // pred_check
      _
    $region78: #{latent_diffusion_forward.8} parent=5 // pred_check_branch
      %559 = sbr.rel (%p556) target = $region80
    $region79: #{latent_diffusion_forward.8} parent=5 // pred_region
      %s560 = ssub.s32 %s21, 1
      %p561 = scmp.lt.s32.totalorder %s30, 1
      %s562 = scalar_select %p561, %s30, 1
      %s563 = smul.addr %s562, 9
      %s564 = smul.addr %s563, 8
      %s565 = scalar_lea.vmem %s0, %s564
      %p566 = pneg %p59
      %p567 = pneg %p56
      %p568 = scmp.lt.s32.totalorder %s31, 1
      %s569 = scalar_select %p568, %s31, 1
      %s570 = scalar_lea.vmem %s1, %s569
      %p571 = pneg %p85
      %p572 = pneg %p82
      %p573 = scmp.lt.s32.totalorder %s31, 1
      %s574 = scalar_select %p573, %s31, 1
      %s575 = scalar_lea.vmem %s2, %s574
      %p576 = pneg %p111
      %p577 = pneg %p108
      %p578 = scmp.lt.s32.totalorder %s31, 1
      %s579 = scalar_select %p578, %s31, 1
      %s580 = smul.addr %s579, 48
      %s581 = smul.addr %s580, 4
      %s582 = scalar_lea.vmem %s3, %s581
      %p583 = pneg %p137
      %p584 = pneg %p134
      %p585 = scmp.lt.s32.totalorder %s31, 1
      %s586 = scalar_select %p585, %s31, 1
      %s587 = smul.addr %s586, 3
      %s588 = scalar_lea.vmem %s4, %s587
      %p589 = pneg %p163
      %p590 = pneg %p160
      %p591 = scmp.lt.s32.totalorder %s31, 1
      %s592 = scalar_select %p591, %s31, 1
      %s593 = smul.addr %s592, 16
      %s594 = smul.addr %s593, 4
      %s595 = scalar_lea.vmem %s5, %s594
      %p596 = pneg %p189
      %p597 = pneg %p186
      %p598 = scmp.lt.s32.totalorder %s31, 1
      %s599 = scalar_select %p598, %s31, 1
      %s600 = scalar_lea.vmem %s6, %s599
      %p601 = pneg %p215
      %p602 = pneg %p212
      %p603 = scmp.lt.s32.totalorder %s31, 1
      %s604 = scalar_select %p603, %s31, 1
      %s605 = scalar_lea.vmem %s7, %s604
      %p606 = pneg %p241
      %p607 = pneg %p238
      %p608 = scmp.lt.s32.totalorder %s31, 1
      %s609 = scalar_select %p608, %s31, 1
      %s610 = scalar_lea.vmem %s8, %s609
      %p611 = pneg %p267
      %p612 = pneg %p264
      %p613 = scmp.lt.s32.totalorder %s31, 1
      %s614 = scalar_select %p613, %s31, 1
      %s615 = smul.addr %s614, 64
      %s616 = smul.addr %s615, 4
      %s617 = scalar_lea.vmem %s9, %s616
      %p618 = pneg %p293
      %p619 = pneg %p290
      %p620 = scmp.lt.s32.totalorder %s31, 1
      %s621 = scalar_select %p620, %s31, 1
      %s622 = smul.addr %s621, 4
      %s623 = scalar_lea.vmem %s10, %s622
      %p624 = pneg %p319
      %p625 = pneg %p316
      %p626 = scmp.lt.s32.totalorder %s31, 1
      %s627 = scalar_select %p626, %s31, 1
      %s628 = smul.addr %s627, 64
      %s629 = smul.addr %s628, 4
      %s630 = scalar_lea.vmem %s11, %s629
      %p631 = pneg %p345
      %p632 = pneg %p342
      %p633 = scmp.lt.s32.totalorder %s31, 1
      %s634 = scalar_select %p633, %s31, 1
      %s635 = scalar_lea.vmem %s12, %s634
      %p636 = pneg %p371
      %p637 = pneg %p368
      %p638 = pneg %p392
      %p639 = pneg %p389
      %p640 = pneg %p413
      %p641 = pneg %p410
      %p642 = pneg %p439
      %p643 = pneg %p436
      %p644 = scmp.lt.s32.totalorder %s30, 1
      %s645 = scalar_select %p644, %s30, 1
      %s646 = smul.addr %s645, 9
      %s647 = smul.addr %s646, 8
      %s648 = scalar_lea.vmem %s15, %s647
      %p649 = scmp.lt.s32.totalorder %s30, 1
      %s650 = scalar_select %p649, %s30, 1
      %s651 = smul.addr %s650, 9
      %s652 = smul.addr %s651, 8
      %s653 = scalar_lea.vmem %s0, %s652
      %p654 = scmp.lt.s32.totalorder %s31, 1
      %s655 = scalar_select %p654, %s31, 1
      %s656 = scalar_lea.vmem %s1, %s655
      %p657 = scmp.lt.s32.totalorder %s31, 1
      %s658 = scalar_select %p657, %s31, 1
      %s659 = scalar_lea.vmem %s2, %s658
      %p660 = scmp.lt.s32.totalorder %s31, 1
      %s661 = scalar_select %p660, %s31, 1
      %s662 = smul.addr %s661, 48
      %s663 = smul.addr %s662, 4
      %s664 = scalar_lea.vmem %s3, %s663
      %p665 = scmp.lt.s32.totalorder %s31, 1
      %s666 = scalar_select %p665, %s31, 1
      %s667 = smul.addr %s666, 3
      %s668 = scalar_lea.vmem %s4, %s667
      %p669 = scmp.lt.s32.totalorder %s31, 1
      %s670 = scalar_select %p669, %s31, 1
      %s671 = smul.addr %s670, 16
      %s672 = smul.addr %s671, 4
      %s673 = scalar_lea.vmem %s5, %s672
      %p674 = scmp.lt.s32.totalorder %s31, 1
      %s675 = scalar_select %p674, %s31, 1
      %s676 = scalar_lea.vmem %s6, %s675
      %p677 = scmp.lt.s32.totalorder %s31, 1
      %s678 = scalar_select %p677, %s31, 1
      %s679 = scalar_lea.vmem %s7, %s678
      %p680 = scmp.lt.s32.totalorder %s31, 1
      %s681 = scalar_select %p680, %s31, 1
      %s682 = scalar_lea.vmem %s8, %s681
      %p683 = scmp.lt.s32.totalorder %s31, 1
      %s684 = scalar_select %p683, %s31, 1
      %s685 = smul.addr %s684, 64
      %s686 = smul.addr %s685, 4
      %s687 = scalar_lea.vmem %s9, %s686
      %p688 = scmp.lt.s32.totalorder %s31, 1
      %s689 = scalar_select %p688, %s31, 1
      %s690 = smul.addr %s689, 4
      %s691 = scalar_lea.vmem %s10, %s690
      %p692 = scmp.lt.s32.totalorder %s31, 1
      %s693 = scalar_select %p692, %s31, 1
      %s694 = smul.addr %s693, 64
      %s695 = smul.addr %s694, 4
      %s696 = scalar_lea.vmem %s11, %s695
      %p697 = scmp.lt.s32.totalorder %s31, 1
      %s698 = scalar_select %p697, %s31, 1
      %s699 = scalar_lea.vmem %s12, %s698
      %p700 = scmp.lt.s32.totalorder %s30, 1
      %s701 = scalar_select %p700, %s30, 1
      %s702 = smul.addr %s701, 9
      %s703 = smul.addr %s702, 8
      %s704 = scalar_lea.vmem %s15, %s703
      %p706 = scmp.eq.s32.totalorder %s31, 0
      // Predicated region
      $region81: #{latent_diffusion_forward.8} parent=79 // pred_check
        %p707 = pneg %p706
      $region82: #{latent_diffusion_forward.8} parent=79 // pred_check_branch
        %709 = sbr.rel (%p707) target = $region84
      $region83: #{latent_diffusion_forward.8} parent=79 // pred_region
        %v710 = vld [vmem:[%s653] sm:$0xff]
        %v711 = vld [vmem:[%s653 + $0x8] sm:$0xff]
        %v712 = vld [vmem:[%s653 + $0x10] sm:$0xff]
        %v713 = vld [vmem:[%s653 + $0x18] sm:$0xff]
        %v714 = vld [vmem:[%s653 + $0x20] sm:$0xff]
        %v715 = vld [vmem:[%s653 + $0x28] sm:$0xff]
        %v716 = vld [vmem:[%s653 + $0x30] sm:$0xff]
        %v717 = vld [vmem:[%s653 + $0x38] sm:$0xff]
        %v718 = vld [vmem:[%s653 + $0x40] sm:$0xff]
        %719 = vst [vmem:[%s704] sm:$0xff] %v710
        %720 = vst [vmem:[%s704 + $0x8] sm:$0xff] %v711
        %721 = vst [vmem:[%s704 + $0x10] sm:$0xff] %v712
        %722 = vst [vmem:[%s704 + $0x18] sm:$0xff] %v713
        %723 = vst [vmem:[%s704 + $0x20] sm:$0xff] %v714
        %724 = vst [vmem:[%s704 + $0x28] sm:$0xff] %v715
        %725 = vst [vmem:[%s704 + $0x30] sm:$0xff] %v716
        %726 = vst [vmem:[%s704 + $0x38] sm:$0xff] %v717
        %727 = vst [vmem:[%s704 + $0x40] sm:$0xff] %v718
      $region84: #{latent_diffusion_forward.8} parent=79 // pred_fallthru
        _
      %v728 = vld [vmem:[%s704] sm:$0xff]
      %v729 = vld [vmem:[%s704 + $0x8] sm:$0xff]
      %v730 = vld [vmem:[%s704 + $0x10] sm:$0xff]
      %v731 = vld [vmem:[%s704 + $0x18] sm:$0xff]
      %v732 = vld [vmem:[%s704 + $0x20] sm:$0xff]
      %v733 = vld [vmem:[%s704 + $0x28] sm:$0xff]
      %v734 = vld [vmem:[%s704 + $0x30] sm:$0xff]
      %v735 = vld [vmem:[%s704 + $0x38] sm:$0xff]
      %v736 = vld [vmem:[%s704 + $0x40] sm:$0xff]
      %v737 = vld [vmem:[%s656] sm:$0x1]
      %v738 = vld [vmem:[%s659] sm:$0x1]
      %739 = vadd.xlane.f32.xlu0 %v728
      %v740 = vpop.xlane.xlu0 %739
      %741 = vadd.xlane.f32.xlu0 %v729
      %v742 = vpop.xlane.xlu0 %741
      %743 = vadd.xlane.f32.xlu0 %v730
      %v744 = vpop.xlane.xlu0 %743
      %745 = vadd.xlane.f32.xlu0 %v731
      %v746 = vpop.xlane.xlu0 %745
      %747 = vadd.xlane.f32.xlu0 %v732
      %v748 = vpop.xlane.xlu0 %747
      %749 = vadd.xlane.f32.xlu0 %v733
      %v750 = vpop.xlane.xlu0 %749
      %751 = vadd.xlane.f32.xlu0 %v734
      %v752 = vpop.xlane.xlu0 %751
      %753 = vadd.xlane.f32.xlu0 %v735
      %v754 = vpop.xlane.xlu0 %753
      %755 = vadd.xlane.f32.xlu0 %v736
      %v756 = vpop.xlane.xlu0 %755
      %v757 = vrcp.pop 128.0
      %v758 = vmul.f32 128.0, %v757
      %v759 = vsub.f32 1.0, %v758
      %v760 = vmul.f32 %v757, %v759
      %v761 = vadd.f32 %v757, %v760
      %vm762 = vweird.f32 %v757
      %v763 = vsel %vm762, %v757, %v761
      %v764 = vmul.f32 %v740, %v763
      %v765 = vmul.f32 %v742, %v763
      %v766 = vmul.f32 %v744, %v763
      %v767 = vmul.f32 %v746, %v763
      %v768 = vmul.f32 %v748, %v763
      %v769 = vmul.f32 %v750, %v763
      %v770 = vmul.f32 %v752, %v763
      %v771 = vmul.f32 %v754, %v763
      %v772 = vmul.f32 %v756, %v763
      %v773 = vsub.f32 %v728, %v764
      %v774 = vsub.f32 %v729, %v765
      %v775 = vsub.f32 %v730, %v766
      %v776 = vsub.f32 %v731, %v767
      %v777 = vsub.f32 %v732, %v768
      %v778 = vsub.f32 %v733, %v769
      %v779 = vsub.f32 %v734, %v770
      %v780 = vsub.f32 %v735, %v771
      %v781 = vsub.f32 %v736, %v772
      %v782 = vmul.f32 %v773, %v773
      %v783 = vmul.f32 %v774, %v774
      %v784 = vmul.f32 %v775, %v775
      %v785 = vmul.f32 %v776, %v776
      %v786 = vmul.f32 %v777, %v777
      %v787 = vmul.f32 %v778, %v778
      %v788 = vmul.f32 %v779, %v779
      %v789 = vmul.f32 %v780, %v780
      %v790 = vmul.f32 %v781, %v781
      %791 = vadd.xlane.f32.xlu0 %v782
      %v792 = vpop.xlane.xlu0 %791
      %793 = vadd.xlane.f32.xlu0 %v783
      %v794 = vpop.xlane.xlu0 %793
      %795 = vadd.xlane.f32.xlu0 %v784
      %v796 = vpop.xlane.xlu0 %795
      %797 = vadd.xlane.f32.xlu0 %v785
      %v798 = vpop.xlane.xlu0 %797
      %799 = vadd.xlane.f32.xlu0 %v786
      %v800 = vpop.xlane.xlu0 %799
      %801 = vadd.xlane.f32.xlu0 %v787
      %v802 = vpop.xlane.xlu0 %801
      %803 = vadd.xlane.f32.xlu0 %v788
      %v804 = vpop.xlane.xlu0 %803
      %805 = vadd.xlane.f32.xlu0 %v789
      %v806 = vpop.xlane.xlu0 %805
      %807 = vadd.xlane.f32.xlu0 %v790
      %v808 = vpop.xlane.xlu0 %807
      %v809 = vmul.f32 %v792, %v763
      %v810 = vmul.f32 %v794, %v763
      %v811 = vmul.f32 %v796, %v763
      %v812 = vmul.f32 %v798, %v763
      %v813 = vmul.f32 %v800, %v763
      %v814 = vmul.f32 %v802, %v763
      %v815 = vmul.f32 %v804, %v763
      %v816 = vmul.f32 %v806, %v763
      %v817 = vmul.f32 %v808, %v763
      %v818 = vadd.f32 %v809, 1e-08
      %v819 = vadd.f32 %v810, 1e-08
      %v820 = vadd.f32 %v811, 1e-08
      %v821 = vadd.f32 %v812, 1e-08
      %v822 = vadd.f32 %v813, 1e-08
      %v823 = vadd.f32 %v814, 1e-08
      %v824 = vadd.f32 %v815, 1e-08
      %v825 = vadd.f32 %v816, 1e-08
      %v826 = vadd.f32 %v817, 1e-08
      %v827 = vrsqrt.pop %v818
      %v828 = vmul.f32 %v827, %v818
      %v829 = vmul.f32 %v828, %v827
      %v830 = vmul.f32 0.5, %v829
      %v831 = vsub.f32 1.5, %v830
      %v832 = vmul.f32 %v827, %v831
      %vm833 = vweird.f32 %v818
      %vm834 = vweird.f32 %v827
      %vm835 = vmor %vm833, %vm834
      %v836 = vsel %vm835, %v827, %v832
      %v837 = vrsqrt.pop %v819
      %v838 = vmul.f32 %v837, %v819
      %v839 = vmul.f32 %v838, %v837
      %v840 = vmul.f32 0.5, %v839
      %v841 = vsub.f32 1.5, %v840
      %v842 = vmul.f32 %v837, %v841
      %vm843 = vweird.f32 %v819
      %vm844 = vweird.f32 %v837
      %vm845 = vmor %vm843, %vm844
      %v846 = vsel %vm845, %v837, %v842
      %v847 = vrsqrt.pop %v820
      %v848 = vmul.f32 %v847, %v820
      %v849 = vmul.f32 %v848, %v847
      %v850 = vmul.f32 0.5, %v849
      %v851 = vsub.f32 1.5, %v850
      %v852 = vmul.f32 %v847, %v851
      %vm853 = vweird.f32 %v820
      %vm854 = vweird.f32 %v847
      %vm855 = vmor %vm853, %vm854
      %v856 = vsel %vm855, %v847, %v852
      %v857 = vrsqrt.pop %v821
      %v858 = vmul.f32 %v857, %v821
      %v859 = vmul.f32 %v858, %v857
      %v860 = vmul.f32 0.5, %v859
      %v861 = vsub.f32 1.5, %v860
      %v862 = vmul.f32 %v857, %v861
      %vm863 = vweird.f32 %v821
      %vm864 = vweird.f32 %v857
      %vm865 = vmor %vm863, %vm864
      %v866 = vsel %vm865, %v857, %v862
      %v867 = vrsqrt.pop %v822
      %v868 = vmul.f32 %v867, %v822
      %v869 = vmul.f32 %v868, %v867
      %v870 = vmul.f32 0.5, %v869
      %v871 = vsub.f32 1.5, %v870
      %v872 = vmul.f32 %v867, %v871
      %vm873 = vweird.f32 %v822
      %vm874 = vweird.f32 %v867
      %vm875 = vmor %vm873, %vm874
      %v876 = vsel %vm875, %v867, %v872
      %v877 = vrsqrt.pop %v823
      %v878 = vmul.f32 %v877, %v823
      %v879 = vmul.f32 %v878, %v877
      %v880 = vmul.f32 0.5, %v879
      %v881 = vsub.f32 1.5, %v880
      %v882 = vmul.f32 %v877, %v881
      %vm883 = vweird.f32 %v823
      %vm884 = vweird.f32 %v877
      %vm885 = vmor %vm883, %vm884
      %v886 = vsel %vm885, %v877, %v882
      %v887 = vrsqrt.pop %v824
      %v888 = vmul.f32 %v887, %v824
      %v889 = vmul.f32 %v888, %v887
      %v890 = vmul.f32 0.5, %v889
      %v891 = vsub.f32 1.5, %v890
      %v892 = vmul.f32 %v887, %v891
      %vm893 = vweird.f32 %v824
      %vm894 = vweird.f32 %v887
      %vm895 = vmor %vm893, %vm894
      %v896 = vsel %vm895, %v887, %v892
      %v897 = vrsqrt.pop %v825
      %v898 = vmul.f32 %v897, %v825
      %v899 = vmul.f32 %v898, %v897
      %v900 = vmul.f32 0.5, %v899
      %v901 = vsub.f32 1.5, %v900
      %v902 = vmul.f32 %v897, %v901
      %vm903 = vweird.f32 %v825
      %vm904 = vweird.f32 %v897
      %vm905 = vmor %vm903, %vm904
      %v906 = vsel %vm905, %v897, %v902
      %v907 = vrsqrt.pop %v826
      %v908 = vmul.f32 %v907, %v826
      %v909 = vmul.f32 %v908, %v907
      %v910 = vmul.f32 0.5, %v909
      %v911 = vsub.f32 1.5, %v910
      %v912 = vmul.f32 %v907, %v911
      %vm913 = vweird.f32 %v826
      %vm914 = vweird.f32 %v907
      %vm915 = vmor %vm913, %vm914
      %v916 = vsel %vm915, %v907, %v912
      %v917 = vmul.f32 %v773, %v836
      %v918 = vmul.f32 %v774, %v846
      %v919 = vmul.f32 %v775, %v856
      %v920 = vmul.f32 %v776, %v866
      %v921 = vmul.f32 %v777, %v876
      %v922 = vmul.f32 %v778, %v886
      %v923 = vmul.f32 %v779, %v896
      %v924 = vmul.f32 %v780, %v906
      %v925 = vmul.f32 %v781, %v916
      %v927 = vperm.slane %v737, 0
      %v929 = vmul.f32 %v917, %v927
      %v930 = vmul.f32 %v918, %v927
      %v931 = vmul.f32 %v919, %v927
      %v932 = vmul.f32 %v920, %v927
      %v933 = vmul.f32 %v921, %v927
      %v934 = vmul.f32 %v922, %v927
      %v935 = vmul.f32 %v923, %v927
      %v936 = vmul.f32 %v924, %v927
      %v937 = vmul.f32 %v925, %v927
      %v939 = vperm.slane %v738, 0
      %v941 = vadd.f32 %v929, %v939
      %v942 = vadd.f32 %v930, %v939
      %v943 = vadd.f32 %v931, %v939
      %v944 = vadd.f32 %v932, %v939
      %v945 = vadd.f32 %v933, %v939
      %v946 = vadd.f32 %v934, %v939
      %v947 = vadd.f32 %v935, %v939
      %v948 = vadd.f32 %v936, %v939
      %v949 = vadd.f32 %v937, %v939
      %v950 = vpack.c.bf16 %v942, %v941
      %v951 = vpack.c.bf16 %v944, %v943
      %v952 = vpack.c.bf16 %v946, %v945
      %v953 = vpack.c.bf16 %v948, %v947
      %v954 = vpack.c.bf16 %v949, %v949
      %v955 = vld [vmem:[%s664] sm:$0xff]
      %v956 = vld [vmem:[%s664 + $0x8] sm:$0xf]
      %v957 = vld [vmem:[%s664 + $0xc] sm:$0xff]
      %v958 = vld [vmem:[%s664 + $0x14] sm:$0xf]
      %v959 = vld [vmem:[%s664 + $0x18] sm:$0xff]
      %v960 = vld [vmem:[%s664 + $0x20] sm:$0xf]
      %v961 = vld [vmem:[%s664 + $0x24] sm:$0xff]
      %v962 = vld [vmem:[%s664 + $0x2c] sm:$0xf]
      %v963 = vld [vmem:[%s664 + $0x30] sm:$0xff]
      %v964 = vld [vmem:[%s664 + $0x38] sm:$0xf]
      %v965 = vld [vmem:[%s664 + $0x3c] sm:$0xff]
      %v966 = vld [vmem:[%s664 + $0x44] sm:$0xf]
      %v967 = vld [vmem:[%s664 + $0x48] sm:$0xff]
      %v968 = vld [vmem:[%s664 + $0x50] sm:$0xf]
      %v969 = vld [vmem:[%s664 + $0x54] sm:$0xff]
      %v970 = vld [vmem:[%s664 + $0x5c] sm:$0xf]
      %v971 = vld [vmem:[%s664 + $0x60] sm:$0xff]
      %v972 = vld [vmem:[%s664 + $0x68] sm:$0xf]
      %v973 = vld [vmem:[%s664 + $0x6c] sm:$0xff]
      %v974 = vld [vmem:[%s664 + $0x74] sm:$0xf]
      %v975 = vld [vmem:[%s664 + $0x78] sm:$0xff]
      %v976 = vld [vmem:[%s664 + $0x80] sm:$0xf]
      %v977 = vld [vmem:[%s664 + $0x84] sm:$0xff]
      %v978 = vld [vmem:[%s664 + $0x8c] sm:$0xf]
      %v979 = vld [vmem:[%s664 + $0x90] sm:$0xff]
      %v980 = vld [vmem:[%s664 + $0x98] sm:$0xf]
      %v981 = vld [vmem:[%s664 + $0x9c] sm:$0xff]
      %v982 = vld [vmem:[%s664 + $0xa4] sm:$0xf]
      %v983 = vld [vmem:[%s664 + $0xa8] sm:$0xff]
      %v984 = vld [vmem:[%s664 + $0xb0] sm:$0xf]
      %v985 = vld [vmem:[%s664 + $0xb4] sm:$0xff]
      %v986 = vld [vmem:[%s664 + $0xbc] sm:$0xf]
      %v987 = vld [vmem:[%s668] sm:$0x7]
      %v989 = vperm.slane %v987, 0
      %v990 = vperm.slane %v987, 1
      %v991 = vperm.slane %v987, 2
      %v1027 = vunpack.c.l.b16 %v955
      %v1028 = vunpack.c.h.b16 %v955
      %v1029 = vunpack.c.l.b16 %v956
      %v1030 = vunpack.c.l.b16 %v957
      %v1031 = vunpack.c.h.b16 %v957
      %v1032 = vunpack.c.l.b16 %v958
      %v1033 = vunpack.c.l.b16 %v959
      %v1034 = vunpack.c.h.b16 %v959
      %v1035 = vunpack.c.l.b16 %v960
      %v1036 = vunpack.c.l.b16 %v961
      %v1037 = vunpack.c.h.b16 %v961
      %v1038 = vunpack.c.l.b16 %v962
      %v1039 = vunpack.c.l.b16 %v963
      %v1040 = vunpack.c.h.b16 %v963
      %v1041 = vunpack.c.l.b16 %v964
      %v1042 = vunpack.c.l.b16 %v965
      %v1043 = vunpack.c.h.b16 %v965
      %v1044 = vunpack.c.l.b16 %v966
      %v1045 = vunpack.c.l.b16 %v967
      %v1046 = vunpack.c.h.b16 %v967
      %v1047 = vunpack.c.l.b16 %v968
      %v1048 = vunpack.c.l.b16 %v969
      %v1049 = vunpack.c.h.b16 %v969
      %v1050 = vunpack.c.l.b16 %v970
      %v1051 = vunpack.c.l.b16 %v971
      %v1052 = vunpack.c.h.b16 %v971
      %v1053 = vunpack.c.l.b16 %v972
      %v1054 = vunpack.c.l.b16 %v973
      %v1055 = vunpack.c.h.b16 %v973
      %v1056 = vunpack.c.l.b16 %v974
      %v1057 = vunpack.c.l.b16 %v975
      %v1058 = vunpack.c.h.b16 %v975
      %v1059 = vunpack.c.l.b16 %v976
      %v1060 = vunpack.c.l.b16 %v977
      %v1061 = vunpack.c.h.b16 %v977
      %v1062 = vunpack.c.l.b16 %v978
      %v1063 = vunpack.c.l.b16 %v979
      %v1064 = vunpack.c.h.b16 %v979
      %v1065 = vunpack.c.l.b16 %v980
      %v1066 = vunpack.c.l.b16 %v981
      %v1067 = vunpack.c.h.b16 %v981
      %v1068 = vunpack.c.l.b16 %v982
      %v1069 = vunpack.c.l.b16 %v983
      %v1070 = vunpack.c.h.b16 %v983
      %v1071 = vunpack.c.l.b16 %v984
      %v1072 = vunpack.c.l.b16 %v985
      %v1073 = vunpack.c.h.b16 %v985
      %v1074 = vunpack.c.l.b16 %v986
      %v1075 = vpack.c.b16 %v1030, %v1027
      %v1076 = vpack.c.b16 %v1031, %v1028
      %v1077 = vpack.c.b16 %v1032, %v1029
      %v1078 = vpack.c.b16 %v1036, %v1033
      %v1079 = vpack.c.b16 %v1037, %v1034
      %v1080 = vpack.c.b16 %v1038, %v1035
      %v1081 = vpack.c.b16 %v1042, %v1039
      %v1082 = vpack.c.b16 %v1043, %v1040
      %v1083 = vpack.c.b16 %v1044, %v1041
      %v1084 = vpack.c.b16 %v1048, %v1045
      %v1085 = vpack.c.b16 %v1049, %v1046
      %v1086 = vpack.c.b16 %v1050, %v1047
      %v1087 = vpack.c.b16 %v1054, %v1051
      %v1088 = vpack.c.b16 %v1055, %v1052
      %v1089 = vpack.c.b16 %v1056, %v1053
      %v1090 = vpack.c.b16 %v1060, %v1057
      %v1091 = vpack.c.b16 %v1061, %v1058
      %v1092 = vpack.c.b16 %v1062, %v1059
      %v1093 = vpack.c.b16 %v1066, %v1063
      %v1094 = vpack.c.b16 %v1067, %v1064
      %v1095 = vpack.c.b16 %v1068, %v1065
      %v1096 = vpack.c.b16 %v1072, %v1069
      %v1097 = vpack.c.b16 %v1073, %v1070
      %v1098 = vpack.c.b16 %v1074, %v1071
      %1123 = vmatpush.bf16.msra.mxu0 %v1096
      %1124 = vmatpush.bf16.msra.mxu0 %v1093
      %1125 = vmatpush.bf16.msra.mxu0 %v1090
      %1126 = vmatpush.bf16.msra.mxu0 %v1087
      %1127 = vmatpush.bf16.msra.mxu0 %v1084
      %1128 = vmatpush.bf16.msra.mxu0 %v1081
      %1129 = vmatpush.bf16.msra.mxu0 %v1078
      %1130 = vmatpush.bf16.msra.mxu0 %v1075
      %1131 = vmatmul.bf16.gmra.mxu0 %v950
      %v1132 = vpop.f32.mrf.mxu0
      %v1133 = vadd.f32 %v989, %v1132
      %v1134 = vpop.f32.mrf.mxu0
      %v1135 = vadd.f32 %v989, %v1134
      %1136 = vmatmul.bf16.gmra.mxu0 %v951
      %v1137 = vpop.f32.mrf.mxu0
      %v1138 = vadd.f32 %v989, %v1137
      %v1139 = vpop.f32.mrf.mxu0
      %v1140 = vadd.f32 %v989, %v1139
      %1141 = vmatmul.bf16.gmra.mxu0 %v952
      %v1142 = vpop.f32.mrf.mxu0
      %v1143 = vadd.f32 %v989, %v1142
      %v1144 = vpop.f32.mrf.mxu0
      %v1145 = vadd.f32 %v989, %v1144
      %1146 = vmatmul.bf16.gmra.mxu0 %v953
      %v1147 = vpop.f32.mrf.mxu0
      %v1148 = vadd.f32 %v989, %v1147
      %v1149 = vpop.f32.mrf.mxu0
      %v1150 = vadd.f32 %v989, %v1149
      %1151 = vmatmul.bf16.gmra.mxu0 %v954
      %v1152 = vpop.f32.mrf.mxu0
      %v1153 = vadd.f32 %v989, %v1152
      %v1154 = vpop.f32.mrf.mxu0
      %1155 = vdwg.mxu0
      %1156 = vmatpush.bf16.msra.mxu0 %v1097
      %1157 = vmatpush.bf16.msra.mxu0 %v1094
      %1158 = vmatpush.bf16.msra.mxu0 %v1091
      %1159 = vmatpush.bf16.msra.mxu0 %v1088
      %1160 = vmatpush.bf16.msra.mxu0 %v1085
      %1161 = vmatpush.bf16.msra.mxu0 %v1082
      %1162 = vmatpush.bf16.msra.mxu0 %v1079
      %1163 = vmatpush.bf16.msra.mxu0 %v1076
      %1164 = vmatmul.bf16.gmra.mxu0 %v950
      %v1165 = vpop.f32.mrf.mxu0
      %v1166 = vadd.f32 %v990, %v1165
      %v1167 = vpop.f32.mrf.mxu0
      %v1168 = vadd.f32 %v990, %v1167
      %1169 = vmatmul.bf16.gmra.mxu0 %v951
      %v1170 = vpop.f32.mrf.mxu0
      %v1171 = vadd.f32 %v990, %v1170
      %v1172 = vpop.f32.mrf.mxu0
      %v1173 = vadd.f32 %v990, %v1172
      %1174 = vmatmul.bf16.gmra.mxu0 %v952
      %v1175 = vpop.f32.mrf.mxu0
      %v1176 = vadd.f32 %v990, %v1175
      %v1177 = vpop.f32.mrf.mxu0
      %v1178 = vadd.f32 %v990, %v1177
      %1179 = vmatmul.bf16.gmra.mxu0 %v953
      %v1180 = vpop.f32.mrf.mxu0
      %v1181 = vadd.f32 %v990, %v1180
      %v1182 = vpop.f32.mrf.mxu0
      %v1183 = vadd.f32 %v990, %v1182
      %1184 = vmatmul.bf16.gmra.mxu0 %v954
      %v1185 = vpop.f32.mrf.mxu0
      %v1186 = vadd.f32 %v990, %v1185
      %v1187 = vpop.f32.mrf.mxu0
      %1188 = vdwg.mxu0
      %1189 = vmatpush.bf16.msra.mxu0 %v1098
      %1190 = vmatpush.bf16.msra.mxu0 %v1095
      %1191 = vmatpush.bf16.msra.mxu0 %v1092
      %1192 = vmatpush.bf16.msra.mxu0 %v1089
      %1193 = vmatpush.bf16.msra.mxu0 %v1086
      %1194 = vmatpush.bf16.msra.mxu0 %v1083
      %1195 = vmatpush.bf16.msra.mxu0 %v1080
      %1196 = vmatpush.bf16.msra.mxu0 %v1077
      %1197 = vmatmul.bf16.gmra.mxu0 %v950
      %v1198 = vpop.f32.mrf.mxu0
      %v1199 = vadd.f32 %v991, %v1198
      %v1200 = vpop.f32.mrf.mxu0
      %v1201 = vadd.f32 %v991, %v1200
      %1202 = vmatmul.bf16.gmra.mxu0 %v951
      %v1203 = vpop.f32.mrf.mxu0
      %v1204 = vadd.f32 %v991, %v1203
      %v1205 = vpop.f32.mrf.mxu0
      %v1206 = vadd.f32 %v991, %v1205
      %1207 = vmatmul.bf16.gmra.mxu0 %v952
      %v1208 = vpop.f32.mrf.mxu0
      %v1209 = vadd.f32 %v991, %v1208
      %v1210 = vpop.f32.mrf.mxu0
      %v1211 = vadd.f32 %v991, %v1210
      %1212 = vmatmul.bf16.gmra.mxu0 %v953
      %v1213 = vpop.f32.mrf.mxu0
      %v1214 = vadd.f32 %v991, %v1213
      %v1215 = vpop.f32.mrf.mxu0
      %v1216 = vadd.f32 %v991, %v1215
      %1217 = vmatmul.bf16.gmra.mxu0 %v954
      %v1218 = vpop.f32.mrf.mxu0
      %v1219 = vadd.f32 %v991, %v1218
      %v1220 = vpop.f32.mrf.mxu0
      %1221 = vdwg.mxu0
      %v1222 = vlaneseq
      %v1223 = vand.u32 %v1222, 127
      %vm1224 = vcmp.lt.s32.totalorder %v1223, 66
      %v1225 = vsel %vm1224, 0.0, -1e+30
      %v1226 = vld [vmem:[%s673] sm:$0xf]
      %v1227 = vld [vmem:[%s673 + $0x4] sm:$0xf]
      %v1228 = vld [vmem:[%s673 + $0x8] sm:$0xf]
      %v1229 = vld [vmem:[%s673 + $0xc] sm:$0xf]
      %v1230 = vld [vmem:[%s673 + $0x10] sm:$0xf]
      %v1231 = vld [vmem:[%s673 + $0x14] sm:$0xf]
      %v1232 = vld [vmem:[%s673 + $0x18] sm:$0xf]
      %v1233 = vld [vmem:[%s673 + $0x1c] sm:$0xf]
      %v1234 = vld [vmem:[%s673 + $0x20] sm:$0xf]
      %v1235 = vld [vmem:[%s673 + $0x24] sm:$0xf]
      %v1236 = vld [vmem:[%s673 + $0x28] sm:$0xf]
      %v1237 = vld [vmem:[%s673 + $0x2c] sm:$0xf]
      %v1238 = vld [vmem:[%s673 + $0x30] sm:$0xf]
      %v1239 = vld [vmem:[%s673 + $0x34] sm:$0xf]
      %v1240 = vld [vmem:[%s673 + $0x38] sm:$0xf]
      %v1241 = vld [vmem:[%s673 + $0x3c] sm:$0xf]
      %vm1242 = vcmask 261120
      %v1244 = vsel %vm1242, %v1133, 0
      %v1247 = vsel %vm1242, %v1135, 0
      %v1250 = vsel %vm1242, %v1138, 0
      %v1253 = vsel %vm1242, %v1140, 0
      %v1256 = vsel %vm1242, %v1143, 0
      %v1259 = vsel %vm1242, %v1145, 0
      %v1262 = vsel %vm1242, %v1148, 0
      %v1265 = vsel %vm1242, %v1150, 0
      %v1268 = vsel %vm1242, %v1153, 0
      %v1271 = vsel %vm1242, %v1166, 0
      %v1274 = vsel %vm1242, %v1168, 0
      %v1277 = vsel %vm1242, %v1171, 0
      %v1280 = vsel %vm1242, %v1173, 0
      %v1283 = vsel %vm1242, %v1176, 0
      %v1286 = vsel %vm1242, %v1178, 0
      %v1289 = vsel %vm1242, %v1181, 0
      %v1292 = vsel %vm1242, %v1183, 0
      %v1295 = vsel %vm1242, %v1186, 0
      %1297 = vmatpush.xpose.msra.mxu0 0.0
      %1298 = vmatpush.xpose.msra.mxu0 0.0
      %1299 = vmatpush.xpose.msra.mxu0 0.0
      %1300 = vmatpush.xpose.msra.mxu0 0.0
      %1301 = vmatpush.xpose.msra.mxu0 0.0
      %1302 = vmatpush.xpose.msra.mxu0 0.0
      %1303 = vmatpush.xpose.msra.mxu0 0.0
      %1304 = vmatpush.xpose.msra.mxu0 %v1295
      %1305 = vmatpush.xpose.msra.mxu0 %v1292
      %1306 = vmatpush.xpose.msra.mxu0 %v1289
      %1307 = vmatpush.xpose.msra.mxu0 %v1286
      %1308 = vmatpush.xpose.msra.mxu0 %v1283
      %1309 = vmatpush.xpose.msra.mxu0 %v1280
      %1310 = vmatpush.xpose.msra.mxu0 %v1277
      %1311 = vmatpush.xpose.msra.mxu0 %v1274
      %1312 = vmatpush.xpose.msra.mxu0 %v1271
      %1313 = vmatmul.f32.gmra.mxu0 %v1244
      %v1314 = vpop.f32.mrf.mxu0
      %v1315 = vadd.f32 0.0, %v1314
      %1316 = vmatmul.f32.gmra.mxu0 %v1247
      %v1317 = vpop.f32.mrf.mxu0
      %v1318 = vadd.f32 0.0, %v1317
      %1319 = vmatmul.f32.gmra.mxu0 %v1250
      %v1320 = vpop.f32.mrf.mxu0
      %v1321 = vadd.f32 0.0, %v1320
      %1322 = vmatmul.f32.gmra.mxu0 %v1253
      %v1323 = vpop.f32.mrf.mxu0
      %v1324 = vadd.f32 0.0, %v1323
      %1325 = vmatmul.f32.gmra.mxu0 %v1256
      %v1326 = vpop.f32.mrf.mxu0
      %v1327 = vadd.f32 0.0, %v1326
      %1328 = vmatmul.f32.gmra.mxu0 %v1259
      %v1329 = vpop.f32.mrf.mxu0
      %v1330 = vadd.f32 0.0, %v1329
      %1331 = vmatmul.f32.gmra.mxu0 %v1262
      %v1332 = vpop.f32.mrf.mxu0
      %v1333 = vadd.f32 0.0, %v1332
      %1334 = vmatmul.f32.gmra.mxu0 %v1265
      %v1335 = vpop.f32.mrf.mxu0
      %v1336 = vadd.f32 0.0, %v1335
      %1337 = vmatmul.f32.gmra.mxu0 %v1268
      %v1338 = vpop.f32.mrf.mxu0
      %v1339 = vadd.f32 0.0, %v1338
      %1340 = vdwg.mxu0
      %v1341 = vmul.f32 %v1315, 0.17677669
      %v1342 = vmul.f32 %v1318, 0.17677669
      %v1343 = vmul.f32 %v1321, 0.17677669
      %v1344 = vmul.f32 %v1324, 0.17677669
      %v1345 = vmul.f32 %v1327, 0.17677669
      %v1346 = vmul.f32 %v1330, 0.17677669
      %v1347 = vmul.f32 %v1333, 0.17677669
      %v1348 = vmul.f32 %v1336, 0.17677669
      %v1349 = vmul.f32 %v1339, 0.17677669
      %v1350 = vadd.f32 %v1341, %v1225
      %v1351 = vadd.f32 %v1342, %v1225
      %v1352 = vadd.f32 %v1343, %v1225
      %v1353 = vadd.f32 %v1344, %v1225
      %v1354 = vadd.f32 %v1345, %v1225
      %v1355 = vadd.f32 %v1346, %v1225
      %v1356 = vadd.f32 %v1347, %v1225
      %v1357 = vadd.f32 %v1348, %v1225
      %v1358 = vadd.f32 %v1349, %v1225
      %vm1359 = vcmask 588800
      %v1360 = vsel %vm1359, %v1350, -inf
      %1361 = vmax.xlane.f32.xlu0 %v1360
      %v1362 = vpop.xlane.xlu0 %1361
      %v1363 = vsel %vm1359, %v1351, -inf
      %1364 = vmax.xlane.f32.xlu0 %v1363
      %v1365 = vpop.xlane.xlu0 %1364
      %v1366 = vsel %vm1359, %v1352, -inf
      %1367 = vmax.xlane.f32.xlu0 %v1366
      %v1368 = vpop.xlane.xlu0 %1367
      %v1369 = vsel %vm1359, %v1353, -inf
      %1370 = vmax.xlane.f32.xlu0 %v1369
      %v1371 = vpop.xlane.xlu0 %1370
      %v1372 = vsel %vm1359, %v1354, -inf
      %1373 = vmax.xlane.f32.xlu0 %v1372
      %v1374 = vpop.xlane.xlu0 %1373
      %v1375 = vsel %vm1359, %v1355, -inf
      %1376 = vmax.xlane.f32.xlu0 %v1375
      %v1377 = vpop.xlane.xlu0 %1376
      %v1378 = vsel %vm1359, %v1356, -inf
      %1379 = vmax.xlane.f32.xlu0 %v1378
      %v1380 = vpop.xlane.xlu0 %1379
      %v1381 = vsel %vm1359, %v1357, -inf
      %1382 = vmax.xlane.f32.xlu0 %v1381
      %v1383 = vpop.xlane.xlu0 %1382
      %v1384 = vsel %vm1359, %v1358, -inf
      %1385 = vmax.xlane.f32.xlu0 %v1384
      %v1386 = vpop.xlane.xlu0 %1385
      %v1387 = vsub.f32 %v1350, %v1362
      %v1388 = vsub.f32 %v1351, %v1365
      %v1389 = vsub.f32 %v1352, %v1368
      %v1390 = vsub.f32 %v1353, %v1371
      %v1391 = vsub.f32 %v1354, %v1374
      %v1392 = vsub.f32 %v1355, %v1377
      %v1393 = vsub.f32 %v1356, %v1380
      %v1394 = vsub.f32 %v1357, %v1383
      %v1395 = vsub.f32 %v1358, %v1386
      %v1396 = vmul.f32 %v1387, 1.442695
      %v1397 = vpow.pop %v1396
      %v1398 = vmul.f32 %v1388, 1.442695
      %v1399 = vpow.pop %v1398
      %v1400 = vmul.f32 %v1389, 1.442695
      %v1401 = vpow.pop %v1400
      %v1402 = vmul.f32 %v1390, 1.442695
      %v1403 = vpow.pop %v1402
      %v1404 = vmul.f32 %v1391, 1.442695
      %v1405 = vpow.pop %v1404
      %v1406 = vmul.f32 %v1392, 1.442695
      %v1407 = vpow.pop %v1406
      %v1408 = vmul.f32 %v1393, 1.442695
      %v1409 = vpow.pop %v1408
      %v1410 = vmul.f32 %v1394, 1.442695
      %v1411 = vpow.pop %v1410
      %v1412 = vmul.f32 %v1395, 1.442695
      %v1413 = vpow.pop %v1412
      %v1414 = vsel %vm1359, %v1397, 0.0
      %1415 = vadd.xlane.f32.xlu0 %v1414
      %v1416 = vpop.xlane.xlu0 %1415
      %v1417 = vsel %vm1359, %v1399, 0.0
      %1418 = vadd.xlane.f32.xlu0 %v1417
      %v1419 = vpop.xlane.xlu0 %1418
      %v1420 = vsel %vm1359, %v1401, 0.0
      %1421 = vadd.xlane.f32.xlu0 %v1420
      %v1422 = vpop.xlane.xlu0 %1421
      %v1423 = vsel %vm1359, %v1403, 0.0
      %1424 = vadd.xlane.f32.xlu0 %v1423
      %v1425 = vpop.xlane.xlu0 %1424
      %v1426 = vsel %vm1359, %v1405, 0.0
      %1427 = vadd.xlane.f32.xlu0 %v1426
      %v1428 = vpop.xlane.xlu0 %1427
      %v1429 = vsel %vm1359, %v1407, 0.0
      %1430 = vadd.xlane.f32.xlu0 %v1429
      %v1431 = vpop.xlane.xlu0 %1430
      %v1432 = vsel %vm1359, %v1409, 0.0
      %1433 = vadd.xlane.f32.xlu0 %v1432
      %v1434 = vpop.xlane.xlu0 %1433
      %v1435 = vsel %vm1359, %v1411, 0.0
      %1436 = vadd.xlane.f32.xlu0 %v1435
      %v1437 = vpop.xlane.xlu0 %1436
      %v1438 = vsel %vm1359, %v1413, 0.0
      %1439 = vadd.xlane.f32.xlu0 %v1438
      %v1440 = vpop.xlane.xlu0 %1439
      %v1441 = vrcp.pop %v1416
      %v1442 = vmul.f32 %v1416, %v1441
      %v1443 = vsub.f32 1.0, %v1442
      %v1444 = vmul.f32 %v1441, %v1443
      %v1445 = vadd.f32 %v1441, %v1444
      %vm1446 = vweird.f32 %v1416
      %vm1447 = vweird.f32 %v1441
      %vm1448 = vmor %vm1446, %vm1447
      %v1449 = vsel %vm1448, %v1441, %v1445
      %v1450 = vand.u32 2147483647, %v1416
      %vm1451 = vcmp.eq.f32.partialorder %v1450, 8.507059e+37
      %v1452 = vand.u32 %v1416, 2147483648
      %v1453 = vor.u32 1.1754944e-38, %v1452
      %v1454 = vsel %vm1451, %v1453, %v1449
      %v1455 = vmul.f32 %v1397, %v1454
      %v1456 = vrcp.pop %v1419
      %v1457 = vmul.f32 %v1419, %v1456
      %v1458 = vsub.f32 1.0, %v1457
      %v1459 = vmul.f32 %v1456, %v1458
      %v1460 = vadd.f32 %v1456, %v1459
      %vm1461 = vweird.f32 %v1419
      %vm1462 = vweird.f32 %v1456
      %vm1463 = vmor %vm1461, %vm1462
      %v1464 = vsel %vm1463, %v1456, %v1460
      %v1465 = vand.u32 2147483647, %v1419
      %vm1466 = vcmp.eq.f32.partialorder %v1465, 8.507059e+37
      %v1467 = vand.u32 %v1419, 2147483648
      %v1468 = vor.u32 1.1754944e-38, %v1467
      %v1469 = vsel %vm1466, %v1468, %v1464
      %v1470 = vmul.f32 %v1399, %v1469
      %v1471 = vrcp.pop %v1422
      %v1472 = vmul.f32 %v1422, %v1471
      %v1473 = vsub.f32 1.0, %v1472
      %v1474 = vmul.f32 %v1471, %v1473
      %v1475 = vadd.f32 %v1471, %v1474
      %vm1476 = vweird.f32 %v1422
      %vm1477 = vweird.f32 %v1471
      %vm1478 = vmor %vm1476, %vm1477
      %v1479 = vsel %vm1478, %v1471, %v1475
      %v1480 = vand.u32 2147483647, %v1422
      %vm1481 = vcmp.eq.f32.partialorder %v1480, 8.507059e+37
      %v1482 = vand.u32 %v1422, 2147483648
      %v1483 = vor.u32 1.1754944e-38, %v1482
      %v1484 = vsel %vm1481, %v1483, %v1479
      %v1485 = vmul.f32 %v1401, %v1484
      %v1486 = vrcp.pop %v1425
      %v1487 = vmul.f32 %v1425, %v1486
      %v1488 = vsub.f32 1.0, %v1487
      %v1489 = vmul.f32 %v1486, %v1488
      %v1490 = vadd.f32 %v1486, %v1489
      %vm1491 = vweird.f32 %v1425
      %vm1492 = vweird.f32 %v1486
      %vm1493 = vmor %vm1491, %vm1492
      %v1494 = vsel %vm1493, %v1486, %v1490
      %v1495 = vand.u32 2147483647, %v1425
      %vm1496 = vcmp.eq.f32.partialorder %v1495, 8.507059e+37
      %v1497 = vand.u32 %v1425, 2147483648
      %v1498 = vor.u32 1.1754944e-38, %v1497
      %v1499 = vsel %vm1496, %v1498, %v1494
      %v1500 = vmul.f32 %v1403, %v1499
      %v1501 = vrcp.pop %v1428
      %v1502 = vmul.f32 %v1428, %v1501
      %v1503 = vsub.f32 1.0, %v1502
      %v1504 = vmul.f32 %v1501, %v1503
      %v1505 = vadd.f32 %v1501, %v1504
      %vm1506 = vweird.f32 %v1428
      %vm1507 = vweird.f32 %v1501
      %vm1508 = vmor %vm1506, %vm1507
      %v1509 = vsel %vm1508, %v1501, %v1505
      %v1510 = vand.u32 2147483647, %v1428
      %vm1511 = vcmp.eq.f32.partialorder %v1510, 8.507059e+37
      %v1512 = vand.u32 %v1428, 2147483648
      %v1513 = vor.u32 1.1754944e-38, %v1512
      %v1514 = vsel %vm1511, %v1513, %v1509
      %v1515 = vmul.f32 %v1405, %v1514
      %v1516 = vrcp.pop %v1431
      %v1517 = vmul.f32 %v1431, %v1516
      %v1518 = vsub.f32 1.0, %v1517
      %v1519 = vmul.f32 %v1516, %v1518
      %v1520 = vadd.f32 %v1516, %v1519
      %vm1521 = vweird.f32 %v1431
      %vm1522 = vweird.f32 %v1516
      %vm1523 = vmor %vm1521, %vm1522
      %v1524 = vsel %vm1523, %v1516, %v1520
      %v1525 = vand.u32 2147483647, %v1431
      %vm1526 = vcmp.eq.f32.partialorder %v1525, 8.507059e+37
      %v1527 = vand.u32 %v1431, 2147483648
      %v1528 = vor.u32 1.1754944e-38, %v1527
      %v1529 = vsel %vm1526, %v1528, %v1524
      %v1530 = vmul.f32 %v1407, %v1529
      %v1531 = vrcp.pop %v1434
      %v1532 = vmul.f32 %v1434, %v1531
      %v1533 = vsub.f32 1.0, %v1532
      %v1534 = vmul.f32 %v1531, %v1533
      %v1535 = vadd.f32 %v1531, %v1534
      %vm1536 = vweird.f32 %v1434
      %vm1537 = vweird.f32 %v1531
      %vm1538 = vmor %vm1536, %vm1537
      %v1539 = vsel %vm1538, %v1531, %v1535
      %v1540 = vand.u32 2147483647, %v1434
      %vm1541 = vcmp.eq.f32.partialorder %v1540, 8.507059e+37
      %v1542 = vand.u32 %v1434, 2147483648
      %v1543 = vor.u32 1.1754944e-38, %v1542
      %v1544 = vsel %vm1541, %v1543, %v1539
      %v1545 = vmul.f32 %v1409, %v1544
      %v1546 = vrcp.pop %v1437
      %v1547 = vmul.f32 %v1437, %v1546
      %v1548 = vsub.f32 1.0, %v1547
      %v1549 = vmul.f32 %v1546, %v1548
      %v1550 = vadd.f32 %v1546, %v1549
      %vm1551 = vweird.f32 %v1437
      %vm1552 = vweird.f32 %v1546
      %vm1553 = vmor %vm1551, %vm1552
      %v1554 = vsel %vm1553, %v1546, %v1550
      %v1555 = vand.u32 2147483647, %v1437
      %vm1556 = vcmp.eq.f32.partialorder %v1555, 8.507059e+37
      %v1557 = vand.u32 %v1437, 2147483648
      %v1558 = vor.u32 1.1754944e-38, %v1557
      %v1559 = vsel %vm1556, %v1558, %v1554
      %v1560 = vmul.f32 %v1411, %v1559
      %v1561 = vrcp.pop %v1440
      %v1562 = vmul.f32 %v1440, %v1561
      %v1563 = vsub.f32 1.0, %v1562
      %v1564 = vmul.f32 %v1561, %v1563
      %v1565 = vadd.f32 %v1561, %v1564
      %vm1566 = vweird.f32 %v1440
      %vm1567 = vweird.f32 %v1561
      %vm1568 = vmor %vm1566, %vm1567
      %v1569 = vsel %vm1568, %v1561, %v1565
      %v1570 = vand.u32 2147483647, %v1440
      %vm1571 = vcmp.eq.f32.partialorder %v1570, 8.507059e+37
      %v1572 = vand.u32 %v1440, 2147483648
      %v1573 = vor.u32 1.1754944e-38, %v1572
      %v1574 = vsel %vm1571, %v1573, %v1569
      %v1575 = vmul.f32 %v1413, %v1574
      %v1576 = vpack.c.bf16 %v1470, %v1455
      %v1577 = vpack.c.bf16 %v1500, %v1485
      %v1578 = vpack.c.bf16 %v1530, %v1515
      %v1579 = vpack.c.bf16 %v1560, %v1545
      %v1580 = vpack.c.bf16 %v1575, %v1575
      %v1581 = vpack.c.bf16 %v1201, %v1199
      %v1582 = vpack.c.bf16 %v1206, %v1204
      %v1583 = vpack.c.bf16 %v1211, %v1209
      %v1584 = vpack.c.bf16 %v1216, %v1214
      %v1585 = vpack.c.bf16 %v1219, %v1219
      %v1587 = vsel %vm1359, %v1576, 0
      %v1590 = vsel %vm1359, %v1577, 0
      %v1593 = vsel %vm1359, %v1578, 0
      %v1596 = vsel %vm1359, %v1579, 0
      %v1599 = vsel %vm1359, %v1580, 0
      %vm1601 = vcmask 1043456
      %v1603 = vsel %vm1601, %v1585, 0
      %1605 = vmatpush.bf16.msra.mxu0 0
      %1606 = vmatpush.bf16.msra.mxu0 0
      %1607 = vmatpush.bf16.msra.mxu0 0
      %1608 = vmatpush.bf16.msra.mxu0 %v1603
      %1609 = vmatpush.bf16.msra.mxu0 %v1584
      %1610 = vmatpush.bf16.msra.mxu0 %v1583
      %1611 = vmatpush.bf16.msra.mxu0 %v1582
      %1612 = vmatpush.bf16.msra.mxu0 %v1581
      %1613 = vmatmul.bf16.gmra.mxu0 %v1587
      %v1614 = vpop.f32.mrf.mxu0
      %v1615 = vadd.f32 0.0, %v1614
      %v1616 = vpop.f32.mrf.mxu0
      %v1617 = vadd.f32 0.0, %v1616
      %1618 = vmatmul.bf16.gmra.mxu0 %v1590
      %v1619 = vpop.f32.mrf.mxu0
      %v1620 = vadd.f32 0.0, %v1619
      %v1621 = vpop.f32.mrf.mxu0
      %v1622 = vadd.f32 0.0, %v1621
      %1623 = vmatmul.bf16.gmra.mxu0 %v1593
      %v1624 = vpop.f32.mrf.mxu0
      %v1625 = vadd.f32 0.0, %v1624
      %v1626 = vpop.f32.mrf.mxu0
      %v1627 = vadd.f32 0.0, %v1626
      %1628 = vmatmul.bf16.gmra.mxu0 %v1596
      %v1629 = vpop.f32.mrf.mxu0
      %v1630 = vadd.f32 0.0, %v1629
      %v1631 = vpop.f32.mrf.mxu0
      %v1632 = vadd.f32 0.0, %v1631
      %1633 = vmatmul.bf16.gmra.mxu0 %v1599
      %v1634 = vpop.f32.mrf.mxu0
      %v1635 = vadd.f32 0.0, %v1634
      %v1636 = vpop.f32.mrf.mxu0
      %1637 = vdwg.mxu0
      %v1638 = vpack.c.bf16 %v1617, %v1615
      %v1639 = vpack.c.bf16 %v1622, %v1620
      %v1640 = vpack.c.bf16 %v1627, %v1625
      %v1641 = vpack.c.bf16 %v1632, %v1630
      %v1642 = vpack.c.bf16 %v1635, %v1635
      %1643 = vrot.lane.b32.xlu0 %v1133, 96
      %v1644 = vpop.permute.xlu0 %1643
      %1645 = vrot.lane.b32.xlu0 %v1135, 96
      %v1646 = vpop.permute.xlu0 %1645
      %1647 = vrot.lane.b32.xlu0 %v1138, 96
      %v1648 = vpop.permute.xlu0 %1647
      %1649 = vrot.lane.b32.xlu0 %v1140, 96
      %v1650 = vpop.permute.xlu0 %1649
      %1651 = vrot.lane.b32.xlu0 %v1143, 96
      %v1652 = vpop.permute.xlu0 %1651
      %1653 = vrot.lane.b32.xlu0 %v1145, 96
      %v1654 = vpop.permute.xlu0 %1653
      %1655 = vrot.lane.b32.xlu0 %v1148, 96
      %v1656 = vpop.permute.xlu0 %1655
      %1657 = vrot.lane.b32.xlu0 %v1150, 96
      %v1658 = vpop.permute.xlu0 %1657
      %1659 = vrot.lane.b32.xlu0 %v1153, 96
      %v1660 = vpop.permute.xlu0 %1659
      %1661 = vrot.lane.b32.xlu0 %v1166, 96
      %v1662 = vpop.permute.xlu0 %1661
      %1663 = vrot.lane.b32.xlu0 %v1168, 96
      %v1664 = vpop.permute.xlu0 %1663
      %1665 = vrot.lane.b32.xlu0 %v1171, 96
      %v1666 = vpop.permute.xlu0 %1665
      %1667 = vrot.lane.b32.xlu0 %v1173, 96
      %v1668 = vpop.permute.xlu0 %1667
      %1669 = vrot.lane.b32.xlu0 %v1176, 96
      %v1670 = vpop.permute.xlu0 %1669
      %1671 = vrot.lane.b32.xlu0 %v1178, 96
      %v1672 = vpop.permute.xlu0 %1671
      %1673 = vrot.lane.b32.xlu0 %v1181, 96
      %v1674 = vpop.permute.xlu0 %1673
      %1675 = vrot.lane.b32.xlu0 %v1183, 96
      %v1676 = vpop.permute.xlu0 %1675
      %1677 = vrot.lane.b32.xlu0 %v1186, 96
      %v1678 = vpop.permute.xlu0 %1677
      %v1679 = vsel %vm1242, %v1644, 0
      %v1681 = vsel %vm1242, %v1646, 0
      %v1683 = vsel %vm1242, %v1648, 0
      %v1685 = vsel %vm1242, %v1650, 0
      %v1687 = vsel %vm1242, %v1652, 0
      %v1689 = vsel %vm1242, %v1654, 0
      %v1691 = vsel %vm1242, %v1656, 0
      %v1693 = vsel %vm1242, %v1658, 0
      %v1695 = vsel %vm1242, %v1660, 0
      %v1697 = vsel %vm1242, %v1662, 0
      %v1699 = vsel %vm1242, %v1664, 0
      %v1701 = vsel %vm1242, %v1666, 0
      %v1703 = vsel %vm1242, %v1668, 0
      %v1705 = vsel %vm1242, %v1670, 0
      %v1707 = vsel %vm1242, %v1672, 0
      %v1709 = vsel %vm1242, %v1674, 0
      %v1711 = vsel %vm1242, %v1676, 0
      %v1713 = vsel %vm1242, %v1678, 0
      %1715 = vmatpush.xpose.msra.mxu0 0.0
      %1716 = vmatpush.xpose.msra.mxu0 0.0
      %1717 = vmatpush.xpose.msra.mxu0 0.0
      %1718 = vmatpush.xpose.msra.mxu0 0.0
      %1719 = vmatpush.xpose.msra.mxu0 0.0
      %1720 = vmatpush.xpose.msra.mxu0 0.0
      %1721 = vmatpush.xpose.msra.mxu0 0.0
      %1722 = vmatpush.xpose.msra.mxu0 %v1713
      %1723 = vmatpush.xpose.msra.mxu0 %v1711
      %1724 = vmatpush.xpose.msra.mxu0 %v1709
      %1725 = vmatpush.xpose.msra.mxu0 %v1707
      %1726 = vmatpush.xpose.msra.mxu0 %v1705
      %1727 = vmatpush.xpose.msra.mxu0 %v1703
      %1728 = vmatpush.xpose.msra.mxu0 %v1701
      %1729 = vmatpush.xpose.msra.mxu0 %v1699
      %1730 = vmatpush.xpose.msra.mxu0 %v1697
      %1731 = vmatmul.f32.gmra.mxu0 %v1679
      %v1732 = vpop.f32.mrf.mxu0
      %v1733 = vadd.f32 0.0, %v1732
      %1734 = vmatmul.f32.gmra.mxu0 %v1681
      %v1735 = vpop.f32.mrf.mxu0
      %v1736 = vadd.f32 0.0, %v1735
      %1737 = vmatmul.f32.gmra.mxu0 %v1683
      %v1738 = vpop.f32.mrf.mxu0
      %v1739 = vadd.f32 0.0, %v1738
      %1740 = vmatmul.f32.gmra.mxu0 %v1685
      %v1741 = vpop.f32.mrf.mxu0
      %v1742 = vadd.f32 0.0, %v1741
      %1743 = vmatmul.f32.gmra.mxu0 %v1687
      %v1744 = vpop.f32.mrf.mxu0
      %v1745 = vadd.f32 0.0, %v1744
      %1746 = vmatmul.f32.gmra.mxu0 %v1689
      %v1747 = vpop.f32.mrf.mxu0
      %v1748 = vadd.f32 0.0, %v1747
      %1749 = vmatmul.f32.gmra.mxu0 %v1691
      %v1750 = vpop.f32.mrf.mxu0
      %v1751 = vadd.f32 0.0, %v1750
      %1752 = vmatmul.f32.gmra.mxu0 %v1693
      %v1753 = vpop.f32.mrf.mxu0
      %v1754 = vadd.f32 0.0, %v1753
      %1755 = vmatmul.f32.gmra.mxu0 %v1695
      %v1756 = vpop.f32.mrf.mxu0
      %v1757 = vadd.f32 0.0, %v1756
      %1758 = vdwg.mxu0
      %v1759 = vmul.f32 %v1733, 0.17677669
      %v1760 = vmul.f32 %v1736, 0.17677669
      %v1761 = vmul.f32 %v1739, 0.17677669
      %v1762 = vmul.f32 %v1742, 0.17677669
      %v1763 = vmul.f32 %v1745, 0.17677669
      %v1764 = vmul.f32 %v1748, 0.17677669
      %v1765 = vmul.f32 %v1751, 0.17677669
      %v1766 = vmul.f32 %v1754, 0.17677669
      %v1767 = vmul.f32 %v1757, 0.17677669
      %v1768 = vadd.f32 %v1759, %v1225
      %v1769 = vadd.f32 %v1760, %v1225
      %v1770 = vadd.f32 %v1761, %v1225
      %v1771 = vadd.f32 %v1762, %v1225
      %v1772 = vadd.f32 %v1763, %v1225
      %v1773 = vadd.f32 %v1764, %v1225
      %v1774 = vadd.f32 %v1765, %v1225
      %v1775 = vadd.f32 %v1766, %v1225
      %v1776 = vadd.f32 %v1767, %v1225
      %v1777 = vsel %vm1359, %v1768, -inf
      %1778 = vmax.xlane.f32.xlu0 %v1777
      %v1779 = vpop.xlane.xlu0 %1778
      %v1780 = vsel %vm1359, %v1769, -inf
      %1781 = vmax.xlane.f32.xlu0 %v1780
      %v1782 = vpop.xlane.xlu0 %1781
      %v1783 = vsel %vm1359, %v1770, -inf
      %1784 = vmax.xlane.f32.xlu0 %v1783
      %v1785 = vpop.xlane.xlu0 %1784
      %v1786 = vsel %vm1359, %v1771, -inf
      %1787 = vmax.xlane.f32.xlu0 %v1786
      %v1788 = vpop.xlane.xlu0 %1787
      %v1789 = vsel %vm1359, %v1772, -inf
      %1790 = vmax.xlane.f32.xlu0 %v1789
      %v1791 = vpop.xlane.xlu0 %1790
      %v1792 = vsel %vm1359, %v1773, -inf
      %1793 = vmax.xlane.f32.xlu0 %v1792
      %v1794 = vpop.xlane.xlu0 %1793
      %v1795 = vsel %vm1359, %v1774, -inf
      %1796 = vmax.xlane.f32.xlu0 %v1795
      %v1797 = vpop.xlane.xlu0 %1796
      %v1798 = vsel %vm1359, %v1775, -inf
      %1799 = vmax.xlane.f32.xlu0 %v1798
      %v1800 = vpop.xlane.xlu0 %1799
      %v1801 = vsel %vm1359, %v1776, -inf
      %1802 = vmax.xlane.f32.xlu0 %v1801
      %v1803 = vpop.xlane.xlu0 %1802
      %v1804 = vsub.f32 %v1768, %v1779
      %v1805 = vsub.f32 %v1769, %v1782
      %v1806 = vsub.f32 %v1770, %v1785
      %v1807 = vsub.f32 %v1771, %v1788
      %v1808 = vsub.f32 %v1772, %v1791
      %v1809 = vsub.f32 %v1773, %v1794
      %v1810 = vsub.f32 %v1774, %v1797
      %v1811 = vsub.f32 %v1775, %v1800
      %v1812 = vsub.f32 %v1776, %v1803
      %v1813 = vmul.f32 %v1804, 1.442695
      %v1814 = vpow.pop %v1813
      %v1815 = vmul.f32 %v1805, 1.442695
      %v1816 = vpow.pop %v1815
      %v1817 = vmul.f32 %v1806, 1.442695
      %v1818 = vpow.pop %v1817
      %v1819 = vmul.f32 %v1807, 1.442695
      %v1820 = vpow.pop %v1819
      %v1821 = vmul.f32 %v1808, 1.442695
      %v1822 = vpow.pop %v1821
      %v1823 = vmul.f32 %v1809, 1.442695
      %v1824 = vpow.pop %v1823
      %v1825 = vmul.f32 %v1810, 1.442695
      %v1826 = vpow.pop %v1825
      %v1827 = vmul.f32 %v1811, 1.442695
      %v1828 = vpow.pop %v1827
      %v1829 = vmul.f32 %v1812, 1.442695
      %v1830 = vpow.pop %v1829
      %v1831 = vsel %vm1359, %v1814, 0.0
      %1832 = vadd.xlane.f32.xlu0 %v1831
      %v1833 = vpop.xlane.xlu0 %1832
      %v1834 = vsel %vm1359, %v1816, 0.0
      %1835 = vadd.xlane.f32.xlu0 %v1834
      %v1836 = vpop.xlane.xlu0 %1835
      %v1837 = vsel %vm1359, %v1818, 0.0
      %1838 = vadd.xlane.f32.xlu0 %v1837
      %v1839 = vpop.xlane.xlu0 %1838
      %v1840 = vsel %vm1359, %v1820, 0.0
      %1841 = vadd.xlane.f32.xlu0 %v1840
      %v1842 = vpop.xlane.xlu0 %1841
      %v1843 = vsel %vm1359, %v1822, 0.0
      %1844 = vadd.xlane.f32.xlu0 %v1843
      %v1845 = vpop.xlane.xlu0 %1844
      %v1846 = vsel %vm1359, %v1824, 0.0
      %1847 = vadd.xlane.f32.xlu0 %v1846
      %v1848 = vpop.xlane.xlu0 %1847
      %v1849 = vsel %vm1359, %v1826, 0.0
      %1850 = vadd.xlane.f32.xlu0 %v1849
      %v1851 = vpop.xlane.xlu0 %1850
      %v1852 = vsel %vm1359, %v1828, 0.0
      %1853 = vadd.xlane.f32.xlu0 %v1852
      %v1854 = vpop.xlane.xlu0 %1853
      %v1855 = vsel %vm1359, %v1830, 0.0
      %1856 = vadd.xlane.f32.xlu0 %v1855
      %v1857 = vpop.xlane.xlu0 %1856
      %v1858 = vrcp.pop %v1833
      %v1859 = vmul.f32 %v1833, %v1858
      %v1860 = vsub.f32 1.0, %v1859
      %v1861 = vmul.f32 %v1858, %v1860
      %v1862 = vadd.f32 %v1858, %v1861
      %vm1863 = vweird.f32 %v1833
      %vm1864 = vweird.f32 %v1858
      %vm1865 = vmor %vm1863, %vm1864
      %v1866 = vsel %vm1865, %v1858, %v1862
      %v1867 = vand.u32 2147483647, %v1833
      %vm1868 = vcmp.eq.f32.partialorder %v1867, 8.507059e+37
      %v1869 = vand.u32 %v1833, 2147483648
      %v1870 = vor.u32 1.1754944e-38, %v1869
      %v1871 = vsel %vm1868, %v1870, %v1866
      %v1872 = vmul.f32 %v1814, %v1871
      %v1873 = vrcp.pop %v1836
      %v1874 = vmul.f32 %v1836, %v1873
      %v1875 = vsub.f32 1.0, %v1874
      %v1876 = vmul.f32 %v1873, %v1875
      %v1877 = vadd.f32 %v1873, %v1876
      %vm1878 = vweird.f32 %v1836
      %vm1879 = vweird.f32 %v1873
      %vm1880 = vmor %vm1878, %vm1879
      %v1881 = vsel %vm1880, %v1873, %v1877
      %v1882 = vand.u32 2147483647, %v1836
      %vm1883 = vcmp.eq.f32.partialorder %v1882, 8.507059e+37
      %v1884 = vand.u32 %v1836, 2147483648
      %v1885 = vor.u32 1.1754944e-38, %v1884
      %v1886 = vsel %vm1883, %v1885, %v1881
      %v1887 = vmul.f32 %v1816, %v1886
      %v1888 = vrcp.pop %v1839
      %v1889 = vmul.f32 %v1839, %v1888
      %v1890 = vsub.f32 1.0, %v1889
      %v1891 = vmul.f32 %v1888, %v1890
      %v1892 = vadd.f32 %v1888, %v1891
      %vm1893 = vweird.f32 %v1839
      %vm1894 = vweird.f32 %v1888
      %vm1895 = vmor %vm1893, %vm1894
      %v1896 = vsel %vm1895, %v1888, %v1892
      %v1897 = vand.u32 2147483647, %v1839
      %vm1898 = vcmp.eq.f32.partialorder %v1897, 8.507059e+37
      %v1899 = vand.u32 %v1839, 2147483648
      %v1900 = vor.u32 1.1754944e-38, %v1899
      %v1901 = vsel %vm1898, %v1900, %v1896
      %v1902 = vmul.f32 %v1818, %v1901
      %v1903 = vrcp.pop %v1842
      %v1904 = vmul.f32 %v1842, %v1903
      %v1905 = vsub.f32 1.0, %v1904
      %v1906 = vmul.f32 %v1903, %v1905
      %v1907 = vadd.f32 %v1903, %v1906
      %vm1908 = vweird.f32 %v1842
      %vm1909 = vweird.f32 %v1903
      %vm1910 = vmor %vm1908, %vm1909
      %v1911 = vsel %vm1910, %v1903, %v1907
      %v1912 = vand.u32 2147483647, %v1842
      %vm1913 = vcmp.eq.f32.partialorder %v1912, 8.507059e+37
      %v1914 = vand.u32 %v1842, 2147483648
      %v1915 = vor.u32 1.1754944e-38, %v1914
      %v1916 = vsel %vm1913, %v1915, %v1911
      %v1917 = vmul.f32 %v1820, %v1916
      %v1918 = vrcp.pop %v1845
      %v1919 = vmul.f32 %v1845, %v1918
      %v1920 = vsub.f32 1.0, %v1919
      %v1921 = vmul.f32 %v1918, %v1920
      %v1922 = vadd.f32 %v1918, %v1921
      %vm1923 = vweird.f32 %v1845
      %vm1924 = vweird.f32 %v1918
      %vm1925 = vmor %vm1923, %vm1924
      %v1926 = vsel %vm1925, %v1918, %v1922
      %v1927 = vand.u32 2147483647, %v1845
      %vm1928 = vcmp.eq.f32.partialorder %v1927, 8.507059e+37
      %v1929 = vand.u32 %v1845, 2147483648
      %v1930 = vor.u32 1.1754944e-38, %v1929
      %v1931 = vsel %vm1928, %v1930, %v1926
      %v1932 = vmul.f32 %v1822, %v1931
      %v1933 = vrcp.pop %v1848
      %v1934 = vmul.f32 %v1848, %v1933
      %v1935 = vsub.f32 1.0, %v1934
      %v1936 = vmul.f32 %v1933, %v1935
      %v1937 = vadd.f32 %v1933, %v1936
      %vm1938 = vweird.f32 %v1848
      %vm1939 = vweird.f32 %v1933
      %vm1940 = vmor %vm1938, %vm1939
      %v1941 = vsel %vm1940, %v1933, %v1937
      %v1942 = vand.u32 2147483647, %v1848
      %vm1943 = vcmp.eq.f32.partialorder %v1942, 8.507059e+37
      %v1944 = vand.u32 %v1848, 2147483648
      %v1945 = vor.u32 1.1754944e-38, %v1944
      %v1946 = vsel %vm1943, %v1945, %v1941
      %v1947 = vmul.f32 %v1824, %v1946
      %v1948 = vrcp.pop %v1851
      %v1949 = vmul.f32 %v1851, %v1948
      %v1950 = vsub.f32 1.0, %v1949
      %v1951 = vmul.f32 %v1948, %v1950
      %v1952 = vadd.f32 %v1948, %v1951
      %vm1953 = vweird.f32 %v1851
      %vm1954 = vweird.f32 %v1948
      %vm1955 = vmor %vm1953, %vm1954
      %v1956 = vsel %vm1955, %v1948, %v1952
      %v1957 = vand.u32 2147483647, %v1851
      %vm1958 = vcmp.eq.f32.partialorder %v1957, 8.507059e+37
      %v1959 = vand.u32 %v1851, 2147483648
      %v1960 = vor.u32 1.1754944e-38, %v1959
      %v1961 = vsel %vm1958, %v1960, %v1956
      %v1962 = vmul.f32 %v1826, %v1961
      %v1963 = vrcp.pop %v1854
      %v1964 = vmul.f32 %v1854, %v1963
      %v1965 = vsub.f32 1.0, %v1964
      %v1966 = vmul.f32 %v1963, %v1965
      %v1967 = vadd.f32 %v1963, %v1966
      %vm1968 = vweird.f32 %v1854
      %vm1969 = vweird.f32 %v1963
      %vm1970 = vmor %vm1968, %vm1969
      %v1971 = vsel %vm1970, %v1963, %v1967
      %v1972 = vand.u32 2147483647, %v1854
      %vm1973 = vcmp.eq.f32.partialorder %v1972, 8.507059e+37
      %v1974 = vand.u32 %v1854, 2147483648
      %v1975 = vor.u32 1.1754944e-38, %v1974
      %v1976 = vsel %vm1973, %v1975, %v1971
      %v1977 = vmul.f32 %v1828, %v1976
      %v1978 = vrcp.pop %v1857
      %v1979 = vmul.f32 %v1857, %v1978
      %v1980 = vsub.f32 1.0, %v1979
      %v1981 = vmul.f32 %v1978, %v1980
      %v1982 = vadd.f32 %v1978, %v1981
      %vm1983 = vweird.f32 %v1857
      %vm1984 = vweird.f32 %v1978
      %vm1985 = vmor %vm1983, %vm1984
      %v1986 = vsel %vm1985, %v1978, %v1982
      %v1987 = vand.u32 2147483647, %v1857
      %vm1988 = vcmp.eq.f32.partialorder %v1987, 8.507059e+37
      %v1989 = vand.u32 %v1857, 2147483648
      %v1990 = vor.u32 1.1754944e-38, %v1989
      %v1991 = vsel %vm1988, %v1990, %v1986
      %v1992 = vmul.f32 %v1830, %v1991
      %v1993 = vpack.c.bf16 %v1887, %v1872
      %v1994 = vpack.c.bf16 %v1917, %v1902
      %v1995 = vpack.c.bf16 %v1947, %v1932
      %v1996 = vpack.c.bf16 %v1977, %v1962
      %v1997 = vpack.c.bf16 %v1992, %v1992
      %2003 = vrot.lane.b32.xlu0 %v1581, 96
      %v2004 = vpop.permute.xlu0 %2003
      %2005 = vrot.lane.b32.xlu0 %v1582, 96
      %v2006 = vpop.permute.xlu0 %2005
      %2007 = vrot.lane.b32.xlu0 %v1583, 96
      %v2008 = vpop.permute.xlu0 %2007
      %2009 = vrot.lane.b32.xlu0 %v1584, 96
      %v2010 = vpop.permute.xlu0 %2009
      %2011 = vrot.lane.b32.xlu0 %v1585, 96
      %v2012 = vpop.permute.xlu0 %2011
      %v2018 = vsel %vm1359, %v1993, 0
      %v2021 = vsel %vm1359, %v1994, 0
      %v2024 = vsel %vm1359, %v1995, 0
      %v2027 = vsel %vm1359, %v1996, 0
      %v2030 = vsel %vm1359, %v1997, 0
      %v2033 = vsel %vm1601, %v2012, 0
      %2035 = vmatpush.bf16.msra.mxu0 0
      %2036 = vmatpush.bf16.msra.mxu0 0
      %2037 = vmatpush.bf16.msra.mxu0 0
      %2038 = vmatpush.bf16.msra.mxu0 %v2033
      %2039 = vmatpush.bf16.msra.mxu0 %v2010
      %2040 = vmatpush.bf16.msra.mxu0 %v2008
      %2041 = vmatpush.bf16.msra.mxu0 %v2006
      %2042 = vmatpush.bf16.msra.mxu0 %v2004
      %2043 = vmatmul.bf16.gmra.mxu0 %v2018
      %v2044 = vpop.f32.mrf.mxu0
      %v2045 = vadd.f32 0.0, %v2044
      %v2046 = vpop.f32.mrf.mxu0
      %v2047 = vadd.f32 0.0, %v2046
      %2048 = vmatmul.bf16.gmra.mxu0 %v2021
      %v2049 = vpop.f32.mrf.mxu0
      %v2050 = vadd.f32 0.0, %v2049
      %v2051 = vpop.f32.mrf.mxu0
      %v2052 = vadd.f32 0.0, %v2051
      %2053 = vmatmul.bf16.gmra.mxu0 %v2024
      %v2054 = vpop.f32.mrf.mxu0
      %v2055 = vadd.f32 0.0, %v2054
      %v2056 = vpop.f32.mrf.mxu0
      %v2057 = vadd.f32 0.0, %v2056
      %2058 = vmatmul.bf16.gmra.mxu0 %v2027
      %v2059 = vpop.f32.mrf.mxu0
      %v2060 = vadd.f32 0.0, %v2059
      %v2061 = vpop.f32.mrf.mxu0
      %v2062 = vadd.f32 0.0, %v2061
      %2063 = vmatmul.bf16.gmra.mxu0 %v2030
      %v2064 = vpop.f32.mrf.mxu0
      %v2065 = vadd.f32 0.0, %v2064
      %v2066 = vpop.f32.mrf.mxu0
      %2067 = vdwg.mxu0
      %v2068 = vpack.c.bf16 %v2047, %v2045
      %v2069 = vpack.c.bf16 %v2052, %v2050
      %v2070 = vpack.c.bf16 %v2057, %v2055
      %v2071 = vpack.c.bf16 %v2062, %v2060
      %v2072 = vpack.c.bf16 %v2065, %v2065
      %v2077 = vunpack.c.l.b16 %v1230
      %v2078 = vunpack.c.l.b16 %v1231
      %v2079 = vunpack.c.l.b16 %v1232
      %v2080 = vunpack.c.l.b16 %v1233
      %v2081 = vpack.c.b16 %v2078, %v2077
      %v2082 = vpack.c.b16 %v2080, %v2079
      %v2086 = vsel %vm1242, %v2068, 0
      %v2089 = vsel %vm1242, %v2069, 0
      %v2092 = vsel %vm1242, %v2070, 0
      %v2095 = vsel %vm1242, %v2071, 0
      %v2098 = vsel %vm1242, %v2072, 0
      %2100 = vmatpush.bf16.msra.mxu0 0
      %2101 = vmatpush.bf16.msra.mxu0 0
      %2102 = vmatpush.bf16.msra.mxu0 0
      %2103 = vmatpush.bf16.msra.mxu0 0
      %2104 = vmatpush.bf16.msra.mxu0 0
      %2105 = vmatpush.bf16.msra.mxu0 0
      %2106 = vmatpush.bf16.msra.mxu0 %v2082
      %2107 = vmatpush.bf16.msra.mxu0 %v2081
      %2108 = vmatmul.bf16.gmra.mxu0 %v2086
      %v2109 = vpop.f32.mrf.mxu0
      %v2110 = vadd.f32 0.0, %v2109
      %v2111 = vpop.f32.mrf.mxu0
      %v2112 = vadd.f32 0.0, %v2111
      %2113 = vmatmul.bf16.gmra.mxu0 %v2089
      %v2114 = vpop.f32.mrf.mxu0
      %v2115 = vadd.f32 0.0, %v2114
      %v2116 = vpop.f32.mrf.mxu0
      %v2117 = vadd.f32 0.0, %v2116
      %2118 = vmatmul.bf16.gmra.mxu0 %v2092
      %v2119 = vpop.f32.mrf.mxu0
      %v2120 = vadd.f32 0.0, %v2119
      %v2121 = vpop.f32.mrf.mxu0
      %v2122 = vadd.f32 0.0, %v2121
      %2123 = vmatmul.bf16.gmra.mxu0 %v2095
      %v2124 = vpop.f32.mrf.mxu0
      %v2125 = vadd.f32 0.0, %v2124
      %v2126 = vpop.f32.mrf.mxu0
      %v2127 = vadd.f32 0.0, %v2126
      %2128 = vmatmul.bf16.gmra.mxu0 %v2098
      %v2129 = vpop.f32.mrf.mxu0
      %v2130 = vadd.f32 0.0, %v2129
      %v2131 = vpop.f32.mrf.mxu0
      %2132 = vdwg.mxu0
      %v2137 = vunpack.c.l.b16 %v1226
      %v2138 = vunpack.c.l.b16 %v1227
      %v2139 = vunpack.c.l.b16 %v1228
      %v2140 = vunpack.c.l.b16 %v1229
      %v2141 = vpack.c.b16 %v2138, %v2137
      %v2142 = vpack.c.b16 %v2140, %v2139
      %v2146 = vsel %vm1242, %v1638, 0
      %v2149 = vsel %vm1242, %v1639, 0
      %v2152 = vsel %vm1242, %v1640, 0
      %v2155 = vsel %vm1242, %v1641, 0
      %v2158 = vsel %vm1242, %v1642, 0
      %2160 = vmatpush.bf16.msra.mxu0 0
      %2161 = vmatpush.bf16.msra.mxu0 0
      %2162 = vmatpush.bf16.msra.mxu0 0
      %2163 = vmatpush.bf16.msra.mxu0 0
      %2164 = vmatpush.bf16.msra.mxu0 0
      %2165 = vmatpush.bf16.msra.mxu0 0
      %2166 = vmatpush.bf16.msra.mxu0 %v2142
      %2167 = vmatpush.bf16.msra.mxu0 %v2141
      %2168 = vmatmul.bf16.gmra.mxu0 %v2146
      %v2169 = vpop.f32.mrf.mxu0
      %v2170 = vadd.f32 %v2110, %v2169
      %v2171 = vpop.f32.mrf.mxu0
      %v2172 = vadd.f32 %v2112, %v2171
      %2173 = vmatmul.bf16.gmra.mxu0 %v2149
      %v2174 = vpop.f32.mrf.mxu0
      %v2175 = vadd.f32 %v2115, %v2174
      %v2176 = vpop.f32.mrf.mxu0
      %v2177 = vadd.f32 %v2117, %v2176
      %2178 = vmatmul.bf16.gmra.mxu0 %v2152
      %v2179 = vpop.f32.mrf.mxu0
      %v2180 = vadd.f32 %v2120, %v2179
      %v2181 = vpop.f32.mrf.mxu0
      %v2182 = vadd.f32 %v2122, %v2181
      %2183 = vmatmul.bf16.gmra.mxu0 %v2155
      %v2184 = vpop.f32.mrf.mxu0
      %v2185 = vadd.f32 %v2125, %v2184
      %v2186 = vpop.f32.mrf.mxu0
      %v2187 = vadd.f32 %v2127, %v2186
      %2188 = vmatmul.bf16.gmra.mxu0 %v2158
      %v2189 = vpop.f32.mrf.mxu0
      %v2190 = vadd.f32 %v2130, %v2189
      %v2191 = vpop.f32.mrf.mxu0
      %2192 = vdwg.mxu0
      %2193 = vrot.lane.b32.xlu0 %v1133, 64
      %v2194 = vpop.permute.xlu0 %2193
      %2195 = vrot.lane.b32.xlu0 %v1135, 64
      %v2196 = vpop.permute.xlu0 %2195
      %2197 = vrot.lane.b32.xlu0 %v1138, 64
      %v2198 = vpop.permute.xlu0 %2197
      %2199 = vrot.lane.b32.xlu0 %v1140, 64
      %v2200 = vpop.permute.xlu0 %2199
      %2201 = vrot.lane.b32.xlu0 %v1143, 64
      %v2202 = vpop.permute.xlu0 %2201
      %2203 = vrot.lane.b32.xlu0 %v1145, 64
      %v2204 = vpop.permute.xlu0 %2203
      %2205 = vrot.lane.b32.xlu0 %v1148, 64
      %v2206 = vpop.permute.xlu0 %2205
      %2207 = vrot.lane.b32.xlu0 %v1150, 64
      %v2208 = vpop.permute.xlu0 %2207
      %2209 = vrot.lane.b32.xlu0 %v1153, 64
      %v2210 = vpop.permute.xlu0 %2209
      %2211 = vrot.lane.b32.xlu0 %v1166, 64
      %v2212 = vpop.permute.xlu0 %2211
      %2213 = vrot.lane.b32.xlu0 %v1168, 64
      %v2214 = vpop.permute.xlu0 %2213
      %2215 = vrot.lane.b32.xlu0 %v1171, 64
      %v2216 = vpop.permute.xlu0 %2215
      %2217 = vrot.lane.b32.xlu0 %v1173, 64
      %v2218 = vpop.permute.xlu0 %2217
      %2219 = vrot.lane.b32.xlu0 %v1176, 64
      %v2220 = vpop.permute.xlu0 %2219
      %2221 = vrot.lane.b32.xlu0 %v1178, 64
      %v2222 = vpop.permute.xlu0 %2221
      %2223 = vrot.lane.b32.xlu0 %v1181, 64
      %v2224 = vpop.permute.xlu0 %2223
      %2225 = vrot.lane.b32.xlu0 %v1183, 64
      %v2226 = vpop.permute.xlu0 %2225
      %2227 = vrot.lane.b32.xlu0 %v1186, 64
      %v2228 = vpop.permute.xlu0 %2227
      %v2229 = vsel %vm1242, %v2194, 0
      %v2231 = vsel %vm1242, %v2196, 0
      %v2233 = vsel %vm1242, %v2198, 0
      %v2235 = vsel %vm1242, %v2200, 0
      %v2237 = vsel %vm1242, %v2202, 0
      %v2239 = vsel %vm1242, %v2204, 0
      %v2241 = vsel %vm1242, %v2206, 0
      %v2243 = vsel %vm1242, %v2208, 0
      %v2245 = vsel %vm1242, %v2210, 0
      %v2247 = vsel %vm1242, %v2212, 0
      %v2249 = vsel %vm1242, %v2214, 0
      %v2251 = vsel %vm1242, %v2216, 0
      %v2253 = vsel %vm1242, %v2218, 0
      %v2255 = vsel %vm1242, %v2220, 0
      %v2257 = vsel %vm1242, %v2222, 0
      %v2259 = vsel %vm1242, %v2224, 0
      %v2261 = vsel %vm1242, %v2226, 0
      %v2263 = vsel %vm1242, %v2228, 0
      %2265 = vmatpush.xpose.msra.mxu0 0.0
      %2266 = vmatpush.xpose.msra.mxu0 0.0
      %2267 = vmatpush.xpose.msra.mxu0 0.0
      %2268 = vmatpush.xpose.msra.mxu0 0.0
      %2269 = vmatpush.xpose.msra.mxu0 0.0
      %2270 = vmatpush.xpose.msra.mxu0 0.0
      %2271 = vmatpush.xpose.msra.mxu0 0.0
      %2272 = vmatpush.xpose.msra.mxu0 %v2263
      %2273 = vmatpush.xpose.msra.mxu0 %v2261
      %2274 = vmatpush.xpose.msra.mxu0 %v2259
      %2275 = vmatpush.xpose.msra.mxu0 %v2257
      %2276 = vmatpush.xpose.msra.mxu0 %v2255
      %2277 = vmatpush.xpose.msra.mxu0 %v2253
      %2278 = vmatpush.xpose.msra.mxu0 %v2251
      %2279 = vmatpush.xpose.msra.mxu0 %v2249
      %2280 = vmatpush.xpose.msra.mxu0 %v2247
      %2281 = vmatmul.f32.gmra.mxu0 %v2229
      %v2282 = vpop.f32.mrf.mxu0
      %v2283 = vadd.f32 0.0, %v2282
      %2284 = vmatmul.f32.gmra.mxu0 %v2231
      %v2285 = vpop.f32.mrf.mxu0
      %v2286 = vadd.f32 0.0, %v2285
      %2287 = vmatmul.f32.gmra.mxu0 %v2233
      %v2288 = vpop.f32.mrf.mxu0
      %v2289 = vadd.f32 0.0, %v2288
      %2290 = vmatmul.f32.gmra.mxu0 %v2235
      %v2291 = vpop.f32.mrf.mxu0
      %v2292 = vadd.f32 0.0, %v2291
      %2293 = vmatmul.f32.gmra.mxu0 %v2237
      %v2294 = vpop.f32.mrf.mxu0
      %v2295 = vadd.f32 0.0, %v2294
      %2296 = vmatmul.f32.gmra.mxu0 %v2239
      %v2297 = vpop.f32.mrf.mxu0
      %v2298 = vadd.f32 0.0, %v2297
      %2299 = vmatmul.f32.gmra.mxu0 %v2241
      %v2300 = vpop.f32.mrf.mxu0
      %v2301 = vadd.f32 0.0, %v2300
      %2302 = vmatmul.f32.gmra.mxu0 %v2243
      %v2303 = vpop.f32.mrf.mxu0
      %v2304 = vadd.f32 0.0, %v2303
      %2305 = vmatmul.f32.gmra.mxu0 %v2245
      %v2306 = vpop.f32.mrf.mxu0
      %v2307 = vadd.f32 0.0, %v2306
      %2308 = vdwg.mxu0
      %v2309 = vmul.f32 %v2283, 0.17677669
      %v2310 = vmul.f32 %v2286, 0.17677669
      %v2311 = vmul.f32 %v2289, 0.17677669
      %v2312 = vmul.f32 %v2292, 0.17677669
      %v2313 = vmul.f32 %v2295, 0.17677669
      %v2314 = vmul.f32 %v2298, 0.17677669
      %v2315 = vmul.f32 %v2301, 0.17677669
      %v2316 = vmul.f32 %v2304, 0.17677669
      %v2317 = vmul.f32 %v2307, 0.17677669
      %v2318 = vadd.f32 %v2309, %v1225
      %v2319 = vadd.f32 %v2310, %v1225
      %v2320 = vadd.f32 %v2311, %v1225
      %v2321 = vadd.f32 %v2312, %v1225
      %v2322 = vadd.f32 %v2313, %v1225
      %v2323 = vadd.f32 %v2314, %v1225
      %v2324 = vadd.f32 %v2315, %v1225
      %v2325 = vadd.f32 %v2316, %v1225
      %v2326 = vadd.f32 %v2317, %v1225
      %v2327 = vsel %vm1359, %v2318, -inf
      %2328 = vmax.xlane.f32.xlu0 %v2327
      %v2329 = vpop.xlane.xlu0 %2328
      %v2330 = vsel %vm1359, %v2319, -inf
      %2331 = vmax.xlane.f32.xlu0 %v2330
      %v2332 = vpop.xlane.xlu0 %2331
      %v2333 = vsel %vm1359, %v2320, -inf
      %2334 = vmax.xlane.f32.xlu0 %v2333
      %v2335 = vpop.xlane.xlu0 %2334
      %v2336 = vsel %vm1359, %v2321, -inf
      %2337 = vmax.xlane.f32.xlu0 %v2336
      %v2338 = vpop.xlane.xlu0 %2337
      %v2339 = vsel %vm1359, %v2322, -inf
      %2340 = vmax.xlane.f32.xlu0 %v2339
      %v2341 = vpop.xlane.xlu0 %2340
      %v2342 = vsel %vm1359, %v2323, -inf
      %2343 = vmax.xlane.f32.xlu0 %v2342
      %v2344 = vpop.xlane.xlu0 %2343
      %v2345 = vsel %vm1359, %v2324, -inf
      %2346 = vmax.xlane.f32.xlu0 %v2345
      %v2347 = vpop.xlane.xlu0 %2346
      %v2348 = vsel %vm1359, %v2325, -inf
      %2349 = vmax.xlane.f32.xlu0 %v2348
      %v2350 = vpop.xlane.xlu0 %2349
      %v2351 = vsel %vm1359, %v2326, -inf
      %2352 = vmax.xlane.f32.xlu0 %v2351
      %v2353 = vpop.xlane.xlu0 %2352
      %v2354 = vsub.f32 %v2318, %v2329
      %v2355 = vsub.f32 %v2319, %v2332
      %v2356 = vsub.f32 %v2320, %v2335
      %v2357 = vsub.f32 %v2321, %v2338
      %v2358 = vsub.f32 %v2322, %v2341
      %v2359 = vsub.f32 %v2323, %v2344
      %v2360 = vsub.f32 %v2324, %v2347
      %v2361 = vsub.f32 %v2325, %v2350
      %v2362 = vsub.f32 %v2326, %v2353
      %v2363 = vmul.f32 %v2354, 1.442695
      %v2364 = vpow.pop %v2363
      %v2365 = vmul.f32 %v2355, 1.442695
      %v2366 = vpow.pop %v2365
      %v2367 = vmul.f32 %v2356, 1.442695
      %v2368 = vpow.pop %v2367
      %v2369 = vmul.f32 %v2357, 1.442695
      %v2370 = vpow.pop %v2369
      %v2371 = vmul.f32 %v2358, 1.442695
      %v2372 = vpow.pop %v2371
      %v2373 = vmul.f32 %v2359, 1.442695
      %v2374 = vpow.pop %v2373
      %v2375 = vmul.f32 %v2360, 1.442695
      %v2376 = vpow.pop %v2375
      %v2377 = vmul.f32 %v2361, 1.442695
      %v2378 = vpow.pop %v2377
      %v2379 = vmul.f32 %v2362, 1.442695
      %v2380 = vpow.pop %v2379
      %v2381 = vsel %vm1359, %v2364, 0.0
      %2382 = vadd.xlane.f32.xlu0 %v2381
      %v2383 = vpop.xlane.xlu0 %2382
      %v2384 = vsel %vm1359, %v2366, 0.0
      %2385 = vadd.xlane.f32.xlu0 %v2384
      %v2386 = vpop.xlane.xlu0 %2385
      %v2387 = vsel %vm1359, %v2368, 0.0
      %2388 = vadd.xlane.f32.xlu0 %v2387
      %v2389 = vpop.xlane.xlu0 %2388
      %v2390 = vsel %vm1359, %v2370, 0.0
      %2391 = vadd.xlane.f32.xlu0 %v2390
      %v2392 = vpop.xlane.xlu0 %2391
      %v2393 = vsel %vm1359, %v2372, 0.0
      %2394 = vadd.xlane.f32.xlu0 %v2393
      %v2395 = vpop.xlane.xlu0 %2394
      %v2396 = vsel %vm1359, %v2374, 0.0
      %2397 = vadd.xlane.f32.xlu0 %v2396
      %v2398 = vpop.xlane.xlu0 %2397
      %v2399 = vsel %vm1359, %v2376, 0.0
      %2400 = vadd.xlane.f32.xlu0 %v2399
      %v2401 = vpop.xlane.xlu0 %2400
      %v2402 = vsel %vm1359, %v2378, 0.0
      %2403 = vadd.xlane.f32.xlu0 %v2402
      %v2404 = vpop.xlane.xlu0 %2403
      %v2405 = vsel %vm1359, %v2380, 0.0
      %2406 = vadd.xlane.f32.xlu0 %v2405
      %v2407 = vpop.xlane.xlu0 %2406
      %v2408 = vrcp.pop %v2383
      %v2409 = vmul.f32 %v2383, %v2408
      %v2410 = vsub.f32 1.0, %v2409
      %v2411 = vmul.f32 %v2408, %v2410
      %v2412 = vadd.f32 %v2408, %v2411
      %vm2413 = vweird.f32 %v2383
      %vm2414 = vweird.f32 %v2408
      %vm2415 = vmor %vm2413, %vm2414
      %v2416 = vsel %vm2415, %v2408, %v2412
      %v2417 = vand.u32 2147483647, %v2383
      %vm2418 = vcmp.eq.f32.partialorder %v2417, 8.507059e+37
      %v2419 = vand.u32 %v2383, 2147483648
      %v2420 = vor.u32 1.1754944e-38, %v2419
      %v2421 = vsel %vm2418, %v2420, %v2416
      %v2422 = vmul.f32 %v2364, %v2421
      %v2423 = vrcp.pop %v2386
      %v2424 = vmul.f32 %v2386, %v2423
      %v2425 = vsub.f32 1.0, %v2424
      %v2426 = vmul.f32 %v2423, %v2425
      %v2427 = vadd.f32 %v2423, %v2426
      %vm2428 = vweird.f32 %v2386
      %vm2429 = vweird.f32 %v2423
      %vm2430 = vmor %vm2428, %vm2429
      %v2431 = vsel %vm2430, %v2423, %v2427
      %v2432 = vand.u32 2147483647, %v2386
      %vm2433 = vcmp.eq.f32.partialorder %v2432, 8.507059e+37
      %v2434 = vand.u32 %v2386, 2147483648
      %v2435 = vor.u32 1.1754944e-38, %v2434
      %v2436 = vsel %vm2433, %v2435, %v2431
      %v2437 = vmul.f32 %v2366, %v2436
      %v2438 = vrcp.pop %v2389
      %v2439 = vmul.f32 %v2389, %v2438
      %v2440 = vsub.f32 1.0, %v2439
      %v2441 = vmul.f32 %v2438, %v2440
      %v2442 = vadd.f32 %v2438, %v2441
      %vm2443 = vweird.f32 %v2389
      %vm2444 = vweird.f32 %v2438
      %vm2445 = vmor %vm2443, %vm2444
      %v2446 = vsel %vm2445, %v2438, %v2442
      %v2447 = vand.u32 2147483647, %v2389
      %vm2448 = vcmp.eq.f32.partialorder %v2447, 8.507059e+37
      %v2449 = vand.u32 %v2389, 2147483648
      %v2450 = vor.u32 1.1754944e-38, %v2449
      %v2451 = vsel %vm2448, %v2450, %v2446
      %v2452 = vmul.f32 %v2368, %v2451
      %v2453 = vrcp.pop %v2392
      %v2454 = vmul.f32 %v2392, %v2453
      %v2455 = vsub.f32 1.0, %v2454
      %v2456 = vmul.f32 %v2453, %v2455
      %v2457 = vadd.f32 %v2453, %v2456
      %vm2458 = vweird.f32 %v2392
      %vm2459 = vweird.f32 %v2453
      %vm2460 = vmor %vm2458, %vm2459
      %v2461 = vsel %vm2460, %v2453, %v2457
      %v2462 = vand.u32 2147483647, %v2392
      %vm2463 = vcmp.eq.f32.partialorder %v2462, 8.507059e+37
      %v2464 = vand.u32 %v2392, 2147483648
      %v2465 = vor.u32 1.1754944e-38, %v2464
      %v2466 = vsel %vm2463, %v2465, %v2461
      %v2467 = vmul.f32 %v2370, %v2466
      %v2468 = vrcp.pop %v2395
      %v2469 = vmul.f32 %v2395, %v2468
      %v2470 = vsub.f32 1.0, %v2469
      %v2471 = vmul.f32 %v2468, %v2470
      %v2472 = vadd.f32 %v2468, %v2471
      %vm2473 = vweird.f32 %v2395
      %vm2474 = vweird.f32 %v2468
      %vm2475 = vmor %vm2473, %vm2474
      %v2476 = vsel %vm2475, %v2468, %v2472
      %v2477 = vand.u32 2147483647, %v2395
      %vm2478 = vcmp.eq.f32.partialorder %v2477, 8.507059e+37
      %v2479 = vand.u32 %v2395, 2147483648
      %v2480 = vor.u32 1.1754944e-38, %v2479
      %v2481 = vsel %vm2478, %v2480, %v2476
      %v2482 = vmul.f32 %v2372, %v2481
      %v2483 = vrcp.pop %v2398
      %v2484 = vmul.f32 %v2398, %v2483
      %v2485 = vsub.f32 1.0, %v2484
      %v2486 = vmul.f32 %v2483, %v2485
      %v2487 = vadd.f32 %v2483, %v2486
      %vm2488 = vweird.f32 %v2398
      %vm2489 = vweird.f32 %v2483
      %vm2490 = vmor %vm2488, %vm2489
      %v2491 = vsel %vm2490, %v2483, %v2487
      %v2492 = vand.u32 2147483647, %v2398
      %vm2493 = vcmp.eq.f32.partialorder %v2492, 8.507059e+37
      %v2494 = vand.u32 %v2398, 2147483648
      %v2495 = vor.u32 1.1754944e-38, %v2494
      %v2496 = vsel %vm2493, %v2495, %v2491
      %v2497 = vmul.f32 %v2374, %v2496
      %v2498 = vrcp.pop %v2401
      %v2499 = vmul.f32 %v2401, %v2498
      %v2500 = vsub.f32 1.0, %v2499
      %v2501 = vmul.f32 %v2498, %v2500
      %v2502 = vadd.f32 %v2498, %v2501
      %vm2503 = vweird.f32 %v2401
      %vm2504 = vweird.f32 %v2498
      %vm2505 = vmor %vm2503, %vm2504
      %v2506 = vsel %vm2505, %v2498, %v2502
      %v2507 = vand.u32 2147483647, %v2401
      %vm2508 = vcmp.eq.f32.partialorder %v2507, 8.507059e+37
      %v2509 = vand.u32 %v2401, 2147483648
      %v2510 = vor.u32 1.1754944e-38, %v2509
      %v2511 = vsel %vm2508, %v2510, %v2506
      %v2512 = vmul.f32 %v2376, %v2511
      %v2513 = vrcp.pop %v2404
      %v2514 = vmul.f32 %v2404, %v2513
      %v2515 = vsub.f32 1.0, %v2514
      %v2516 = vmul.f32 %v2513, %v2515
      %v2517 = vadd.f32 %v2513, %v2516
      %vm2518 = vweird.f32 %v2404
      %vm2519 = vweird.f32 %v2513
      %vm2520 = vmor %vm2518, %vm2519
      %v2521 = vsel %vm2520, %v2513, %v2517
      %v2522 = vand.u32 2147483647, %v2404
      %vm2523 = vcmp.eq.f32.partialorder %v2522, 8.507059e+37
      %v2524 = vand.u32 %v2404, 2147483648
      %v2525 = vor.u32 1.1754944e-38, %v2524
      %v2526 = vsel %vm2523, %v2525, %v2521
      %v2527 = vmul.f32 %v2378, %v2526
      %v2528 = vrcp.pop %v2407
      %v2529 = vmul.f32 %v2407, %v2528
      %v2530 = vsub.f32 1.0, %v2529
      %v2531 = vmul.f32 %v2528, %v2530
      %v2532 = vadd.f32 %v2528, %v2531
      %vm2533 = vweird.f32 %v2407
      %vm2534 = vweird.f32 %v2528
      %vm2535 = vmor %vm2533, %vm2534
      %v2536 = vsel %vm2535, %v2528, %v2532
      %v2537 = vand.u32 2147483647, %v2407
      %vm2538 = vcmp.eq.f32.partialorder %v2537, 8.507059e+37
      %v2539 = vand.u32 %v2407, 2147483648
      %v2540 = vor.u32 1.1754944e-38, %v2539
      %v2541 = vsel %vm2538, %v2540, %v2536
      %v2542 = vmul.f32 %v2380, %v2541
      %v2543 = vpack.c.bf16 %v2437, %v2422
      %v2544 = vpack.c.bf16 %v2467, %v2452
      %v2545 = vpack.c.bf16 %v2497, %v2482
      %v2546 = vpack.c.bf16 %v2527, %v2512
      %v2547 = vpack.c.bf16 %v2542, %v2542
      %2548 = vrot.lane.b32.xlu0 %v1581, 64
      %v2549 = vpop.permute.xlu0 %2548
      %2550 = vrot.lane.b32.xlu0 %v1582, 64
      %v2551 = vpop.permute.xlu0 %2550
      %2552 = vrot.lane.b32.xlu0 %v1583, 64
      %v2553 = vpop.permute.xlu0 %2552
      %2554 = vrot.lane.b32.xlu0 %v1584, 64
      %v2555 = vpop.permute.xlu0 %2554
      %2556 = vrot.lane.b32.xlu0 %v1585, 64
      %v2557 = vpop.permute.xlu0 %2556
      %v2563 = vsel %vm1359, %v2543, 0
      %v2566 = vsel %vm1359, %v2544, 0
      %v2569 = vsel %vm1359, %v2545, 0
      %v2572 = vsel %vm1359, %v2546, 0
      %v2575 = vsel %vm1359, %v2547, 0
      %v2578 = vsel %vm1601, %v2557, 0
      %2580 = vmatpush.bf16.msra.mxu0 0
      %2581 = vmatpush.bf16.msra.mxu0 0
      %2582 = vmatpush.bf16.msra.mxu0 0
      %2583 = vmatpush.bf16.msra.mxu0 %v2578
      %2584 = vmatpush.bf16.msra.mxu0 %v2555
      %2585 = vmatpush.bf16.msra.mxu0 %v2553
      %2586 = vmatpush.bf16.msra.mxu0 %v2551
      %2587 = vmatpush.bf16.msra.mxu0 %v2549
      %2588 = vmatmul.bf16.gmra.mxu0 %v2563
      %v2589 = vpop.f32.mrf.mxu0
      %v2590 = vadd.f32 0.0, %v2589
      %v2591 = vpop.f32.mrf.mxu0
      %v2592 = vadd.f32 0.0, %v2591
      %2593 = vmatmul.bf16.gmra.mxu0 %v2566
      %v2594 = vpop.f32.mrf.mxu0
      %v2595 = vadd.f32 0.0, %v2594
      %v2596 = vpop.f32.mrf.mxu0
      %v2597 = vadd.f32 0.0, %v2596
      %2598 = vmatmul.bf16.gmra.mxu0 %v2569
      %v2599 = vpop.f32.mrf.mxu0
      %v2600 = vadd.f32 0.0, %v2599
      %v2601 = vpop.f32.mrf.mxu0
      %v2602 = vadd.f32 0.0, %v2601
      %2603 = vmatmul.bf16.gmra.mxu0 %v2572
      %v2604 = vpop.f32.mrf.mxu0
      %v2605 = vadd.f32 0.0, %v2604
      %v2606 = vpop.f32.mrf.mxu0
      %v2607 = vadd.f32 0.0, %v2606
      %2608 = vmatmul.bf16.gmra.mxu0 %v2575
      %v2609 = vpop.f32.mrf.mxu0
      %v2610 = vadd.f32 0.0, %v2609
      %v2611 = vpop.f32.mrf.mxu0
      %2612 = vdwg.mxu0
      %v2613 = vpack.c.bf16 %v2592, %v2590
      %v2614 = vpack.c.bf16 %v2597, %v2595
      %v2615 = vpack.c.bf16 %v2602, %v2600
      %v2616 = vpack.c.bf16 %v2607, %v2605
      %v2617 = vpack.c.bf16 %v2610, %v2610
      %v2622 = vunpack.c.l.b16 %v1234
      %v2623 = vunpack.c.l.b16 %v1235
      %v2624 = vunpack.c.l.b16 %v1236
      %v2625 = vunpack.c.l.b16 %v1237
      %v2626 = vpack.c.b16 %v2623, %v2622
      %v2627 = vpack.c.b16 %v2625, %v2624
      %v2631 = vsel %vm1242, %v2613, 0
      %v2634 = vsel %vm1242, %v2614, 0
      %v2637 = vsel %vm1242, %v2615, 0
      %v2640 = vsel %vm1242, %v2616, 0
      %v2643 = vsel %vm1242, %v2617, 0
      %2645 = vmatpush.bf16.msra.mxu0 0
      %2646 = vmatpush.bf16.msra.mxu0 0
      %2647 = vmatpush.bf16.msra.mxu0 0
      %2648 = vmatpush.bf16.msra.mxu0 0
      %2649 = vmatpush.bf16.msra.mxu0 0
      %2650 = vmatpush.bf16.msra.mxu0 0
      %2651 = vmatpush.bf16.msra.mxu0 %v2627
      %2652 = vmatpush.bf16.msra.mxu0 %v2626
      %2653 = vmatmul.bf16.gmra.mxu0 %v2631
      %v2654 = vpop.f32.mrf.mxu0
      %v2655 = vadd.f32 0.0, %v2654
      %v2656 = vpop.f32.mrf.mxu0
      %v2657 = vadd.f32 0.0, %v2656
      %2658 = vmatmul.bf16.gmra.mxu0 %v2634
      %v2659 = vpop.f32.mrf.mxu0
      %v2660 = vadd.f32 0.0, %v2659
      %v2661 = vpop.f32.mrf.mxu0
      %v2662 = vadd.f32 0.0, %v2661
      %2663 = vmatmul.bf16.gmra.mxu0 %v2637
      %v2664 = vpop.f32.mrf.mxu0
      %v2665 = vadd.f32 0.0, %v2664
      %v2666 = vpop.f32.mrf.mxu0
      %v2667 = vadd.f32 0.0, %v2666
      %2668 = vmatmul.bf16.gmra.mxu0 %v2640
      %v2669 = vpop.f32.mrf.mxu0
      %v2670 = vadd.f32 0.0, %v2669
      %v2671 = vpop.f32.mrf.mxu0
      %v2672 = vadd.f32 0.0, %v2671
      %2673 = vmatmul.bf16.gmra.mxu0 %v2643
      %v2674 = vpop.f32.mrf.mxu0
      %v2675 = vadd.f32 0.0, %v2674
      %v2676 = vpop.f32.mrf.mxu0
      %2677 = vdwg.mxu0
      %v2678 = vadd.f32 %v2170, %v2655
      %v2679 = vadd.f32 %v2172, %v2657
      %v2680 = vadd.f32 %v2175, %v2660
      %v2681 = vadd.f32 %v2177, %v2662
      %v2682 = vadd.f32 %v2180, %v2665
      %v2683 = vadd.f32 %v2182, %v2667
      %v2684 = vadd.f32 %v2185, %v2670
      %v2685 = vadd.f32 %v2187, %v2672
      %v2686 = vadd.f32 %v2190, %v2675
      %2687 = vrot.lane.b32.xlu0 %v1133, 32
      %v2688 = vpop.permute.xlu0 %2687
      %2689 = vrot.lane.b32.xlu0 %v1135, 32
      %v2690 = vpop.permute.xlu0 %2689
      %2691 = vrot.lane.b32.xlu0 %v1138, 32
      %v2692 = vpop.permute.xlu0 %2691
      %2693 = vrot.lane.b32.xlu0 %v1140, 32
      %v2694 = vpop.permute.xlu0 %2693
      %2695 = vrot.lane.b32.xlu0 %v1143, 32
      %v2696 = vpop.permute.xlu0 %2695
      %2697 = vrot.lane.b32.xlu0 %v1145, 32
      %v2698 = vpop.permute.xlu0 %2697
      %2699 = vrot.lane.b32.xlu0 %v1148, 32
      %v2700 = vpop.permute.xlu0 %2699
      %2701 = vrot.lane.b32.xlu0 %v1150, 32
      %v2702 = vpop.permute.xlu0 %2701
      %2703 = vrot.lane.b32.xlu0 %v1153, 32
      %v2704 = vpop.permute.xlu0 %2703
      %2705 = vrot.lane.b32.xlu0 %v1166, 32
      %v2706 = vpop.permute.xlu0 %2705
      %2707 = vrot.lane.b32.xlu0 %v1168, 32
      %v2708 = vpop.permute.xlu0 %2707
      %2709 = vrot.lane.b32.xlu0 %v1171, 32
      %v2710 = vpop.permute.xlu0 %2709
      %2711 = vrot.lane.b32.xlu0 %v1173, 32
      %v2712 = vpop.permute.xlu0 %2711
      %2713 = vrot.lane.b32.xlu0 %v1176, 32
      %v2714 = vpop.permute.xlu0 %2713
      %2715 = vrot.lane.b32.xlu0 %v1178, 32
      %v2716 = vpop.permute.xlu0 %2715
      %2717 = vrot.lane.b32.xlu0 %v1181, 32
      %v2718 = vpop.permute.xlu0 %2717
      %2719 = vrot.lane.b32.xlu0 %v1183, 32
      %v2720 = vpop.permute.xlu0 %2719
      %2721 = vrot.lane.b32.xlu0 %v1186, 32
      %v2722 = vpop.permute.xlu0 %2721
      %v2723 = vsel %vm1242, %v2688, 0
      %v2725 = vsel %vm1242, %v2690, 0
      %v2727 = vsel %vm1242, %v2692, 0
      %v2729 = vsel %vm1242, %v2694, 0
      %v2731 = vsel %vm1242, %v2696, 0
      %v2733 = vsel %vm1242, %v2698, 0
      %v2735 = vsel %vm1242, %v2700, 0
      %v2737 = vsel %vm1242, %v2702, 0
      %v2739 = vsel %vm1242, %v2704, 0
      %v2741 = vsel %vm1242, %v2706, 0
      %v2743 = vsel %vm1242, %v2708, 0
      %v2745 = vsel %vm1242, %v2710, 0
      %v2747 = vsel %vm1242, %v2712, 0
      %v2749 = vsel %vm1242, %v2714, 0
      %v2751 = vsel %vm1242, %v2716, 0
      %v2753 = vsel %vm1242, %v2718, 0
      %v2755 = vsel %vm1242, %v2720, 0
      %v2757 = vsel %vm1242, %v2722, 0
      %2759 = vmatpush.xpose.msra.mxu0 0.0
      %2760 = vmatpush.xpose.msra.mxu0 0.0
      %2761 = vmatpush.xpose.msra.mxu0 0.0
      %2762 = vmatpush.xpose.msra.mxu0 0.0
      %2763 = vmatpush.xpose.msra.mxu0 0.0
      %2764 = vmatpush.xpose.msra.mxu0 0.0
      %2765 = vmatpush.xpose.msra.mxu0 0.0
      %2766 = vmatpush.xpose.msra.mxu0 %v2757
      %2767 = vmatpush.xpose.msra.mxu0 %v2755
      %2768 = vmatpush.xpose.msra.mxu0 %v2753
      %2769 = vmatpush.xpose.msra.mxu0 %v2751
      %2770 = vmatpush.xpose.msra.mxu0 %v2749
      %2771 = vmatpush.xpose.msra.mxu0 %v2747
      %2772 = vmatpush.xpose.msra.mxu0 %v2745
      %2773 = vmatpush.xpose.msra.mxu0 %v2743
      %2774 = vmatpush.xpose.msra.mxu0 %v2741
      %2775 = vmatmul.f32.gmra.mxu0 %v2723
      %v2776 = vpop.f32.mrf.mxu0
      %v2777 = vadd.f32 0.0, %v2776
      %2778 = vmatmul.f32.gmra.mxu0 %v2725
      %v2779 = vpop.f32.mrf.mxu0
      %v2780 = vadd.f32 0.0, %v2779
      %2781 = vmatmul.f32.gmra.mxu0 %v2727
      %v2782 = vpop.f32.mrf.mxu0
      %v2783 = vadd.f32 0.0, %v2782
      %2784 = vmatmul.f32.gmra.mxu0 %v2729
      %v2785 = vpop.f32.mrf.mxu0
      %v2786 = vadd.f32 0.0, %v2785
      %2787 = vmatmul.f32.gmra.mxu0 %v2731
      %v2788 = vpop.f32.mrf.mxu0
      %v2789 = vadd.f32 0.0, %v2788
      %2790 = vmatmul.f32.gmra.mxu0 %v2733
      %v2791 = vpop.f32.mrf.mxu0
      %v2792 = vadd.f32 0.0, %v2791
      %2793 = vmatmul.f32.gmra.mxu0 %v2735
      %v2794 = vpop.f32.mrf.mxu0
      %v2795 = vadd.f32 0.0, %v2794
      %2796 = vmatmul.f32.gmra.mxu0 %v2737
      %v2797 = vpop.f32.mrf.mxu0
      %v2798 = vadd.f32 0.0, %v2797
      %2799 = vmatmul.f32.gmra.mxu0 %v2739
      %v2800 = vpop.f32.mrf.mxu0
      %v2801 = vadd.f32 0.0, %v2800
      %2802 = vdwg.mxu0
      %v2803 = vmul.f32 %v2777, 0.17677669
      %v2804 = vmul.f32 %v2780, 0.17677669
      %v2805 = vmul.f32 %v2783, 0.17677669
      %v2806 = vmul.f32 %v2786, 0.17677669
      %v2807 = vmul.f32 %v2789, 0.17677669
      %v2808 = vmul.f32 %v2792, 0.17677669
      %v2809 = vmul.f32 %v2795, 0.17677669
      %v2810 = vmul.f32 %v2798, 0.17677669
      %v2811 = vmul.f32 %v2801, 0.17677669
      %v2812 = vadd.f32 %v2803, %v1225
      %v2813 = vadd.f32 %v2804, %v1225
      %v2814 = vadd.f32 %v2805, %v1225
      %v2815 = vadd.f32 %v2806, %v1225
      %v2816 = vadd.f32 %v2807, %v1225
      %v2817 = vadd.f32 %v2808, %v1225
      %v2818 = vadd.f32 %v2809, %v1225
      %v2819 = vadd.f32 %v2810, %v1225
      %v2820 = vadd.f32 %v2811, %v1225
      %v2821 = vsel %vm1359, %v2812, -inf
      %2822 = vmax.xlane.f32.xlu0 %v2821
      %v2823 = vpop.xlane.xlu0 %2822
      %v2824 = vsel %vm1359, %v2813, -inf
      %2825 = vmax.xlane.f32.xlu0 %v2824
      %v2826 = vpop.xlane.xlu0 %2825
      %v2827 = vsel %vm1359, %v2814, -inf
      %2828 = vmax.xlane.f32.xlu0 %v2827
      %v2829 = vpop.xlane.xlu0 %2828
      %v2830 = vsel %vm1359, %v2815, -inf
      %2831 = vmax.xlane.f32.xlu0 %v2830
      %v2832 = vpop.xlane.xlu0 %2831
      %v2833 = vsel %vm1359, %v2816, -inf
      %2834 = vmax.xlane.f32.xlu0 %v2833
      %v2835 = vpop.xlane.xlu0 %2834
      %v2836 = vsel %vm1359, %v2817, -inf
      %2837 = vmax.xlane.f32.xlu0 %v2836
      %v2838 = vpop.xlane.xlu0 %2837
      %v2839 = vsel %vm1359, %v2818, -inf
      %2840 = vmax.xlane.f32.xlu0 %v2839
      %v2841 = vpop.xlane.xlu0 %2840
      %v2842 = vsel %vm1359, %v2819, -inf
      %2843 = vmax.xlane.f32.xlu0 %v2842
      %v2844 = vpop.xlane.xlu0 %2843
      %v2845 = vsel %vm1359, %v2820, -inf
      %2846 = vmax.xlane.f32.xlu0 %v2845
      %v2847 = vpop.xlane.xlu0 %2846
      %v2848 = vsub.f32 %v2812, %v2823
      %v2849 = vsub.f32 %v2813, %v2826
      %v2850 = vsub.f32 %v2814, %v2829
      %v2851 = vsub.f32 %v2815, %v2832
      %v2852 = vsub.f32 %v2816, %v2835
      %v2853 = vsub.f32 %v2817, %v2838
      %v2854 = vsub.f32 %v2818, %v2841
      %v2855 = vsub.f32 %v2819, %v2844
      %v2856 = vsub.f32 %v2820, %v2847
      %v2857 = vmul.f32 %v2848, 1.442695
      %v2858 = vpow.pop %v2857
      %v2859 = vmul.f32 %v2849, 1.442695
      %v2860 = vpow.pop %v2859
      %v2861 = vmul.f32 %v2850, 1.442695
      %v2862 = vpow.pop %v2861
      %v2863 = vmul.f32 %v2851, 1.442695
      %v2864 = vpow.pop %v2863
      %v2865 = vmul.f32 %v2852, 1.442695
      %v2866 = vpow.pop %v2865
      %v2867 = vmul.f32 %v2853, 1.442695
      %v2868 = vpow.pop %v2867
      %v2869 = vmul.f32 %v2854, 1.442695
      %v2870 = vpow.pop %v2869
      %v2871 = vmul.f32 %v2855, 1.442695
      %v2872 = vpow.pop %v2871
      %v2873 = vmul.f32 %v2856, 1.442695
      %v2874 = vpow.pop %v2873
      %v2875 = vsel %vm1359, %v2858, 0.0
      %2876 = vadd.xlane.f32.xlu0 %v2875
      %v2877 = vpop.xlane.xlu0 %2876
      %v2878 = vsel %vm1359, %v2860, 0.0
      %2879 = vadd.xlane.f32.xlu0 %v2878
      %v2880 = vpop.xlane.xlu0 %2879
      %v2881 = vsel %vm1359, %v2862, 0.0
      %2882 = vadd.xlane.f32.xlu0 %v2881
      %v2883 = vpop.xlane.xlu0 %2882
      %v2884 = vsel %vm1359, %v2864, 0.0
      %2885 = vadd.xlane.f32.xlu0 %v2884
      %v2886 = vpop.xlane.xlu0 %2885
      %v2887 = vsel %vm1359, %v2866, 0.0
      %2888 = vadd.xlane.f32.xlu0 %v2887
      %v2889 = vpop.xlane.xlu0 %2888
      %v2890 = vsel %vm1359, %v2868, 0.0
      %2891 = vadd.xlane.f32.xlu0 %v2890
      %v2892 = vpop.xlane.xlu0 %2891
      %v2893 = vsel %vm1359, %v2870, 0.0
      %2894 = vadd.xlane.f32.xlu0 %v2893
      %v2895 = vpop.xlane.xlu0 %2894
      %v2896 = vsel %vm1359, %v2872, 0.0
      %2897 = vadd.xlane.f32.xlu0 %v2896
      %v2898 = vpop.xlane.xlu0 %2897
      %v2899 = vsel %vm1359, %v2874, 0.0
      %2900 = vadd.xlane.f32.xlu0 %v2899
      %v2901 = vpop.xlane.xlu0 %2900
      %v2902 = vrcp.pop %v2877
      %v2903 = vmul.f32 %v2877, %v2902
      %v2904 = vsub.f32 1.0, %v2903
      %v2905 = vmul.f32 %v2902, %v2904
      %v2906 = vadd.f32 %v2902, %v2905
      %vm2907 = vweird.f32 %v2877
      %vm2908 = vweird.f32 %v2902
      %vm2909 = vmor %vm2907, %vm2908
      %v2910 = vsel %vm2909, %v2902, %v2906
      %v2911 = vand.u32 2147483647, %v2877
      %vm2912 = vcmp.eq.f32.partialorder %v2911, 8.507059e+37
      %v2913 = vand.u32 %v2877, 2147483648
      %v2914 = vor.u32 1.1754944e-38, %v2913
      %v2915 = vsel %vm2912, %v2914, %v2910
      %v2916 = vmul.f32 %v2858, %v2915
      %v2917 = vrcp.pop %v2880
      %v2918 = vmul.f32 %v2880, %v2917
      %v2919 = vsub.f32 1.0, %v2918
      %v2920 = vmul.f32 %v2917, %v2919
      %v2921 = vadd.f32 %v2917, %v2920
      %vm2922 = vweird.f32 %v2880
      %vm2923 = vweird.f32 %v2917
      %vm2924 = vmor %vm2922, %vm2923
      %v2925 = vsel %vm2924, %v2917, %v2921
      %v2926 = vand.u32 2147483647, %v2880
      %vm2927 = vcmp.eq.f32.partialorder %v2926, 8.507059e+37
      %v2928 = vand.u32 %v2880, 2147483648
      %v2929 = vor.u32 1.1754944e-38, %v2928
      %v2930 = vsel %vm2927, %v2929, %v2925
      %v2931 = vmul.f32 %v2860, %v2930
      %v2932 = vrcp.pop %v2883
      %v2933 = vmul.f32 %v2883, %v2932
      %v2934 = vsub.f32 1.0, %v2933
      %v2935 = vmul.f32 %v2932, %v2934
      %v2936 = vadd.f32 %v2932, %v2935
      %vm2937 = vweird.f32 %v2883
      %vm2938 = vweird.f32 %v2932
      %vm2939 = vmor %vm2937, %vm2938
      %v2940 = vsel %vm2939, %v2932, %v2936
      %v2941 = vand.u32 2147483647, %v2883
      %vm2942 = vcmp.eq.f32.partialorder %v2941, 8.507059e+37
      %v2943 = vand.u32 %v2883, 2147483648
      %v2944 = vor.u32 1.1754944e-38, %v2943
      %v2945 = vsel %vm2942, %v2944, %v2940
      %v2946 = vmul.f32 %v2862, %v2945
      %v2947 = vrcp.pop %v2886
      %v2948 = vmul.f32 %v2886, %v2947
      %v2949 = vsub.f32 1.0, %v2948
      %v2950 = vmul.f32 %v2947, %v2949
      %v2951 = vadd.f32 %v2947, %v2950
      %vm2952 = vweird.f32 %v2886
      %vm2953 = vweird.f32 %v2947
      %vm2954 = vmor %vm2952, %vm2953
      %v2955 = vsel %vm2954, %v2947, %v2951
      %v2956 = vand.u32 2147483647, %v2886
      %vm2957 = vcmp.eq.f32.partialorder %v2956, 8.507059e+37
      %v2958 = vand.u32 %v2886, 2147483648
      %v2959 = vor.u32 1.1754944e-38, %v2958
      %v2960 = vsel %vm2957, %v2959, %v2955
      %v2961 = vmul.f32 %v2864, %v2960
      %v2962 = vrcp.pop %v2889
      %v2963 = vmul.f32 %v2889, %v2962
      %v2964 = vsub.f32 1.0, %v2963
      %v2965 = vmul.f32 %v2962, %v2964
      %v2966 = vadd.f32 %v2962, %v2965
      %vm2967 = vweird.f32 %v2889
      %vm2968 = vweird.f32 %v2962
      %vm2969 = vmor %vm2967, %vm2968
      %v2970 = vsel %vm2969, %v2962, %v2966
      %v2971 = vand.u32 2147483647, %v2889
      %vm2972 = vcmp.eq.f32.partialorder %v2971, 8.507059e+37
      %v2973 = vand.u32 %v2889, 2147483648
      %v2974 = vor.u32 1.1754944e-38, %v2973
      %v2975 = vsel %vm2972, %v2974, %v2970
      %v2976 = vmul.f32 %v2866, %v2975
      %v2977 = vrcp.pop %v2892
      %v2978 = vmul.f32 %v2892, %v2977
      %v2979 = vsub.f32 1.0, %v2978
      %v2980 = vmul.f32 %v2977, %v2979
      %v2981 = vadd.f32 %v2977, %v2980
      %vm2982 = vweird.f32 %v2892
      %vm2983 = vweird.f32 %v2977
      %vm2984 = vmor %vm2982, %vm2983
      %v2985 = vsel %vm2984, %v2977, %v2981
      %v2986 = vand.u32 2147483647, %v2892
      %vm2987 = vcmp.eq.f32.partialorder %v2986, 8.507059e+37
      %v2988 = vand.u32 %v2892, 2147483648
      %v2989 = vor.u32 1.1754944e-38, %v2988
      %v2990 = vsel %vm2987, %v2989, %v2985
      %v2991 = vmul.f32 %v2868, %v2990
      %v2992 = vrcp.pop %v2895
      %v2993 = vmul.f32 %v2895, %v2992
      %v2994 = vsub.f32 1.0, %v2993
      %v2995 = vmul.f32 %v2992, %v2994
      %v2996 = vadd.f32 %v2992, %v2995
      %vm2997 = vweird.f32 %v2895
      %vm2998 = vweird.f32 %v2992
      %vm2999 = vmor %vm2997, %vm2998
      %v3000 = vsel %vm2999, %v2992, %v2996
      %v3001 = vand.u32 2147483647, %v2895
      %vm3002 = vcmp.eq.f32.partialorder %v3001, 8.507059e+37
      %v3003 = vand.u32 %v2895, 2147483648
      %v3004 = vor.u32 1.1754944e-38, %v3003
      %v3005 = vsel %vm3002, %v3004, %v3000
      %v3006 = vmul.f32 %v2870, %v3005
      %v3007 = vrcp.pop %v2898
      %v3008 = vmul.f32 %v2898, %v3007
      %v3009 = vsub.f32 1.0, %v3008
      %v3010 = vmul.f32 %v3007, %v3009
      %v3011 = vadd.f32 %v3007, %v3010
      %vm3012 = vweird.f32 %v2898
      %vm3013 = vweird.f32 %v3007
      %vm3014 = vmor %vm3012, %vm3013
      %v3015 = vsel %vm3014, %v3007, %v3011
      %v3016 = vand.u32 2147483647, %v2898
      %vm3017 = vcmp.eq.f32.partialorder %v3016, 8.507059e+37
      %v3018 = vand.u32 %v2898, 2147483648
      %v3019 = vor.u32 1.1754944e-38, %v3018
      %v3020 = vsel %vm3017, %v3019, %v3015
      %v3021 = vmul.f32 %v2872, %v3020
      %v3022 = vrcp.pop %v2901
      %v3023 = vmul.f32 %v2901, %v3022
      %v3024 = vsub.f32 1.0, %v3023
      %v3025 = vmul.f32 %v3022, %v3024
      %v3026 = vadd.f32 %v3022, %v3025
      %vm3027 = vweird.f32 %v2901
      %vm3028 = vweird.f32 %v3022
      %vm3029 = vmor %vm3027, %vm3028
      %v3030 = vsel %vm3029, %v3022, %v3026
      %v3031 = vand.u32 2147483647, %v2901
      %vm3032 = vcmp.eq.f32.partialorder %v3031, 8.507059e+37
      %v3033 = vand.u32 %v2901, 2147483648
      %v3034 = vor.u32 1.1754944e-38, %v3033
      %v3035 = vsel %vm3032, %v3034, %v3030
      %v3036 = vmul.f32 %v2874, %v3035
      %v3037 = vpack.c.bf16 %v2931, %v2916
      %v3038 = vpack.c.bf16 %v2961, %v2946
      %v3039 = vpack.c.bf16 %v2991, %v2976
      %v3040 = vpack.c.bf16 %v3021, %v3006
      %v3041 = vpack.c.bf16 %v3036, %v3036
      %3042 = vrot.lane.b32.xlu0 %v1581, 32
      %v3043 = vpop.permute.xlu0 %3042
      %3044 = vrot.lane.b32.xlu0 %v1582, 32
      %v3045 = vpop.permute.xlu0 %3044
      %3046 = vrot.lane.b32.xlu0 %v1583, 32
      %v3047 = vpop.permute.xlu0 %3046
      %3048 = vrot.lane.b32.xlu0 %v1584, 32
      %v3049 = vpop.permute.xlu0 %3048
      %3050 = vrot.lane.b32.xlu0 %v1585, 32
      %v3051 = vpop.permute.xlu0 %3050
      %v3057 = vsel %vm1359, %v3037, 0
      %v3060 = vsel %vm1359, %v3038, 0
      %v3063 = vsel %vm1359, %v3039, 0
      %v3066 = vsel %vm1359, %v3040, 0
      %v3069 = vsel %vm1359, %v3041, 0
      %v3072 = vsel %vm1601, %v3051, 0
      %3074 = vmatpush.bf16.msra.mxu0 0
      %3075 = vmatpush.bf16.msra.mxu0 0
      %3076 = vmatpush.bf16.msra.mxu0 0
      %3077 = vmatpush.bf16.msra.mxu0 %v3072
      %3078 = vmatpush.bf16.msra.mxu0 %v3049
      %3079 = vmatpush.bf16.msra.mxu0 %v3047
      %3080 = vmatpush.bf16.msra.mxu0 %v3045
      %3081 = vmatpush.bf16.msra.mxu0 %v3043
      %3082 = vmatmul.bf16.gmra.mxu0 %v3057
      %v3083 = vpop.f32.mrf.mxu0
      %v3084 = vadd.f32 0.0, %v3083
      %v3085 = vpop.f32.mrf.mxu0
      %v3086 = vadd.f32 0.0, %v3085
      %3087 = vmatmul.bf16.gmra.mxu0 %v3060
      %v3088 = vpop.f32.mrf.mxu0
      %v3089 = vadd.f32 0.0, %v3088
      %v3090 = vpop.f32.mrf.mxu0
      %v3091 = vadd.f32 0.0, %v3090
      %3092 = vmatmul.bf16.gmra.mxu0 %v3063
      %v3093 = vpop.f32.mrf.mxu0
      %v3094 = vadd.f32 0.0, %v3093
      %v3095 = vpop.f32.mrf.mxu0
      %v3096 = vadd.f32 0.0, %v3095
      %3097 = vmatmul.bf16.gmra.mxu0 %v3066
      %v3098 = vpop.f32.mrf.mxu0
      %v3099 = vadd.f32 0.0, %v3098
      %v3100 = vpop.f32.mrf.mxu0
      %v3101 = vadd.f32 0.0, %v3100
      %3102 = vmatmul.bf16.gmra.mxu0 %v3069
      %v3103 = vpop.f32.mrf.mxu0
      %v3104 = vadd.f32 0.0, %v3103
      %v3105 = vpop.f32.mrf.mxu0
      %3106 = vdwg.mxu0
      %v3107 = vpack.c.bf16 %v3086, %v3084
      %v3108 = vpack.c.bf16 %v3091, %v3089
      %v3109 = vpack.c.bf16 %v3096, %v3094
      %v3110 = vpack.c.bf16 %v3101, %v3099
      %v3111 = vpack.c.bf16 %v3104, %v3104
      %v3116 = vunpack.c.l.b16 %v1238
      %v3117 = vunpack.c.l.b16 %v1239
      %v3118 = vunpack.c.l.b16 %v1240
      %v3119 = vunpack.c.l.b16 %v1241
      %v3120 = vpack.c.b16 %v3117, %v3116
      %v3121 = vpack.c.b16 %v3119, %v3118
      %v3125 = vsel %vm1242, %v3107, 0
      %v3128 = vsel %vm1242, %v3108, 0
      %v3131 = vsel %vm1242, %v3109, 0
      %v3134 = vsel %vm1242, %v3110, 0
      %v3137 = vsel %vm1242, %v3111, 0
      %3139 = vmatpush.bf16.msra.mxu0 0
      %3140 = vmatpush.bf16.msra.mxu0 0
      %3141 = vmatpush.bf16.msra.mxu0 0
      %3142 = vmatpush.bf16.msra.mxu0 0
      %3143 = vmatpush.bf16.msra.mxu0 0
      %3144 = vmatpush.bf16.msra.mxu0 0
      %3145 = vmatpush.bf16.msra.mxu0 %v3121
      %3146 = vmatpush.bf16.msra.mxu0 %v3120
      %3147 = vmatmul.bf16.gmra.mxu0 %v3125
      %v3148 = vpop.f32.mrf.mxu0
      %v3149 = vadd.f32 0.0, %v3148
      %v3150 = vpop.f32.mrf.mxu0
      %v3151 = vadd.f32 0.0, %v3150
      %3152 = vmatmul.bf16.gmra.mxu0 %v3128
      %v3153 = vpop.f32.mrf.mxu0
      %v3154 = vadd.f32 0.0, %v3153
      %v3155 = vpop.f32.mrf.mxu0
      %v3156 = vadd.f32 0.0, %v3155
      %3157 = vmatmul.bf16.gmra.mxu0 %v3131
      %v3158 = vpop.f32.mrf.mxu0
      %v3159 = vadd.f32 0.0, %v3158
      %v3160 = vpop.f32.mrf.mxu0
      %v3161 = vadd.f32 0.0, %v3160
      %3162 = vmatmul.bf16.gmra.mxu0 %v3134
      %v3163 = vpop.f32.mrf.mxu0
      %v3164 = vadd.f32 0.0, %v3163
      %v3165 = vpop.f32.mrf.mxu0
      %v3166 = vadd.f32 0.0, %v3165
      %3167 = vmatmul.bf16.gmra.mxu0 %v3137
      %v3168 = vpop.f32.mrf.mxu0
      %v3169 = vadd.f32 0.0, %v3168
      %v3170 = vpop.f32.mrf.mxu0
      %3171 = vdwg.mxu0
      %v3172 = vadd.f32 %v2678, %v3149
      %v3173 = vadd.f32 %v2679, %v3151
      %v3174 = vadd.f32 %v2680, %v3154
      %v3175 = vadd.f32 %v2681, %v3156
      %v3176 = vadd.f32 %v2682, %v3159
      %v3177 = vadd.f32 %v2683, %v3161
      %v3178 = vadd.f32 %v2684, %v3164
      %v3179 = vadd.f32 %v2685, %v3166
      %v3180 = vadd.f32 %v2686, %v3169
      %v3181 = vadd.f32 %v728, %v3172
      %v3182 = vadd.f32 %v729, %v3173
      %v3183 = vadd.f32 %v730, %v3174
      %v3184 = vadd.f32 %v731, %v3175
      %v3185 = vadd.f32 %v732, %v3176
      %v3186 = vadd.f32 %v733, %v3177
      %v3187 = vadd.f32 %v734, %v3178
      %v3188 = vadd.f32 %v735, %v3179
      %v3189 = vadd.f32 %v736, %v3180
      %v3190 = vld [vmem:[%s676] sm:$0x1]
      %v3192 = vperm.slane %v3190, 0
      %v3194 = vadd.f32 %v3181, %v3192
      %v3195 = vadd.f32 %v3182, %v3192
      %v3196 = vadd.f32 %v3183, %v3192
      %v3197 = vadd.f32 %v3184, %v3192
      %v3198 = vadd.f32 %v3185, %v3192
      %v3199 = vadd.f32 %v3186, %v3192
      %v3200 = vadd.f32 %v3187, %v3192
      %v3201 = vadd.f32 %v3188, %v3192
      %v3202 = vadd.f32 %v3189, %v3192
      %v3203 = vld [vmem:[%s679] sm:$0x1]
      %v3204 = vld [vmem:[%s682] sm:$0x1]
      %3205 = vadd.xlane.f32.xlu0 %v3194
      %v3206 = vpop.xlane.xlu0 %3205
      %3207 = vadd.xlane.f32.xlu0 %v3195
      %v3208 = vpop.xlane.xlu0 %3207
      %3209 = vadd.xlane.f32.xlu0 %v3196
      %v3210 = vpop.xlane.xlu0 %3209
      %3211 = vadd.xlane.f32.xlu0 %v3197
      %v3212 = vpop.xlane.xlu0 %3211
      %3213 = vadd.xlane.f32.xlu0 %v3198
      %v3214 = vpop.xlane.xlu0 %3213
      %3215 = vadd.xlane.f32.xlu0 %v3199
      %v3216 = vpop.xlane.xlu0 %3215
      %3217 = vadd.xlane.f32.xlu0 %v3200
      %v3218 = vpop.xlane.xlu0 %3217
      %3219 = vadd.xlane.f32.xlu0 %v3201
      %v3220 = vpop.xlane.xlu0 %3219
      %3221 = vadd.xlane.f32.xlu0 %v3202
      %v3222 = vpop.xlane.xlu0 %3221
      %v3223 = vmul.f32 %v3206, %v763
      %v3224 = vmul.f32 %v3208, %v763
      %v3225 = vmul.f32 %v3210, %v763
      %v3226 = vmul.f32 %v3212, %v763
      %v3227 = vmul.f32 %v3214, %v763
      %v3228 = vmul.f32 %v3216, %v763
      %v3229 = vmul.f32 %v3218, %v763
      %v3230 = vmul.f32 %v3220, %v763
      %v3231 = vmul.f32 %v3222, %v763
      %v3232 = vsub.f32 %v3194, %v3223
      %v3233 = vsub.f32 %v3195, %v3224
      %v3234 = vsub.f32 %v3196, %v3225
      %v3235 = vsub.f32 %v3197, %v3226
      %v3236 = vsub.f32 %v3198, %v3227
      %v3237 = vsub.f32 %v3199, %v3228
      %v3238 = vsub.f32 %v3200, %v3229
      %v3239 = vsub.f32 %v3201, %v3230
      %v3240 = vsub.f32 %v3202, %v3231
      %v3241 = vmul.f32 %v3232, %v3232
      %v3242 = vmul.f32 %v3233, %v3233
      %v3243 = vmul.f32 %v3234, %v3234
      %v3244 = vmul.f32 %v3235, %v3235
      %v3245 = vmul.f32 %v3236, %v3236
      %v3246 = vmul.f32 %v3237, %v3237
      %v3247 = vmul.f32 %v3238, %v3238
      %v3248 = vmul.f32 %v3239, %v3239
      %v3249 = vmul.f32 %v3240, %v3240
      %3250 = vadd.xlane.f32.xlu0 %v3241
      %v3251 = vpop.xlane.xlu0 %3250
      %3252 = vadd.xlane.f32.xlu0 %v3242
      %v3253 = vpop.xlane.xlu0 %3252
      %3254 = vadd.xlane.f32.xlu0 %v3243
      %v3255 = vpop.xlane.xlu0 %3254
      %3256 = vadd.xlane.f32.xlu0 %v3244
      %v3257 = vpop.xlane.xlu0 %3256
      %3258 = vadd.xlane.f32.xlu0 %v3245
      %v3259 = vpop.xlane.xlu0 %3258
      %3260 = vadd.xlane.f32.xlu0 %v3246
      %v3261 = vpop.xlane.xlu0 %3260
      %3262 = vadd.xlane.f32.xlu0 %v3247
      %v3263 = vpop.xlane.xlu0 %3262
      %3264 = vadd.xlane.f32.xlu0 %v3248
      %v3265 = vpop.xlane.xlu0 %3264
      %3266 = vadd.xlane.f32.xlu0 %v3249
      %v3267 = vpop.xlane.xlu0 %3266
      %v3268 = vmul.f32 %v3251, %v763
      %v3269 = vmul.f32 %v3253, %v763
      %v3270 = vmul.f32 %v3255, %v763
      %v3271 = vmul.f32 %v3257, %v763
      %v3272 = vmul.f32 %v3259, %v763
      %v3273 = vmul.f32 %v3261, %v763
      %v3274 = vmul.f32 %v3263, %v763
      %v3275 = vmul.f32 %v3265, %v763
      %v3276 = vmul.f32 %v3267, %v763
      %v3277 = vadd.f32 %v3268, 1e-08
      %v3278 = vadd.f32 %v3269, 1e-08
      %v3279 = vadd.f32 %v3270, 1e-08
      %v3280 = vadd.f32 %v3271, 1e-08
      %v3281 = vadd.f32 %v3272, 1e-08
      %v3282 = vadd.f32 %v3273, 1e-08
      %v3283 = vadd.f32 %v3274, 1e-08
      %v3284 = vadd.f32 %v3275, 1e-08
      %v3285 = vadd.f32 %v3276, 1e-08
      %v3286 = vrsqrt.pop %v3277
      %v3287 = vmul.f32 %v3286, %v3277
      %v3288 = vmul.f32 %v3287, %v3286
      %v3289 = vmul.f32 0.5, %v3288
      %v3290 = vsub.f32 1.5, %v3289
      %v3291 = vmul.f32 %v3286, %v3290
      %vm3292 = vweird.f32 %v3277
      %vm3293 = vweird.f32 %v3286
      %vm3294 = vmor %vm3292, %vm3293
      %v3295 = vsel %vm3294, %v3286, %v3291
      %v3296 = vrsqrt.pop %v3278
      %v3297 = vmul.f32 %v3296, %v3278
      %v3298 = vmul.f32 %v3297, %v3296
      %v3299 = vmul.f32 0.5, %v3298
      %v3300 = vsub.f32 1.5, %v3299
      %v3301 = vmul.f32 %v3296, %v3300
      %vm3302 = vweird.f32 %v3278
      %vm3303 = vweird.f32 %v3296
      %vm3304 = vmor %vm3302, %vm3303
      %v3305 = vsel %vm3304, %v3296, %v3301
      %v3306 = vrsqrt.pop %v3279
      %v3307 = vmul.f32 %v3306, %v3279
      %v3308 = vmul.f32 %v3307, %v3306
      %v3309 = vmul.f32 0.5, %v3308
      %v3310 = vsub.f32 1.5, %v3309
      %v3311 = vmul.f32 %v3306, %v3310
      %vm3312 = vweird.f32 %v3279
      %vm3313 = vweird.f32 %v3306
      %vm3314 = vmor %vm3312, %vm3313
      %v3315 = vsel %vm3314, %v3306, %v3311
      %v3316 = vrsqrt.pop %v3280
      %v3317 = vmul.f32 %v3316, %v3280
      %v3318 = vmul.f32 %v3317, %v3316
      %v3319 = vmul.f32 0.5, %v3318
      %v3320 = vsub.f32 1.5, %v3319
      %v3321 = vmul.f32 %v3316, %v3320
      %vm3322 = vweird.f32 %v3280
      %vm3323 = vweird.f32 %v3316
      %vm3324 = vmor %vm3322, %vm3323
      %v3325 = vsel %vm3324, %v3316, %v3321
      %v3326 = vrsqrt.pop %v3281
      %v3327 = vmul.f32 %v3326, %v3281
      %v3328 = vmul.f32 %v3327, %v3326
      %v3329 = vmul.f32 0.5, %v3328
      %v3330 = vsub.f32 1.5, %v3329
      %v3331 = vmul.f32 %v3326, %v3330
      %vm3332 = vweird.f32 %v3281
      %vm3333 = vweird.f32 %v3326
      %vm3334 = vmor %vm3332, %vm3333
      %v3335 = vsel %vm3334, %v3326, %v3331
      %v3336 = vrsqrt.pop %v3282
      %v3337 = vmul.f32 %v3336, %v3282
      %v3338 = vmul.f32 %v3337, %v3336
      %v3339 = vmul.f32 0.5, %v3338
      %v3340 = vsub.f32 1.5, %v3339
      %v3341 = vmul.f32 %v3336, %v3340
      %vm3342 = vweird.f32 %v3282
      %vm3343 = vweird.f32 %v3336
      %vm3344 = vmor %vm3342, %vm3343
      %v3345 = vsel %vm3344, %v3336, %v3341
      %v3346 = vrsqrt.pop %v3283
      %v3347 = vmul.f32 %v3346, %v3283
      %v3348 = vmul.f32 %v3347, %v3346
      %v3349 = vmul.f32 0.5, %v3348
      %v3350 = vsub.f32 1.5, %v3349
      %v3351 = vmul.f32 %v3346, %v3350
      %vm3352 = vweird.f32 %v3283
      %vm3353 = vweird.f32 %v3346
      %vm3354 = vmor %vm3352, %vm3353
      %v3355 = vsel %vm3354, %v3346, %v3351
      %v3356 = vrsqrt.pop %v3284
      %v3357 = vmul.f32 %v3356, %v3284
      %v3358 = vmul.f32 %v3357, %v3356
      %v3359 = vmul.f32 0.5, %v3358
      %v3360 = vsub.f32 1.5, %v3359
      %v3361 = vmul.f32 %v3356, %v3360
      %vm3362 = vweird.f32 %v3284
      %vm3363 = vweird.f32 %v3356
      %vm3364 = vmor %vm3362, %vm3363
      %v3365 = vsel %vm3364, %v3356, %v3361
      %v3366 = vrsqrt.pop %v3285
      %v3367 = vmul.f32 %v3366, %v3285
      %v3368 = vmul.f32 %v3367, %v3366
      %v3369 = vmul.f32 0.5, %v3368
      %v3370 = vsub.f32 1.5, %v3369
      %v3371 = vmul.f32 %v3366, %v3370
      %vm3372 = vweird.f32 %v3285
      %vm3373 = vweird.f32 %v3366
      %vm3374 = vmor %vm3372, %vm3373
      %v3375 = vsel %vm3374, %v3366, %v3371
      %v3376 = vmul.f32 %v3232, %v3295
      %v3377 = vmul.f32 %v3233, %v3305
      %v3378 = vmul.f32 %v3234, %v3315
      %v3379 = vmul.f32 %v3235, %v3325
      %v3380 = vmul.f32 %v3236, %v3335
      %v3381 = vmul.f32 %v3237, %v3345
      %v3382 = vmul.f32 %v3238, %v3355
      %v3383 = vmul.f32 %v3239, %v3365
      %v3384 = vmul.f32 %v3240, %v3375
      %v3386 = vperm.slane %v3203, 0
      %v3388 = vmul.f32 %v3376, %v3386
      %v3389 = vmul.f32 %v3377, %v3386
      %v3390 = vmul.f32 %v3378, %v3386
      %v3391 = vmul.f32 %v3379, %v3386
      %v3392 = vmul.f32 %v3380, %v3386
      %v3393 = vmul.f32 %v3381, %v3386
      %v3394 = vmul.f32 %v3382, %v3386
      %v3395 = vmul.f32 %v3383, %v3386
      %v3396 = vmul.f32 %v3384, %v3386
      %v3398 = vperm.slane %v3204, 0
      %v3400 = vadd.f32 %v3388, %v3398
      %v3401 = vadd.f32 %v3389, %v3398
      %v3402 = vadd.f32 %v3390, %v3398
      %v3403 = vadd.f32 %v3391, %v3398
      %v3404 = vadd.f32 %v3392, %v3398
      %v3405 = vadd.f32 %v3393, %v3398
      %v3406 = vadd.f32 %v3394, %v3398
      %v3407 = vadd.f32 %v3395, %v3398
      %v3408 = vadd.f32 %v3396, %v3398
      %v3409 = vpack.c.bf16 %v3401, %v3400
      %v3410 = vpack.c.bf16 %v3403, %v3402
      %v3411 = vpack.c.bf16 %v3405, %v3404
      %v3412 = vpack.c.bf16 %v3407, %v3406
      %v3413 = vpack.c.bf16 %v3408, %v3408
      %v3414 = vld [vmem:[%s687] sm:$0xff]
      %v3415 = vld [vmem:[%s687 + $0x8] sm:$0xff]
      %v3416 = vld [vmem:[%s687 + $0x10] sm:$0xff]
      %v3417 = vld [vmem:[%s687 + $0x18] sm:$0xff]
      %v3418 = vld [vmem:[%s687 + $0x20] sm:$0xff]
      %v3419 = vld [vmem:[%s687 + $0x28] sm:$0xff]
      %v3420 = vld [vmem:[%s687 + $0x30] sm:$0xff]
      %v3421 = vld [vmem:[%s687 + $0x38] sm:$0xff]
      %v3422 = vld [vmem:[%s687 + $0x40] sm:$0xff]
      %v3423 = vld [vmem:[%s687 + $0x48] sm:$0xff]
      %v3424 = vld [vmem:[%s687 + $0x50] sm:$0xff]
      %v3425 = vld [vmem:[%s687 + $0x58] sm:$0xff]
      %v3426 = vld [vmem:[%s687 + $0x60] sm:$0xff]
      %v3427 = vld [vmem:[%s687 + $0x68] sm:$0xff]
      %v3428 = vld [vmem:[%s687 + $0x70] sm:$0xff]
      %v3429 = vld [vmem:[%s687 + $0x78] sm:$0xff]
      %v3430 = vld [vmem:[%s687 + $0x80] sm:$0xff]
      %v3431 = vld [vmem:[%s687 + $0x88] sm:$0xff]
      %v3432 = vld [vmem:[%s687 + $0x90] sm:$0xff]
      %v3433 = vld [vmem:[%s687 + $0x98] sm:$0xff]
      %v3434 = vld [vmem:[%s687 + $0xa0] sm:$0xff]
      %v3435 = vld [vmem:[%s687 + $0xa8] sm:$0xff]
      %v3436 = vld [vmem:[%s687 + $0xb0] sm:$0xff]
      %v3437 = vld [vmem:[%s687 + $0xb8] sm:$0xff]
      %v3438 = vld [vmem:[%s687 + $0xc0] sm:$0xff]
      %v3439 = vld [vmem:[%s687 + $0xc8] sm:$0xff]
      %v3440 = vld [vmem:[%s687 + $0xd0] sm:$0xff]
      %v3441 = vld [vmem:[%s687 + $0xd8] sm:$0xff]
      %v3442 = vld [vmem:[%s687 + $0xe0] sm:$0xff]
      %v3443 = vld [vmem:[%s687 + $0xe8] sm:$0xff]
      %v3444 = vld [vmem:[%s687 + $0xf0] sm:$0xff]
      %v3445 = vld [vmem:[%s687 + $0xf8] sm:$0xff]
      %v3446 = vld [vmem:[%s691] sm:$0xf]
      %v3448 = vperm.slane %v3446, 0
      %v3449 = vperm.slane %v3446, 1
      %v3450 = vperm.slane %v3446, 2
      %v3451 = vperm.slane %v3446, 3
      %v3488 = vunpack.c.l.b16 %v3414
      %v3489 = vunpack.c.h.b16 %v3414
      %v3490 = vunpack.c.l.b16 %v3415
      %v3491 = vunpack.c.h.b16 %v3415
      %v3492 = vunpack.c.l.b16 %v3416
      %v3493 = vunpack.c.h.b16 %v3416
      %v3494 = vunpack.c.l.b16 %v3417
      %v3495 = vunpack.c.h.b16 %v3417
      %v3496 = vunpack.c.l.b16 %v3418
      %v3497 = vunpack.c.h.b16 %v3418
      %v3498 = vunpack.c.l.b16 %v3419
      %v3499 = vunpack.c.h.b16 %v3419
      %v3500 = vunpack.c.l.b16 %v3420
      %v3501 = vunpack.c.h.b16 %v3420
      %v3502 = vunpack.c.l.b16 %v3421
      %v3503 = vunpack.c.h.b16 %v3421
      %v3504 = vunpack.c.l.b16 %v3422
      %v3505 = vunpack.c.h.b16 %v3422
      %v3506 = vunpack.c.l.b16 %v3423
      %v3507 = vunpack.c.h.b16 %v3423
      %v3508 = vunpack.c.l.b16 %v3424
      %v3509 = vunpack.c.h.b16 %v3424
      %v3510 = vunpack.c.l.b16 %v3425
      %v3511 = vunpack.c.h.b16 %v3425
      %v3512 = vunpack.c.l.b16 %v3426
      %v3513 = vunpack.c.h.b16 %v3426
      %v3514 = vunpack.c.l.b16 %v3427
      %v3515 = vunpack.c.h.b16 %v3427
      %v3516 = vunpack.c.l.b16 %v3428
      %v3517 = vunpack.c.h.b16 %v3428
      %v3518 = vunpack.c.l.b16 %v3429
      %v3519 = vunpack.c.h.b16 %v3429
      %v3520 = vunpack.c.l.b16 %v3430
      %v3521 = vunpack.c.h.b16 %v3430
      %v3522 = vunpack.c.l.b16 %v3431
      %v3523 = vunpack.c.h.b16 %v3431
      %v3524 = vunpack.c.l.b16 %v3432
      %v3525 = vunpack.c.h.b16 %v3432
      %v3526 = vunpack.c.l.b16 %v3433
      %v3527 = vunpack.c.h.b16 %v3433
      %v3528 = vunpack.c.l.b16 %v3434
      %v3529 = vunpack.c.h.b16 %v3434
      %v3530 = vunpack.c.l.b16 %v3435
      %v3531 = vunpack.c.h.b16 %v3435
      %v3532 = vunpack.c.l.b16 %v3436
      %v3533 = vunpack.c.h.b16 %v3436
      %v3534 = vunpack.c.l.b16 %v3437
      %v3535 = vunpack.c.h.b16 %v3437
      %v3536 = vunpack.c.l.b16 %v3438
      %v3537 = vunpack.c.h.b16 %v3438
      %v3538 = vunpack.c.l.b16 %v3439
      %v3539 = vunpack.c.h.b16 %v3439
      %v3540 = vunpack.c.l.b16 %v3440
      %v3541 = vunpack.c.h.b16 %v3440
      %v3542 = vunpack.c.l.b16 %v3441
      %v3543 = vunpack.c.h.b16 %v3441
      %v3544 = vunpack.c.l.b16 %v3442
      %v3545 = vunpack.c.h.b16 %v3442
      %v3546 = vunpack.c.l.b16 %v3443
      %v3547 = vunpack.c.h.b16 %v3443
      %v3548 = vunpack.c.l.b16 %v3444
      %v3549 = vunpack.c.h.b16 %v3444
      %v3550 = vunpack.c.l.b16 %v3445
      %v3551 = vunpack.c.h.b16 %v3445
      %v3552 = vpack.c.b16 %v3492, %v3488
      %v3553 = vpack.c.b16 %v3493, %v3489
      %v3554 = vpack.c.b16 %v3494, %v3490
      %v3555 = vpack.c.b16 %v3495, %v3491
      %v3556 = vpack.c.b16 %v3500, %v3496
      %v3557 = vpack.c.b16 %v3501, %v3497
      %v3558 = vpack.c.b16 %v3502, %v3498
      %v3559 = vpack.c.b16 %v3503, %v3499
      %v3560 = vpack.c.b16 %v3508, %v3504
      %v3561 = vpack.c.b16 %v3509, %v3505
      %v3562 = vpack.c.b16 %v3510, %v3506
      %v3563 = vpack.c.b16 %v3511, %v3507
      %v3564 = vpack.c.b16 %v3516, %v3512
      %v3565 = vpack.c.b16 %v3517, %v3513
      %v3566 = vpack.c.b16 %v3518, %v3514
      %v3567 = vpack.c.b16 %v3519, %v3515
      %v3568 = vpack.c.b16 %v3524, %v3520
      %v3569 = vpack.c.b16 %v3525, %v3521
      %v3570 = vpack.c.b16 %v3526, %v3522
      %v3571 = vpack.c.b16 %v3527, %v3523
      %v3572 = vpack.c.b16 %v3532, %v3528
      %v3573 = vpack.c.b16 %v3533, %v3529
      %v3574 = vpack.c.b16 %v3534, %v3530
      %v3575 = vpack.c.b16 %v3535, %v3531
      %v3576 = vpack.c.b16 %v3540, %v3536
      %v3577 = vpack.c.b16 %v3541, %v3537
      %v3578 = vpack.c.b16 %v3542, %v3538
      %v3579 = vpack.c.b16 %v3543, %v3539
      %v3580 = vpack.c.b16 %v3548, %v3544
      %v3581 = vpack.c.b16 %v3549, %v3545
      %v3582 = vpack.c.b16 %v3550, %v3546
      %v3583 = vpack.c.b16 %v3551, %v3547
      %3616 = vmatpush.bf16.msra.mxu0 %v3580
      %3617 = vmatpush.bf16.msra.mxu0 %v3576
      %3618 = vmatpush.bf16.msra.mxu0 %v3572
      %3619 = vmatpush.bf16.msra.mxu0 %v3568
      %3620 = vmatpush.bf16.msra.mxu0 %v3564
      %3621 = vmatpush.bf16.msra.mxu0 %v3560
      %3622 = vmatpush.bf16.msra.mxu0 %v3556
      %3623 = vmatpush.bf16.msra.mxu0 %v3552
      %3624 = vmatmul.bf16.gmra.mxu0 %v3409
      %v3625 = vpop.f32.mrf.mxu0
      %v3626 = vadd.f32 %v3448, %v3625
      %v3627 = vpop.f32.mrf.mxu0
      %v3628 = vadd.f32 %v3448, %v3627
      %3629 = vmatmul.bf16.gmra.mxu0 %v3410
      %v3630 = vpop.f32.mrf.mxu0
      %v3631 = vadd.f32 %v3448, %v3630
      %v3632 = vpop.f32.mrf.mxu0
      %v3633 = vadd.f32 %v3448, %v3632
      %3634 = vmatmul.bf16.gmra.mxu0 %v3411
      %v3635 = vpop.f32.mrf.mxu0
      %v3636 = vadd.f32 %v3448, %v3635
      %v3637 = vpop.f32.mrf.mxu0
      %v3638 = vadd.f32 %v3448, %v3637
      %3639 = vmatmul.bf16.gmra.mxu0 %v3412
      %v3640 = vpop.f32.mrf.mxu0
      %v3641 = vadd.f32 %v3448, %v3640
      %v3642 = vpop.f32.mrf.mxu0
      %v3643 = vadd.f32 %v3448, %v3642
      %3644 = vmatmul.bf16.gmra.mxu0 %v3413
      %v3645 = vpop.f32.mrf.mxu0
      %v3646 = vadd.f32 %v3448, %v3645
      %v3647 = vpop.f32.mrf.mxu0
      %3648 = vdwg.mxu0
      %3649 = vmatpush.bf16.msra.mxu0 %v3581
      %3650 = vmatpush.bf16.msra.mxu0 %v3577
      %3651 = vmatpush.bf16.msra.mxu0 %v3573
      %3652 = vmatpush.bf16.msra.mxu0 %v3569
      %3653 = vmatpush.bf16.msra.mxu0 %v3565
      %3654 = vmatpush.bf16.msra.mxu0 %v3561
      %3655 = vmatpush.bf16.msra.mxu0 %v3557
      %3656 = vmatpush.bf16.msra.mxu0 %v3553
      %3657 = vmatmul.bf16.gmra.mxu0 %v3409
      %v3658 = vpop.f32.mrf.mxu0
      %v3659 = vadd.f32 %v3449, %v3658
      %v3660 = vpop.f32.mrf.mxu0
      %v3661 = vadd.f32 %v3449, %v3660
      %3662 = vmatmul.bf16.gmra.mxu0 %v3410
      %v3663 = vpop.f32.mrf.mxu0
      %v3664 = vadd.f32 %v3449, %v3663
      %v3665 = vpop.f32.mrf.mxu0
      %v3666 = vadd.f32 %v3449, %v3665
      %3667 = vmatmul.bf16.gmra.mxu0 %v3411
      %v3668 = vpop.f32.mrf.mxu0
      %v3669 = vadd.f32 %v3449, %v3668
      %v3670 = vpop.f32.mrf.mxu0
      %v3671 = vadd.f32 %v3449, %v3670
      %3672 = vmatmul.bf16.gmra.mxu0 %v3412
      %v3673 = vpop.f32.mrf.mxu0
      %v3674 = vadd.f32 %v3449, %v3673
      %v3675 = vpop.f32.mrf.mxu0
      %v3676 = vadd.f32 %v3449, %v3675
      %3677 = vmatmul.bf16.gmra.mxu0 %v3413
      %v3678 = vpop.f32.mrf.mxu0
      %v3679 = vadd.f32 %v3449, %v3678
      %v3680 = vpop.f32.mrf.mxu0
      %3681 = vdwg.mxu0
      %3682 = vmatpush.bf16.msra.mxu0 %v3582
      %3683 = vmatpush.bf16.msra.mxu0 %v3578
      %3684 = vmatpush.bf16.msra.mxu0 %v3574
      %3685 = vmatpush.bf16.msra.mxu0 %v3570
      %3686 = vmatpush.bf16.msra.mxu0 %v3566
      %3687 = vmatpush.bf16.msra.mxu0 %v3562
      %3688 = vmatpush.bf16.msra.mxu0 %v3558
      %3689 = vmatpush.bf16.msra.mxu0 %v3554
      %3690 = vmatmul.bf16.gmra.mxu0 %v3409
      %v3691 = vpop.f32.mrf.mxu0
      %v3692 = vadd.f32 %v3450, %v3691
      %v3693 = vpop.f32.mrf.mxu0
      %v3694 = vadd.f32 %v3450, %v3693
      %3695 = vmatmul.bf16.gmra.mxu0 %v3410
      %v3696 = vpop.f32.mrf.mxu0
      %v3697 = vadd.f32 %v3450, %v3696
      %v3698 = vpop.f32.mrf.mxu0
      %v3699 = vadd.f32 %v3450, %v3698
      %3700 = vmatmul.bf16.gmra.mxu0 %v3411
      %v3701 = vpop.f32.mrf.mxu0
      %v3702 = vadd.f32 %v3450, %v3701
      %v3703 = vpop.f32.mrf.mxu0
      %v3704 = vadd.f32 %v3450, %v3703
      %3705 = vmatmul.bf16.gmra.mxu0 %v3412
      %v3706 = vpop.f32.mrf.mxu0
      %v3707 = vadd.f32 %v3450, %v3706
      %v3708 = vpop.f32.mrf.mxu0
      %v3709 = vadd.f32 %v3450, %v3708
      %3710 = vmatmul.bf16.gmra.mxu0 %v3413
      %v3711 = vpop.f32.mrf.mxu0
      %v3712 = vadd.f32 %v3450, %v3711
      %v3713 = vpop.f32.mrf.mxu0
      %3714 = vdwg.mxu0
      %3715 = vmatpush.bf16.msra.mxu0 %v3583
      %3716 = vmatpush.bf16.msra.mxu0 %v3579
      %3717 = vmatpush.bf16.msra.mxu0 %v3575
      %3718 = vmatpush.bf16.msra.mxu0 %v3571
      %3719 = vmatpush.bf16.msra.mxu0 %v3567
      %3720 = vmatpush.bf16.msra.mxu0 %v3563
      %3721 = vmatpush.bf16.msra.mxu0 %v3559
      %3722 = vmatpush.bf16.msra.mxu0 %v3555
      %3723 = vmatmul.bf16.gmra.mxu0 %v3409
      %v3724 = vpop.f32.mrf.mxu0
      %v3725 = vadd.f32 %v3451, %v3724
      %v3726 = vpop.f32.mrf.mxu0
      %v3727 = vadd.f32 %v3451, %v3726
      %3728 = vmatmul.bf16.gmra.mxu0 %v3410
      %v3729 = vpop.f32.mrf.mxu0
      %v3730 = vadd.f32 %v3451, %v3729
      %v3731 = vpop.f32.mrf.mxu0
      %v3732 = vadd.f32 %v3451, %v3731
      %3733 = vmatmul.bf16.gmra.mxu0 %v3411
      %v3734 = vpop.f32.mrf.mxu0
      %v3735 = vadd.f32 %v3451, %v3734
      %v3736 = vpop.f32.mrf.mxu0
      %v3737 = vadd.f32 %v3451, %v3736
      %3738 = vmatmul.bf16.gmra.mxu0 %v3412
      %v3739 = vpop.f32.mrf.mxu0
      %v3740 = vadd.f32 %v3451, %v3739
      %v3741 = vpop.f32.mrf.mxu0
      %v3742 = vadd.f32 %v3451, %v3741
      %3743 = vmatmul.bf16.gmra.mxu0 %v3413
      %v3744 = vpop.f32.mrf.mxu0
      %v3745 = vadd.f32 %v3451, %v3744
      %v3746 = vpop.f32.mrf.mxu0
      %3747 = vdwg.mxu0
      %v3748 = vmul.f32 %v3626, %v3626
      %v3749 = vmul.f32 %v3659, %v3659
      %v3750 = vmul.f32 %v3692, %v3692
      %v3751 = vmul.f32 %v3725, %v3725
      %v3752 = vmul.f32 %v3628, %v3628
      %v3753 = vmul.f32 %v3661, %v3661
      %v3754 = vmul.f32 %v3694, %v3694
      %v3755 = vmul.f32 %v3727, %v3727
      %v3756 = vmul.f32 %v3631, %v3631
      %v3757 = vmul.f32 %v3664, %v3664
      %v3758 = vmul.f32 %v3697, %v3697
      %v3759 = vmul.f32 %v3730, %v3730
      %v3760 = vmul.f32 %v3633, %v3633
      %v3761 = vmul.f32 %v3666, %v3666
      %v3762 = vmul.f32 %v3699, %v3699
      %v3763 = vmul.f32 %v3732, %v3732
      %v3764 = vmul.f32 %v3636, %v3636
      %v3765 = vmul.f32 %v3669, %v3669
      %v3766 = vmul.f32 %v3702, %v3702
      %v3767 = vmul.f32 %v3735, %v3735
      %v3768 = vmul.f32 %v3638, %v3638
      %v3769 = vmul.f32 %v3671, %v3671
      %v3770 = vmul.f32 %v3704, %v3704
      %v3771 = vmul.f32 %v3737, %v3737
      %v3772 = vmul.f32 %v3641, %v3641
      %v3773 = vmul.f32 %v3674, %v3674
      %v3774 = vmul.f32 %v3707, %v3707
      %v3775 = vmul.f32 %v3740, %v3740
      %v3776 = vmul.f32 %v3643, %v3643
      %v3777 = vmul.f32 %v3676, %v3676
      %v3778 = vmul.f32 %v3709, %v3709
      %v3779 = vmul.f32 %v3742, %v3742
      %v3780 = vmul.f32 %v3646, %v3646
      %v3781 = vmul.f32 %v3679, %v3679
      %v3782 = vmul.f32 %v3712, %v3712
      %v3783 = vmul.f32 %v3745, %v3745
      %v3784 = vmul.f32 %v3626, %v3748
      %v3785 = vmul.f32 %v3659, %v3749
      %v3786 = vmul.f32 %v3692, %v3750
      %v3787 = vmul.f32 %v3725, %v3751
      %v3788 = vmul.f32 %v3628, %v3752
      %v3789 = vmul.f32 %v3661, %v3753
      %v3790 = vmul.f32 %v3694, %v3754
      %v3791 = vmul.f32 %v3727, %v3755
      %v3792 = vmul.f32 %v3631, %v3756
      %v3793 = vmul.f32 %v3664, %v3757
      %v3794 = vmul.f32 %v3697, %v3758
      %v3795 = vmul.f32 %v3730, %v3759
      %v3796 = vmul.f32 %v3633, %v3760
      %v3797 = vmul.f32 %v3666, %v3761
      %v3798 = vmul.f32 %v3699, %v3762
      %v3799 = vmul.f32 %v3732, %v3763
      %v3800 = vmul.f32 %v3636, %v3764
      %v3801 = vmul.f32 %v3669, %v3765
      %v3802 = vmul.f32 %v3702, %v3766
      %v3803 = vmul.f32 %v3735, %v3767
      %v3804 = vmul.f32 %v3638, %v3768
      %v3805 = vmul.f32 %v3671, %v3769
      %v3806 = vmul.f32 %v3704, %v3770
      %v3807 = vmul.f32 %v3737, %v3771
      %v3808 = vmul.f32 %v3641, %v3772
      %v3809 = vmul.f32 %v3674, %v3773
      %v3810 = vmul.f32 %v3707, %v3774
      %v3811 = vmul.f32 %v3740, %v3775
      %v3812 = vmul.f32 %v3643, %v3776
      %v3813 = vmul.f32 %v3676, %v3777
      %v3814 = vmul.f32 %v3709, %v3778
      %v3815 = vmul.f32 %v3742, %v3779
      %v3816 = vmul.f32 %v3646, %v3780
      %v3817 = vmul.f32 %v3679, %v3781
      %v3818 = vmul.f32 %v3712, %v3782
      %v3819 = vmul.f32 %v3745, %v3783
      %v3820 = vmul.f32 %v3784, 0.044715
      %v3821 = vmul.f32 %v3785, 0.044715
      %v3822 = vmul.f32 %v3786, 0.044715
      %v3823 = vmul.f32 %v3787, 0.044715
      %v3824 = vmul.f32 %v3788, 0.044715
      %v3825 = vmul.f32 %v3789, 0.044715
      %v3826 = vmul.f32 %v3790, 0.044715
      %v3827 = vmul.f32 %v3791, 0.044715
      %v3828 = vmul.f32 %v3792, 0.044715
      %v3829 = vmul.f32 %v3793, 0.044715
      %v3830 = vmul.f32 %v3794, 0.044715
      %v3831 = vmul.f32 %v3795, 0.044715
      %v3832 = vmul.f32 %v3796, 0.044715
      %v3833 = vmul.f32 %v3797, 0.044715
      %v3834 = vmul.f32 %v3798, 0.044715
      %v3835 = vmul.f32 %v3799, 0.044715
      %v3836 = vmul.f32 %v3800, 0.044715
      %v3837 = vmul.f32 %v3801, 0.044715
      %v3838 = vmul.f32 %v3802, 0.044715
      %v3839 = vmul.f32 %v3803, 0.044715
      %v3840 = vmul.f32 %v3804, 0.044715
      %v3841 = vmul.f32 %v3805, 0.044715
      %v3842 = vmul.f32 %v3806, 0.044715
      %v3843 = vmul.f32 %v3807, 0.044715
      %v3844 = vmul.f32 %v3808, 0.044715
      %v3845 = vmul.f32 %v3809, 0.044715
      %v3846 = vmul.f32 %v3810, 0.044715
      %v3847 = vmul.f32 %v3811, 0.044715
      %v3848 = vmul.f32 %v3812, 0.044715
      %v3849 = vmul.f32 %v3813, 0.044715
      %v3850 = vmul.f32 %v3814, 0.044715
      %v3851 = vmul.f32 %v3815, 0.044715
      %v3852 = vmul.f32 %v3816, 0.044715
      %v3853 = vmul.f32 %v3817, 0.044715
      %v3854 = vmul.f32 %v3818, 0.044715
      %v3855 = vmul.f32 %v3819, 0.044715
      %v3856 = vadd.f32 %v3626, %v3820
      %v3857 = vadd.f32 %v3659, %v3821
      %v3858 = vadd.f32 %v3692, %v3822
      %v3859 = vadd.f32 %v3725, %v3823
      %v3860 = vadd.f32 %v3628, %v3824
      %v3861 = vadd.f32 %v3661, %v3825
      %v3862 = vadd.f32 %v3694, %v3826
      %v3863 = vadd.f32 %v3727, %v3827
      %v3864 = vadd.f32 %v3631, %v3828
      %v3865 = vadd.f32 %v3664, %v3829
      %v3866 = vadd.f32 %v3697, %v3830
      %v3867 = vadd.f32 %v3730, %v3831
      %v3868 = vadd.f32 %v3633, %v3832
      %v3869 = vadd.f32 %v3666, %v3833
      %v3870 = vadd.f32 %v3699, %v3834
      %v3871 = vadd.f32 %v3732, %v3835
      %v3872 = vadd.f32 %v3636, %v3836
      %v3873 = vadd.f32 %v3669, %v3837
      %v3874 = vadd.f32 %v3702, %v3838
      %v3875 = vadd.f32 %v3735, %v3839
      %v3876 = vadd.f32 %v3638, %v3840
      %v3877 = vadd.f32 %v3671, %v3841
      %v3878 = vadd.f32 %v3704, %v3842
      %v3879 = vadd.f32 %v3737, %v3843
      %v3880 = vadd.f32 %v3641, %v3844
      %v3881 = vadd.f32 %v3674, %v3845
      %v3882 = vadd.f32 %v3707, %v3846
      %v3883 = vadd.f32 %v3740, %v3847
      %v3884 = vadd.f32 %v3643, %v3848
      %v3885 = vadd.f32 %v3676, %v3849
      %v3886 = vadd.f32 %v3709, %v3850
      %v3887 = vadd.f32 %v3742, %v3851
      %v3888 = vadd.f32 %v3646, %v3852
      %v3889 = vadd.f32 %v3679, %v3853
      %v3890 = vadd.f32 %v3712, %v3854
      %v3891 = vadd.f32 %v3745, %v3855
      %v3892 = vmul.f32 %v3856, 0.7978846
      %v3893 = vmul.f32 %v3857, 0.7978846
      %v3894 = vmul.f32 %v3858, 0.7978846
      %v3895 = vmul.f32 %v3859, 0.7978846
      %v3896 = vmul.f32 %v3860, 0.7978846
      %v3897 = vmul.f32 %v3861, 0.7978846
      %v3898 = vmul.f32 %v3862, 0.7978846
      %v3899 = vmul.f32 %v3863, 0.7978846
      %v3900 = vmul.f32 %v3864, 0.7978846
      %v3901 = vmul.f32 %v3865, 0.7978846
      %v3902 = vmul.f32 %v3866, 0.7978846
      %v3903 = vmul.f32 %v3867, 0.7978846
      %v3904 = vmul.f32 %v3868, 0.7978846
      %v3905 = vmul.f32 %v3869, 0.7978846
      %v3906 = vmul.f32 %v3870, 0.7978846
      %v3907 = vmul.f32 %v3871, 0.7978846
      %v3908 = vmul.f32 %v3872, 0.7978846
      %v3909 = vmul.f32 %v3873, 0.7978846
      %v3910 = vmul.f32 %v3874, 0.7978846
      %v3911 = vmul.f32 %v3875, 0.7978846
      %v3912 = vmul.f32 %v3876, 0.7978846
      %v3913 = vmul.f32 %v3877, 0.7978846
      %v3914 = vmul.f32 %v3878, 0.7978846
      %v3915 = vmul.f32 %v3879, 0.7978846
      %v3916 = vmul.f32 %v3880, 0.7978846
      %v3917 = vmul.f32 %v3881, 0.7978846
      %v3918 = vmul.f32 %v3882, 0.7978846
      %v3919 = vmul.f32 %v3883, 0.7978846
      %v3920 = vmul.f32 %v3884, 0.7978846
      %v3921 = vmul.f32 %v3885, 0.7978846
      %v3922 = vmul.f32 %v3886, 0.7978846
      %v3923 = vmul.f32 %v3887, 0.7978846
      %v3924 = vmul.f32 %v3888, 0.7978846
      %v3925 = vmul.f32 %v3889, 0.7978846
      %v3926 = vmul.f32 %v3890, 0.7978846
      %v3927 = vmul.f32 %v3891, 0.7978846
      %v3928 = vtanh.pop %v3892
      %v3929 = vtanh.pop %v3893
      %v3930 = vtanh.pop %v3894
      %v3931 = vtanh.pop %v3895
      %v3932 = vtanh.pop %v3896
      %v3933 = vtanh.pop %v3897
      %v3934 = vtanh.pop %v3898
      %v3935 = vtanh.pop %v3899
      %v3936 = vtanh.pop %v3900
      %v3937 = vtanh.pop %v3901
      %v3938 = vtanh.pop %v3902
      %v3939 = vtanh.pop %v3903
      %v3940 = vtanh.pop %v3904
      %v3941 = vtanh.pop %v3905
      %v3942 = vtanh.pop %v3906
      %v3943 = vtanh.pop %v3907
      %v3944 = vtanh.pop %v3908
      %v3945 = vtanh.pop %v3909
      %v3946 = vtanh.pop %v3910
      %v3947 = vtanh.pop %v3911
      %v3948 = vtanh.pop %v3912
      %v3949 = vtanh.pop %v3913
      %v3950 = vtanh.pop %v3914
      %v3951 = vtanh.pop %v3915
      %v3952 = vtanh.pop %v3916
      %v3953 = vtanh.pop %v3917
      %v3954 = vtanh.pop %v3918
      %v3955 = vtanh.pop %v3919
      %v3956 = vtanh.pop %v3920
      %v3957 = vtanh.pop %v3921
      %v3958 = vtanh.pop %v3922
      %v3959 = vtanh.pop %v3923
      %v3960 = vtanh.pop %v3924
      %v3961 = vtanh.pop %v3925
      %v3962 = vtanh.pop %v3926
      %v3963 = vtanh.pop %v3927
      %v3964 = vadd.f32 %v3928, 1.0
      %v3965 = vadd.f32 %v3929, 1.0
      %v3966 = vadd.f32 %v3930, 1.0
      %v3967 = vadd.f32 %v3931, 1.0
      %v3968 = vadd.f32 %v3932, 1.0
      %v3969 = vadd.f32 %v3933, 1.0
      %v3970 = vadd.f32 %v3934, 1.0
      %v3971 = vadd.f32 %v3935, 1.0
      %v3972 = vadd.f32 %v3936, 1.0
      %v3973 = vadd.f32 %v3937, 1.0
      %v3974 = vadd.f32 %v3938, 1.0
      %v3975 = vadd.f32 %v3939, 1.0
      %v3976 = vadd.f32 %v3940, 1.0
      %v3977 = vadd.f32 %v3941, 1.0
      %v3978 = vadd.f32 %v3942, 1.0
      %v3979 = vadd.f32 %v3943, 1.0
      %v3980 = vadd.f32 %v3944, 1.0
      %v3981 = vadd.f32 %v3945, 1.0
      %v3982 = vadd.f32 %v3946, 1.0
      %v3983 = vadd.f32 %v3947, 1.0
      %v3984 = vadd.f32 %v3948, 1.0
      %v3985 = vadd.f32 %v3949, 1.0
      %v3986 = vadd.f32 %v3950, 1.0
      %v3987 = vadd.f32 %v3951, 1.0
      %v3988 = vadd.f32 %v3952, 1.0
      %v3989 = vadd.f32 %v3953, 1.0
      %v3990 = vadd.f32 %v3954, 1.0
      %v3991 = vadd.f32 %v3955, 1.0
      %v3992 = vadd.f32 %v3956, 1.0
      %v3993 = vadd.f32 %v3957, 1.0
      %v3994 = vadd.f32 %v3958, 1.0
      %v3995 = vadd.f32 %v3959, 1.0
      %v3996 = vadd.f32 %v3960, 1.0
      %v3997 = vadd.f32 %v3961, 1.0
      %v3998 = vadd.f32 %v3962, 1.0
      %v3999 = vadd.f32 %v3963, 1.0
      %v4000 = vmul.f32 %v3964, 0.5
      %v4001 = vmul.f32 %v3965, 0.5
      %v4002 = vmul.f32 %v3966, 0.5
      %v4003 = vmul.f32 %v3967, 0.5
      %v4004 = vmul.f32 %v3968, 0.5
      %v4005 = vmul.f32 %v3969, 0.5
      %v4006 = vmul.f32 %v3970, 0.5
      %v4007 = vmul.f32 %v3971, 0.5
      %v4008 = vmul.f32 %v3972, 0.5
      %v4009 = vmul.f32 %v3973, 0.5
      %v4010 = vmul.f32 %v3974, 0.5
      %v4011 = vmul.f32 %v3975, 0.5
      %v4012 = vmul.f32 %v3976, 0.5
      %v4013 = vmul.f32 %v3977, 0.5
      %v4014 = vmul.f32 %v3978, 0.5
      %v4015 = vmul.f32 %v3979, 0.5
      %v4016 = vmul.f32 %v3980, 0.5
      %v4017 = vmul.f32 %v3981, 0.5
      %v4018 = vmul.f32 %v3982, 0.5
      %v4019 = vmul.f32 %v3983, 0.5
      %v4020 = vmul.f32 %v3984, 0.5
      %v4021 = vmul.f32 %v3985, 0.5
      %v4022 = vmul.f32 %v3986, 0.5
      %v4023 = vmul.f32 %v3987, 0.5
      %v4024 = vmul.f32 %v3988, 0.5
      %v4025 = vmul.f32 %v3989, 0.5
      %v4026 = vmul.f32 %v3990, 0.5
      %v4027 = vmul.f32 %v3991, 0.5
      %v4028 = vmul.f32 %v3992, 0.5
      %v4029 = vmul.f32 %v3993, 0.5
      %v4030 = vmul.f32 %v3994, 0.5
      %v4031 = vmul.f32 %v3995, 0.5
      %v4032 = vmul.f32 %v3996, 0.5
      %v4033 = vmul.f32 %v3997, 0.5
      %v4034 = vmul.f32 %v3998, 0.5
      %v4035 = vmul.f32 %v3999, 0.5
      %v4036 = vmul.f32 %v3626, %v4000
      %v4037 = vmul.f32 %v3659, %v4001
      %v4038 = vmul.f32 %v3692, %v4002
      %v4039 = vmul.f32 %v3725, %v4003
      %v4040 = vmul.f32 %v3628, %v4004
      %v4041 = vmul.f32 %v3661, %v4005
      %v4042 = vmul.f32 %v3694, %v4006
      %v4043 = vmul.f32 %v3727, %v4007
      %v4044 = vmul.f32 %v3631, %v4008
      %v4045 = vmul.f32 %v3664, %v4009
      %v4046 = vmul.f32 %v3697, %v4010
      %v4047 = vmul.f32 %v3730, %v4011
      %v4048 = vmul.f32 %v3633, %v4012
      %v4049 = vmul.f32 %v3666, %v4013
      %v4050 = vmul.f32 %v3699, %v4014
      %v4051 = vmul.f32 %v3732, %v4015
      %v4052 = vmul.f32 %v3636, %v4016
      %v4053 = vmul.f32 %v3669, %v4017
      %v4054 = vmul.f32 %v3702, %v4018
      %v4055 = vmul.f32 %v3735, %v4019
      %v4056 = vmul.f32 %v3638, %v4020
      %v4057 = vmul.f32 %v3671, %v4021
      %v4058 = vmul.f32 %v3704, %v4022
      %v4059 = vmul.f32 %v3737, %v4023
      %v4060 = vmul.f32 %v3641, %v4024
      %v4061 = vmul.f32 %v3674, %v4025
      %v4062 = vmul.f32 %v3707, %v4026
      %v4063 = vmul.f32 %v3740, %v4027
      %v4064 = vmul.f32 %v3643, %v4028
      %v4065 = vmul.f32 %v3676, %v4029
      %v4066 = vmul.f32 %v3709, %v4030
      %v4067 = vmul.f32 %v3742, %v4031
      %v4068 = vmul.f32 %v3646, %v4032
      %v4069 = vmul.f32 %v3679, %v4033
      %v4070 = vmul.f32 %v3712, %v4034
      %v4071 = vmul.f32 %v3745, %v4035
      %v4072 = vpack.c.bf16 %v4040, %v4036
      %v4073 = vpack.c.bf16 %v4041, %v4037
      %v4074 = vpack.c.bf16 %v4042, %v4038
      %v4075 = vpack.c.bf16 %v4043, %v4039
      %v4076 = vpack.c.bf16 %v4048, %v4044
      %v4077 = vpack.c.bf16 %v4049, %v4045
      %v4078 = vpack.c.bf16 %v4050, %v4046
      %v4079 = vpack.c.bf16 %v4051, %v4047
      %v4080 = vpack.c.bf16 %v4056, %v4052
      %v4081 = vpack.c.bf16 %v4057, %v4053
      %v4082 = vpack.c.bf16 %v4058, %v4054
      %v4083 = vpack.c.bf16 %v4059, %v4055
      %v4084 = vpack.c.bf16 %v4064, %v4060
      %v4085 = vpack.c.bf16 %v4065, %v4061
      %v4086 = vpack.c.bf16 %v4066, %v4062
      %v4087 = vpack.c.bf16 %v4067, %v4063
      %v4088 = vpack.c.bf16 %v4068, %v4068
      %v4089 = vpack.c.bf16 %v4069, %v4069
      %v4090 = vpack.c.bf16 %v4070, %v4070
      %v4091 = vpack.c.bf16 %v4071, %v4071
      %v4092 = vld [vmem:[%s696] sm:$0xf]
      %v4093 = vld [vmem:[%s696 + $0x4] sm:$0xf]
      %v4094 = vld [vmem:[%s696 + $0x8] sm:$0xf]
      %v4095 = vld [vmem:[%s696 + $0xc] sm:$0xf]
      %v4096 = vld [vmem:[%s696 + $0x10] sm:$0xf]
      %v4097 = vld [vmem:[%s696 + $0x14] sm:$0xf]
      %v4098 = vld [vmem:[%s696 + $0x18] sm:$0xf]
      %v4099 = vld [vmem:[%s696 + $0x1c] sm:$0xf]
      %v4100 = vld [vmem:[%s696 + $0x20] sm:$0xf]
      %v4101 = vld [vmem:[%s696 + $0x24] sm:$0xf]
      %v4102 = vld [vmem:[%s696 + $0x28] sm:$0xf]
      %v4103 = vld [vmem:[%s696 + $0x2c] sm:$0xf]
      %v4104 = vld [vmem:[%s696 + $0x30] sm:$0xf]
      %v4105 = vld [vmem:[%s696 + $0x34] sm:$0xf]
      %v4106 = vld [vmem:[%s696 + $0x38] sm:$0xf]
      %v4107 = vld [vmem:[%s696 + $0x3c] sm:$0xf]
      %v4108 = vld [vmem:[%s696 + $0x40] sm:$0xf]
      %v4109 = vld [vmem:[%s696 + $0x44] sm:$0xf]
      %v4110 = vld [vmem:[%s696 + $0x48] sm:$0xf]
      %v4111 = vld [vmem:[%s696 + $0x4c] sm:$0xf]
      %v4112 = vld [vmem:[%s696 + $0x50] sm:$0xf]
      %v4113 = vld [vmem:[%s696 + $0x54] sm:$0xf]
      %v4114 = vld [vmem:[%s696 + $0x58] sm:$0xf]
      %v4115 = vld [vmem:[%s696 + $0x5c] sm:$0xf]
      %v4116 = vld [vmem:[%s696 + $0x60] sm:$0xf]
      %v4117 = vld [vmem:[%s696 + $0x64] sm:$0xf]
      %v4118 = vld [vmem:[%s696 + $0x68] sm:$0xf]
      %v4119 = vld [vmem:[%s696 + $0x6c] sm:$0xf]
      %v4120 = vld [vmem:[%s696 + $0x70] sm:$0xf]
      %v4121 = vld [vmem:[%s696 + $0x74] sm:$0xf]
      %v4122 = vld [vmem:[%s696 + $0x78] sm:$0xf]
      %v4123 = vld [vmem:[%s696 + $0x7c] sm:$0xf]
      %v4124 = vld [vmem:[%s696 + $0x80] sm:$0xf]
      %v4125 = vld [vmem:[%s696 + $0x84] sm:$0xf]
      %v4126 = vld [vmem:[%s696 + $0x88] sm:$0xf]
      %v4127 = vld [vmem:[%s696 + $0x8c] sm:$0xf]
      %v4128 = vld [vmem:[%s696 + $0x90] sm:$0xf]
      %v4129 = vld [vmem:[%s696 + $0x94] sm:$0xf]
      %v4130 = vld [vmem:[%s696 + $0x98] sm:$0xf]
      %v4131 = vld [vmem:[%s696 + $0x9c] sm:$0xf]
      %v4132 = vld [vmem:[%s696 + $0xa0] sm:$0xf]
      %v4133 = vld [vmem:[%s696 + $0xa4] sm:$0xf]
      %v4134 = vld [vmem:[%s696 + $0xa8] sm:$0xf]
      %v4135 = vld [vmem:[%s696 + $0xac] sm:$0xf]
      %v4136 = vld [vmem:[%s696 + $0xb0] sm:$0xf]
      %v4137 = vld [vmem:[%s696 + $0xb4] sm:$0xf]
      %v4138 = vld [vmem:[%s696 + $0xb8] sm:$0xf]
      %v4139 = vld [vmem:[%s696 + $0xbc] sm:$0xf]
      %v4140 = vld [vmem:[%s696 + $0xc0] sm:$0xf]
      %v4141 = vld [vmem:[%s696 + $0xc4] sm:$0xf]
      %v4142 = vld [vmem:[%s696 + $0xc8] sm:$0xf]
      %v4143 = vld [vmem:[%s696 + $0xcc] sm:$0xf]
      %v4144 = vld [vmem:[%s696 + $0xd0] sm:$0xf]
      %v4145 = vld [vmem:[%s696 + $0xd4] sm:$0xf]
      %v4146 = vld [vmem:[%s696 + $0xd8] sm:$0xf]
      %v4147 = vld [vmem:[%s696 + $0xdc] sm:$0xf]
      %v4148 = vld [vmem:[%s696 + $0xe0] sm:$0xf]
      %v4149 = vld [vmem:[%s696 + $0xe4] sm:$0xf]
      %v4150 = vld [vmem:[%s696 + $0xe8] sm:$0xf]
      %v4151 = vld [vmem:[%s696 + $0xec] sm:$0xf]
      %v4152 = vld [vmem:[%s696 + $0xf0] sm:$0xf]
      %v4153 = vld [vmem:[%s696 + $0xf4] sm:$0xf]
      %v4154 = vld [vmem:[%s696 + $0xf8] sm:$0xf]
      %v4155 = vld [vmem:[%s696 + $0xfc] sm:$0xf]
      %v4220 = vunpack.c.l.b16 %v4092
      %v4221 = vunpack.c.l.b16 %v4093
      %v4222 = vunpack.c.l.b16 %v4094
      %v4223 = vunpack.c.l.b16 %v4095
      %v4224 = vunpack.c.l.b16 %v4096
      %v4225 = vunpack.c.l.b16 %v4097
      %v4226 = vunpack.c.l.b16 %v4098
      %v4227 = vunpack.c.l.b16 %v4099
      %v4228 = vunpack.c.l.b16 %v4100
      %v4229 = vunpack.c.l.b16 %v4101
      %v4230 = vunpack.c.l.b16 %v4102
      %v4231 = vunpack.c.l.b16 %v4103
      %v4232 = vunpack.c.l.b16 %v4104
      %v4233 = vunpack.c.l.b16 %v4105
      %v4234 = vunpack.c.l.b16 %v4106
      %v4235 = vunpack.c.l.b16 %v4107
      %v4236 = vunpack.c.l.b16 %v4108
      %v4237 = vunpack.c.l.b16 %v4109
      %v4238 = vunpack.c.l.b16 %v4110
      %v4239 = vunpack.c.l.b16 %v4111
      %v4240 = vunpack.c.l.b16 %v4112
      %v4241 = vunpack.c.l.b16 %v4113
      %v4242 = vunpack.c.l.b16 %v4114
      %v4243 = vunpack.c.l.b16 %v4115
      %v4244 = vunpack.c.l.b16 %v4116
      %v4245 = vunpack.c.l.b16 %v4117
      %v4246 = vunpack.c.l.b16 %v4118
      %v4247 = vunpack.c.l.b16 %v4119
      %v4248 = vunpack.c.l.b16 %v4120
      %v4249 = vunpack.c.l.b16 %v4121
      %v4250 = vunpack.c.l.b16 %v4122
      %v4251 = vunpack.c.l.b16 %v4123
      %v4252 = vunpack.c.l.b16 %v4124
      %v4253 = vunpack.c.l.b16 %v4125
      %v4254 = vunpack.c.l.b16 %v4126
      %v4255 = vunpack.c.l.b16 %v4127
      %v4256 = vunpack.c.l.b16 %v4128
      %v4257 = vunpack.c.l.b16 %v4129
      %v4258 = vunpack.c.l.b16 %v4130
      %v4259 = vunpack.c.l.b16 %v4131
      %v4260 = vunpack.c.l.b16 %v4132
      %v4261 = vunpack.c.l.b16 %v4133
      %v4262 = vunpack.c.l.b16 %v4134
      %v4263 = vunpack.c.l.b16 %v4135
      %v4264 = vunpack.c.l.b16 %v4136
      %v4265 = vunpack.c.l.b16 %v4137
      %v4266 = vunpack.c.l.b16 %v4138
      %v4267 = vunpack.c.l.b16 %v4139
      %v4268 = vunpack.c.l.b16 %v4140
      %v4269 = vunpack.c.l.b16 %v4141
      %v4270 = vunpack.c.l.b16 %v4142
      %v4271 = vunpack.c.l.b16 %v4143
      %v4272 = vunpack.c.l.b16 %v4144
      %v4273 = vunpack.c.l.b16 %v4145
      %v4274 = vunpack.c.l.b16 %v4146
      %v4275 = vunpack.c.l.b16 %v4147
      %v4276 = vunpack.c.l.b16 %v4148
      %v4277 = vunpack.c.l.b16 %v4149
      %v4278 = vunpack.c.l.b16 %v4150
      %v4279 = vunpack.c.l.b16 %v4151
      %v4280 = vunpack.c.l.b16 %v4152
      %v4281 = vunpack.c.l.b16 %v4153
      %v4282 = vunpack.c.l.b16 %v4154
      %v4283 = vunpack.c.l.b16 %v4155
      %v4284 = vpack.c.b16 %v4221, %v4220
      %v4285 = vpack.c.b16 %v4223, %v4222
      %v4286 = vpack.c.b16 %v4225, %v4224
      %v4287 = vpack.c.b16 %v4227, %v4226
      %v4288 = vpack.c.b16 %v4229, %v4228
      %v4289 = vpack.c.b16 %v4231, %v4230
      %v4290 = vpack.c.b16 %v4233, %v4232
      %v4291 = vpack.c.b16 %v4235, %v4234
      %v4292 = vpack.c.b16 %v4237, %v4236
      %v4293 = vpack.c.b16 %v4239, %v4238
      %v4294 = vpack.c.b16 %v4241, %v4240
      %v4295 = vpack.c.b16 %v4243, %v4242
      %v4296 = vpack.c.b16 %v4245, %v4244
      %v4297 = vpack.c.b16 %v4247, %v4246
      %v4298 = vpack.c.b16 %v4249, %v4248
      %v4299 = vpack.c.b16 %v4251, %v4250
      %v4300 = vpack.c.b16 %v4253, %v4252
      %v4301 = vpack.c.b16 %v4255, %v4254
      %v4302 = vpack.c.b16 %v4257, %v4256
      %v4303 = vpack.c.b16 %v4259, %v4258
      %v4304 = vpack.c.b16 %v4261, %v4260
      %v4305 = vpack.c.b16 %v4263, %v4262
      %v4306 = vpack.c.b16 %v4265, %v4264
      %v4307 = vpack.c.b16 %v4267, %v4266
      %v4308 = vpack.c.b16 %v4269, %v4268
      %v4309 = vpack.c.b16 %v4271, %v4270
      %v4310 = vpack.c.b16 %v4273, %v4272
      %v4311 = vpack.c.b16 %v4275, %v4274
      %v4312 = vpack.c.b16 %v4277, %v4276
      %v4313 = vpack.c.b16 %v4279, %v4278
      %v4314 = vpack.c.b16 %v4281, %v4280
      %v4315 = vpack.c.b16 %v4283, %v4282
      %4348 = vmatpush.bf16.msra.mxu0 %v4291
      %4349 = vmatpush.bf16.msra.mxu0 %v4290
      %4350 = vmatpush.bf16.msra.mxu0 %v4289
      %4351 = vmatpush.bf16.msra.mxu0 %v4288
      %4352 = vmatpush.bf16.msra.mxu0 %v4287
      %4353 = vmatpush.bf16.msra.mxu0 %v4286
      %4354 = vmatpush.bf16.msra.mxu0 %v4285
      %4355 = vmatpush.bf16.msra.mxu0 %v4284
      %4356 = vmatmul.bf16.gmra.mxu0 %v4072
      %v4357 = vpop.f32.mrf.mxu0
      %v4358 = vadd.f32 0.0, %v4357
      %v4359 = vpop.f32.mrf.mxu0
      %v4360 = vadd.f32 0.0, %v4359
      %4361 = vmatmul.bf16.gmra.mxu0 %v4076
      %v4362 = vpop.f32.mrf.mxu0
      %v4363 = vadd.f32 0.0, %v4362
      %v4364 = vpop.f32.mrf.mxu0
      %v4365 = vadd.f32 0.0, %v4364
      %4366 = vmatmul.bf16.gmra.mxu0 %v4080
      %v4367 = vpop.f32.mrf.mxu0
      %v4368 = vadd.f32 0.0, %v4367
      %v4369 = vpop.f32.mrf.mxu0
      %v4370 = vadd.f32 0.0, %v4369
      %4371 = vmatmul.bf16.gmra.mxu0 %v4084
      %v4372 = vpop.f32.mrf.mxu0
      %v4373 = vadd.f32 0.0, %v4372
      %v4374 = vpop.f32.mrf.mxu0
      %v4375 = vadd.f32 0.0, %v4374
      %4376 = vmatmul.bf16.gmra.mxu0 %v4088
      %v4377 = vpop.f32.mrf.mxu0
      %v4378 = vadd.f32 0.0, %v4377
      %v4379 = vpop.f32.mrf.mxu0
      %4380 = vdwg.mxu0
      %4381 = vmatpush.bf16.msra.mxu0 %v4299
      %4382 = vmatpush.bf16.msra.mxu0 %v4298
      %4383 = vmatpush.bf16.msra.mxu0 %v4297
      %4384 = vmatpush.bf16.msra.mxu0 %v4296
      %4385 = vmatpush.bf16.msra.mxu0 %v4295
      %4386 = vmatpush.bf16.msra.mxu0 %v4294
      %4387 = vmatpush.bf16.msra.mxu0 %v4293
      %4388 = vmatpush.bf16.msra.mxu0 %v4292
      %4389 = vmatmul.bf16.gmra.mxu0 %v4073
      %v4390 = vpop.f32.mrf.mxu0
      %v4391 = vadd.f32 %v4358, %v4390
      %v4392 = vpop.f32.mrf.mxu0
      %v4393 = vadd.f32 %v4360, %v4392
      %4394 = vmatmul.bf16.gmra.mxu0 %v4077
      %v4395 = vpop.f32.mrf.mxu0
      %v4396 = vadd.f32 %v4363, %v4395
      %v4397 = vpop.f32.mrf.mxu0
      %v4398 = vadd.f32 %v4365, %v4397
      %4399 = vmatmul.bf16.gmra.mxu0 %v4081
      %v4400 = vpop.f32.mrf.mxu0
      %v4401 = vadd.f32 %v4368, %v4400
      %v4402 = vpop.f32.mrf.mxu0
      %v4403 = vadd.f32 %v4370, %v4402
      %4404 = vmatmul.bf16.gmra.mxu0 %v4085
      %v4405 = vpop.f32.mrf.mxu0
      %v4406 = vadd.f32 %v4373, %v4405
      %v4407 = vpop.f32.mrf.mxu0
      %v4408 = vadd.f32 %v4375, %v4407
      %4409 = vmatmul.bf16.gmra.mxu0 %v4089
      %v4410 = vpop.f32.mrf.mxu0
      %v4411 = vadd.f32 %v4378, %v4410
      %v4412 = vpop.f32.mrf.mxu0
      %4413 = vdwg.mxu0
      %4414 = vmatpush.bf16.msra.mxu0 %v4307
      %4415 = vmatpush.bf16.msra.mxu0 %v4306
      %4416 = vmatpush.bf16.msra.mxu0 %v4305
      %4417 = vmatpush.bf16.msra.mxu0 %v4304
      %4418 = vmatpush.bf16.msra.mxu0 %v4303
      %4419 = vmatpush.bf16.msra.mxu0 %v4302
      %4420 = vmatpush.bf16.msra.mxu0 %v4301
      %4421 = vmatpush.bf16.msra.mxu0 %v4300
      %4422 = vmatmul.bf16.gmra.mxu0 %v4074
      %v4423 = vpop.f32.mrf.mxu0
      %v4424 = vadd.f32 %v4391, %v4423
      %v4425 = vpop.f32.mrf.mxu0
      %v4426 = vadd.f32 %v4393, %v4425
      %4427 = vmatmul.bf16.gmra.mxu0 %v4078
      %v4428 = vpop.f32.mrf.mxu0
      %v4429 = vadd.f32 %v4396, %v4428
      %v4430 = vpop.f32.mrf.mxu0
      %v4431 = vadd.f32 %v4398, %v4430
      %4432 = vmatmul.bf16.gmra.mxu0 %v4082
      %v4433 = vpop.f32.mrf.mxu0
      %v4434 = vadd.f32 %v4401, %v4433
      %v4435 = vpop.f32.mrf.mxu0
      %v4436 = vadd.f32 %v4403, %v4435
      %4437 = vmatmul.bf16.gmra.mxu0 %v4086
      %v4438 = vpop.f32.mrf.mxu0
      %v4439 = vadd.f32 %v4406, %v4438
      %v4440 = vpop.f32.mrf.mxu0
      %v4441 = vadd.f32 %v4408, %v4440
      %4442 = vmatmul.bf16.gmra.mxu0 %v4090
      %v4443 = vpop.f32.mrf.mxu0
      %v4444 = vadd.f32 %v4411, %v4443
      %v4445 = vpop.f32.mrf.mxu0
      %4446 = vdwg.mxu0
      %4447 = vmatpush.bf16.msra.mxu0 %v4315
      %4448 = vmatpush.bf16.msra.mxu0 %v4314
      %4449 = vmatpush.bf16.msra.mxu0 %v4313
      %4450 = vmatpush.bf16.msra.mxu0 %v4312
      %4451 = vmatpush.bf16.msra.mxu0 %v4311
      %4452 = vmatpush.bf16.msra.mxu0 %v4310
      %4453 = vmatpush.bf16.msra.mxu0 %v4309
      %4454 = vmatpush.bf16.msra.mxu0 %v4308
      %4455 = vmatmul.bf16.gmra.mxu0 %v4075
      %v4456 = vpop.f32.mrf.mxu0
      %v4457 = vadd.f32 %v4424, %v4456
      %v4458 = vpop.f32.mrf.mxu0
      %v4459 = vadd.f32 %v4426, %v4458
      %4460 = vmatmul.bf16.gmra.mxu0 %v4079
      %v4461 = vpop.f32.mrf.mxu0
      %v4462 = vadd.f32 %v4429, %v4461
      %v4463 = vpop.f32.mrf.mxu0
      %v4464 = vadd.f32 %v4431, %v4463
      %4465 = vmatmul.bf16.gmra.mxu0 %v4083
      %v4466 = vpop.f32.mrf.mxu0
      %v4467 = vadd.f32 %v4434, %v4466
      %v4468 = vpop.f32.mrf.mxu0
      %v4469 = vadd.f32 %v4436, %v4468
      %4470 = vmatmul.bf16.gmra.mxu0 %v4087
      %v4471 = vpop.f32.mrf.mxu0
      %v4472 = vadd.f32 %v4439, %v4471
      %v4473 = vpop.f32.mrf.mxu0
      %v4474 = vadd.f32 %v4441, %v4473
      %4475 = vmatmul.bf16.gmra.mxu0 %v4091
      %v4476 = vpop.f32.mrf.mxu0
      %v4477 = vadd.f32 %v4444, %v4476
      %v4478 = vpop.f32.mrf.mxu0
      %4479 = vdwg.mxu0
      %v4480 = vadd.f32 %v3194, %v4457
      %v4481 = vadd.f32 %v3195, %v4459
      %v4482 = vadd.f32 %v3196, %v4462
      %v4483 = vadd.f32 %v3197, %v4464
      %v4484 = vadd.f32 %v3198, %v4467
      %v4485 = vadd.f32 %v3199, %v4469
      %v4486 = vadd.f32 %v3200, %v4472
      %v4487 = vadd.f32 %v3201, %v4474
      %v4488 = vadd.f32 %v3202, %v4477
      %v4489 = vld [vmem:[%s699] sm:$0x1]
      %v4491 = vperm.slane %v4489, 0
      %v4493 = vadd.f32 %v4480, %v4491
      %v4494 = vadd.f32 %v4481, %v4491
      %v4495 = vadd.f32 %v4482, %v4491
      %v4496 = vadd.f32 %v4483, %v4491
      %v4497 = vadd.f32 %v4484, %v4491
      %v4498 = vadd.f32 %v4485, %v4491
      %v4499 = vadd.f32 %v4486, %v4491
      %v4500 = vadd.f32 %v4487, %v4491
      %v4501 = vadd.f32 %v4488, %v4491
      %p4502 = scmp.lt.s32.totalorder %s31, 1
      // Predicated region
      $region85: #{latent_diffusion_forward.8} parent=79 // pred_check
        %p4503 = pneg %p4502
      $region86: #{latent_diffusion_forward.8} parent=79 // pred_check_branch
        %4505 = sbr.rel (%p4503) target = $region88
      $region87: #{latent_diffusion_forward.8} parent=79 // pred_region
        %4506 = vst [vmem:[%s704] sm:$0xff] %v4493
        %4507 = vst [vmem:[%s704 + $0x8] sm:$0xff] %v4494
        %4508 = vst [vmem:[%s704 + $0x10] sm:$0xff] %v4495
        %4509 = vst [vmem:[%s704 + $0x18] sm:$0xff] %v4496
        %4510 = vst [vmem:[%s704 + $0x20] sm:$0xff] %v4497
        %4511 = vst [vmem:[%s704 + $0x28] sm:$0xff] %v4498
        %4512 = vst [vmem:[%s704 + $0x30] sm:$0xff] %v4499
        %4513 = vst [vmem:[%s704 + $0x38] sm:$0xff] %v4500
        %4514 = vst [vmem:[%s704 + $0x40] sm:$0xff] %v4501
      $region88: #{latent_diffusion_forward.8} parent=79 // pred_fallthru
        _
      %p4515 = scmp.eq.s32.totalorder %s31, 1
      // Predicated region
      $region89: #{latent_diffusion_forward.8} parent=79 // pred_check
        %p4516 = pneg %p4515
      $region90: #{latent_diffusion_forward.8} parent=79 // pred_check_branch
        %4518 = sbr.rel (%p4516) target = $region92
      $region91: #{latent_diffusion_forward.8} parent=79 // pred_region
        %v4519 = vld [vmem:[%s13] sm:$0x1]
        %v4520 = vld [vmem:[%s14] sm:$0x1]
        %4521 = vadd.xlane.f32.xlu0 %v4493
        %v4522 = vpop.xlane.xlu0 %4521
        %4523 = vadd.xlane.f32.xlu0 %v4494
        %v4524 = vpop.xlane.xlu0 %4523
        %4525 = vadd.xlane.f32.xlu0 %v4495
        %v4526 = vpop.xlane.xlu0 %4525
        %4527 = vadd.xlane.f32.xlu0 %v4496
        %v4528 = vpop.xlane.xlu0 %4527
        %4529 = vadd.xlane.f32.xlu0 %v4497
        %v4530 = vpop.xlane.xlu0 %4529
        %4531 = vadd.xlane.f32.xlu0 %v4498
        %v4532 = vpop.xlane.xlu0 %4531
        %4533 = vadd.xlane.f32.xlu0 %v4499
        %v4534 = vpop.xlane.xlu0 %4533
        %4535 = vadd.xlane.f32.xlu0 %v4500
        %v4536 = vpop.xlane.xlu0 %4535
        %4537 = vadd.xlane.f32.xlu0 %v4501
        %v4538 = vpop.xlane.xlu0 %4537
        %v4539 = vmul.f32 %v4522, %v763
        %v4540 = vmul.f32 %v4524, %v763
        %v4541 = vmul.f32 %v4526, %v763
        %v4542 = vmul.f32 %v4528, %v763
        %v4543 = vmul.f32 %v4530, %v763
        %v4544 = vmul.f32 %v4532, %v763
        %v4545 = vmul.f32 %v4534, %v763
        %v4546 = vmul.f32 %v4536, %v763
        %v4547 = vmul.f32 %v4538, %v763
        %v4548 = vsub.f32 %v4493, %v4539
        %v4549 = vsub.f32 %v4494, %v4540
        %v4550 = vsub.f32 %v4495, %v4541
        %v4551 = vsub.f32 %v4496, %v4542
        %v4552 = vsub.f32 %v4497, %v4543
        %v4553 = vsub.f32 %v4498, %v4544
        %v4554 = vsub.f32 %v4499, %v4545
        %v4555 = vsub.f32 %v4500, %v4546
        %v4556 = vsub.f32 %v4501, %v4547
        %v4557 = vmul.f32 %v4548, %v4548
        %v4558 = vmul.f32 %v4549, %v4549
        %v4559 = vmul.f32 %v4550, %v4550
        %v4560 = vmul.f32 %v4551, %v4551
        %v4561 = vmul.f32 %v4552, %v4552
        %v4562 = vmul.f32 %v4553, %v4553
        %v4563 = vmul.f32 %v4554, %v4554
        %v4564 = vmul.f32 %v4555, %v4555
        %v4565 = vmul.f32 %v4556, %v4556
        %4566 = vadd.xlane.f32.xlu0 %v4557
        %v4567 = vpop.xlane.xlu0 %4566
        %4568 = vadd.xlane.f32.xlu0 %v4558
        %v4569 = vpop.xlane.xlu0 %4568
        %4570 = vadd.xlane.f32.xlu0 %v4559
        %v4571 = vpop.xlane.xlu0 %4570
        %4572 = vadd.xlane.f32.xlu0 %v4560
        %v4573 = vpop.xlane.xlu0 %4572
        %4574 = vadd.xlane.f32.xlu0 %v4561
        %v4575 = vpop.xlane.xlu0 %4574
        %4576 = vadd.xlane.f32.xlu0 %v4562
        %v4577 = vpop.xlane.xlu0 %4576
        %4578 = vadd.xlane.f32.xlu0 %v4563
        %v4579 = vpop.xlane.xlu0 %4578
        %4580 = vadd.xlane.f32.xlu0 %v4564
        %v4581 = vpop.xlane.xlu0 %4580
        %4582 = vadd.xlane.f32.xlu0 %v4565
        %v4583 = vpop.xlane.xlu0 %4582
        %v4584 = vmul.f32 %v4567, %v763
        %v4585 = vmul.f32 %v4569, %v763
        %v4586 = vmul.f32 %v4571, %v763
        %v4587 = vmul.f32 %v4573, %v763
        %v4588 = vmul.f32 %v4575, %v763
        %v4589 = vmul.f32 %v4577, %v763
        %v4590 = vmul.f32 %v4579, %v763
        %v4591 = vmul.f32 %v4581, %v763
        %v4592 = vmul.f32 %v4583, %v763
        %v4593 = vadd.f32 %v4584, 1e-08
        %v4594 = vadd.f32 %v4585, 1e-08
        %v4595 = vadd.f32 %v4586, 1e-08
        %v4596 = vadd.f32 %v4587, 1e-08
        %v4597 = vadd.f32 %v4588, 1e-08
        %v4598 = vadd.f32 %v4589, 1e-08
        %v4599 = vadd.f32 %v4590, 1e-08
        %v4600 = vadd.f32 %v4591, 1e-08
        %v4601 = vadd.f32 %v4592, 1e-08
        %v4602 = vrsqrt.pop %v4593
        %v4603 = vmul.f32 %v4602, %v4593
        %v4604 = vmul.f32 %v4603, %v4602
        %v4605 = vmul.f32 0.5, %v4604
        %v4606 = vsub.f32 1.5, %v4605
        %v4607 = vmul.f32 %v4602, %v4606
        %vm4608 = vweird.f32 %v4593
        %vm4609 = vweird.f32 %v4602
        %vm4610 = vmor %vm4608, %vm4609
        %v4611 = vsel %vm4610, %v4602, %v4607
        %v4612 = vrsqrt.pop %v4594
        %v4613 = vmul.f32 %v4612, %v4594
        %v4614 = vmul.f32 %v4613, %v4612
        %v4615 = vmul.f32 0.5, %v4614
        %v4616 = vsub.f32 1.5, %v4615
        %v4617 = vmul.f32 %v4612, %v4616
        %vm4618 = vweird.f32 %v4594
        %vm4619 = vweird.f32 %v4612
        %vm4620 = vmor %vm4618, %vm4619
        %v4621 = vsel %vm4620, %v4612, %v4617
        %v4622 = vrsqrt.pop %v4595
        %v4623 = vmul.f32 %v4622, %v4595
        %v4624 = vmul.f32 %v4623, %v4622
        %v4625 = vmul.f32 0.5, %v4624
        %v4626 = vsub.f32 1.5, %v4625
        %v4627 = vmul.f32 %v4622, %v4626
        %vm4628 = vweird.f32 %v4595
        %vm4629 = vweird.f32 %v4622
        %vm4630 = vmor %vm4628, %vm4629
        %v4631 = vsel %vm4630, %v4622, %v4627
        %v4632 = vrsqrt.pop %v4596
        %v4633 = vmul.f32 %v4632, %v4596
        %v4634 = vmul.f32 %v4633, %v4632
        %v4635 = vmul.f32 0.5, %v4634
        %v4636 = vsub.f32 1.5, %v4635
        %v4637 = vmul.f32 %v4632, %v4636
        %vm4638 = vweird.f32 %v4596
        %vm4639 = vweird.f32 %v4632
        %vm4640 = vmor %vm4638, %vm4639
        %v4641 = vsel %vm4640, %v4632, %v4637
        %v4642 = vrsqrt.pop %v4597
        %v4643 = vmul.f32 %v4642, %v4597
        %v4644 = vmul.f32 %v4643, %v4642
        %v4645 = vmul.f32 0.5, %v4644
        %v4646 = vsub.f32 1.5, %v4645
        %v4647 = vmul.f32 %v4642, %v4646
        %vm4648 = vweird.f32 %v4597
        %vm4649 = vweird.f32 %v4642
        %vm4650 = vmor %vm4648, %vm4649
        %v4651 = vsel %vm4650, %v4642, %v4647
        %v4652 = vrsqrt.pop %v4598
        %v4653 = vmul.f32 %v4652, %v4598
        %v4654 = vmul.f32 %v4653, %v4652
        %v4655 = vmul.f32 0.5, %v4654
        %v4656 = vsub.f32 1.5, %v4655
        %v4657 = vmul.f32 %v4652, %v4656
        %vm4658 = vweird.f32 %v4598
        %vm4659 = vweird.f32 %v4652
        %vm4660 = vmor %vm4658, %vm4659
        %v4661 = vsel %vm4660, %v4652, %v4657
        %v4662 = vrsqrt.pop %v4599
        %v4663 = vmul.f32 %v4662, %v4599
        %v4664 = vmul.f32 %v4663, %v4662
        %v4665 = vmul.f32 0.5, %v4664
        %v4666 = vsub.f32 1.5, %v4665
        %v4667 = vmul.f32 %v4662, %v4666
        %vm4668 = vweird.f32 %v4599
        %vm4669 = vweird.f32 %v4662
        %vm4670 = vmor %vm4668, %vm4669
        %v4671 = vsel %vm4670, %v4662, %v4667
        %v4672 = vrsqrt.pop %v4600
        %v4673 = vmul.f32 %v4672, %v4600
        %v4674 = vmul.f32 %v4673, %v4672
        %v4675 = vmul.f32 0.5, %v4674
        %v4676 = vsub.f32 1.5, %v4675
        %v4677 = vmul.f32 %v4672, %v4676
        %vm4678 = vweird.f32 %v4600
        %vm4679 = vweird.f32 %v4672
        %vm4680 = vmor %vm4678, %vm4679
        %v4681 = vsel %vm4680, %v4672, %v4677
        %v4682 = vrsqrt.pop %v4601
        %v4683 = vmul.f32 %v4682, %v4601
        %v4684 = vmul.f32 %v4683, %v4682
        %v4685 = vmul.f32 0.5, %v4684
        %v4686 = vsub.f32 1.5, %v4685
        %v4687 = vmul.f32 %v4682, %v4686
        %vm4688 = vweird.f32 %v4601
        %vm4689 = vweird.f32 %v4682
        %vm4690 = vmor %vm4688, %vm4689
        %v4691 = vsel %vm4690, %v4682, %v4687
        %v4692 = vmul.f32 %v4548, %v4611
        %v4693 = vmul.f32 %v4549, %v4621
        %v4694 = vmul.f32 %v4550, %v4631
        %v4695 = vmul.f32 %v4551, %v4641
        %v4696 = vmul.f32 %v4552, %v4651
        %v4697 = vmul.f32 %v4553, %v4661
        %v4698 = vmul.f32 %v4554, %v4671
        %v4699 = vmul.f32 %v4555, %v4681
        %v4700 = vmul.f32 %v4556, %v4691
        %v4702 = vperm.slane %v4519, 0
        %v4704 = vmul.f32 %v4692, %v4702
        %v4705 = vmul.f32 %v4693, %v4702
        %v4706 = vmul.f32 %v4694, %v4702
        %v4707 = vmul.f32 %v4695, %v4702
        %v4708 = vmul.f32 %v4696, %v4702
        %v4709 = vmul.f32 %v4697, %v4702
        %v4710 = vmul.f32 %v4698, %v4702
        %v4711 = vmul.f32 %v4699, %v4702
        %v4712 = vmul.f32 %v4700, %v4702
        %v4714 = vperm.slane %v4520, 0
        %v4716 = vadd.f32 %v4704, %v4714
        %v4717 = vadd.f32 %v4705, %v4714
        %v4718 = vadd.f32 %v4706, %v4714
        %v4719 = vadd.f32 %v4707, %v4714
        %v4720 = vadd.f32 %v4708, %v4714
        %v4721 = vadd.f32 %v4709, %v4714
        %v4722 = vadd.f32 %v4710, %v4714
        %v4723 = vadd.f32 %v4711, %v4714
        %v4724 = vadd.f32 %v4712, %v4714
        %4725 = vst [vmem:[%s704] sm:$0xff] %v4716
        %4726 = vst [vmem:[%s704 + $0x8] sm:$0xff] %v4717
        %4727 = vst [vmem:[%s704 + $0x10] sm:$0xff] %v4718
        %4728 = vst [vmem:[%s704 + $0x18] sm:$0xff] %v4719
        %4729 = vst [vmem:[%s704 + $0x20] sm:$0xff] %v4720
        %4730 = vst [vmem:[%s704 + $0x28] sm:$0xff] %v4721
        %4731 = vst [vmem:[%s704 + $0x30] sm:$0xff] %v4722
        %4732 = vst [vmem:[%s704 + $0x38] sm:$0xff] %v4723
        %4733 = vst [vmem:[%s704 + $0x40] sm:$0xff] %v4724
      $region92: #{latent_diffusion_forward.8} parent=79 // pred_fallthru
        _
      %p4734 = scmp.lt.s32.totalorder %s30, 1
      %s4735 = scalar_select %p4734, %s30, 1
      %s4736 = smul.addr %s4735, 9
      %s4737 = smul.addr %s4736, 8
      %s4738 = scalar_lea.vmem %s15, %s4737
      // Predicated region
      $region93: #{latent_diffusion_forward.8} parent=79 // pred_check
        %p4739 = pneg %p436
      $region94: #{latent_diffusion_forward.8} parent=79 // pred_check_branch
        %4741 = sbr.rel (%p4739) target = $region96
      $region95: #{latent_diffusion_forward.8} parent=79 // pred_region
        _
      $region96: #{latent_diffusion_forward.8} parent=79 // pred_fallthru
        _
    $region80: #{latent_diffusion_forward.8} parent=5 // pred_fallthru
      _
    %p4742 = scmp.le.s32.totalorder 2, %s21
    // Predicated region
    $region97: #{latent_diffusion_forward.8} parent=5 // pred_check
      %p4743 = pneg %p4742
    $region98: #{latent_diffusion_forward.8} parent=5 // pred_check_branch
      %4745 = sbr.rel (%p4743) target = $region100
    $region99: #{latent_diffusion_forward.8} parent=5 // pred_region
      %s4746 = ssub.s32 %s21, 2
      // Predicated region
      $region101: #{latent_diffusion_forward.8} parent=99 // pred_check
        %p4747 = pneg %p442
      $region102: #{latent_diffusion_forward.8} parent=99 // pred_check_branch
        %4749 = sbr.rel (%p4747) target = $region104
      $region103: #{latent_diffusion_forward.8} parent=99 // pred_region
        %p4750 = scmp.lt.s32.totalorder %s32, 1
        %s4751 = scalar_select %p4750, %s32, 1
        %s4752 = smul.addr %s4751, 9
        %s4753 = smul.addr %s4752, 8
        %s4754 = scalar_lea.vmem %s15, %s4753
      $region104: #{latent_diffusion_forward.8} parent=99 // pred_fallthru
        _
    $region100: #{latent_diffusion_forward.8} parent=5 // pred_fallthru
      _
  $region6: #{latent_diffusion_forward.8} parent=0 // loop_footer
    %s25 = sadd.s32 1, %s21
  $region7: #{latent_diffusion_forward.8} parent=0 // loop_footer_branch
    %20 = sbr.rel target = $region3
  $region8: #{latent_diffusion_forward.8} parent=0 // loop_exit
    _

// kernel: latent_diffusion_forward.10
$region0: #{latent_diffusion_forward.10}
  #allocation0 [shape = 'u32[]', space=smem, size = 0x4, offset = 0x4, fixed_abs, tag = 'smem constant byte address 0x4 - core index']
  #allocation1 [shape = 'u32[72,128]{1,0:T(1,128)}', space=vmem, size = 0x9000, scoped, tag = 'internal scratch']
  %s0 = inlined_call_operand.vmem [shape: f32[16,128], index: 0, kind: input, shape index: {}]
  %s1 = inlined_call_operand.vmem [shape: f32[16,128], index: 1, kind: input, shape index: {}]
  %s2 = inlined_call_operand.hbm [shape: f32[1,1], index: 2, kind: output, shape index: {}]
  %s3 = sld [smem:[#allocation0]]
  $region18: #{latent_diffusion_forward.10} parent=0
    _
  %s5 = ssub.s32 1, %s3
  %s6 = scalar_select 0, %s5, %s3
  $region1: #{latent_diffusion_forward.10} parent=0
    #allocation2 [shape = 'u8[512]{0}', space=smem, size = 0x200, scoped, tag = 'output window, operand 0, single buffered']
    #allocation3 [shape = 's32[1]{0}', space=sflag, size = 0x4, scoped, tag = 'scoped memory for latent_diffusion_forward.10']
    %7 = vsyncpa [#allocation3], 0
    // Predicated region
    $region2: #{latent_diffusion_forward.10} parent=1 // pred_check
      _
    $region3: #{latent_diffusion_forward.10} parent=1 // pred_check_branch
      %9 = sbr.rel (0) target = $region5
    $region4: #{latent_diffusion_forward.10} parent=1 // pred_region
      _
    $region5: #{latent_diffusion_forward.10} parent=1 // pred_fallthru
      _
    // Predicated region
    $region6: #{latent_diffusion_forward.10} parent=1 // pred_check
      _
    $region7: #{latent_diffusion_forward.10} parent=1 // pred_check_branch
      %11 = sbr.rel (0) target = $region9
    $region8: #{latent_diffusion_forward.10} parent=1 // pred_region
      _
    $region9: #{latent_diffusion_forward.10} parent=1 // pred_fallthru
      _
    %v12 = vld [vmem:[%s0] sm:$0xff]
    %v13 = vld [vmem:[%s0 + $0x8] sm:$0xff]
    %v14 = vld [vmem:[%s1] sm:$0xff]
    %v15 = vld [vmem:[%s1 + $0x8] sm:$0xff]
    %v16 = vsub.f32 %v12, %v14
    %v17 = vsub.f32 %v13, %v15
    %v18 = vmul.f32 %v16, %v16
    %v19 = vmul.f32 %v17, %v17
    %v20 = vadd.f32 %v18, %v19
    %21 = vadd.xlane.f32.xlu0 %v20
    %v22 = vpop.xlane.xlu0 %21
    %v23 = vrot.slane %v22, 4
    %v24 = vadd.f32 %v22, %v23
    %v25 = vrot.slane %v24, 2
    %v26 = vadd.f32 %v24, %v25
    %v27 = vrot.slane %v26, 1
    %v28 = vadd.f32 %v26, %v27
    %s29 = vtos %v28
    %v30 = vrcp.pop 1536.0
    %v31 = vmul.f32 1536.0, %v30
    %v32 = vsub.f32 1.0, %v31
    %v33 = vmul.f32 %v30, %v32
    %v34 = vadd.f32 %v30, %v33
    %vm35 = vweird.f32 %v30
    %v36 = vsel %vm35, %v30, %v34
    %s37 = vtos %v36
    %s38 = smul.f32 %s29, %s37
    %s39 = scalar_lea.smem [#allocation2], 0
    %40 = sst [smem:[%s39]] %s38
    // Predicated region
    $region10: #{latent_diffusion_forward.10} parent=1 // pred_check
      _
    $region11: #{latent_diffusion_forward.10} parent=1 // pred_check_branch
      %42 = sbr.rel (0) target = $region13
    $region12: #{latent_diffusion_forward.10} parent=1 // pred_region
      %44 = vsyncadd [#allocation3], 0
      %s46 = sshll.u32 %s2, 4
      %s47 = int_to_ptr.hbm [resolvable:$true] %s46
      %49 = dma.smem_to_hbm [#allocation2], 16, %s47, [#allocation3]
    $region13: #{latent_diffusion_forward.10} parent=1 // pred_fallthru
      _
    // Predicated region
    $region14: #{latent_diffusion_forward.10} parent=1 // pred_check
      _
    $region15: #{latent_diffusion_forward.10} parent=1 // pred_check_branch
      %51 = sbr.rel (0) target = $region17
    $region16: #{latent_diffusion_forward.10} parent=1 // pred_region
      %53 = dma.done [#allocation3], 16
    $region17: #{latent_diffusion_forward.10} parent=1 // pred_fallthru
      _
    %54 = sfence
    %55 = vsyncpa [#allocation3], 1

// kernel: latent_diffusion_forward.9
$region0: #{latent_diffusion_forward.9}
  #allocation0 [shape = 'u32[]', space=smem, size = 0x4, offset = 0x4, fixed_abs, tag = 'smem constant byte address 0x4 - core index']
  #allocation1 [shape = 'u32[72,128]{1,0:T(1,128)}', space=vmem, size = 0x9000, scoped, tag = 'internal scratch']
  %s0 = inlined_call_operand.vmem [shape: f32[2,10,10,128], index: 0, kind: input, shape index: {}]
  %s1 = inlined_call_operand.vmem [shape: bf16[9,128,12], index: 1, kind: input, shape index: {}]
  %s2 = inlined_call_operand.vmem [shape: f32[2,8,8,12], index: 2, kind: output, shape index: {}]
  %s3 = sld [smem:[#allocation0]]
  $region41: #{latent_diffusion_forward.9} parent=0
    _
  %s5 = ssub.s32 1, %s3
  %s6 = scalar_select 0, %s5, %s3
  loop: start=0, step=1, limit=4
  $region2: #{latent_diffusion_forward.9} parent=0 // loop_pre_header
    _
  $region3: #{latent_diffusion_forward.9} parent=0 // loop_header
    %s8 = sphi 0, %s12
    %p9 = scmp.ge.s32.totalorder %s8, 4
    %s18 = sphi 0, %s20
    %s21 = sphi 0, %s18
    %s22 = sphi 0, %s21
    %s38 = sphi 0, %s22
    %s42 = sphi 0, %s42
    %s44 = sphi 0, %s42
    %s45 = sphi 0, %s44
    %s59 = sphi 0, %s45
    %s65 = sphi 0, %s67
    %s68 = sphi 0, %s65
    %s69 = sphi 0, %s68
    %s85 = sphi 0, %s69
  $region4: #{latent_diffusion_forward.9} parent=0 // loop_header_branch
    %11 = sbr.rel (%p9) target = $region8
  $region5: #{latent_diffusion_forward.9} parent=0 // loop_body
    %s13 = ssub.s32 %s8, 1
    %s14 = ssub.s32 %s8, 2
    %s15 = sadd.s32 %s8, 1
    %s16 = ssub.s32 %s8, %s15
    %p17 = scmp.eq.s32.totalorder %s16, 0
    %s19 = sadd.s32 %s18, 1
    %s20 = scalar_select %p17, %s18, %s19
    %p23 = pneg %p17
    %p24 = scmp.eq.s32.totalorder %s8, 1
    %p25 = por %p23, %p24
    %p26 = scmp.ne.s32.totalorder %s18, %s21
    %p27 = scmp.eq.s32.totalorder %s8, 0
    %p28 = por %p26, %p27
    %p29 = scmp.ne.s32.totalorder %s18, %s21
    %p30 = scmp.eq.s32.totalorder %s13, 1
    %p31 = por %p29, %p30
    %p32 = scmp.ne.s32.totalorder %s21, %s22
    %p33 = scmp.eq.s32.totalorder %s13, 0
    %p34 = por %p32, %p33
    %p35 = scmp.ne.s32.totalorder %s21, %s22
    %p36 = scmp.eq.s32.totalorder %s14, 1
    %p37 = por %p35, %p36
    %p39 = scmp.ne.s32.totalorder %s22, %s38
    %p40 = scmp.eq.s32.totalorder %s14, 0
    %p41 = por %p39, %p40
    %s43 = sadd.s32 %s42, 1
    %p46 = scmp.eq.s32.totalorder %s8, 1
    %p47 = scmp.ne.s32.totalorder %s42, %s44
    %p48 = scmp.eq.s32.totalorder %s8, 0
    %p49 = por %p47, %p48
    %p50 = scmp.ne.s32.totalorder %s42, %s44
    %p51 = scmp.eq.s32.totalorder %s13, 1
    %p52 = por %p50, %p51
    %p53 = scmp.ne.s32.totalorder %s44, %s45
    %p54 = scmp.eq.s32.totalorder %s13, 0
    %p55 = por %p53, %p54
    %p56 = scmp.ne.s32.totalorder %s44, %s45
    %p57 = scmp.eq.s32.totalorder %s14, 1
    %p58 = por %p56, %p57
    %p60 = scmp.ne.s32.totalorder %s45, %s59
    %p61 = scmp.eq.s32.totalorder %s14, 0
    %p62 = por %p60, %p61
    %s63 = ssub.s32 %s8, %s15
    %p64 = scmp.eq.s32.totalorder %s63, 0
    %s66 = sadd.s32 %s65, 1
    %s67 = scalar_select %p64, %s65, %s66
    %p70 = pneg %p64
    %p71 = scmp.eq.s32.totalorder %s8, 1
    %p72 = por %p70, %p71
    %p73 = scmp.ne.s32.totalorder %s65, %s68
    %p74 = scmp.eq.s32.totalorder %s8, 0
    %p75 = por %p73, %p74
    %p76 = scmp.ne.s32.totalorder %s65, %s68
    %p77 = scmp.eq.s32.totalorder %s13, 1
    %p78 = por %p76, %p77
    %p79 = scmp.ne.s32.totalorder %s68, %s69
    %p80 = scmp.eq.s32.totalorder %s13, 0
    %p81 = por %p79, %p80
    %p82 = scmp.ne.s32.totalorder %s68, %s69
    %p83 = scmp.eq.s32.totalorder %s14, 1
    %p84 = por %p82, %p83
    %p86 = scmp.ne.s32.totalorder %s69, %s85
    %p87 = scmp.eq.s32.totalorder %s14, 0
    %p88 = por %p86, %p87
    %p89 = scmp.le.s32.totalorder 1, %s8
    %p90 = scmp.lt.s32.totalorder %s8, 3
    %p91 = pnand %p89, %p90
    %p92 = pneg %p91
    // Predicated region
    $region9: #{latent_diffusion_forward.9} parent=5 // pred_check
      _
    $region10: #{latent_diffusion_forward.9} parent=5 // pred_check_branch
      %94 = sbr.rel (%p91) target = $region12
    $region11: #{latent_diffusion_forward.9} parent=5 // pred_region
      %s95 = ssub.s32 %s8, 1
      // Predicated region
      $region13: #{latent_diffusion_forward.9} parent=11 // pred_check
        %p96 = pneg %p55
      $region14: #{latent_diffusion_forward.9} parent=11 // pred_check_branch
        %98 = sbr.rel (%p96) target = $region16
      $region15: #{latent_diffusion_forward.9} parent=11 // pred_region
        _
      $region16: #{latent_diffusion_forward.9} parent=11 // pred_fallthru
        _
    $region12: #{latent_diffusion_forward.9} parent=5 // pred_fallthru
      _
    %p99 = scmp.lt.s32.totalorder %s8, 2
    // Predicated region
    $region17: #{latent_diffusion_forward.9} parent=5 // pred_check
      %p100 = pneg %p99
    $region18: #{latent_diffusion_forward.9} parent=5 // pred_check_branch
      %102 = sbr.rel (%p100) target = $region20
    $region19: #{latent_diffusion_forward.9} parent=5 // pred_region
      // Predicated region
      $region21: #{latent_diffusion_forward.9} parent=19 // pred_check
        %p103 = pneg %p28
      $region22: #{latent_diffusion_forward.9} parent=19 // pred_check_branch
        %105 = sbr.rel (%p103) target = $region24
      $region23: #{latent_diffusion_forward.9} parent=19 // pred_region
        %p106 = scmp.lt.s32.totalorder %s8, 1
        %s107 = scalar_select %p106, %s8, 1
        %s108 = smul.addr %s107, 20
        %s109 = smul.addr %s108, 8
        %s110 = scalar_lea.vmem %s0, %s109
      $region24: #{latent_diffusion_forward.9} parent=19 // pred_fallthru
        _
    $region20: #{latent_diffusion_forward.9} parent=5 // pred_fallthru
      _
    %p111 = scmp.le.s32.totalorder 1, %s8
    %p112 = scmp.lt.s32.totalorder %s8, 3
    %p113 = pnand %p111, %p112
    %p114 = pneg %p113
    // Predicated region
    $region25: #{latent_diffusion_forward.9} parent=5 // pred_check
      _
    $region26: #{latent_diffusion_forward.9} parent=5 // pred_check_branch
      %116 = sbr.rel (%p113) target = $region28
    $region27: #{latent_diffusion_forward.9} parent=5 // pred_region
      %s117 = ssub.s32 %s8, 1
      %p118 = scmp.lt.s32.totalorder %s13, 1
      %s119 = scalar_select %p118, %s13, 1
      %s120 = smul.addr %s119, 20
      %s121 = smul.addr %s120, 8
      %s122 = scalar_lea.vmem %s0, %s121
      %p123 = pneg %p34
      %p124 = pneg %p31
      %p125 = pneg %p55
      %p126 = pneg %p52
      %p127 = pneg %p81
      %p128 = pneg %p78
      %p129 = scmp.lt.s32.totalorder %s13, 1
      %s130 = scalar_select %p129, %s13, 1
      %s131 = smul.addr %s130, 8
      %s132 = smul.addr %s131, 8
      %s133 = scalar_lea.vmem %s2, %s132
      %p134 = scmp.lt.s32.totalorder %s13, 1
      %s135 = scalar_select %p134, %s13, 1
      %s136 = smul.addr %s135, 20
      %s137 = smul.addr %s136, 8
      %s138 = scalar_lea.vmem %s0, %s137
      %p139 = scmp.lt.s32.totalorder %s13, 1
      %s140 = scalar_select %p139, %s13, 1
      %s141 = smul.addr %s140, 8
      %s142 = smul.addr %s141, 8
      %s143 = scalar_lea.vmem %s2, %s142
      %v144 = vld [vmem:[%s138] sm:$0xff]
      %v145 = vld [vmem:[%s138 + $0x8] sm:$0x3]
      %v146 = vld [vmem:[%s138 + $0x10] sm:$0xff]
      %v147 = vld [vmem:[%s138 + $0x18] sm:$0x3]
      %v148 = vld [vmem:[%s138 + $0x20] sm:$0xff]
      %v149 = vld [vmem:[%s138 + $0x28] sm:$0x3]
      %v150 = vld [vmem:[%s138 + $0x30] sm:$0xff]
      %v151 = vld [vmem:[%s138 + $0x38] sm:$0x3]
      %v152 = vld [vmem:[%s138 + $0x40] sm:$0xff]
      %v153 = vld [vmem:[%s138 + $0x48] sm:$0x3]
      %v154 = vld [vmem:[%s138 + $0x50] sm:$0xff]
      %v155 = vld [vmem:[%s138 + $0x58] sm:$0x3]
      %v156 = vld [vmem:[%s138 + $0x60] sm:$0xff]
      %v157 = vld [vmem:[%s138 + $0x68] sm:$0x3]
      %v158 = vld [vmem:[%s138 + $0x70] sm:$0xff]
      %v159 = vld [vmem:[%s138 + $0x78] sm:$0x3]
      %v160 = vld [vmem:[%s138 + $0x80] sm:$0xff]
      %v161 = vld [vmem:[%s138 + $0x88] sm:$0x3]
      %v162 = vld [vmem:[%s138 + $0x90] sm:$0xff]
      %v163 = vld [vmem:[%s138 + $0x98] sm:$0x3]
      %v164 = vpack.c.bf16 %v146, %v144
      %v165 = vpack.c.bf16 %v150, %v148
      %v166 = vpack.c.bf16 %v154, %v152
      %v167 = vpack.c.bf16 %v158, %v156
      %v168 = vld [vmem:[%s1] sm:$0xf]
      %v169 = vld [vmem:[%s1 + $0x4] sm:$0xf]
      %v170 = vld [vmem:[%s1 + $0x8] sm:$0xf]
      %v171 = vld [vmem:[%s1 + $0xc] sm:$0xf]
      %v172 = vld [vmem:[%s1 + $0x10] sm:$0xf]
      %v173 = vld [vmem:[%s1 + $0x14] sm:$0xf]
      %v174 = vld [vmem:[%s1 + $0x18] sm:$0xf]
      %v175 = vld [vmem:[%s1 + $0x1c] sm:$0xf]
      %v176 = vld [vmem:[%s1 + $0x20] sm:$0xf]
      %v177 = vld [vmem:[%s1 + $0x24] sm:$0xf]
      %v178 = vld [vmem:[%s1 + $0x28] sm:$0xf]
      %v179 = vld [vmem:[%s1 + $0x2c] sm:$0xf]
      %v180 = vld [vmem:[%s1 + $0x30] sm:$0xf]
      %v181 = vld [vmem:[%s1 + $0x34] sm:$0xf]
      %v182 = vld [vmem:[%s1 + $0x38] sm:$0xf]
      %v183 = vld [vmem:[%s1 + $0x3c] sm:$0xf]
      %vm200 = vcmask 1046528
      %v201 = vrot.slane %v144, 1
      %v202 = vrot.slane %v145, 1
      %v203 = vsel %vm200, %v201, %v202
      %v204 = vrot.slane %v146, 1
      %v205 = vrot.slane %v147, 1
      %v206 = vsel %vm200, %v204, %v205
      %v207 = vrot.slane %v148, 1
      %v208 = vrot.slane %v149, 1
      %v209 = vsel %vm200, %v207, %v208
      %v210 = vrot.slane %v150, 1
      %v211 = vrot.slane %v151, 1
      %v212 = vsel %vm200, %v210, %v211
      %v213 = vrot.slane %v152, 1
      %v214 = vrot.slane %v153, 1
      %v215 = vsel %vm200, %v213, %v214
      %v216 = vrot.slane %v154, 1
      %v217 = vrot.slane %v155, 1
      %v218 = vsel %vm200, %v216, %v217
      %v219 = vrot.slane %v156, 1
      %v220 = vrot.slane %v157, 1
      %v221 = vsel %vm200, %v219, %v220
      %v222 = vrot.slane %v158, 1
      %v223 = vrot.slane %v159, 1
      %v224 = vsel %vm200, %v222, %v223
      %v233 = vpack.c.bf16 %v206, %v203
      %v234 = vpack.c.bf16 %v212, %v209
      %v235 = vpack.c.bf16 %v218, %v215
      %v236 = vpack.c.bf16 %v224, %v221
      %s237 = scalar_lea.vmem %s1, 64
      %v238 = vld [vmem:[%s237] sm:$0xf]
      %v239 = vld [vmem:[%s237 + $0x4] sm:$0xf]
      %v240 = vld [vmem:[%s237 + $0x8] sm:$0xf]
      %v241 = vld [vmem:[%s237 + $0xc] sm:$0xf]
      %v242 = vld [vmem:[%s237 + $0x10] sm:$0xf]
      %v243 = vld [vmem:[%s237 + $0x14] sm:$0xf]
      %v244 = vld [vmem:[%s237 + $0x18] sm:$0xf]
      %v245 = vld [vmem:[%s237 + $0x1c] sm:$0xf]
      %v246 = vld [vmem:[%s237 + $0x20] sm:$0xf]
      %v247 = vld [vmem:[%s237 + $0x24] sm:$0xf]
      %v248 = vld [vmem:[%s237 + $0x28] sm:$0xf]
      %v249 = vld [vmem:[%s237 + $0x2c] sm:$0xf]
      %v250 = vld [vmem:[%s237 + $0x30] sm:$0xf]
      %v251 = vld [vmem:[%s237 + $0x34] sm:$0xf]
      %v252 = vld [vmem:[%s237 + $0x38] sm:$0xf]
      %v253 = vld [vmem:[%s237 + $0x3c] sm:$0xf]
      %v270 = vunpack.c.l.b16 %v238
      %v271 = vunpack.c.l.b16 %v239
      %v272 = vunpack.c.l.b16 %v240
      %v273 = vunpack.c.l.b16 %v241
      %v274 = vunpack.c.l.b16 %v242
      %v275 = vunpack.c.l.b16 %v243
      %v276 = vunpack.c.l.b16 %v244
      %v277 = vunpack.c.l.b16 %v245
      %v278 = vunpack.c.l.b16 %v246
      %v279 = vunpack.c.l.b16 %v247
      %v280 = vunpack.c.l.b16 %v248
      %v281 = vunpack.c.l.b16 %v249
      %v282 = vunpack.c.l.b16 %v250
      %v283 = vunpack.c.l.b16 %v251
      %v284 = vunpack.c.l.b16 %v252
      %v285 = vunpack.c.l.b16 %v253
      %v286 = vpack.c.b16 %v271, %v270
      %v287 = vpack.c.b16 %v273, %v272
      %v288 = vpack.c.b16 %v275, %v274
      %v289 = vpack.c.b16 %v277, %v276
      %v290 = vpack.c.b16 %v279, %v278
      %v291 = vpack.c.b16 %v281, %v280
      %v292 = vpack.c.b16 %v283, %v282
      %v293 = vpack.c.b16 %v285, %v284
      %302 = vmatpush.bf16.msra.mxu0 %v293
      %303 = vmatpush.bf16.msra.mxu0 %v292
      %304 = vmatpush.bf16.msra.mxu0 %v291
      %305 = vmatpush.bf16.msra.mxu0 %v290
      %306 = vmatpush.bf16.msra.mxu0 %v289
      %307 = vmatpush.bf16.msra.mxu0 %v288
      %308 = vmatpush.bf16.msra.mxu0 %v287
      %309 = vmatpush.bf16.msra.mxu0 %v286
      %310 = vmatmul.bf16.gmra.mxu0 %v233
      %v311 = vpop.f32.mrf.mxu0
      %v312 = vadd.f32 0.0, %v311
      %v313 = vpop.f32.mrf.mxu0
      %v314 = vadd.f32 0.0, %v313
      %315 = vmatmul.bf16.gmra.mxu0 %v234
      %v316 = vpop.f32.mrf.mxu0
      %v317 = vadd.f32 0.0, %v316
      %v318 = vpop.f32.mrf.mxu0
      %v319 = vadd.f32 0.0, %v318
      %320 = vmatmul.bf16.gmra.mxu0 %v235
      %v321 = vpop.f32.mrf.mxu0
      %v322 = vadd.f32 0.0, %v321
      %v323 = vpop.f32.mrf.mxu0
      %v324 = vadd.f32 0.0, %v323
      %325 = vmatmul.bf16.gmra.mxu0 %v236
      %v326 = vpop.f32.mrf.mxu0
      %v327 = vadd.f32 0.0, %v326
      %v328 = vpop.f32.mrf.mxu0
      %v329 = vadd.f32 0.0, %v328
      %330 = vdwg.mxu0
      %v347 = vunpack.c.l.b16 %v168
      %v348 = vunpack.c.l.b16 %v169
      %v349 = vunpack.c.l.b16 %v170
      %v350 = vunpack.c.l.b16 %v171
      %v351 = vunpack.c.l.b16 %v172
      %v352 = vunpack.c.l.b16 %v173
      %v353 = vunpack.c.l.b16 %v174
      %v354 = vunpack.c.l.b16 %v175
      %v355 = vunpack.c.l.b16 %v176
      %v356 = vunpack.c.l.b16 %v177
      %v357 = vunpack.c.l.b16 %v178
      %v358 = vunpack.c.l.b16 %v179
      %v359 = vunpack.c.l.b16 %v180
      %v360 = vunpack.c.l.b16 %v181
      %v361 = vunpack.c.l.b16 %v182
      %v362 = vunpack.c.l.b16 %v183
      %v363 = vpack.c.b16 %v348, %v347
      %v364 = vpack.c.b16 %v350, %v349
      %v365 = vpack.c.b16 %v352, %v351
      %v366 = vpack.c.b16 %v354, %v353
      %v367 = vpack.c.b16 %v356, %v355
      %v368 = vpack.c.b16 %v358, %v357
      %v369 = vpack.c.b16 %v360, %v359
      %v370 = vpack.c.b16 %v362, %v361
      %379 = vmatpush.bf16.msra.mxu0 %v370
      %380 = vmatpush.bf16.msra.mxu0 %v369
      %381 = vmatpush.bf16.msra.mxu0 %v368
      %382 = vmatpush.bf16.msra.mxu0 %v367
      %383 = vmatpush.bf16.msra.mxu0 %v366
      %384 = vmatpush.bf16.msra.mxu0 %v365
      %385 = vmatpush.bf16.msra.mxu0 %v364
      %386 = vmatpush.bf16.msra.mxu0 %v363
      %387 = vmatmul.bf16.gmra.mxu0 %v164
      %v388 = vpop.f32.mrf.mxu0
      %v389 = vadd.f32 %v312, %v388
      %v390 = vpop.f32.mrf.mxu0
      %v391 = vadd.f32 %v314, %v390
      %392 = vmatmul.bf16.gmra.mxu0 %v165
      %v393 = vpop.f32.mrf.mxu0
      %v394 = vadd.f32 %v317, %v393
      %v395 = vpop.f32.mrf.mxu0
      %v396 = vadd.f32 %v319, %v395
      %397 = vmatmul.bf16.gmra.mxu0 %v166
      %v398 = vpop.f32.mrf.mxu0
      %v399 = vadd.f32 %v322, %v398
      %v400 = vpop.f32.mrf.mxu0
      %v401 = vadd.f32 %v324, %v400
      %402 = vmatmul.bf16.gmra.mxu0 %v167
      %v403 = vpop.f32.mrf.mxu0
      %v404 = vadd.f32 %v327, %v403
      %v405 = vpop.f32.mrf.mxu0
      %v406 = vadd.f32 %v329, %v405
      %407 = vdwg.mxu0
      %vm408 = vcmask 1045504
      %v409 = vrot.slane %v144, 2
      %v410 = vrot.slane %v145, 2
      %v411 = vsel %vm408, %v409, %v410
      %v412 = vrot.slane %v146, 2
      %v413 = vrot.slane %v147, 2
      %v414 = vsel %vm408, %v412, %v413
      %v415 = vrot.slane %v148, 2
      %v416 = vrot.slane %v149, 2
      %v417 = vsel %vm408, %v415, %v416
      %v418 = vrot.slane %v150, 2
      %v419 = vrot.slane %v151, 2
      %v420 = vsel %vm408, %v418, %v419
      %v421 = vrot.slane %v152, 2
      %v422 = vrot.slane %v153, 2
      %v423 = vsel %vm408, %v421, %v422
      %v424 = vrot.slane %v154, 2
      %v425 = vrot.slane %v155, 2
      %v426 = vsel %vm408, %v424, %v425
      %v427 = vrot.slane %v156, 2
      %v428 = vrot.slane %v157, 2
      %v429 = vsel %vm408, %v427, %v428
      %v430 = vrot.slane %v158, 2
      %v431 = vrot.slane %v159, 2
      %v432 = vsel %vm408, %v430, %v431
      %v441 = vpack.c.bf16 %v414, %v411
      %v442 = vpack.c.bf16 %v420, %v417
      %v443 = vpack.c.bf16 %v426, %v423
      %v444 = vpack.c.bf16 %v432, %v429
      %s445 = scalar_lea.vmem %s1, 128
      %v446 = vld [vmem:[%s445] sm:$0xf]
      %v447 = vld [vmem:[%s445 + $0x4] sm:$0xf]
      %v448 = vld [vmem:[%s445 + $0x8] sm:$0xf]
      %v449 = vld [vmem:[%s445 + $0xc] sm:$0xf]
      %v450 = vld [vmem:[%s445 + $0x10] sm:$0xf]
      %v451 = vld [vmem:[%s445 + $0x14] sm:$0xf]
      %v452 = vld [vmem:[%s445 + $0x18] sm:$0xf]
      %v453 = vld [vmem:[%s445 + $0x1c] sm:$0xf]
      %v454 = vld [vmem:[%s445 + $0x20] sm:$0xf]
      %v455 = vld [vmem:[%s445 + $0x24] sm:$0xf]
      %v456 = vld [vmem:[%s445 + $0x28] sm:$0xf]
      %v457 = vld [vmem:[%s445 + $0x2c] sm:$0xf]
      %v458 = vld [vmem:[%s445 + $0x30] sm:$0xf]
      %v459 = vld [vmem:[%s445 + $0x34] sm:$0xf]
      %v460 = vld [vmem:[%s445 + $0x38] sm:$0xf]
      %v461 = vld [vmem:[%s445 + $0x3c] sm:$0xf]
      %v478 = vunpack.c.l.b16 %v446
      %v479 = vunpack.c.l.b16 %v447
      %v480 = vunpack.c.l.b16 %v448
      %v481 = vunpack.c.l.b16 %v449
      %v482 = vunpack.c.l.b16 %v450
      %v483 = vunpack.c.l.b16 %v451
      %v484 = vunpack.c.l.b16 %v452
      %v485 = vunpack.c.l.b16 %v453
      %v486 = vunpack.c.l.b16 %v454
      %v487 = vunpack.c.l.b16 %v455
      %v488 = vunpack.c.l.b16 %v456
      %v489 = vunpack.c.l.b16 %v457
      %v490 = vunpack.c.l.b16 %v458
      %v491 = vunpack.c.l.b16 %v459
      %v492 = vunpack.c.l.b16 %v460
      %v493 = vunpack.c.l.b16 %v461
      %v494 = vpack.c.b16 %v479, %v478
      %v495 = vpack.c.b16 %v481, %v480
      %v496 = vpack.c.b16 %v483, %v482
      %v497 = vpack.c.b16 %v485, %v484
      %v498 = vpack.c.b16 %v487, %v486
      %v499 = vpack.c.b16 %v489, %v488
      %v500 = vpack.c.b16 %v491, %v490
      %v501 = vpack.c.b16 %v493, %v492
      %510 = vmatpush.bf16.msra.mxu0 %v501
      %511 = vmatpush.bf16.msra.mxu0 %v500
      %512 = vmatpush.bf16.msra.mxu0 %v499
      %513 = vmatpush.bf16.msra.mxu0 %v498
      %514 = vmatpush.bf16.msra.mxu0 %v497
      %515 = vmatpush.bf16.msra.mxu0 %v496
      %516 = vmatpush.bf16.msra.mxu0 %v495
      %517 = vmatpush.bf16.msra.mxu0 %v494
      %518 = vmatmul.bf16.gmra.mxu0 %v441
      %v519 = vpop.f32.mrf.mxu0
      %v520 = vadd.f32 0.0, %v519
      %v521 = vpop.f32.mrf.mxu0
      %v522 = vadd.f32 0.0, %v521
      %523 = vmatmul.bf16.gmra.mxu0 %v442
      %v524 = vpop.f32.mrf.mxu0
      %v525 = vadd.f32 0.0, %v524
      %v526 = vpop.f32.mrf.mxu0
      %v527 = vadd.f32 0.0, %v526
      %528 = vmatmul.bf16.gmra.mxu0 %v443
      %v529 = vpop.f32.mrf.mxu0
      %v530 = vadd.f32 0.0, %v529
      %v531 = vpop.f32.mrf.mxu0
      %v532 = vadd.f32 0.0, %v531
      %533 = vmatmul.bf16.gmra.mxu0 %v444
      %v534 = vpop.f32.mrf.mxu0
      %v535 = vadd.f32 0.0, %v534
      %v536 = vpop.f32.mrf.mxu0
      %v537 = vadd.f32 0.0, %v536
      %538 = vdwg.mxu0
      %v539 = vadd.f32 %v389, %v520
      %v540 = vadd.f32 %v391, %v522
      %v541 = vadd.f32 %v394, %v525
      %v542 = vadd.f32 %v396, %v527
      %v543 = vadd.f32 %v399, %v530
      %v544 = vadd.f32 %v401, %v532
      %v545 = vadd.f32 %v404, %v535
      %v546 = vadd.f32 %v406, %v537
      %v547 = vpack.c.bf16 %v148, %v146
      %v548 = vpack.c.bf16 %v152, %v150
      %v549 = vpack.c.bf16 %v156, %v154
      %v550 = vpack.c.bf16 %v160, %v158
      %s551 = scalar_lea.vmem %s1, 192
      %v552 = vld [vmem:[%s551] sm:$0xf]
      %v553 = vld [vmem:[%s551 + $0x4] sm:$0xf]
      %v554 = vld [vmem:[%s551 + $0x8] sm:$0xf]
      %v555 = vld [vmem:[%s551 + $0xc] sm:$0xf]
      %v556 = vld [vmem:[%s551 + $0x10] sm:$0xf]
      %v557 = vld [vmem:[%s551 + $0x14] sm:$0xf]
      %v558 = vld [vmem:[%s551 + $0x18] sm:$0xf]
      %v559 = vld [vmem:[%s551 + $0x1c] sm:$0xf]
      %v560 = vld [vmem:[%s551 + $0x20] sm:$0xf]
      %v561 = vld [vmem:[%s551 + $0x24] sm:$0xf]
      %v562 = vld [vmem:[%s551 + $0x28] sm:$0xf]
      %v563 = vld [vmem:[%s551 + $0x2c] sm:$0xf]
      %v564 = vld [vmem:[%s551 + $0x30] sm:$0xf]
      %v565 = vld [vmem:[%s551 + $0x34] sm:$0xf]
      %v566 = vld [vmem:[%s551 + $0x38] sm:$0xf]
      %v567 = vld [vmem:[%s551 + $0x3c] sm:$0xf]
      %v584 = vunpack.c.l.b16 %v552
      %v585 = vunpack.c.l.b16 %v553
      %v586 = vunpack.c.l.b16 %v554
      %v587 = vunpack.c.l.b16 %v555
      %v588 = vunpack.c.l.b16 %v556
      %v589 = vunpack.c.l.b16 %v557
      %v590 = vunpack.c.l.b16 %v558
      %v591 = vunpack.c.l.b16 %v559
      %v592 = vunpack.c.l.b16 %v560
      %v593 = vunpack.c.l.b16 %v561
      %v594 = vunpack.c.l.b16 %v562
      %v595 = vunpack.c.l.b16 %v563
      %v596 = vunpack.c.l.b16 %v564
      %v597 = vunpack.c.l.b16 %v565
      %v598 = vunpack.c.l.b16 %v566
      %v599 = vunpack.c.l.b16 %v567
      %v600 = vpack.c.b16 %v585, %v584
      %v601 = vpack.c.b16 %v587, %v586
      %v602 = vpack.c.b16 %v589, %v588
      %v603 = vpack.c.b16 %v591, %v590
      %v604 = vpack.c.b16 %v593, %v592
      %v605 = vpack.c.b16 %v595, %v594
      %v606 = vpack.c.b16 %v597, %v596
      %v607 = vpack.c.b16 %v599, %v598
      %616 = vmatpush.bf16.msra.mxu0 %v607
      %617 = vmatpush.bf16.msra.mxu0 %v606
      %618 = vmatpush.bf16.msra.mxu0 %v605
      %619 = vmatpush.bf16.msra.mxu0 %v604
      %620 = vmatpush.bf16.msra.mxu0 %v603
      %621 = vmatpush.bf16.msra.mxu0 %v602
      %622 = vmatpush.bf16.msra.mxu0 %v601
      %623 = vmatpush.bf16.msra.mxu0 %v600
      %624 = vmatmul.bf16.gmra.mxu0 %v547
      %v625 = vpop.f32.mrf.mxu0
      %v626 = vadd.f32 0.0, %v625
      %v627 = vpop.f32.mrf.mxu0
      %v628 = vadd.f32 0.0, %v627
      %629 = vmatmul.bf16.gmra.mxu0 %v548
      %v630 = vpop.f32.mrf.mxu0
      %v631 = vadd.f32 0.0, %v630
      %v632 = vpop.f32.mrf.mxu0
      %v633 = vadd.f32 0.0, %v632
      %634 = vmatmul.bf16.gmra.mxu0 %v549
      %v635 = vpop.f32.mrf.mxu0
      %v636 = vadd.f32 0.0, %v635
      %v637 = vpop.f32.mrf.mxu0
      %v638 = vadd.f32 0.0, %v637
      %639 = vmatmul.bf16.gmra.mxu0 %v550
      %v640 = vpop.f32.mrf.mxu0
      %v641 = vadd.f32 0.0, %v640
      %v642 = vpop.f32.mrf.mxu0
      %v643 = vadd.f32 0.0, %v642
      %644 = vdwg.mxu0
      %v645 = vadd.f32 %v539, %v626
      %v646 = vadd.f32 %v540, %v628
      %v647 = vadd.f32 %v541, %v631
      %v648 = vadd.f32 %v542, %v633
      %v649 = vadd.f32 %v543, %v636
      %v650 = vadd.f32 %v544, %v638
      %v651 = vadd.f32 %v545, %v641
      %v652 = vadd.f32 %v546, %v643
      %v655 = vrot.slane %v160, 1
      %v656 = vrot.slane %v161, 1
      %v657 = vsel %vm200, %v655, %v656
      %v659 = vpack.c.bf16 %v209, %v206
      %v660 = vpack.c.bf16 %v215, %v212
      %v661 = vpack.c.bf16 %v221, %v218
      %v662 = vpack.c.bf16 %v657, %v224
      %s663 = scalar_lea.vmem %s1, 256
      %v664 = vld [vmem:[%s663] sm:$0xf]
      %v665 = vld [vmem:[%s663 + $0x4] sm:$0xf]
      %v666 = vld [vmem:[%s663 + $0x8] sm:$0xf]
      %v667 = vld [vmem:[%s663 + $0xc] sm:$0xf]
      %v668 = vld [vmem:[%s663 + $0x10] sm:$0xf]
      %v669 = vld [vmem:[%s663 + $0x14] sm:$0xf]
      %v670 = vld [vmem:[%s663 + $0x18] sm:$0xf]
      %v671 = vld [vmem:[%s663 + $0x1c] sm:$0xf]
      %v672 = vld [vmem:[%s663 + $0x20] sm:$0xf]
      %v673 = vld [vmem:[%s663 + $0x24] sm:$0xf]
      %v674 = vld [vmem:[%s663 + $0x28] sm:$0xf]
      %v675 = vld [vmem:[%s663 + $0x2c] sm:$0xf]
      %v676 = vld [vmem:[%s663 + $0x30] sm:$0xf]
      %v677 = vld [vmem:[%s663 + $0x34] sm:$0xf]
      %v678 = vld [vmem:[%s663 + $0x38] sm:$0xf]
      %v679 = vld [vmem:[%s663 + $0x3c] sm:$0xf]
      %v696 = vunpack.c.l.b16 %v664
      %v697 = vunpack.c.l.b16 %v665
      %v698 = vunpack.c.l.b16 %v666
      %v699 = vunpack.c.l.b16 %v667
      %v700 = vunpack.c.l.b16 %v668
      %v701 = vunpack.c.l.b16 %v669
      %v702 = vunpack.c.l.b16 %v670
      %v703 = vunpack.c.l.b16 %v671
      %v704 = vunpack.c.l.b16 %v672
      %v705 = vunpack.c.l.b16 %v673
      %v706 = vunpack.c.l.b16 %v674
      %v707 = vunpack.c.l.b16 %v675
      %v708 = vunpack.c.l.b16 %v676
      %v709 = vunpack.c.l.b16 %v677
      %v710 = vunpack.c.l.b16 %v678
      %v711 = vunpack.c.l.b16 %v679
      %v712 = vpack.c.b16 %v697, %v696
      %v713 = vpack.c.b16 %v699, %v698
      %v714 = vpack.c.b16 %v701, %v700
      %v715 = vpack.c.b16 %v703, %v702
      %v716 = vpack.c.b16 %v705, %v704
      %v717 = vpack.c.b16 %v707, %v706
      %v718 = vpack.c.b16 %v709, %v708
      %v719 = vpack.c.b16 %v711, %v710
      %728 = vmatpush.bf16.msra.mxu0 %v719
      %729 = vmatpush.bf16.msra.mxu0 %v718
      %730 = vmatpush.bf16.msra.mxu0 %v717
      %731 = vmatpush.bf16.msra.mxu0 %v716
      %732 = vmatpush.bf16.msra.mxu0 %v715
      %733 = vmatpush.bf16.msra.mxu0 %v714
      %734 = vmatpush.bf16.msra.mxu0 %v713
      %735 = vmatpush.bf16.msra.mxu0 %v712
      %736 = vmatmul.bf16.gmra.mxu0 %v659
      %v737 = vpop.f32.mrf.mxu0
      %v738 = vadd.f32 0.0, %v737
      %v739 = vpop.f32.mrf.mxu0
      %v740 = vadd.f32 0.0, %v739
      %741 = vmatmul.bf16.gmra.mxu0 %v660
      %v742 = vpop.f32.mrf.mxu0
      %v743 = vadd.f32 0.0, %v742
      %v744 = vpop.f32.mrf.mxu0
      %v745 = vadd.f32 0.0, %v744
      %746 = vmatmul.bf16.gmra.mxu0 %v661
      %v747 = vpop.f32.mrf.mxu0
      %v748 = vadd.f32 0.0, %v747
      %v749 = vpop.f32.mrf.mxu0
      %v750 = vadd.f32 0.0, %v749
      %751 = vmatmul.bf16.gmra.mxu0 %v662
      %v752 = vpop.f32.mrf.mxu0
      %v753 = vadd.f32 0.0, %v752
      %v754 = vpop.f32.mrf.mxu0
      %v755 = vadd.f32 0.0, %v754
      %756 = vdwg.mxu0
      %v757 = vadd.f32 %v645, %v738
      %v758 = vadd.f32 %v646, %v740
      %v759 = vadd.f32 %v647, %v743
      %v760 = vadd.f32 %v648, %v745
      %v761 = vadd.f32 %v649, %v748
      %v762 = vadd.f32 %v650, %v750
      %v763 = vadd.f32 %v651, %v753
      %v764 = vadd.f32 %v652, %v755
      %v765 = vrot.slane %v160, 2
      %v766 = vrot.slane %v161, 2
      %v767 = vsel %vm408, %v765, %v766
      %v769 = vpack.c.bf16 %v417, %v414
      %v770 = vpack.c.bf16 %v423, %v420
      %v771 = vpack.c.bf16 %v429, %v426
      %v772 = vpack.c.bf16 %v767, %v432
      %s773 = scalar_lea.vmem %s1, 320
      %v774 = vld [vmem:[%s773] sm:$0xf]
      %v775 = vld [vmem:[%s773 + $0x4] sm:$0xf]
      %v776 = vld [vmem:[%s773 + $0x8] sm:$0xf]
      %v777 = vld [vmem:[%s773 + $0xc] sm:$0xf]
      %v778 = vld [vmem:[%s773 + $0x10] sm:$0xf]
      %v779 = vld [vmem:[%s773 + $0x14] sm:$0xf]
      %v780 = vld [vmem:[%s773 + $0x18] sm:$0xf]
      %v781 = vld [vmem:[%s773 + $0x1c] sm:$0xf]
      %v782 = vld [vmem:[%s773 + $0x20] sm:$0xf]
      %v783 = vld [vmem:[%s773 + $0x24] sm:$0xf]
      %v784 = vld [vmem:[%s773 + $0x28] sm:$0xf]
      %v785 = vld [vmem:[%s773 + $0x2c] sm:$0xf]
      %v786 = vld [vmem:[%s773 + $0x30] sm:$0xf]
      %v787 = vld [vmem:[%s773 + $0x34] sm:$0xf]
      %v788 = vld [vmem:[%s773 + $0x38] sm:$0xf]
      %v789 = vld [vmem:[%s773 + $0x3c] sm:$0xf]
      %v806 = vunpack.c.l.b16 %v774
      %v807 = vunpack.c.l.b16 %v775
      %v808 = vunpack.c.l.b16 %v776
      %v809 = vunpack.c.l.b16 %v777
      %v810 = vunpack.c.l.b16 %v778
      %v811 = vunpack.c.l.b16 %v779
      %v812 = vunpack.c.l.b16 %v780
      %v813 = vunpack.c.l.b16 %v781
      %v814 = vunpack.c.l.b16 %v782
      %v815 = vunpack.c.l.b16 %v783
      %v816 = vunpack.c.l.b16 %v784
      %v817 = vunpack.c.l.b16 %v785
      %v818 = vunpack.c.l.b16 %v786
      %v819 = vunpack.c.l.b16 %v787
      %v820 = vunpack.c.l.b16 %v788
      %v821 = vunpack.c.l.b16 %v789
      %v822 = vpack.c.b16 %v807, %v806
      %v823 = vpack.c.b16 %v809, %v808
      %v824 = vpack.c.b16 %v811, %v810
      %v825 = vpack.c.b16 %v813, %v812
      %v826 = vpack.c.b16 %v815, %v814
      %v827 = vpack.c.b16 %v817, %v816
      %v828 = vpack.c.b16 %v819, %v818
      %v829 = vpack.c.b16 %v821, %v820
      %838 = vmatpush.bf16.msra.mxu0 %v829
      %839 = vmatpush.bf16.msra.mxu0 %v828
      %840 = vmatpush.bf16.msra.mxu0 %v827
      %841 = vmatpush.bf16.msra.mxu0 %v826
      %842 = vmatpush.bf16.msra.mxu0 %v825
      %843 = vmatpush.bf16.msra.mxu0 %v824
      %844 = vmatpush.bf16.msra.mxu0 %v823
      %845 = vmatpush.bf16.msra.mxu0 %v822
      %846 = vmatmul.bf16.gmra.mxu0 %v769
      %v847 = vpop.f32.mrf.mxu0
      %v848 = vadd.f32 0.0, %v847
      %v849 = vpop.f32.mrf.mxu0
      %v850 = vadd.f32 0.0, %v849
      %851 = vmatmul.bf16.gmra.mxu0 %v770
      %v852 = vpop.f32.mrf.mxu0
      %v853 = vadd.f32 0.0, %v852
      %v854 = vpop.f32.mrf.mxu0
      %v855 = vadd.f32 0.0, %v854
      %856 = vmatmul.bf16.gmra.mxu0 %v771
      %v857 = vpop.f32.mrf.mxu0
      %v858 = vadd.f32 0.0, %v857
      %v859 = vpop.f32.mrf.mxu0
      %v860 = vadd.f32 0.0, %v859
      %861 = vmatmul.bf16.gmra.mxu0 %v772
      %v862 = vpop.f32.mrf.mxu0
      %v863 = vadd.f32 0.0, %v862
      %v864 = vpop.f32.mrf.mxu0
      %v865 = vadd.f32 0.0, %v864
      %866 = vdwg.mxu0
      %v867 = vadd.f32 %v757, %v848
      %v868 = vadd.f32 %v758, %v850
      %v869 = vadd.f32 %v759, %v853
      %v870 = vadd.f32 %v760, %v855
      %v871 = vadd.f32 %v761, %v858
      %v872 = vadd.f32 %v762, %v860
      %v873 = vadd.f32 %v763, %v863
      %v874 = vadd.f32 %v764, %v865
      %v875 = vpack.c.bf16 %v162, %v160
      %s876 = scalar_lea.vmem %s1, 384
      %v877 = vld [vmem:[%s876] sm:$0xf]
      %v878 = vld [vmem:[%s876 + $0x4] sm:$0xf]
      %v879 = vld [vmem:[%s876 + $0x8] sm:$0xf]
      %v880 = vld [vmem:[%s876 + $0xc] sm:$0xf]
      %v881 = vld [vmem:[%s876 + $0x10] sm:$0xf]
      %v882 = vld [vmem:[%s876 + $0x14] sm:$0xf]
      %v883 = vld [vmem:[%s876 + $0x18] sm:$0xf]
      %v884 = vld [vmem:[%s876 + $0x1c] sm:$0xf]
      %v885 = vld [vmem:[%s876 + $0x20] sm:$0xf]
      %v886 = vld [vmem:[%s876 + $0x24] sm:$0xf]
      %v887 = vld [vmem:[%s876 + $0x28] sm:$0xf]
      %v888 = vld [vmem:[%s876 + $0x2c] sm:$0xf]
      %v889 = vld [vmem:[%s876 + $0x30] sm:$0xf]
      %v890 = vld [vmem:[%s876 + $0x34] sm:$0xf]
      %v891 = vld [vmem:[%s876 + $0x38] sm:$0xf]
      %v892 = vld [vmem:[%s876 + $0x3c] sm:$0xf]
      %v909 = vunpack.c.l.b16 %v877
      %v910 = vunpack.c.l.b16 %v878
      %v911 = vunpack.c.l.b16 %v879
      %v912 = vunpack.c.l.b16 %v880
      %v913 = vunpack.c.l.b16 %v881
      %v914 = vunpack.c.l.b16 %v882
      %v915 = vunpack.c.l.b16 %v883
      %v916 = vunpack.c.l.b16 %v884
      %v917 = vunpack.c.l.b16 %v885
      %v918 = vunpack.c.l.b16 %v886
      %v919 = vunpack.c.l.b16 %v887
      %v920 = vunpack.c.l.b16 %v888
      %v921 = vunpack.c.l.b16 %v889
      %v922 = vunpack.c.l.b16 %v890
      %v923 = vunpack.c.l.b16 %v891
      %v924 = vunpack.c.l.b16 %v892
      %v925 = vpack.c.b16 %v910, %v909
      %v926 = vpack.c.b16 %v912, %v911
      %v927 = vpack.c.b16 %v914, %v913
      %v928 = vpack.c.b16 %v916, %v915
      %v929 = vpack.c.b16 %v918, %v917
      %v930 = vpack.c.b16 %v920, %v919
      %v931 = vpack.c.b16 %v922, %v921
      %v932 = vpack.c.b16 %v924, %v923
      %941 = vmatpush.bf16.msra.mxu0 %v932
      %942 = vmatpush.bf16.msra.mxu0 %v931
      %943 = vmatpush.bf16.msra.mxu0 %v930
      %944 = vmatpush.bf16.msra.mxu0 %v929
      %945 = vmatpush.bf16.msra.mxu0 %v928
      %946 = vmatpush.bf16.msra.mxu0 %v927
      %947 = vmatpush.bf16.msra.mxu0 %v926
      %948 = vmatpush.bf16.msra.mxu0 %v925
      %949 = vmatmul.bf16.gmra.mxu0 %v165
      %v950 = vpop.f32.mrf.mxu0
      %v951 = vadd.f32 0.0, %v950
      %v952 = vpop.f32.mrf.mxu0
      %v953 = vadd.f32 0.0, %v952
      %954 = vmatmul.bf16.gmra.mxu0 %v166
      %v955 = vpop.f32.mrf.mxu0
      %v956 = vadd.f32 0.0, %v955
      %v957 = vpop.f32.mrf.mxu0
      %v958 = vadd.f32 0.0, %v957
      %959 = vmatmul.bf16.gmra.mxu0 %v167
      %v960 = vpop.f32.mrf.mxu0
      %v961 = vadd.f32 0.0, %v960
      %v962 = vpop.f32.mrf.mxu0
      %v963 = vadd.f32 0.0, %v962
      %964 = vmatmul.bf16.gmra.mxu0 %v875
      %v965 = vpop.f32.mrf.mxu0
      %v966 = vadd.f32 0.0, %v965
      %v967 = vpop.f32.mrf.mxu0
      %v968 = vadd.f32 0.0, %v967
      %969 = vdwg.mxu0
      %v970 = vadd.f32 %v867, %v951
      %v971 = vadd.f32 %v868, %v953
      %v972 = vadd.f32 %v869, %v956
      %v973 = vadd.f32 %v870, %v958
      %v974 = vadd.f32 %v871, %v961
      %v975 = vadd.f32 %v872, %v963
      %v976 = vadd.f32 %v873, %v966
      %v977 = vadd.f32 %v874, %v968
      %v980 = vrot.slane %v162, 1
      %v981 = vrot.slane %v163, 1
      %v982 = vsel %vm200, %v980, %v981
      %v984 = vpack.c.bf16 %v982, %v657
      %s985 = scalar_lea.vmem %s1, 448
      %v986 = vld [vmem:[%s985] sm:$0xf]
      %v987 = vld [vmem:[%s985 + $0x4] sm:$0xf]
      %v988 = vld [vmem:[%s985 + $0x8] sm:$0xf]
      %v989 = vld [vmem:[%s985 + $0xc] sm:$0xf]
      %v990 = vld [vmem:[%s985 + $0x10] sm:$0xf]
      %v991 = vld [vmem:[%s985 + $0x14] sm:$0xf]
      %v992 = vld [vmem:[%s985 + $0x18] sm:$0xf]
      %v993 = vld [vmem:[%s985 + $0x1c] sm:$0xf]
      %v994 = vld [vmem:[%s985 + $0x20] sm:$0xf]
      %v995 = vld [vmem:[%s985 + $0x24] sm:$0xf]
      %v996 = vld [vmem:[%s985 + $0x28] sm:$0xf]
      %v997 = vld [vmem:[%s985 + $0x2c] sm:$0xf]
      %v998 = vld [vmem:[%s985 + $0x30] sm:$0xf]
      %v999 = vld [vmem:[%s985 + $0x34] sm:$0xf]
      %v1000 = vld [vmem:[%s985 + $0x38] sm:$0xf]
      %v1001 = vld [vmem:[%s985 + $0x3c] sm:$0xf]
      %v1018 = vunpack.c.l.b16 %v986
      %v1019 = vunpack.c.l.b16 %v987
      %v1020 = vunpack.c.l.b16 %v988
      %v1021 = vunpack.c.l.b16 %v989
      %v1022 = vunpack.c.l.b16 %v990
      %v1023 = vunpack.c.l.b16 %v991
      %v1024 = vunpack.c.l.b16 %v992
      %v1025 = vunpack.c.l.b16 %v993
      %v1026 = vunpack.c.l.b16 %v994
      %v1027 = vunpack.c.l.b16 %v995
      %v1028 = vunpack.c.l.b16 %v996
      %v1029 = vunpack.c.l.b16 %v997
      %v1030 = vunpack.c.l.b16 %v998
      %v1031 = vunpack.c.l.b16 %v999
      %v1032 = vunpack.c.l.b16 %v1000
      %v1033 = vunpack.c.l.b16 %v1001
      %v1034 = vpack.c.b16 %v1019, %v1018
      %v1035 = vpack.c.b16 %v1021, %v1020
      %v1036 = vpack.c.b16 %v1023, %v1022
      %v1037 = vpack.c.b16 %v1025, %v1024
      %v1038 = vpack.c.b16 %v1027, %v1026
      %v1039 = vpack.c.b16 %v1029, %v1028
      %v1040 = vpack.c.b16 %v1031, %v1030
      %v1041 = vpack.c.b16 %v1033, %v1032
      %1050 = vmatpush.bf16.msra.mxu0 %v1041
      %1051 = vmatpush.bf16.msra.mxu0 %v1040
      %1052 = vmatpush.bf16.msra.mxu0 %v1039
      %1053 = vmatpush.bf16.msra.mxu0 %v1038
      %1054 = vmatpush.bf16.msra.mxu0 %v1037
      %1055 = vmatpush.bf16.msra.mxu0 %v1036
      %1056 = vmatpush.bf16.msra.mxu0 %v1035
      %1057 = vmatpush.bf16.msra.mxu0 %v1034
      %1058 = vmatmul.bf16.gmra.mxu0 %v234
      %v1059 = vpop.f32.mrf.mxu0
      %v1060 = vadd.f32 0.0, %v1059
      %v1061 = vpop.f32.mrf.mxu0
      %v1062 = vadd.f32 0.0, %v1061
      %1063 = vmatmul.bf16.gmra.mxu0 %v235
      %v1064 = vpop.f32.mrf.mxu0
      %v1065 = vadd.f32 0.0, %v1064
      %v1066 = vpop.f32.mrf.mxu0
      %v1067 = vadd.f32 0.0, %v1066
      %1068 = vmatmul.bf16.gmra.mxu0 %v236
      %v1069 = vpop.f32.mrf.mxu0
      %v1070 = vadd.f32 0.0, %v1069
      %v1071 = vpop.f32.mrf.mxu0
      %v1072 = vadd.f32 0.0, %v1071
      %1073 = vmatmul.bf16.gmra.mxu0 %v984
      %v1074 = vpop.f32.mrf.mxu0
      %v1075 = vadd.f32 0.0, %v1074
      %v1076 = vpop.f32.mrf.mxu0
      %v1077 = vadd.f32 0.0, %v1076
      %1078 = vdwg.mxu0
      %v1079 = vadd.f32 %v970, %v1060
      %v1080 = vadd.f32 %v971, %v1062
      %v1081 = vadd.f32 %v972, %v1065
      %v1082 = vadd.f32 %v973, %v1067
      %v1083 = vadd.f32 %v974, %v1070
      %v1084 = vadd.f32 %v975, %v1072
      %v1085 = vadd.f32 %v976, %v1075
      %v1086 = vadd.f32 %v977, %v1077
      %v1087 = vrot.slane %v162, 2
      %v1088 = vrot.slane %v163, 2
      %v1089 = vsel %vm408, %v1087, %v1088
      %v1091 = vpack.c.bf16 %v1089, %v767
      %s1092 = scalar_lea.vmem %s1, 512
      %v1093 = vld [vmem:[%s1092] sm:$0xf]
      %v1094 = vld [vmem:[%s1092 + $0x4] sm:$0xf]
      %v1095 = vld [vmem:[%s1092 + $0x8] sm:$0xf]
      %v1096 = vld [vmem:[%s1092 + $0xc] sm:$0xf]
      %v1097 = vld [vmem:[%s1092 + $0x10] sm:$0xf]
      %v1098 = vld [vmem:[%s1092 + $0x14] sm:$0xf]
      %v1099 = vld [vmem:[%s1092 + $0x18] sm:$0xf]
      %v1100 = vld [vmem:[%s1092 + $0x1c] sm:$0xf]
      %v1101 = vld [vmem:[%s1092 + $0x20] sm:$0xf]
      %v1102 = vld [vmem:[%s1092 + $0x24] sm:$0xf]
      %v1103 = vld [vmem:[%s1092 + $0x28] sm:$0xf]
      %v1104 = vld [vmem:[%s1092 + $0x2c] sm:$0xf]
      %v1105 = vld [vmem:[%s1092 + $0x30] sm:$0xf]
      %v1106 = vld [vmem:[%s1092 + $0x34] sm:$0xf]
      %v1107 = vld [vmem:[%s1092 + $0x38] sm:$0xf]
      %v1108 = vld [vmem:[%s1092 + $0x3c] sm:$0xf]
      %v1125 = vunpack.c.l.b16 %v1093
      %v1126 = vunpack.c.l.b16 %v1094
      %v1127 = vunpack.c.l.b16 %v1095
      %v1128 = vunpack.c.l.b16 %v1096
      %v1129 = vunpack.c.l.b16 %v1097
      %v1130 = vunpack.c.l.b16 %v1098
      %v1131 = vunpack.c.l.b16 %v1099
      %v1132 = vunpack.c.l.b16 %v1100
      %v1133 = vunpack.c.l.b16 %v1101
      %v1134 = vunpack.c.l.b16 %v1102
      %v1135 = vunpack.c.l.b16 %v1103
      %v1136 = vunpack.c.l.b16 %v1104
      %v1137 = vunpack.c.l.b16 %v1105
      %v1138 = vunpack.c.l.b16 %v1106
      %v1139 = vunpack.c.l.b16 %v1107
      %v1140 = vunpack.c.l.b16 %v1108
      %v1141 = vpack.c.b16 %v1126, %v1125
      %v1142 = vpack.c.b16 %v1128, %v1127
      %v1143 = vpack.c.b16 %v1130, %v1129
      %v1144 = vpack.c.b16 %v1132, %v1131
      %v1145 = vpack.c.b16 %v1134, %v1133
      %v1146 = vpack.c.b16 %v1136, %v1135
      %v1147 = vpack.c.b16 %v1138, %v1137
      %v1148 = vpack.c.b16 %v1140, %v1139
      %1157 = vmatpush.bf16.msra.mxu0 %v1148
      %1158 = vmatpush.bf16.msra.mxu0 %v1147
      %1159 = vmatpush.bf16.msra.mxu0 %v1146
      %1160 = vmatpush.bf16.msra.mxu0 %v1145
      %1161 = vmatpush.bf16.msra.mxu0 %v1144
      %1162 = vmatpush.bf16.msra.mxu0 %v1143
      %1163 = vmatpush.bf16.msra.mxu0 %v1142
      %1164 = vmatpush.bf16.msra.mxu0 %v1141
      %1165 = vmatmul.bf16.gmra.mxu0 %v442
      %v1166 = vpop.f32.mrf.mxu0
      %v1167 = vadd.f32 0.0, %v1166
      %v1168 = vpop.f32.mrf.mxu0
      %v1169 = vadd.f32 0.0, %v1168
      %1170 = vmatmul.bf16.gmra.mxu0 %v443
      %v1171 = vpop.f32.mrf.mxu0
      %v1172 = vadd.f32 0.0, %v1171
      %v1173 = vpop.f32.mrf.mxu0
      %v1174 = vadd.f32 0.0, %v1173
      %1175 = vmatmul.bf16.gmra.mxu0 %v444
      %v1176 = vpop.f32.mrf.mxu0
      %v1177 = vadd.f32 0.0, %v1176
      %v1178 = vpop.f32.mrf.mxu0
      %v1179 = vadd.f32 0.0, %v1178
      %1180 = vmatmul.bf16.gmra.mxu0 %v1091
      %v1181 = vpop.f32.mrf.mxu0
      %v1182 = vadd.f32 0.0, %v1181
      %v1183 = vpop.f32.mrf.mxu0
      %v1184 = vadd.f32 0.0, %v1183
      %1185 = vdwg.mxu0
      %v1186 = vadd.f32 %v1079, %v1167
      %v1187 = vadd.f32 %v1080, %v1169
      %v1188 = vadd.f32 %v1081, %v1172
      %v1189 = vadd.f32 %v1082, %v1174
      %v1190 = vadd.f32 %v1083, %v1177
      %v1191 = vadd.f32 %v1084, %v1179
      %v1192 = vadd.f32 %v1085, %v1182
      %v1193 = vadd.f32 %v1086, %v1184
      %vm1194 = vcmask 97280
      %1195 = vst.msk [vmem:[%s143] sm:$0xff] %vm1194, %v1186
      %1196 = vst.msk [vmem:[%s143 + $0x8] sm:$0xff] %vm1194, %v1187
      %1197 = vst.msk [vmem:[%s143 + $0x10] sm:$0xff] %vm1194, %v1188
      %1198 = vst.msk [vmem:[%s143 + $0x18] sm:$0xff] %vm1194, %v1189
      %1199 = vst.msk [vmem:[%s143 + $0x20] sm:$0xff] %vm1194, %v1190
      %1200 = vst.msk [vmem:[%s143 + $0x28] sm:$0xff] %vm1194, %v1191
      %1201 = vst.msk [vmem:[%s143 + $0x30] sm:$0xff] %vm1194, %v1192
      %1202 = vst.msk [vmem:[%s143 + $0x38] sm:$0xff] %vm1194, %v1193
      %p1203 = scmp.lt.s32.totalorder %s13, 1
      %s1204 = scalar_select %p1203, %s13, 1
      %s1205 = smul.addr %s1204, 8
      %s1206 = smul.addr %s1205, 8
      %s1207 = scalar_lea.vmem %s2, %s1206
      // Predicated region
      $region29: #{latent_diffusion_forward.9} parent=27 // pred_check
        %p1208 = pneg %p78
      $region30: #{latent_diffusion_forward.9} parent=27 // pred_check_branch
        %1210 = sbr.rel (%p1208) target = $region32
      $region31: #{latent_diffusion_forward.9} parent=27 // pred_region
        _
      $region32: #{latent_diffusion_forward.9} parent=27 // pred_fallthru
        _
    $region28: #{latent_diffusion_forward.9} parent=5 // pred_fallthru
      _
    %p1211 = scmp.le.s32.totalorder 2, %s8
    // Predicated region
    $region33: #{latent_diffusion_forward.9} parent=5 // pred_check
      %p1212 = pneg %p1211
    $region34: #{latent_diffusion_forward.9} parent=5 // pred_check_branch
      %1214 = sbr.rel (%p1212) target = $region36
    $region35: #{latent_diffusion_forward.9} parent=5 // pred_region
      %s1215 = ssub.s32 %s8, 2
      // Predicated region
      $region37: #{latent_diffusion_forward.9} parent=35 // pred_check
        %p1216 = pneg %p84
      $region38: #{latent_diffusion_forward.9} parent=35 // pred_check_branch
        %1218 = sbr.rel (%p1216) target = $region40
      $region39: #{latent_diffusion_forward.9} parent=35 // pred_region
        %p1219 = scmp.lt.s32.totalorder %s14, 1
        %s1220 = scalar_select %p1219, %s14, 1
        %s1221 = smul.addr %s1220, 8
        %s1222 = smul.addr %s1221, 8
        %s1223 = scalar_lea.vmem %s2, %s1222
      $region40: #{latent_diffusion_forward.9} parent=35 // pred_fallthru
        _
    $region36: #{latent_diffusion_forward.9} parent=5 // pred_fallthru
      _
  $region6: #{latent_diffusion_forward.9} parent=0 // loop_footer
    %s12 = sadd.s32 1, %s8
  $region7: #{latent_diffusion_forward.9} parent=0 // loop_footer_branch
    %7 = sbr.rel target = $region3
  $region8: #{latent_diffusion_forward.9} parent=0 // loop_exit
    _

// kernel: latent_diffusion_forward.11
$region0: #{latent_diffusion_forward.11}
  #allocation0 [shape = 'u32[]', space=smem, size = 0x4, offset = 0x4, fixed_abs, tag = 'smem constant byte address 0x4 - core index']
  #allocation1 [shape = 'u32[72,128]{1,0:T(1,128)}', space=vmem, size = 0x9000, scoped, tag = 'internal scratch']
  %s0 = inlined_call_operand.vmem [shape: f32[2,18,18,12], index: 0, kind: input, shape index: {}]
  %s1 = inlined_call_operand.vmem [shape: bf16[9,12,3], index: 1, kind: input, shape index: {}]
  %s2 = inlined_call_operand.vmem [shape: f32[2,16,16,3], index: 2, kind: output, shape index: {}]
  %s3 = sld [smem:[#allocation0]]
  $region41: #{latent_diffusion_forward.11} parent=0
    _
  %s5 = ssub.s32 1, %s3
  %s6 = scalar_select 0, %s5, %s3
  loop: start=0, step=1, limit=4
  $region2: #{latent_diffusion_forward.11} parent=0 // loop_pre_header
    _
  $region3: #{latent_diffusion_forward.11} parent=0 // loop_header
    %s8 = sphi 0, %s12
    %p9 = scmp.ge.s32.totalorder %s8, 4
    %s18 = sphi 0, %s20
    %s21 = sphi 0, %s18
    %s22 = sphi 0, %s21
    %s38 = sphi 0, %s22
    %s42 = sphi 0, %s42
    %s44 = sphi 0, %s42
    %s45 = sphi 0, %s44
    %s59 = sphi 0, %s45
    %s65 = sphi 0, %s67
    %s68 = sphi 0, %s65
    %s69 = sphi 0, %s68
    %s85 = sphi 0, %s69
  $region4: #{latent_diffusion_forward.11} parent=0 // loop_header_branch
    %11 = sbr.rel (%p9) target = $region8
  $region5: #{latent_diffusion_forward.11} parent=0 // loop_body
    %s13 = ssub.s32 %s8, 1
    %s14 = ssub.s32 %s8, 2
    %s15 = sadd.s32 %s8, 1
    %s16 = ssub.s32 %s8, %s15
    %p17 = scmp.eq.s32.totalorder %s16, 0
    %s19 = sadd.s32 %s18, 1
    %s20 = scalar_select %p17, %s18, %s19
    %p23 = pneg %p17
    %p24 = scmp.eq.s32.totalorder %s8, 1
    %p25 = por %p23, %p24
    %p26 = scmp.ne.s32.totalorder %s18, %s21
    %p27 = scmp.eq.s32.totalorder %s8, 0
    %p28 = por %p26, %p27
    %p29 = scmp.ne.s32.totalorder %s18, %s21
    %p30 = scmp.eq.s32.totalorder %s13, 1
    %p31 = por %p29, %p30
    %p32 = scmp.ne.s32.totalorder %s21, %s22
    %p33 = scmp.eq.s32.totalorder %s13, 0
    %p34 = por %p32, %p33
    %p35 = scmp.ne.s32.totalorder %s21, %s22
    %p36 = scmp.eq.s32.totalorder %s14, 1
    %p37 = por %p35, %p36
    %p39 = scmp.ne.s32.totalorder %s22, %s38
    %p40 = scmp.eq.s32.totalorder %s14, 0
    %p41 = por %p39, %p40
    %s43 = sadd.s32 %s42, 1
    %p46 = scmp.eq.s32.totalorder %s8, 1
    %p47 = scmp.ne.s32.totalorder %s42, %s44
    %p48 = scmp.eq.s32.totalorder %s8, 0
    %p49 = por %p47, %p48
    %p50 = scmp.ne.s32.totalorder %s42, %s44
    %p51 = scmp.eq.s32.totalorder %s13, 1
    %p52 = por %p50, %p51
    %p53 = scmp.ne.s32.totalorder %s44, %s45
    %p54 = scmp.eq.s32.totalorder %s13, 0
    %p55 = por %p53, %p54
    %p56 = scmp.ne.s32.totalorder %s44, %s45
    %p57 = scmp.eq.s32.totalorder %s14, 1
    %p58 = por %p56, %p57
    %p60 = scmp.ne.s32.totalorder %s45, %s59
    %p61 = scmp.eq.s32.totalorder %s14, 0
    %p62 = por %p60, %p61
    %s63 = ssub.s32 %s8, %s15
    %p64 = scmp.eq.s32.totalorder %s63, 0
    %s66 = sadd.s32 %s65, 1
    %s67 = scalar_select %p64, %s65, %s66
    %p70 = pneg %p64
    %p71 = scmp.eq.s32.totalorder %s8, 1
    %p72 = por %p70, %p71
    %p73 = scmp.ne.s32.totalorder %s65, %s68
    %p74 = scmp.eq.s32.totalorder %s8, 0
    %p75 = por %p73, %p74
    %p76 = scmp.ne.s32.totalorder %s65, %s68
    %p77 = scmp.eq.s32.totalorder %s13, 1
    %p78 = por %p76, %p77
    %p79 = scmp.ne.s32.totalorder %s68, %s69
    %p80 = scmp.eq.s32.totalorder %s13, 0
    %p81 = por %p79, %p80
    %p82 = scmp.ne.s32.totalorder %s68, %s69
    %p83 = scmp.eq.s32.totalorder %s14, 1
    %p84 = por %p82, %p83
    %p86 = scmp.ne.s32.totalorder %s69, %s85
    %p87 = scmp.eq.s32.totalorder %s14, 0
    %p88 = por %p86, %p87
    %p89 = scmp.le.s32.totalorder 1, %s8
    %p90 = scmp.lt.s32.totalorder %s8, 3
    %p91 = pnand %p89, %p90
    %p92 = pneg %p91
    // Predicated region
    $region9: #{latent_diffusion_forward.11} parent=5 // pred_check
      _
    $region10: #{latent_diffusion_forward.11} parent=5 // pred_check_branch
      %94 = sbr.rel (%p91) target = $region12
    $region11: #{latent_diffusion_forward.11} parent=5 // pred_region
      %s95 = ssub.s32 %s8, 1
      // Predicated region
      $region13: #{latent_diffusion_forward.11} parent=11 // pred_check
        %p96 = pneg %p55
      $region14: #{latent_diffusion_forward.11} parent=11 // pred_check_branch
        %98 = sbr.rel (%p96) target = $region16
      $region15: #{latent_diffusion_forward.11} parent=11 // pred_region
        _
      $region16: #{latent_diffusion_forward.11} parent=11 // pred_fallthru
        _
    $region12: #{latent_diffusion_forward.11} parent=5 // pred_fallthru
      _
    %p99 = scmp.lt.s32.totalorder %s8, 2
    // Predicated region
    $region17: #{latent_diffusion_forward.11} parent=5 // pred_check
      %p100 = pneg %p99
    $region18: #{latent_diffusion_forward.11} parent=5 // pred_check_branch
      %102 = sbr.rel (%p100) target = $region20
    $region19: #{latent_diffusion_forward.11} parent=5 // pred_region
      // Predicated region
      $region21: #{latent_diffusion_forward.11} parent=19 // pred_check
        %p103 = pneg %p28
      $region22: #{latent_diffusion_forward.11} parent=19 // pred_check_branch
        %105 = sbr.rel (%p103) target = $region24
      $region23: #{latent_diffusion_forward.11} parent=19 // pred_region
        %p106 = scmp.lt.s32.totalorder %s8, 1
        %s107 = scalar_select %p106, %s8, 1
        %s108 = smul.addr %s107, 54
        %s109 = smul.addr %s108, 8
        %s110 = scalar_lea.vmem %s0, %s109
      $region24: #{latent_diffusion_forward.11} parent=19 // pred_fallthru
        _
    $region20: #{latent_diffusion_forward.11} parent=5 // pred_fallthru
      _
    %p111 = scmp.le.s32.totalorder 1, %s8
    %p112 = scmp.lt.s32.totalorder %s8, 3
    %p113 = pnand %p111, %p112
    %p114 = pneg %p113
    // Predicated region
    $region25: #{latent_diffusion_forward.11} parent=5 // pred_check
      _
    $region26: #{latent_diffusion_forward.11} parent=5 // pred_check_branch
      %116 = sbr.rel (%p113) target = $region28
    $region27: #{latent_diffusion_forward.11} parent=5 // pred_region
      %s117 = ssub.s32 %s8, 1
      %p118 = scmp.lt.s32.totalorder %s13, 1
      %s119 = scalar_select %p118, %s13, 1
      %s120 = smul.addr %s119, 54
      %s121 = smul.addr %s120, 8
      %s122 = scalar_lea.vmem %s0, %s121
      %p123 = pneg %p34
      %p124 = pneg %p31
      %p125 = pneg %p55
      %p126 = pneg %p52
      %p127 = pneg %p81
      %p128 = pneg %p78
      %p129 = scmp.lt.s32.totalorder %s13, 1
      %s130 = scalar_select %p129, %s13, 1
      %s131 = smul.addr %s130, 32
      %s132 = smul.addr %s131, 8
      %s133 = scalar_lea.vmem %s2, %s132
      %p134 = scmp.lt.s32.totalorder %s13, 1
      %s135 = scalar_select %p134, %s13, 1
      %s136 = smul.addr %s135, 54
      %s137 = smul.addr %s136, 8
      %s138 = scalar_lea.vmem %s0, %s137
      %p139 = scmp.lt.s32.totalorder %s13, 1
      %s140 = scalar_select %p139, %s13, 1
      %s141 = smul.addr %s140, 32
      %s142 = smul.addr %s141, 8
      %s143 = scalar_lea.vmem %s2, %s142
      %v145 = vld [vmem:[%s138] sm:$0xff]
      %v146 = vld [vmem:[%s138 + $0x8] sm:$0xff]
      %v147 = vld [vmem:[%s138 + $0x10] sm:$0x3]
      %v148 = vld [vmem:[%s138 + $0x18] sm:$0xff]
      %v149 = vld [vmem:[%s138 + $0x20] sm:$0xff]
      %v150 = vld [vmem:[%s138 + $0x28] sm:$0x3]
      %v151 = vld [vmem:[%s138 + $0x30] sm:$0xff]
      %v152 = vld [vmem:[%s138 + $0x38] sm:$0xff]
      %v153 = vld [vmem:[%s138 + $0x40] sm:$0x3]
      %v154 = vld [vmem:[%s138 + $0x48] sm:$0xff]
      %v155 = vld [vmem:[%s138 + $0x50] sm:$0xff]
      %v156 = vld [vmem:[%s138 + $0x58] sm:$0x3]
      %v157 = vld [vmem:[%s138 + $0x60] sm:$0xff]
      %v158 = vld [vmem:[%s138 + $0x68] sm:$0xff]
      %v159 = vld [vmem:[%s138 + $0x70] sm:$0x3]
      %v160 = vld [vmem:[%s138 + $0x78] sm:$0xff]
      %v161 = vld [vmem:[%s138 + $0x80] sm:$0xff]
      %v162 = vld [vmem:[%s138 + $0x88] sm:$0x3]
      %v163 = vld [vmem:[%s138 + $0x90] sm:$0xff]
      %v164 = vld [vmem:[%s138 + $0x98] sm:$0xff]
      %v165 = vld [vmem:[%s138 + $0xa0] sm:$0x3]
      %v166 = vld [vmem:[%s138 + $0xa8] sm:$0xff]
      %v167 = vld [vmem:[%s138 + $0xb0] sm:$0xff]
      %v168 = vld [vmem:[%s138 + $0xb8] sm:$0x3]
      %v169 = vld [vmem:[%s138 + $0xc0] sm:$0xff]
      %v170 = vld [vmem:[%s138 + $0xc8] sm:$0xff]
      %v171 = vld [vmem:[%s138 + $0xd0] sm:$0x3]
      %v172 = vld [vmem:[%s138 + $0xd8] sm:$0xff]
      %v173 = vld [vmem:[%s138 + $0xe0] sm:$0xff]
      %v174 = vld [vmem:[%s138 + $0xe8] sm:$0x3]
      %v175 = vld [vmem:[%s138 + $0xf0] sm:$0xff]
      %v176 = vld [vmem:[%s138 + $0xf8] sm:$0xff]
      %v177 = vld [vmem:[%s138 + $0x100] sm:$0x3]
      %v178 = vld [vmem:[%s138 + $0x108] sm:$0xff]
      %v179 = vld [vmem:[%s138 + $0x110] sm:$0xff]
      %v180 = vld [vmem:[%s138 + $0x118] sm:$0x3]
      %v181 = vld [vmem:[%s138 + $0x120] sm:$0xff]
      %v182 = vld [vmem:[%s138 + $0x128] sm:$0xff]
      %v183 = vld [vmem:[%s138 + $0x130] sm:$0x3]
      %v184 = vld [vmem:[%s138 + $0x138] sm:$0xff]
      %v185 = vld [vmem:[%s138 + $0x140] sm:$0xff]
      %v186 = vld [vmem:[%s138 + $0x148] sm:$0x3]
      %v187 = vld [vmem:[%s138 + $0x150] sm:$0xff]
      %v188 = vld [vmem:[%s138 + $0x158] sm:$0xff]
      %v189 = vld [vmem:[%s138 + $0x160] sm:$0x3]
      %v190 = vld [vmem:[%s138 + $0x168] sm:$0xff]
      %v191 = vld [vmem:[%s138 + $0x170] sm:$0xff]
      %v192 = vld [vmem:[%s138 + $0x178] sm:$0x3]
      %v193 = vld [vmem:[%s138 + $0x180] sm:$0xff]
      %v194 = vld [vmem:[%s138 + $0x188] sm:$0xff]
      %v195 = vld [vmem:[%s138 + $0x190] sm:$0x3]
      %v196 = vld [vmem:[%s138 + $0x198] sm:$0xff]
      %v197 = vld [vmem:[%s138 + $0x1a0] sm:$0xff]
      %v198 = vld [vmem:[%s138 + $0x1a8] sm:$0x3]
      %v199 = vpack.c.bf16 %v146, %v145
      %v200 = vpack.c.bf16 %v149, %v148
      %v201 = vpack.c.bf16 %v152, %v151
      %v202 = vpack.c.bf16 %v155, %v154
      %v203 = vpack.c.bf16 %v158, %v157
      %v204 = vpack.c.bf16 %v161, %v160
      %v205 = vpack.c.bf16 %v164, %v163
      %v206 = vpack.c.bf16 %v167, %v166
      %v207 = vpack.c.bf16 %v170, %v169
      %v208 = vpack.c.bf16 %v173, %v172
      %v209 = vpack.c.bf16 %v176, %v175
      %v210 = vpack.c.bf16 %v179, %v178
      %v211 = vpack.c.bf16 %v182, %v181
      %v212 = vpack.c.bf16 %v185, %v184
      %v213 = vpack.c.bf16 %v188, %v187
      %v214 = vpack.c.bf16 %v191, %v190
      %v215 = vld [vmem:[%s1] sm:$0xf]
      %v216 = vld [vmem:[%s1 + $0x4] sm:$0x3]
      %vm265 = vcmask 1046528
      %v266 = vrot.slane %v145, 1
      %v267 = vrot.slane %v146, 1
      %v268 = vsel %vm265, %v266, %v267
      %v269 = vrot.slane %v147, 1
      %v270 = vsel %vm265, %v267, %v269
      %v271 = vrot.slane %v148, 1
      %v272 = vrot.slane %v149, 1
      %v273 = vsel %vm265, %v271, %v272
      %v274 = vrot.slane %v150, 1
      %v275 = vsel %vm265, %v272, %v274
      %v276 = vrot.slane %v151, 1
      %v277 = vrot.slane %v152, 1
      %v278 = vsel %vm265, %v276, %v277
      %v279 = vrot.slane %v153, 1
      %v280 = vsel %vm265, %v277, %v279
      %v281 = vrot.slane %v154, 1
      %v282 = vrot.slane %v155, 1
      %v283 = vsel %vm265, %v281, %v282
      %v284 = vrot.slane %v156, 1
      %v285 = vsel %vm265, %v282, %v284
      %v286 = vrot.slane %v157, 1
      %v287 = vrot.slane %v158, 1
      %v288 = vsel %vm265, %v286, %v287
      %v289 = vrot.slane %v159, 1
      %v290 = vsel %vm265, %v287, %v289
      %v291 = vrot.slane %v160, 1
      %v292 = vrot.slane %v161, 1
      %v293 = vsel %vm265, %v291, %v292
      %v294 = vrot.slane %v162, 1
      %v295 = vsel %vm265, %v292, %v294
      %v296 = vrot.slane %v163, 1
      %v297 = vrot.slane %v164, 1
      %v298 = vsel %vm265, %v296, %v297
      %v299 = vrot.slane %v165, 1
      %v300 = vsel %vm265, %v297, %v299
      %v301 = vrot.slane %v166, 1
      %v302 = vrot.slane %v167, 1
      %v303 = vsel %vm265, %v301, %v302
      %v304 = vrot.slane %v168, 1
      %v305 = vsel %vm265, %v302, %v304
      %v306 = vrot.slane %v169, 1
      %v307 = vrot.slane %v170, 1
      %v308 = vsel %vm265, %v306, %v307
      %v309 = vrot.slane %v171, 1
      %v310 = vsel %vm265, %v307, %v309
      %v311 = vrot.slane %v172, 1
      %v312 = vrot.slane %v173, 1
      %v313 = vsel %vm265, %v311, %v312
      %v314 = vrot.slane %v174, 1
      %v315 = vsel %vm265, %v312, %v314
      %v316 = vrot.slane %v175, 1
      %v317 = vrot.slane %v176, 1
      %v318 = vsel %vm265, %v316, %v317
      %v319 = vrot.slane %v177, 1
      %v320 = vsel %vm265, %v317, %v319
      %v321 = vrot.slane %v178, 1
      %v322 = vrot.slane %v179, 1
      %v323 = vsel %vm265, %v321, %v322
      %v324 = vrot.slane %v180, 1
      %v325 = vsel %vm265, %v322, %v324
      %v326 = vrot.slane %v181, 1
      %v327 = vrot.slane %v182, 1
      %v328 = vsel %vm265, %v326, %v327
      %v329 = vrot.slane %v183, 1
      %v330 = vsel %vm265, %v327, %v329
      %v331 = vrot.slane %v184, 1
      %v332 = vrot.slane %v185, 1
      %v333 = vsel %vm265, %v331, %v332
      %v334 = vrot.slane %v186, 1
      %v335 = vsel %vm265, %v332, %v334
      %v336 = vrot.slane %v187, 1
      %v337 = vrot.slane %v188, 1
      %v338 = vsel %vm265, %v336, %v337
      %v339 = vrot.slane %v189, 1
      %v340 = vsel %vm265, %v337, %v339
      %v341 = vrot.slane %v190, 1
      %v342 = vrot.slane %v191, 1
      %v343 = vsel %vm265, %v341, %v342
      %v344 = vrot.slane %v192, 1
      %v345 = vsel %vm265, %v342, %v344
      %v378 = vpack.c.bf16 %v270, %v268
      %v379 = vpack.c.bf16 %v275, %v273
      %v380 = vpack.c.bf16 %v280, %v278
      %v381 = vpack.c.bf16 %v285, %v283
      %v382 = vpack.c.bf16 %v290, %v288
      %v383 = vpack.c.bf16 %v295, %v293
      %v384 = vpack.c.bf16 %v300, %v298
      %v385 = vpack.c.bf16 %v305, %v303
      %v386 = vpack.c.bf16 %v310, %v308
      %v387 = vpack.c.bf16 %v315, %v313
      %v388 = vpack.c.bf16 %v320, %v318
      %v389 = vpack.c.bf16 %v325, %v323
      %v390 = vpack.c.bf16 %v330, %v328
      %v391 = vpack.c.bf16 %v335, %v333
      %v392 = vpack.c.bf16 %v340, %v338
      %v393 = vpack.c.bf16 %v345, %v343
      %s394 = scalar_lea.vmem %s1, 8
      %v395 = vld [vmem:[%s394] sm:$0xf]
      %v396 = vld [vmem:[%s394 + $0x4] sm:$0x3]
      %v399 = vunpack.c.l.b16 %v395
      %v400 = vunpack.c.l.b16 %v396
      %v401 = vpack.c.b16 %v400, %v399
      %vm402 = vcmask 97280
      %v404 = vsel %vm402, %v378, 0
      %v407 = vsel %vm402, %v379, 0
      %v410 = vsel %vm402, %v380, 0
      %v413 = vsel %vm402, %v381, 0
      %v416 = vsel %vm402, %v382, 0
      %v419 = vsel %vm402, %v383, 0
      %v422 = vsel %vm402, %v384, 0
      %v425 = vsel %vm402, %v385, 0
      %v428 = vsel %vm402, %v386, 0
      %v431 = vsel %vm402, %v387, 0
      %v434 = vsel %vm402, %v388, 0
      %v437 = vsel %vm402, %v389, 0
      %v440 = vsel %vm402, %v390, 0
      %v443 = vsel %vm402, %v391, 0
      %v446 = vsel %vm402, %v392, 0
      %v449 = vsel %vm402, %v393, 0
      %vm451 = vcmask 1045504
      %v453 = vsel %vm451, %v401, 0
      %455 = vmatpush.bf16.msra.mxu0 0
      %456 = vmatpush.bf16.msra.mxu0 0
      %457 = vmatpush.bf16.msra.mxu0 0
      %458 = vmatpush.bf16.msra.mxu0 0
      %459 = vmatpush.bf16.msra.mxu0 0
      %460 = vmatpush.bf16.msra.mxu0 0
      %461 = vmatpush.bf16.msra.mxu0 0
      %462 = vmatpush.bf16.msra.mxu0 %v453
      %463 = vmatmul.bf16.gmra.mxu0 %v404
      %v464 = vpop.f32.mrf.mxu0
      %v465 = vadd.f32 0.0, %v464
      %v466 = vpop.f32.mrf.mxu0
      %v467 = vadd.f32 0.0, %v466
      %468 = vmatmul.bf16.gmra.mxu0 %v407
      %v469 = vpop.f32.mrf.mxu0
      %v470 = vadd.f32 0.0, %v469
      %v471 = vpop.f32.mrf.mxu0
      %v472 = vadd.f32 0.0, %v471
      %473 = vmatmul.bf16.gmra.mxu0 %v410
      %v474 = vpop.f32.mrf.mxu0
      %v475 = vadd.f32 0.0, %v474
      %v476 = vpop.f32.mrf.mxu0
      %v477 = vadd.f32 0.0, %v476
      %478 = vmatmul.bf16.gmra.mxu0 %v413
      %v479 = vpop.f32.mrf.mxu0
      %v480 = vadd.f32 0.0, %v479
      %v481 = vpop.f32.mrf.mxu0
      %v482 = vadd.f32 0.0, %v481
      %483 = vmatmul.bf16.gmra.mxu0 %v416
      %v484 = vpop.f32.mrf.mxu0
      %v485 = vadd.f32 0.0, %v484
      %v486 = vpop.f32.mrf.mxu0
      %v487 = vadd.f32 0.0, %v486
      %488 = vmatmul.bf16.gmra.mxu0 %v419
      %v489 = vpop.f32.mrf.mxu0
      %v490 = vadd.f32 0.0, %v489
      %v491 = vpop.f32.mrf.mxu0
      %v492 = vadd.f32 0.0, %v491
      %493 = vmatmul.bf16.gmra.mxu0 %v422
      %v494 = vpop.f32.mrf.mxu0
      %v495 = vadd.f32 0.0, %v494
      %v496 = vpop.f32.mrf.mxu0
      %v497 = vadd.f32 0.0, %v496
      %498 = vmatmul.bf16.gmra.mxu0 %v425
      %v499 = vpop.f32.mrf.mxu0
      %v500 = vadd.f32 0.0, %v499
      %v501 = vpop.f32.mrf.mxu0
      %v502 = vadd.f32 0.0, %v501
      %503 = vmatmul.bf16.gmra.mxu0 %v428
      %v504 = vpop.f32.mrf.mxu0
      %v505 = vadd.f32 0.0, %v504
      %v506 = vpop.f32.mrf.mxu0
      %v507 = vadd.f32 0.0, %v506
      %508 = vmatmul.bf16.gmra.mxu0 %v431
      %v509 = vpop.f32.mrf.mxu0
      %v510 = vadd.f32 0.0, %v509
      %v511 = vpop.f32.mrf.mxu0
      %v512 = vadd.f32 0.0, %v511
      %513 = vmatmul.bf16.gmra.mxu0 %v434
      %v514 = vpop.f32.mrf.mxu0
      %v515 = vadd.f32 0.0, %v514
      %v516 = vpop.f32.mrf.mxu0
      %v517 = vadd.f32 0.0, %v516
      %518 = vmatmul.bf16.gmra.mxu0 %v437
      %v519 = vpop.f32.mrf.mxu0
      %v520 = vadd.f32 0.0, %v519
      %v521 = vpop.f32.mrf.mxu0
      %v522 = vadd.f32 0.0, %v521
      %523 = vmatmul.bf16.gmra.mxu0 %v440
      %v524 = vpop.f32.mrf.mxu0
      %v525 = vadd.f32 0.0, %v524
      %v526 = vpop.f32.mrf.mxu0
      %v527 = vadd.f32 0.0, %v526
      %528 = vmatmul.bf16.gmra.mxu0 %v443
      %v529 = vpop.f32.mrf.mxu0
      %v530 = vadd.f32 0.0, %v529
      %v531 = vpop.f32.mrf.mxu0
      %v532 = vadd.f32 0.0, %v531
      %533 = vmatmul.bf16.gmra.mxu0 %v446
      %v534 = vpop.f32.mrf.mxu0
      %v535 = vadd.f32 0.0, %v534
      %v536 = vpop.f32.mrf.mxu0
      %v537 = vadd.f32 0.0, %v536
      %538 = vmatmul.bf16.gmra.mxu0 %v449
      %v539 = vpop.f32.mrf.mxu0
      %v540 = vadd.f32 0.0, %v539
      %v541 = vpop.f32.mrf.mxu0
      %v542 = vadd.f32 0.0, %v541
      %543 = vdwg.mxu0
      %v546 = vunpack.c.l.b16 %v215
      %v547 = vunpack.c.l.b16 %v216
      %v548 = vpack.c.b16 %v547, %v546
      %v550 = vsel %vm402, %v199, 0
      %v553 = vsel %vm402, %v200, 0
      %v556 = vsel %vm402, %v201, 0
      %v559 = vsel %vm402, %v202, 0
      %v562 = vsel %vm402, %v203, 0
      %v565 = vsel %vm402, %v204, 0
      %v568 = vsel %vm402, %v205, 0
      %v571 = vsel %vm402, %v206, 0
      %v574 = vsel %vm402, %v207, 0
      %v577 = vsel %vm402, %v208, 0
      %v580 = vsel %vm402, %v209, 0
      %v583 = vsel %vm402, %v210, 0
      %v586 = vsel %vm402, %v211, 0
      %v589 = vsel %vm402, %v212, 0
      %v592 = vsel %vm402, %v213, 0
      %v595 = vsel %vm402, %v214, 0
      %v598 = vsel %vm451, %v548, 0
      %600 = vmatpush.bf16.msra.mxu0 0
      %601 = vmatpush.bf16.msra.mxu0 0
      %602 = vmatpush.bf16.msra.mxu0 0
      %603 = vmatpush.bf16.msra.mxu0 0
      %604 = vmatpush.bf16.msra.mxu0 0
      %605 = vmatpush.bf16.msra.mxu0 0
      %606 = vmatpush.bf16.msra.mxu0 0
      %607 = vmatpush.bf16.msra.mxu0 %v598
      %608 = vmatmul.bf16.gmra.mxu0 %v550
      %v609 = vpop.f32.mrf.mxu0
      %v610 = vadd.f32 %v465, %v609
      %v611 = vpop.f32.mrf.mxu0
      %v612 = vadd.f32 %v467, %v611
      %613 = vmatmul.bf16.gmra.mxu0 %v553
      %v614 = vpop.f32.mrf.mxu0
      %v615 = vadd.f32 %v470, %v614
      %v616 = vpop.f32.mrf.mxu0
      %v617 = vadd.f32 %v472, %v616
      %618 = vmatmul.bf16.gmra.mxu0 %v556
      %v619 = vpop.f32.mrf.mxu0
      %v620 = vadd.f32 %v475, %v619
      %v621 = vpop.f32.mrf.mxu0
      %v622 = vadd.f32 %v477, %v621
      %623 = vmatmul.bf16.gmra.mxu0 %v559
      %v624 = vpop.f32.mrf.mxu0
      %v625 = vadd.f32 %v480, %v624
      %v626 = vpop.f32.mrf.mxu0
      %v627 = vadd.f32 %v482, %v626
      %628 = vmatmul.bf16.gmra.mxu0 %v562
      %v629 = vpop.f32.mrf.mxu0
      %v630 = vadd.f32 %v485, %v629
      %v631 = vpop.f32.mrf.mxu0
      %v632 = vadd.f32 %v487, %v631
      %633 = vmatmul.bf16.gmra.mxu0 %v565
      %v634 = vpop.f32.mrf.mxu0
      %v635 = vadd.f32 %v490, %v634
      %v636 = vpop.f32.mrf.mxu0
      %v637 = vadd.f32 %v492, %v636
      %638 = vmatmul.bf16.gmra.mxu0 %v568
      %v639 = vpop.f32.mrf.mxu0
      %v640 = vadd.f32 %v495, %v639
      %v641 = vpop.f32.mrf.mxu0
      %v642 = vadd.f32 %v497, %v641
      %643 = vmatmul.bf16.gmra.mxu0 %v571
      %v644 = vpop.f32.mrf.mxu0
      %v645 = vadd.f32 %v500, %v644
      %v646 = vpop.f32.mrf.mxu0
      %v647 = vadd.f32 %v502, %v646
      %648 = vmatmul.bf16.gmra.mxu0 %v574
      %v649 = vpop.f32.mrf.mxu0
      %v650 = vadd.f32 %v505, %v649
      %v651 = vpop.f32.mrf.mxu0
      %v652 = vadd.f32 %v507, %v651
      %653 = vmatmul.bf16.gmra.mxu0 %v577
      %v654 = vpop.f32.mrf.mxu0
      %v655 = vadd.f32 %v510, %v654
      %v656 = vpop.f32.mrf.mxu0
      %v657 = vadd.f32 %v512, %v656
      %658 = vmatmul.bf16.gmra.mxu0 %v580
      %v659 = vpop.f32.mrf.mxu0
      %v660 = vadd.f32 %v515, %v659
      %v661 = vpop.f32.mrf.mxu0
      %v662 = vadd.f32 %v517, %v661
      %663 = vmatmul.bf16.gmra.mxu0 %v583
      %v664 = vpop.f32.mrf.mxu0
      %v665 = vadd.f32 %v520, %v664
      %v666 = vpop.f32.mrf.mxu0
      %v667 = vadd.f32 %v522, %v666
      %668 = vmatmul.bf16.gmra.mxu0 %v586
      %v669 = vpop.f32.mrf.mxu0
      %v670 = vadd.f32 %v525, %v669
      %v671 = vpop.f32.mrf.mxu0
      %v672 = vadd.f32 %v527, %v671
      %673 = vmatmul.bf16.gmra.mxu0 %v589
      %v674 = vpop.f32.mrf.mxu0
      %v675 = vadd.f32 %v530, %v674
      %v676 = vpop.f32.mrf.mxu0
      %v677 = vadd.f32 %v532, %v676
      %678 = vmatmul.bf16.gmra.mxu0 %v592
      %v679 = vpop.f32.mrf.mxu0
      %v680 = vadd.f32 %v535, %v679
      %v681 = vpop.f32.mrf.mxu0
      %v682 = vadd.f32 %v537, %v681
      %683 = vmatmul.bf16.gmra.mxu0 %v595
      %v684 = vpop.f32.mrf.mxu0
      %v685 = vadd.f32 %v540, %v684
      %v686 = vpop.f32.mrf.mxu0
      %v687 = vadd.f32 %v542, %v686
      %688 = vdwg.mxu0
      %v689 = vrot.slane %v145, 2
      %v690 = vrot.slane %v146, 2
      %v691 = vsel %vm451, %v689, %v690
      %v692 = vrot.slane %v147, 2
      %v693 = vsel %vm451, %v690, %v692
      %v694 = vrot.slane %v148, 2
      %v695 = vrot.slane %v149, 2
      %v696 = vsel %vm451, %v694, %v695
      %v697 = vrot.slane %v150, 2
      %v698 = vsel %vm451, %v695, %v697
      %v699 = vrot.slane %v151, 2
      %v700 = vrot.slane %v152, 2
      %v701 = vsel %vm451, %v699, %v700
      %v702 = vrot.slane %v153, 2
      %v703 = vsel %vm451, %v700, %v702
      %v704 = vrot.slane %v154, 2
      %v705 = vrot.slane %v155, 2
      %v706 = vsel %vm451, %v704, %v705
      %v707 = vrot.slane %v156, 2
      %v708 = vsel %vm451, %v705, %v707
      %v709 = vrot.slane %v157, 2
      %v710 = vrot.slane %v158, 2
      %v711 = vsel %vm451, %v709, %v710
      %v712 = vrot.slane %v159, 2
      %v713 = vsel %vm451, %v710, %v712
      %v714 = vrot.slane %v160, 2
      %v715 = vrot.slane %v161, 2
      %v716 = vsel %vm451, %v714, %v715
      %v717 = vrot.slane %v162, 2
      %v718 = vsel %vm451, %v715, %v717
      %v719 = vrot.slane %v163, 2
      %v720 = vrot.slane %v164, 2
      %v721 = vsel %vm451, %v719, %v720
      %v722 = vrot.slane %v165, 2
      %v723 = vsel %vm451, %v720, %v722
      %v724 = vrot.slane %v166, 2
      %v725 = vrot.slane %v167, 2
      %v726 = vsel %vm451, %v724, %v725
      %v727 = vrot.slane %v168, 2
      %v728 = vsel %vm451, %v725, %v727
      %v729 = vrot.slane %v169, 2
      %v730 = vrot.slane %v170, 2
      %v731 = vsel %vm451, %v729, %v730
      %v732 = vrot.slane %v171, 2
      %v733 = vsel %vm451, %v730, %v732
      %v734 = vrot.slane %v172, 2
      %v735 = vrot.slane %v173, 2
      %v736 = vsel %vm451, %v734, %v735
      %v737 = vrot.slane %v174, 2
      %v738 = vsel %vm451, %v735, %v737
      %v739 = vrot.slane %v175, 2
      %v740 = vrot.slane %v176, 2
      %v741 = vsel %vm451, %v739, %v740
      %v742 = vrot.slane %v177, 2
      %v743 = vsel %vm451, %v740, %v742
      %v744 = vrot.slane %v178, 2
      %v745 = vrot.slane %v179, 2
      %v746 = vsel %vm451, %v744, %v745
      %v747 = vrot.slane %v180, 2
      %v748 = vsel %vm451, %v745, %v747
      %v749 = vrot.slane %v181, 2
      %v750 = vrot.slane %v182, 2
      %v751 = vsel %vm451, %v749, %v750
      %v752 = vrot.slane %v183, 2
      %v753 = vsel %vm451, %v750, %v752
      %v754 = vrot.slane %v184, 2
      %v755 = vrot.slane %v185, 2
      %v756 = vsel %vm451, %v754, %v755
      %v757 = vrot.slane %v186, 2
      %v758 = vsel %vm451, %v755, %v757
      %v759 = vrot.slane %v187, 2
      %v760 = vrot.slane %v188, 2
      %v761 = vsel %vm451, %v759, %v760
      %v762 = vrot.slane %v189, 2
      %v763 = vsel %vm451, %v760, %v762
      %v764 = vrot.slane %v190, 2
      %v765 = vrot.slane %v191, 2
      %v766 = vsel %vm451, %v764, %v765
      %v767 = vrot.slane %v192, 2
      %v768 = vsel %vm451, %v765, %v767
      %v801 = vpack.c.bf16 %v693, %v691
      %v802 = vpack.c.bf16 %v698, %v696
      %v803 = vpack.c.bf16 %v703, %v701
      %v804 = vpack.c.bf16 %v708, %v706
      %v805 = vpack.c.bf16 %v713, %v711
      %v806 = vpack.c.bf16 %v718, %v716
      %v807 = vpack.c.bf16 %v723, %v721
      %v808 = vpack.c.bf16 %v728, %v726
      %v809 = vpack.c.bf16 %v733, %v731
      %v810 = vpack.c.bf16 %v738, %v736
      %v811 = vpack.c.bf16 %v743, %v741
      %v812 = vpack.c.bf16 %v748, %v746
      %v813 = vpack.c.bf16 %v753, %v751
      %v814 = vpack.c.bf16 %v758, %v756
      %v815 = vpack.c.bf16 %v763, %v761
      %v816 = vpack.c.bf16 %v768, %v766
      %s817 = scalar_lea.vmem %s1, 16
      %v818 = vld [vmem:[%s817] sm:$0xf]
      %v819 = vld [vmem:[%s817 + $0x4] sm:$0x3]
      %v822 = vunpack.c.l.b16 %v818
      %v823 = vunpack.c.l.b16 %v819
      %v824 = vpack.c.b16 %v823, %v822
      %v826 = vsel %vm402, %v801, 0
      %v829 = vsel %vm402, %v802, 0
      %v832 = vsel %vm402, %v803, 0
      %v835 = vsel %vm402, %v804, 0
      %v838 = vsel %vm402, %v805, 0
      %v841 = vsel %vm402, %v806, 0
      %v844 = vsel %vm402, %v807, 0
      %v847 = vsel %vm402, %v808, 0
      %v850 = vsel %vm402, %v809, 0
      %v853 = vsel %vm402, %v810, 0
      %v856 = vsel %vm402, %v811, 0
      %v859 = vsel %vm402, %v812, 0
      %v862 = vsel %vm402, %v813, 0
      %v865 = vsel %vm402, %v814, 0
      %v868 = vsel %vm402, %v815, 0
      %v871 = vsel %vm402, %v816, 0
      %v874 = vsel %vm451, %v824, 0
      %876 = vmatpush.bf16.msra.mxu0 0
      %877 = vmatpush.bf16.msra.mxu0 0
      %878 = vmatpush.bf16.msra.mxu0 0
      %879 = vmatpush.bf16.msra.mxu0 0
      %880 = vmatpush.bf16.msra.mxu0 0
      %881 = vmatpush.bf16.msra.mxu0 0
      %882 = vmatpush.bf16.msra.mxu0 0
      %883 = vmatpush.bf16.msra.mxu0 %v874
      %884 = vmatmul.bf16.gmra.mxu0 %v826
      %v885 = vpop.f32.mrf.mxu0
      %v886 = vadd.f32 0.0, %v885
      %v887 = vpop.f32.mrf.mxu0
      %v888 = vadd.f32 0.0, %v887
      %889 = vmatmul.bf16.gmra.mxu0 %v829
      %v890 = vpop.f32.mrf.mxu0
      %v891 = vadd.f32 0.0, %v890
      %v892 = vpop.f32.mrf.mxu0
      %v893 = vadd.f32 0.0, %v892
      %894 = vmatmul.bf16.gmra.mxu0 %v832
      %v895 = vpop.f32.mrf.mxu0
      %v896 = vadd.f32 0.0, %v895
      %v897 = vpop.f32.mrf.mxu0
      %v898 = vadd.f32 0.0, %v897
      %899 = vmatmul.bf16.gmra.mxu0 %v835
      %v900 = vpop.f32.mrf.mxu0
      %v901 = vadd.f32 0.0, %v900
      %v902 = vpop.f32.mrf.mxu0
      %v903 = vadd.f32 0.0, %v902
      %904 = vmatmul.bf16.gmra.mxu0 %v838
      %v905 = vpop.f32.mrf.mxu0
      %v906 = vadd.f32 0.0, %v905
      %v907 = vpop.f32.mrf.mxu0
      %v908 = vadd.f32 0.0, %v907
      %909 = vmatmul.bf16.gmra.mxu0 %v841
      %v910 = vpop.f32.mrf.mxu0
      %v911 = vadd.f32 0.0, %v910
      %v912 = vpop.f32.mrf.mxu0
      %v913 = vadd.f32 0.0, %v912
      %914 = vmatmul.bf16.gmra.mxu0 %v844
      %v915 = vpop.f32.mrf.mxu0
      %v916 = vadd.f32 0.0, %v915
      %v917 = vpop.f32.mrf.mxu0
      %v918 = vadd.f32 0.0, %v917
      %919 = vmatmul.bf16.gmra.mxu0 %v847
      %v920 = vpop.f32.mrf.mxu0
      %v921 = vadd.f32 0.0, %v920
      %v922 = vpop.f32.mrf.mxu0
      %v923 = vadd.f32 0.0, %v922
      %924 = vmatmul.bf16.gmra.mxu0 %v850
      %v925 = vpop.f32.mrf.mxu0
      %v926 = vadd.f32 0.0, %v925
      %v927 = vpop.f32.mrf.mxu0
      %v928 = vadd.f32 0.0, %v927
      %929 = vmatmul.bf16.gmra.mxu0 %v853
      %v930 = vpop.f32.mrf.mxu0
      %v931 = vadd.f32 0.0, %v930
      %v932 = vpop.f32.mrf.mxu0
      %v933 = vadd.f32 0.0, %v932
      %934 = vmatmul.bf16.gmra.mxu0 %v856
      %v935 = vpop.f32.mrf.mxu0
      %v936 = vadd.f32 0.0, %v935
      %v937 = vpop.f32.mrf.mxu0
      %v938 = vadd.f32 0.0, %v937
      %939 = vmatmul.bf16.gmra.mxu0 %v859
      %v940 = vpop.f32.mrf.mxu0
      %v941 = vadd.f32 0.0, %v940
      %v942 = vpop.f32.mrf.mxu0
      %v943 = vadd.f32 0.0, %v942
      %944 = vmatmul.bf16.gmra.mxu0 %v862
      %v945 = vpop.f32.mrf.mxu0
      %v946 = vadd.f32 0.0, %v945
      %v947 = vpop.f32.mrf.mxu0
      %v948 = vadd.f32 0.0, %v947
      %949 = vmatmul.bf16.gmra.mxu0 %v865
      %v950 = vpop.f32.mrf.mxu0
      %v951 = vadd.f32 0.0, %v950
      %v952 = vpop.f32.mrf.mxu0
      %v953 = vadd.f32 0.0, %v952
      %954 = vmatmul.bf16.gmra.mxu0 %v868
      %v955 = vpop.f32.mrf.mxu0
      %v956 = vadd.f32 0.0, %v955
      %v957 = vpop.f32.mrf.mxu0
      %v958 = vadd.f32 0.0, %v957
      %959 = vmatmul.bf16.gmra.mxu0 %v871
      %v960 = vpop.f32.mrf.mxu0
      %v961 = vadd.f32 0.0, %v960
      %v962 = vpop.f32.mrf.mxu0
      %v963 = vadd.f32 0.0, %v962
      %964 = vdwg.mxu0
      %v965 = vadd.f32 %v610, %v886
      %v966 = vadd.f32 %v612, %v888
      %v967 = vadd.f32 %v615, %v891
      %v968 = vadd.f32 %v617, %v893
      %v969 = vadd.f32 %v620, %v896
      %v970 = vadd.f32 %v622, %v898
      %v971 = vadd.f32 %v625, %v901
      %v972 = vadd.f32 %v627, %v903
      %v973 = vadd.f32 %v630, %v906
      %v974 = vadd.f32 %v632, %v908
      %v975 = vadd.f32 %v635, %v911
      %v976 = vadd.f32 %v637, %v913
      %v977 = vadd.f32 %v640, %v916
      %v978 = vadd.f32 %v642, %v918
      %v979 = vadd.f32 %v645, %v921
      %v980 = vadd.f32 %v647, %v923
      %v981 = vadd.f32 %v650, %v926
      %v982 = vadd.f32 %v652, %v928
      %v983 = vadd.f32 %v655, %v931
      %v984 = vadd.f32 %v657, %v933
      %v985 = vadd.f32 %v660, %v936
      %v986 = vadd.f32 %v662, %v938
      %v987 = vadd.f32 %v665, %v941
      %v988 = vadd.f32 %v667, %v943
      %v989 = vadd.f32 %v670, %v946
      %v990 = vadd.f32 %v672, %v948
      %v991 = vadd.f32 %v675, %v951
      %v992 = vadd.f32 %v677, %v953
      %v993 = vadd.f32 %v680, %v956
      %v994 = vadd.f32 %v682, %v958
      %v995 = vadd.f32 %v685, %v961
      %v996 = vadd.f32 %v687, %v963
      %v997 = vpack.c.bf16 %v194, %v193
      %s998 = scalar_lea.vmem %s1, 24
      %v999 = vld [vmem:[%s998] sm:$0xf]
      %v1000 = vld [vmem:[%s998 + $0x4] sm:$0x3]
      %v1003 = vunpack.c.l.b16 %v999
      %v1004 = vunpack.c.l.b16 %v1000
      %v1005 = vpack.c.b16 %v1004, %v1003
      %v1007 = vsel %vm402, %v997, 0
      %v1010 = vsel %vm451, %v1005, 0
      %1012 = vmatpush.bf16.msra.mxu0 0
      %1013 = vmatpush.bf16.msra.mxu0 0
      %1014 = vmatpush.bf16.msra.mxu0 0
      %1015 = vmatpush.bf16.msra.mxu0 0
      %1016 = vmatpush.bf16.msra.mxu0 0
      %1017 = vmatpush.bf16.msra.mxu0 0
      %1018 = vmatpush.bf16.msra.mxu0 0
      %1019 = vmatpush.bf16.msra.mxu0 %v1010
      %1020 = vmatmul.bf16.gmra.mxu0 %v553
      %v1021 = vpop.f32.mrf.mxu0
      %v1022 = vadd.f32 0.0, %v1021
      %v1023 = vpop.f32.mrf.mxu0
      %v1024 = vadd.f32 0.0, %v1023
      %1025 = vmatmul.bf16.gmra.mxu0 %v556
      %v1026 = vpop.f32.mrf.mxu0
      %v1027 = vadd.f32 0.0, %v1026
      %v1028 = vpop.f32.mrf.mxu0
      %v1029 = vadd.f32 0.0, %v1028
      %1030 = vmatmul.bf16.gmra.mxu0 %v559
      %v1031 = vpop.f32.mrf.mxu0
      %v1032 = vadd.f32 0.0, %v1031
      %v1033 = vpop.f32.mrf.mxu0
      %v1034 = vadd.f32 0.0, %v1033
      %1035 = vmatmul.bf16.gmra.mxu0 %v562
      %v1036 = vpop.f32.mrf.mxu0
      %v1037 = vadd.f32 0.0, %v1036
      %v1038 = vpop.f32.mrf.mxu0
      %v1039 = vadd.f32 0.0, %v1038
      %1040 = vmatmul.bf16.gmra.mxu0 %v565
      %v1041 = vpop.f32.mrf.mxu0
      %v1042 = vadd.f32 0.0, %v1041
      %v1043 = vpop.f32.mrf.mxu0
      %v1044 = vadd.f32 0.0, %v1043
      %1045 = vmatmul.bf16.gmra.mxu0 %v568
      %v1046 = vpop.f32.mrf.mxu0
      %v1047 = vadd.f32 0.0, %v1046
      %v1048 = vpop.f32.mrf.mxu0
      %v1049 = vadd.f32 0.0, %v1048
      %1050 = vmatmul.bf16.gmra.mxu0 %v571
      %v1051 = vpop.f32.mrf.mxu0
      %v1052 = vadd.f32 0.0, %v1051
      %v1053 = vpop.f32.mrf.mxu0
      %v1054 = vadd.f32 0.0, %v1053
      %1055 = vmatmul.bf16.gmra.mxu0 %v574
      %v1056 = vpop.f32.mrf.mxu0
      %v1057 = vadd.f32 0.0, %v1056
      %v1058 = vpop.f32.mrf.mxu0
      %v1059 = vadd.f32 0.0, %v1058
      %1060 = vmatmul.bf16.gmra.mxu0 %v577
      %v1061 = vpop.f32.mrf.mxu0
      %v1062 = vadd.f32 0.0, %v1061
      %v1063 = vpop.f32.mrf.mxu0
      %v1064 = vadd.f32 0.0, %v1063
      %1065 = vmatmul.bf16.gmra.mxu0 %v580
      %v1066 = vpop.f32.mrf.mxu0
      %v1067 = vadd.f32 0.0, %v1066
      %v1068 = vpop.f32.mrf.mxu0
      %v1069 = vadd.f32 0.0, %v1068
      %1070 = vmatmul.bf16.gmra.mxu0 %v583
      %v1071 = vpop.f32.mrf.mxu0
      %v1072 = vadd.f32 0.0, %v1071
      %v1073 = vpop.f32.mrf.mxu0
      %v1074 = vadd.f32 0.0, %v1073
      %1075 = vmatmul.bf16.gmra.mxu0 %v586
      %v1076 = vpop.f32.mrf.mxu0
      %v1077 = vadd.f32 0.0, %v1076
      %v1078 = vpop.f32.mrf.mxu0
      %v1079 = vadd.f32 0.0, %v1078
      %1080 = vmatmul.bf16.gmra.mxu0 %v589
      %v1081 = vpop.f32.mrf.mxu0
      %v1082 = vadd.f32 0.0, %v1081
      %v1083 = vpop.f32.mrf.mxu0
      %v1084 = vadd.f32 0.0, %v1083
      %1085 = vmatmul.bf16.gmra.mxu0 %v592
      %v1086 = vpop.f32.mrf.mxu0
      %v1087 = vadd.f32 0.0, %v1086
      %v1088 = vpop.f32.mrf.mxu0
      %v1089 = vadd.f32 0.0, %v1088
      %1090 = vmatmul.bf16.gmra.mxu0 %v595
      %v1091 = vpop.f32.mrf.mxu0
      %v1092 = vadd.f32 0.0, %v1091
      %v1093 = vpop.f32.mrf.mxu0
      %v1094 = vadd.f32 0.0, %v1093
      %1095 = vmatmul.bf16.gmra.mxu0 %v1007
      %v1096 = vpop.f32.mrf.mxu0
      %v1097 = vadd.f32 0.0, %v1096
      %v1098 = vpop.f32.mrf.mxu0
      %v1099 = vadd.f32 0.0, %v1098
      %1100 = vdwg.mxu0
      %v1101 = vadd.f32 %v965, %v1022
      %v1102 = vadd.f32 %v966, %v1024
      %v1103 = vadd.f32 %v967, %v1027
      %v1104 = vadd.f32 %v968, %v1029
      %v1105 = vadd.f32 %v969, %v1032
      %v1106 = vadd.f32 %v970, %v1034
      %v1107 = vadd.f32 %v971, %v1037
      %v1108 = vadd.f32 %v972, %v1039
      %v1109 = vadd.f32 %v973, %v1042
      %v1110 = vadd.f32 %v974, %v1044
      %v1111 = vadd.f32 %v975, %v1047
      %v1112 = vadd.f32 %v976, %v1049
      %v1113 = vadd.f32 %v977, %v1052
      %v1114 = vadd.f32 %v978, %v1054
      %v1115 = vadd.f32 %v979, %v1057
      %v1116 = vadd.f32 %v980, %v1059
      %v1117 = vadd.f32 %v981, %v1062
      %v1118 = vadd.f32 %v982, %v1064
      %v1119 = vadd.f32 %v983, %v1067
      %v1120 = vadd.f32 %v984, %v1069
      %v1121 = vadd.f32 %v985, %v1072
      %v1122 = vadd.f32 %v986, %v1074
      %v1123 = vadd.f32 %v987, %v1077
      %v1124 = vadd.f32 %v988, %v1079
      %v1125 = vadd.f32 %v989, %v1082
      %v1126 = vadd.f32 %v990, %v1084
      %v1127 = vadd.f32 %v991, %v1087
      %v1128 = vadd.f32 %v992, %v1089
      %v1129 = vadd.f32 %v993, %v1092
      %v1130 = vadd.f32 %v994, %v1094
      %v1131 = vadd.f32 %v995, %v1097
      %v1132 = vadd.f32 %v996, %v1099
      %v1136 = vrot.slane %v193, 1
      %v1137 = vrot.slane %v194, 1
      %v1138 = vsel %vm265, %v1136, %v1137
      %v1139 = vrot.slane %v195, 1
      %v1140 = vsel %vm265, %v1137, %v1139
      %v1143 = vpack.c.bf16 %v1140, %v1138
      %s1144 = scalar_lea.vmem %s1, 32
      %v1145 = vld [vmem:[%s1144] sm:$0xf]
      %v1146 = vld [vmem:[%s1144 + $0x4] sm:$0x3]
      %v1149 = vunpack.c.l.b16 %v1145
      %v1150 = vunpack.c.l.b16 %v1146
      %v1151 = vpack.c.b16 %v1150, %v1149
      %v1153 = vsel %vm402, %v1143, 0
      %v1156 = vsel %vm451, %v1151, 0
      %1158 = vmatpush.bf16.msra.mxu0 0
      %1159 = vmatpush.bf16.msra.mxu0 0
      %1160 = vmatpush.bf16.msra.mxu0 0
      %1161 = vmatpush.bf16.msra.mxu0 0
      %1162 = vmatpush.bf16.msra.mxu0 0
      %1163 = vmatpush.bf16.msra.mxu0 0
      %1164 = vmatpush.bf16.msra.mxu0 0
      %1165 = vmatpush.bf16.msra.mxu0 %v1156
      %1166 = vmatmul.bf16.gmra.mxu0 %v407
      %v1167 = vpop.f32.mrf.mxu0
      %v1168 = vadd.f32 0.0, %v1167
      %v1169 = vpop.f32.mrf.mxu0
      %v1170 = vadd.f32 0.0, %v1169
      %1171 = vmatmul.bf16.gmra.mxu0 %v410
      %v1172 = vpop.f32.mrf.mxu0
      %v1173 = vadd.f32 0.0, %v1172
      %v1174 = vpop.f32.mrf.mxu0
      %v1175 = vadd.f32 0.0, %v1174
      %1176 = vmatmul.bf16.gmra.mxu0 %v413
      %v1177 = vpop.f32.mrf.mxu0
      %v1178 = vadd.f32 0.0, %v1177
      %v1179 = vpop.f32.mrf.mxu0
      %v1180 = vadd.f32 0.0, %v1179
      %1181 = vmatmul.bf16.gmra.mxu0 %v416
      %v1182 = vpop.f32.mrf.mxu0
      %v1183 = vadd.f32 0.0, %v1182
      %v1184 = vpop.f32.mrf.mxu0
      %v1185 = vadd.f32 0.0, %v1184
      %1186 = vmatmul.bf16.gmra.mxu0 %v419
      %v1187 = vpop.f32.mrf.mxu0
      %v1188 = vadd.f32 0.0, %v1187
      %v1189 = vpop.f32.mrf.mxu0
      %v1190 = vadd.f32 0.0, %v1189
      %1191 = vmatmul.bf16.gmra.mxu0 %v422
      %v1192 = vpop.f32.mrf.mxu0
      %v1193 = vadd.f32 0.0, %v1192
      %v1194 = vpop.f32.mrf.mxu0
      %v1195 = vadd.f32 0.0, %v1194
      %1196 = vmatmul.bf16.gmra.mxu0 %v425
      %v1197 = vpop.f32.mrf.mxu0
      %v1198 = vadd.f32 0.0, %v1197
      %v1199 = vpop.f32.mrf.mxu0
      %v1200 = vadd.f32 0.0, %v1199
      %1201 = vmatmul.bf16.gmra.mxu0 %v428
      %v1202 = vpop.f32.mrf.mxu0
      %v1203 = vadd.f32 0.0, %v1202
      %v1204 = vpop.f32.mrf.mxu0
      %v1205 = vadd.f32 0.0, %v1204
      %1206 = vmatmul.bf16.gmra.mxu0 %v431
      %v1207 = vpop.f32.mrf.mxu0
      %v1208 = vadd.f32 0.0, %v1207
      %v1209 = vpop.f32.mrf.mxu0
      %v1210 = vadd.f32 0.0, %v1209
      %1211 = vmatmul.bf16.gmra.mxu0 %v434
      %v1212 = vpop.f32.mrf.mxu0
      %v1213 = vadd.f32 0.0, %v1212
      %v1214 = vpop.f32.mrf.mxu0
      %v1215 = vadd.f32 0.0, %v1214
      %1216 = vmatmul.bf16.gmra.mxu0 %v437
      %v1217 = vpop.f32.mrf.mxu0
      %v1218 = vadd.f32 0.0, %v1217
      %v1219 = vpop.f32.mrf.mxu0
      %v1220 = vadd.f32 0.0, %v1219
      %1221 = vmatmul.bf16.gmra.mxu0 %v440
      %v1222 = vpop.f32.mrf.mxu0
      %v1223 = vadd.f32 0.0, %v1222
      %v1224 = vpop.f32.mrf.mxu0
      %v1225 = vadd.f32 0.0, %v1224
      %1226 = vmatmul.bf16.gmra.mxu0 %v443
      %v1227 = vpop.f32.mrf.mxu0
      %v1228 = vadd.f32 0.0, %v1227
      %v1229 = vpop.f32.mrf.mxu0
      %v1230 = vadd.f32 0.0, %v1229
      %1231 = vmatmul.bf16.gmra.mxu0 %v446
      %v1232 = vpop.f32.mrf.mxu0
      %v1233 = vadd.f32 0.0, %v1232
      %v1234 = vpop.f32.mrf.mxu0
      %v1235 = vadd.f32 0.0, %v1234
      %1236 = vmatmul.bf16.gmra.mxu0 %v449
      %v1237 = vpop.f32.mrf.mxu0
      %v1238 = vadd.f32 0.0, %v1237
      %v1239 = vpop.f32.mrf.mxu0
      %v1240 = vadd.f32 0.0, %v1239
      %1241 = vmatmul.bf16.gmra.mxu0 %v1153
      %v1242 = vpop.f32.mrf.mxu0
      %v1243 = vadd.f32 0.0, %v1242
      %v1244 = vpop.f32.mrf.mxu0
      %v1245 = vadd.f32 0.0, %v1244
      %1246 = vdwg.mxu0
      %v1247 = vadd.f32 %v1101, %v1168
      %v1248 = vadd.f32 %v1102, %v1170
      %v1249 = vadd.f32 %v1103, %v1173
      %v1250 = vadd.f32 %v1104, %v1175
      %v1251 = vadd.f32 %v1105, %v1178
      %v1252 = vadd.f32 %v1106, %v1180
      %v1253 = vadd.f32 %v1107, %v1183
      %v1254 = vadd.f32 %v1108, %v1185
      %v1255 = vadd.f32 %v1109, %v1188
      %v1256 = vadd.f32 %v1110, %v1190
      %v1257 = vadd.f32 %v1111, %v1193
      %v1258 = vadd.f32 %v1112, %v1195
      %v1259 = vadd.f32 %v1113, %v1198
      %v1260 = vadd.f32 %v1114, %v1200
      %v1261 = vadd.f32 %v1115, %v1203
      %v1262 = vadd.f32 %v1116, %v1205
      %v1263 = vadd.f32 %v1117, %v1208
      %v1264 = vadd.f32 %v1118, %v1210
      %v1265 = vadd.f32 %v1119, %v1213
      %v1266 = vadd.f32 %v1120, %v1215
      %v1267 = vadd.f32 %v1121, %v1218
      %v1268 = vadd.f32 %v1122, %v1220
      %v1269 = vadd.f32 %v1123, %v1223
      %v1270 = vadd.f32 %v1124, %v1225
      %v1271 = vadd.f32 %v1125, %v1228
      %v1272 = vadd.f32 %v1126, %v1230
      %v1273 = vadd.f32 %v1127, %v1233
      %v1274 = vadd.f32 %v1128, %v1235
      %v1275 = vadd.f32 %v1129, %v1238
      %v1276 = vadd.f32 %v1130, %v1240
      %v1277 = vadd.f32 %v1131, %v1243
      %v1278 = vadd.f32 %v1132, %v1245
      %v1279 = vrot.slane %v193, 2
      %v1280 = vrot.slane %v194, 2
      %v1281 = vsel %vm451, %v1279, %v1280
      %v1282 = vrot.slane %v195, 2
      %v1283 = vsel %vm451, %v1280, %v1282
      %v1286 = vpack.c.bf16 %v1283, %v1281
      %s1287 = scalar_lea.vmem %s1, 40
      %v1288 = vld [vmem:[%s1287] sm:$0xf]
      %v1289 = vld [vmem:[%s1287 + $0x4] sm:$0x3]
      %v1292 = vunpack.c.l.b16 %v1288
      %v1293 = vunpack.c.l.b16 %v1289
      %v1294 = vpack.c.b16 %v1293, %v1292
      %v1296 = vsel %vm402, %v1286, 0
      %v1299 = vsel %vm451, %v1294, 0
      %1301 = vmatpush.bf16.msra.mxu0 0
      %1302 = vmatpush.bf16.msra.mxu0 0
      %1303 = vmatpush.bf16.msra.mxu0 0
      %1304 = vmatpush.bf16.msra.mxu0 0
      %1305 = vmatpush.bf16.msra.mxu0 0
      %1306 = vmatpush.bf16.msra.mxu0 0
      %1307 = vmatpush.bf16.msra.mxu0 0
      %1308 = vmatpush.bf16.msra.mxu0 %v1299
      %1309 = vmatmul.bf16.gmra.mxu0 %v829
      %v1310 = vpop.f32.mrf.mxu0
      %v1311 = vadd.f32 0.0, %v1310
      %v1312 = vpop.f32.mrf.mxu0
      %v1313 = vadd.f32 0.0, %v1312
      %1314 = vmatmul.bf16.gmra.mxu0 %v832
      %v1315 = vpop.f32.mrf.mxu0
      %v1316 = vadd.f32 0.0, %v1315
      %v1317 = vpop.f32.mrf.mxu0
      %v1318 = vadd.f32 0.0, %v1317
      %1319 = vmatmul.bf16.gmra.mxu0 %v835
      %v1320 = vpop.f32.mrf.mxu0
      %v1321 = vadd.f32 0.0, %v1320
      %v1322 = vpop.f32.mrf.mxu0
      %v1323 = vadd.f32 0.0, %v1322
      %1324 = vmatmul.bf16.gmra.mxu0 %v838
      %v1325 = vpop.f32.mrf.mxu0
      %v1326 = vadd.f32 0.0, %v1325
      %v1327 = vpop.f32.mrf.mxu0
      %v1328 = vadd.f32 0.0, %v1327
      %1329 = vmatmul.bf16.gmra.mxu0 %v841
      %v1330 = vpop.f32.mrf.mxu0
      %v1331 = vadd.f32 0.0, %v1330
      %v1332 = vpop.f32.mrf.mxu0
      %v1333 = vadd.f32 0.0, %v1332
      %1334 = vmatmul.bf16.gmra.mxu0 %v844
      %v1335 = vpop.f32.mrf.mxu0
      %v1336 = vadd.f32 0.0, %v1335
      %v1337 = vpop.f32.mrf.mxu0
      %v1338 = vadd.f32 0.0, %v1337
      %1339 = vmatmul.bf16.gmra.mxu0 %v847
      %v1340 = vpop.f32.mrf.mxu0
      %v1341 = vadd.f32 0.0, %v1340
      %v1342 = vpop.f32.mrf.mxu0
      %v1343 = vadd.f32 0.0, %v1342
      %1344 = vmatmul.bf16.gmra.mxu0 %v850
      %v1345 = vpop.f32.mrf.mxu0
      %v1346 = vadd.f32 0.0, %v1345
      %v1347 = vpop.f32.mrf.mxu0
      %v1348 = vadd.f32 0.0, %v1347
      %1349 = vmatmul.bf16.gmra.mxu0 %v853
      %v1350 = vpop.f32.mrf.mxu0
      %v1351 = vadd.f32 0.0, %v1350
      %v1352 = vpop.f32.mrf.mxu0
      %v1353 = vadd.f32 0.0, %v1352
      %1354 = vmatmul.bf16.gmra.mxu0 %v856
      %v1355 = vpop.f32.mrf.mxu0
      %v1356 = vadd.f32 0.0, %v1355
      %v1357 = vpop.f32.mrf.mxu0
      %v1358 = vadd.f32 0.0, %v1357
      %1359 = vmatmul.bf16.gmra.mxu0 %v859
      %v1360 = vpop.f32.mrf.mxu0
      %v1361 = vadd.f32 0.0, %v1360
      %v1362 = vpop.f32.mrf.mxu0
      %v1363 = vadd.f32 0.0, %v1362
      %1364 = vmatmul.bf16.gmra.mxu0 %v862
      %v1365 = vpop.f32.mrf.mxu0
      %v1366 = vadd.f32 0.0, %v1365
      %v1367 = vpop.f32.mrf.mxu0
      %v1368 = vadd.f32 0.0, %v1367
      %1369 = vmatmul.bf16.gmra.mxu0 %v865
      %v1370 = vpop.f32.mrf.mxu0
      %v1371 = vadd.f32 0.0, %v1370
      %v1372 = vpop.f32.mrf.mxu0
      %v1373 = vadd.f32 0.0, %v1372
      %1374 = vmatmul.bf16.gmra.mxu0 %v868
      %v1375 = vpop.f32.mrf.mxu0
      %v1376 = vadd.f32 0.0, %v1375
      %v1377 = vpop.f32.mrf.mxu0
      %v1378 = vadd.f32 0.0, %v1377
      %1379 = vmatmul.bf16.gmra.mxu0 %v871
      %v1380 = vpop.f32.mrf.mxu0
      %v1381 = vadd.f32 0.0, %v1380
      %v1382 = vpop.f32.mrf.mxu0
      %v1383 = vadd.f32 0.0, %v1382
      %1384 = vmatmul.bf16.gmra.mxu0 %v1296
      %v1385 = vpop.f32.mrf.mxu0
      %v1386 = vadd.f32 0.0, %v1385
      %v1387 = vpop.f32.mrf.mxu0
      %v1388 = vadd.f32 0.0, %v1387
      %1389 = vdwg.mxu0
      %v1390 = vadd.f32 %v1247, %v1311
      %v1391 = vadd.f32 %v1248, %v1313
      %v1392 = vadd.f32 %v1249, %v1316
      %v1393 = vadd.f32 %v1250, %v1318
      %v1394 = vadd.f32 %v1251, %v1321
      %v1395 = vadd.f32 %v1252, %v1323
      %v1396 = vadd.f32 %v1253, %v1326
      %v1397 = vadd.f32 %v1254, %v1328
      %v1398 = vadd.f32 %v1255, %v1331
      %v1399 = vadd.f32 %v1256, %v1333
      %v1400 = vadd.f32 %v1257, %v1336
      %v1401 = vadd.f32 %v1258, %v1338
      %v1402 = vadd.f32 %v1259, %v1341
      %v1403 = vadd.f32 %v1260, %v1343
      %v1404 = vadd.f32 %v1261, %v1346
      %v1405 = vadd.f32 %v1262, %v1348
      %v1406 = vadd.f32 %v1263, %v1351
      %v1407 = vadd.f32 %v1264, %v1353
      %v1408 = vadd.f32 %v1265, %v1356
      %v1409 = vadd.f32 %v1266, %v1358
      %v1410 = vadd.f32 %v1267, %v1361
      %v1411 = vadd.f32 %v1268, %v1363
      %v1412 = vadd.f32 %v1269, %v1366
      %v1413 = vadd.f32 %v1270, %v1368
      %v1414 = vadd.f32 %v1271, %v1371
      %v1415 = vadd.f32 %v1272, %v1373
      %v1416 = vadd.f32 %v1273, %v1376
      %v1417 = vadd.f32 %v1274, %v1378
      %v1418 = vadd.f32 %v1275, %v1381
      %v1419 = vadd.f32 %v1276, %v1383
      %v1420 = vadd.f32 %v1277, %v1386
      %v1421 = vadd.f32 %v1278, %v1388
      %v1422 = vpack.c.bf16 %v197, %v196
      %s1423 = scalar_lea.vmem %s1, 48
      %v1424 = vld [vmem:[%s1423] sm:$0xf]
      %v1425 = vld [vmem:[%s1423 + $0x4] sm:$0x3]
      %v1428 = vunpack.c.l.b16 %v1424
      %v1429 = vunpack.c.l.b16 %v1425
      %v1430 = vpack.c.b16 %v1429, %v1428
      %v1432 = vsel %vm402, %v1422, 0
      %v1435 = vsel %vm451, %v1430, 0
      %1437 = vmatpush.bf16.msra.mxu0 0
      %1438 = vmatpush.bf16.msra.mxu0 0
      %1439 = vmatpush.bf16.msra.mxu0 0
      %1440 = vmatpush.bf16.msra.mxu0 0
      %1441 = vmatpush.bf16.msra.mxu0 0
      %1442 = vmatpush.bf16.msra.mxu0 0
      %1443 = vmatpush.bf16.msra.mxu0 0
      %1444 = vmatpush.bf16.msra.mxu0 %v1435
      %1445 = vmatmul.bf16.gmra.mxu0 %v556
      %v1446 = vpop.f32.mrf.mxu0
      %v1447 = vadd.f32 0.0, %v1446
      %v1448 = vpop.f32.mrf.mxu0
      %v1449 = vadd.f32 0.0, %v1448
      %1450 = vmatmul.bf16.gmra.mxu0 %v559
      %v1451 = vpop.f32.mrf.mxu0
      %v1452 = vadd.f32 0.0, %v1451
      %v1453 = vpop.f32.mrf.mxu0
      %v1454 = vadd.f32 0.0, %v1453
      %1455 = vmatmul.bf16.gmra.mxu0 %v562
      %v1456 = vpop.f32.mrf.mxu0
      %v1457 = vadd.f32 0.0, %v1456
      %v1458 = vpop.f32.mrf.mxu0
      %v1459 = vadd.f32 0.0, %v1458
      %1460 = vmatmul.bf16.gmra.mxu0 %v565
      %v1461 = vpop.f32.mrf.mxu0
      %v1462 = vadd.f32 0.0, %v1461
      %v1463 = vpop.f32.mrf.mxu0
      %v1464 = vadd.f32 0.0, %v1463
      %1465 = vmatmul.bf16.gmra.mxu0 %v568
      %v1466 = vpop.f32.mrf.mxu0
      %v1467 = vadd.f32 0.0, %v1466
      %v1468 = vpop.f32.mrf.mxu0
      %v1469 = vadd.f32 0.0, %v1468
      %1470 = vmatmul.bf16.gmra.mxu0 %v571
      %v1471 = vpop.f32.mrf.mxu0
      %v1472 = vadd.f32 0.0, %v1471
      %v1473 = vpop.f32.mrf.mxu0
      %v1474 = vadd.f32 0.0, %v1473
      %1475 = vmatmul.bf16.gmra.mxu0 %v574
      %v1476 = vpop.f32.mrf.mxu0
      %v1477 = vadd.f32 0.0, %v1476
      %v1478 = vpop.f32.mrf.mxu0
      %v1479 = vadd.f32 0.0, %v1478
      %1480 = vmatmul.bf16.gmra.mxu0 %v577
      %v1481 = vpop.f32.mrf.mxu0
      %v1482 = vadd.f32 0.0, %v1481
      %v1483 = vpop.f32.mrf.mxu0
      %v1484 = vadd.f32 0.0, %v1483
      %1485 = vmatmul.bf16.gmra.mxu0 %v580
      %v1486 = vpop.f32.mrf.mxu0
      %v1487 = vadd.f32 0.0, %v1486
      %v1488 = vpop.f32.mrf.mxu0
      %v1489 = vadd.f32 0.0, %v1488
      %1490 = vmatmul.bf16.gmra.mxu0 %v583
      %v1491 = vpop.f32.mrf.mxu0
      %v1492 = vadd.f32 0.0, %v1491
      %v1493 = vpop.f32.mrf.mxu0
      %v1494 = vadd.f32 0.0, %v1493
      %1495 = vmatmul.bf16.gmra.mxu0 %v586
      %v1496 = vpop.f32.mrf.mxu0
      %v1497 = vadd.f32 0.0, %v1496
      %v1498 = vpop.f32.mrf.mxu0
      %v1499 = vadd.f32 0.0, %v1498
      %1500 = vmatmul.bf16.gmra.mxu0 %v589
      %v1501 = vpop.f32.mrf.mxu0
      %v1502 = vadd.f32 0.0, %v1501
      %v1503 = vpop.f32.mrf.mxu0
      %v1504 = vadd.f32 0.0, %v1503
      %1505 = vmatmul.bf16.gmra.mxu0 %v592
      %v1506 = vpop.f32.mrf.mxu0
      %v1507 = vadd.f32 0.0, %v1506
      %v1508 = vpop.f32.mrf.mxu0
      %v1509 = vadd.f32 0.0, %v1508
      %1510 = vmatmul.bf16.gmra.mxu0 %v595
      %v1511 = vpop.f32.mrf.mxu0
      %v1512 = vadd.f32 0.0, %v1511
      %v1513 = vpop.f32.mrf.mxu0
      %v1514 = vadd.f32 0.0, %v1513
      %1515 = vmatmul.bf16.gmra.mxu0 %v1007
      %v1516 = vpop.f32.mrf.mxu0
      %v1517 = vadd.f32 0.0, %v1516
      %v1518 = vpop.f32.mrf.mxu0
      %v1519 = vadd.f32 0.0, %v1518
      %1520 = vmatmul.bf16.gmra.mxu0 %v1432
      %v1521 = vpop.f32.mrf.mxu0
      %v1522 = vadd.f32 0.0, %v1521
      %v1523 = vpop.f32.mrf.mxu0
      %v1524 = vadd.f32 0.0, %v1523
      %1525 = vdwg.mxu0
      %v1526 = vadd.f32 %v1390, %v1447
      %v1527 = vadd.f32 %v1391, %v1449
      %v1528 = vadd.f32 %v1392, %v1452
      %v1529 = vadd.f32 %v1393, %v1454
      %v1530 = vadd.f32 %v1394, %v1457
      %v1531 = vadd.f32 %v1395, %v1459
      %v1532 = vadd.f32 %v1396, %v1462
      %v1533 = vadd.f32 %v1397, %v1464
      %v1534 = vadd.f32 %v1398, %v1467
      %v1535 = vadd.f32 %v1399, %v1469
      %v1536 = vadd.f32 %v1400, %v1472
      %v1537 = vadd.f32 %v1401, %v1474
      %v1538 = vadd.f32 %v1402, %v1477
      %v1539 = vadd.f32 %v1403, %v1479
      %v1540 = vadd.f32 %v1404, %v1482
      %v1541 = vadd.f32 %v1405, %v1484
      %v1542 = vadd.f32 %v1406, %v1487
      %v1543 = vadd.f32 %v1407, %v1489
      %v1544 = vadd.f32 %v1408, %v1492
      %v1545 = vadd.f32 %v1409, %v1494
      %v1546 = vadd.f32 %v1410, %v1497
      %v1547 = vadd.f32 %v1411, %v1499
      %v1548 = vadd.f32 %v1412, %v1502
      %v1549 = vadd.f32 %v1413, %v1504
      %v1550 = vadd.f32 %v1414, %v1507
      %v1551 = vadd.f32 %v1415, %v1509
      %v1552 = vadd.f32 %v1416, %v1512
      %v1553 = vadd.f32 %v1417, %v1514
      %v1554 = vadd.f32 %v1418, %v1517
      %v1555 = vadd.f32 %v1419, %v1519
      %v1556 = vadd.f32 %v1420, %v1522
      %v1557 = vadd.f32 %v1421, %v1524
      %v1561 = vrot.slane %v196, 1
      %v1562 = vrot.slane %v197, 1
      %v1563 = vsel %vm265, %v1561, %v1562
      %v1564 = vrot.slane %v198, 1
      %v1565 = vsel %vm265, %v1562, %v1564
      %v1568 = vpack.c.bf16 %v1565, %v1563
      %s1569 = scalar_lea.vmem %s1, 56
      %v1570 = vld [vmem:[%s1569] sm:$0xf]
      %v1571 = vld [vmem:[%s1569 + $0x4] sm:$0x3]
      %v1574 = vunpack.c.l.b16 %v1570
      %v1575 = vunpack.c.l.b16 %v1571
      %v1576 = vpack.c.b16 %v1575, %v1574
      %v1578 = vsel %vm402, %v1568, 0
      %v1581 = vsel %vm451, %v1576, 0
      %1583 = vmatpush.bf16.msra.mxu0 0
      %1584 = vmatpush.bf16.msra.mxu0 0
      %1585 = vmatpush.bf16.msra.mxu0 0
      %1586 = vmatpush.bf16.msra.mxu0 0
      %1587 = vmatpush.bf16.msra.mxu0 0
      %1588 = vmatpush.bf16.msra.mxu0 0
      %1589 = vmatpush.bf16.msra.mxu0 0
      %1590 = vmatpush.bf16.msra.mxu0 %v1581
      %1591 = vmatmul.bf16.gmra.mxu0 %v410
      %v1592 = vpop.f32.mrf.mxu0
      %v1593 = vadd.f32 0.0, %v1592
      %v1594 = vpop.f32.mrf.mxu0
      %v1595 = vadd.f32 0.0, %v1594
      %1596 = vmatmul.bf16.gmra.mxu0 %v413
      %v1597 = vpop.f32.mrf.mxu0
      %v1598 = vadd.f32 0.0, %v1597
      %v1599 = vpop.f32.mrf.mxu0
      %v1600 = vadd.f32 0.0, %v1599
      %1601 = vmatmul.bf16.gmra.mxu0 %v416
      %v1602 = vpop.f32.mrf.mxu0
      %v1603 = vadd.f32 0.0, %v1602
      %v1604 = vpop.f32.mrf.mxu0
      %v1605 = vadd.f32 0.0, %v1604
      %1606 = vmatmul.bf16.gmra.mxu0 %v419
      %v1607 = vpop.f32.mrf.mxu0
      %v1608 = vadd.f32 0.0, %v1607
      %v1609 = vpop.f32.mrf.mxu0
      %v1610 = vadd.f32 0.0, %v1609
      %1611 = vmatmul.bf16.gmra.mxu0 %v422
      %v1612 = vpop.f32.mrf.mxu0
      %v1613 = vadd.f32 0.0, %v1612
      %v1614 = vpop.f32.mrf.mxu0
      %v1615 = vadd.f32 0.0, %v1614
      %1616 = vmatmul.bf16.gmra.mxu0 %v425
      %v1617 = vpop.f32.mrf.mxu0
      %v1618 = vadd.f32 0.0, %v1617
      %v1619 = vpop.f32.mrf.mxu0
      %v1620 = vadd.f32 0.0, %v1619
      %1621 = vmatmul.bf16.gmra.mxu0 %v428
      %v1622 = vpop.f32.mrf.mxu0
      %v1623 = vadd.f32 0.0, %v1622
      %v1624 = vpop.f32.mrf.mxu0
      %v1625 = vadd.f32 0.0, %v1624
      %1626 = vmatmul.bf16.gmra.mxu0 %v431
      %v1627 = vpop.f32.mrf.mxu0
      %v1628 = vadd.f32 0.0, %v1627
      %v1629 = vpop.f32.mrf.mxu0
      %v1630 = vadd.f32 0.0, %v1629
      %1631 = vmatmul.bf16.gmra.mxu0 %v434
      %v1632 = vpop.f32.mrf.mxu0
      %v1633 = vadd.f32 0.0, %v1632
      %v1634 = vpop.f32.mrf.mxu0
      %v1635 = vadd.f32 0.0, %v1634
      %1636 = vmatmul.bf16.gmra.mxu0 %v437
      %v1637 = vpop.f32.mrf.mxu0
      %v1638 = vadd.f32 0.0, %v1637
      %v1639 = vpop.f32.mrf.mxu0
      %v1640 = vadd.f32 0.0, %v1639
      %1641 = vmatmul.bf16.gmra.mxu0 %v440
      %v1642 = vpop.f32.mrf.mxu0
      %v1643 = vadd.f32 0.0, %v1642
      %v1644 = vpop.f32.mrf.mxu0
      %v1645 = vadd.f32 0.0, %v1644
      %1646 = vmatmul.bf16.gmra.mxu0 %v443
      %v1647 = vpop.f32.mrf.mxu0
      %v1648 = vadd.f32 0.0, %v1647
      %v1649 = vpop.f32.mrf.mxu0
      %v1650 = vadd.f32 0.0, %v1649
      %1651 = vmatmul.bf16.gmra.mxu0 %v446
      %v1652 = vpop.f32.mrf.mxu0
      %v1653 = vadd.f32 0.0, %v1652
      %v1654 = vpop.f32.mrf.mxu0
      %v1655 = vadd.f32 0.0, %v1654
      %1656 = vmatmul.bf16.gmra.mxu0 %v449
      %v1657 = vpop.f32.mrf.mxu0
      %v1658 = vadd.f32 0.0, %v1657
      %v1659 = vpop.f32.mrf.mxu0
      %v1660 = vadd.f32 0.0, %v1659
      %1661 = vmatmul.bf16.gmra.mxu0 %v1153
      %v1662 = vpop.f32.mrf.mxu0
      %v1663 = vadd.f32 0.0, %v1662
      %v1664 = vpop.f32.mrf.mxu0
      %v1665 = vadd.f32 0.0, %v1664
      %1666 = vmatmul.bf16.gmra.mxu0 %v1578
      %v1667 = vpop.f32.mrf.mxu0
      %v1668 = vadd.f32 0.0, %v1667
      %v1669 = vpop.f32.mrf.mxu0
      %v1670 = vadd.f32 0.0, %v1669
      %1671 = vdwg.mxu0
      %v1672 = vadd.f32 %v1526, %v1593
      %v1673 = vadd.f32 %v1527, %v1595
      %v1674 = vadd.f32 %v1528, %v1598
      %v1675 = vadd.f32 %v1529, %v1600
      %v1676 = vadd.f32 %v1530, %v1603
      %v1677 = vadd.f32 %v1531, %v1605
      %v1678 = vadd.f32 %v1532, %v1608
      %v1679 = vadd.f32 %v1533, %v1610
      %v1680 = vadd.f32 %v1534, %v1613
      %v1681 = vadd.f32 %v1535, %v1615
      %v1682 = vadd.f32 %v1536, %v1618
      %v1683 = vadd.f32 %v1537, %v1620
      %v1684 = vadd.f32 %v1538, %v1623
      %v1685 = vadd.f32 %v1539, %v1625
      %v1686 = vadd.f32 %v1540, %v1628
      %v1687 = vadd.f32 %v1541, %v1630
      %v1688 = vadd.f32 %v1542, %v1633
      %v1689 = vadd.f32 %v1543, %v1635
      %v1690 = vadd.f32 %v1544, %v1638
      %v1691 = vadd.f32 %v1545, %v1640
      %v1692 = vadd.f32 %v1546, %v1643
      %v1693 = vadd.f32 %v1547, %v1645
      %v1694 = vadd.f32 %v1548, %v1648
      %v1695 = vadd.f32 %v1549, %v1650
      %v1696 = vadd.f32 %v1550, %v1653
      %v1697 = vadd.f32 %v1551, %v1655
      %v1698 = vadd.f32 %v1552, %v1658
      %v1699 = vadd.f32 %v1553, %v1660
      %v1700 = vadd.f32 %v1554, %v1663
      %v1701 = vadd.f32 %v1555, %v1665
      %v1702 = vadd.f32 %v1556, %v1668
      %v1703 = vadd.f32 %v1557, %v1670
      %v1704 = vrot.slane %v196, 2
      %v1705 = vrot.slane %v197, 2
      %v1706 = vsel %vm451, %v1704, %v1705
      %v1707 = vrot.slane %v198, 2
      %v1708 = vsel %vm451, %v1705, %v1707
      %v1711 = vpack.c.bf16 %v1708, %v1706
      %s1712 = scalar_lea.vmem %s1, 64
      %v1713 = vld [vmem:[%s1712] sm:$0xf]
      %v1714 = vld [vmem:[%s1712 + $0x4] sm:$0x3]
      %v1717 = vunpack.c.l.b16 %v1713
      %v1718 = vunpack.c.l.b16 %v1714
      %v1719 = vpack.c.b16 %v1718, %v1717
      %v1721 = vsel %vm402, %v1711, 0
      %v1724 = vsel %vm451, %v1719, 0
      %1726 = vmatpush.bf16.msra.mxu0 0
      %1727 = vmatpush.bf16.msra.mxu0 0
      %1728 = vmatpush.bf16.msra.mxu0 0
      %1729 = vmatpush.bf16.msra.mxu0 0
      %1730 = vmatpush.bf16.msra.mxu0 0
      %1731 = vmatpush.bf16.msra.mxu0 0
      %1732 = vmatpush.bf16.msra.mxu0 0
      %1733 = vmatpush.bf16.msra.mxu0 %v1724
      %1734 = vmatmul.bf16.gmra.mxu0 %v832
      %v1735 = vpop.f32.mrf.mxu0
      %v1736 = vadd.f32 0.0, %v1735
      %v1737 = vpop.f32.mrf.mxu0
      %v1738 = vadd.f32 0.0, %v1737
      %1739 = vmatmul.bf16.gmra.mxu0 %v835
      %v1740 = vpop.f32.mrf.mxu0
      %v1741 = vadd.f32 0.0, %v1740
      %v1742 = vpop.f32.mrf.mxu0
      %v1743 = vadd.f32 0.0, %v1742
      %1744 = vmatmul.bf16.gmra.mxu0 %v838
      %v1745 = vpop.f32.mrf.mxu0
      %v1746 = vadd.f32 0.0, %v1745
      %v1747 = vpop.f32.mrf.mxu0
      %v1748 = vadd.f32 0.0, %v1747
      %1749 = vmatmul.bf16.gmra.mxu0 %v841
      %v1750 = vpop.f32.mrf.mxu0
      %v1751 = vadd.f32 0.0, %v1750
      %v1752 = vpop.f32.mrf.mxu0
      %v1753 = vadd.f32 0.0, %v1752
      %1754 = vmatmul.bf16.gmra.mxu0 %v844
      %v1755 = vpop.f32.mrf.mxu0
      %v1756 = vadd.f32 0.0, %v1755
      %v1757 = vpop.f32.mrf.mxu0
      %v1758 = vadd.f32 0.0, %v1757
      %1759 = vmatmul.bf16.gmra.mxu0 %v847
      %v1760 = vpop.f32.mrf.mxu0
      %v1761 = vadd.f32 0.0, %v1760
      %v1762 = vpop.f32.mrf.mxu0
      %v1763 = vadd.f32 0.0, %v1762
      %1764 = vmatmul.bf16.gmra.mxu0 %v850
      %v1765 = vpop.f32.mrf.mxu0
      %v1766 = vadd.f32 0.0, %v1765
      %v1767 = vpop.f32.mrf.mxu0
      %v1768 = vadd.f32 0.0, %v1767
      %1769 = vmatmul.bf16.gmra.mxu0 %v853
      %v1770 = vpop.f32.mrf.mxu0
      %v1771 = vadd.f32 0.0, %v1770
      %v1772 = vpop.f32.mrf.mxu0
      %v1773 = vadd.f32 0.0, %v1772
      %1774 = vmatmul.bf16.gmra.mxu0 %v856
      %v1775 = vpop.f32.mrf.mxu0
      %v1776 = vadd.f32 0.0, %v1775
      %v1777 = vpop.f32.mrf.mxu0
      %v1778 = vadd.f32 0.0, %v1777
      %1779 = vmatmul.bf16.gmra.mxu0 %v859
      %v1780 = vpop.f32.mrf.mxu0
      %v1781 = vadd.f32 0.0, %v1780
      %v1782 = vpop.f32.mrf.mxu0
      %v1783 = vadd.f32 0.0, %v1782
      %1784 = vmatmul.bf16.gmra.mxu0 %v862
      %v1785 = vpop.f32.mrf.mxu0
      %v1786 = vadd.f32 0.0, %v1785
      %v1787 = vpop.f32.mrf.mxu0
      %v1788 = vadd.f32 0.0, %v1787
      %1789 = vmatmul.bf16.gmra.mxu0 %v865
      %v1790 = vpop.f32.mrf.mxu0
      %v1791 = vadd.f32 0.0, %v1790
      %v1792 = vpop.f32.mrf.mxu0
      %v1793 = vadd.f32 0.0, %v1792
      %1794 = vmatmul.bf16.gmra.mxu0 %v868
      %v1795 = vpop.f32.mrf.mxu0
      %v1796 = vadd.f32 0.0, %v1795
      %v1797 = vpop.f32.mrf.mxu0
      %v1798 = vadd.f32 0.0, %v1797
      %1799 = vmatmul.bf16.gmra.mxu0 %v871
      %v1800 = vpop.f32.mrf.mxu0
      %v1801 = vadd.f32 0.0, %v1800
      %v1802 = vpop.f32.mrf.mxu0
      %v1803 = vadd.f32 0.0, %v1802
      %1804 = vmatmul.bf16.gmra.mxu0 %v1296
      %v1805 = vpop.f32.mrf.mxu0
      %v1806 = vadd.f32 0.0, %v1805
      %v1807 = vpop.f32.mrf.mxu0
      %v1808 = vadd.f32 0.0, %v1807
      %1809 = vmatmul.bf16.gmra.mxu0 %v1721
      %v1810 = vpop.f32.mrf.mxu0
      %v1811 = vadd.f32 0.0, %v1810
      %v1812 = vpop.f32.mrf.mxu0
      %v1813 = vadd.f32 0.0, %v1812
      %1814 = vdwg.mxu0
      %v1815 = vadd.f32 %v1672, %v1736
      %v1816 = vadd.f32 %v1673, %v1738
      %v1817 = vadd.f32 %v1674, %v1741
      %v1818 = vadd.f32 %v1675, %v1743
      %v1819 = vadd.f32 %v1676, %v1746
      %v1820 = vadd.f32 %v1677, %v1748
      %v1821 = vadd.f32 %v1678, %v1751
      %v1822 = vadd.f32 %v1679, %v1753
      %v1823 = vadd.f32 %v1680, %v1756
      %v1824 = vadd.f32 %v1681, %v1758
      %v1825 = vadd.f32 %v1682, %v1761
      %v1826 = vadd.f32 %v1683, %v1763
      %v1827 = vadd.f32 %v1684, %v1766
      %v1828 = vadd.f32 %v1685, %v1768
      %v1829 = vadd.f32 %v1686, %v1771
      %v1830 = vadd.f32 %v1687, %v1773
      %v1831 = vadd.f32 %v1688, %v1776
      %v1832 = vadd.f32 %v1689, %v1778
      %v1833 = vadd.f32 %v1690, %v1781
      %v1834 = vadd.f32 %v1691, %v1783
      %v1835 = vadd.f32 %v1692, %v1786
      %v1836 = vadd.f32 %v1693, %v1788
      %v1837 = vadd.f32 %v1694, %v1791
      %v1838 = vadd.f32 %v1695, %v1793
      %v1839 = vadd.f32 %v1696, %v1796
      %v1840 = vadd.f32 %v1697, %v1798
      %v1841 = vadd.f32 %v1698, %v1801
      %v1842 = vadd.f32 %v1699, %v1803
      %v1843 = vadd.f32 %v1700, %v1806
      %v1844 = vadd.f32 %v1701, %v1808
      %v1845 = vadd.f32 %v1702, %v1811
      %v1846 = vadd.f32 %v1703, %v1813
      %vm1847 = vcmask 23552
      %1848 = vst.msk [vmem:[%s143] sm:$0xff] %vm1847, %v1815
      %1849 = vst.msk [vmem:[%s143 + $0x8] sm:$0xff] %vm1847, %v1816
      %1850 = vst.msk [vmem:[%s143 + $0x10] sm:$0xff] %vm1847, %v1817
      %1851 = vst.msk [vmem:[%s143 + $0x18] sm:$0xff] %vm1847, %v1818
      %1852 = vst.msk [vmem:[%s143 + $0x20] sm:$0xff] %vm1847, %v1819
      %1853 = vst.msk [vmem:[%s143 + $0x28] sm:$0xff] %vm1847, %v1820
      %1854 = vst.msk [vmem:[%s143 + $0x30] sm:$0xff] %vm1847, %v1821
      %1855 = vst.msk [vmem:[%s143 + $0x38] sm:$0xff] %vm1847, %v1822
      %1856 = vst.msk [vmem:[%s143 + $0x40] sm:$0xff] %vm1847, %v1823
      %1857 = vst.msk [vmem:[%s143 + $0x48] sm:$0xff] %vm1847, %v1824
      %1858 = vst.msk [vmem:[%s143 + $0x50] sm:$0xff] %vm1847, %v1825
      %1859 = vst.msk [vmem:[%s143 + $0x58] sm:$0xff] %vm1847, %v1826
      %1860 = vst.msk [vmem:[%s143 + $0x60] sm:$0xff] %vm1847, %v1827
      %1861 = vst.msk [vmem:[%s143 + $0x68] sm:$0xff] %vm1847, %v1828
      %1862 = vst.msk [vmem:[%s143 + $0x70] sm:$0xff] %vm1847, %v1829
      %1863 = vst.msk [vmem:[%s143 + $0x78] sm:$0xff] %vm1847, %v1830
      %1864 = vst.msk [vmem:[%s143 + $0x80] sm:$0xff] %vm1847, %v1831
      %1865 = vst.msk [vmem:[%s143 + $0x88] sm:$0xff] %vm1847, %v1832
      %1866 = vst.msk [vmem:[%s143 + $0x90] sm:$0xff] %vm1847, %v1833
      %1867 = vst.msk [vmem:[%s143 + $0x98] sm:$0xff] %vm1847, %v1834
      %1868 = vst.msk [vmem:[%s143 + $0xa0] sm:$0xff] %vm1847, %v1835
      %1869 = vst.msk [vmem:[%s143 + $0xa8] sm:$0xff] %vm1847, %v1836
      %1870 = vst.msk [vmem:[%s143 + $0xb0] sm:$0xff] %vm1847, %v1837
      %1871 = vst.msk [vmem:[%s143 + $0xb8] sm:$0xff] %vm1847, %v1838
      %1872 = vst.msk [vmem:[%s143 + $0xc0] sm:$0xff] %vm1847, %v1839
      %1873 = vst.msk [vmem:[%s143 + $0xc8] sm:$0xff] %vm1847, %v1840
      %1874 = vst.msk [vmem:[%s143 + $0xd0] sm:$0xff] %vm1847, %v1841
      %1875 = vst.msk [vmem:[%s143 + $0xd8] sm:$0xff] %vm1847, %v1842
      %1876 = vst.msk [vmem:[%s143 + $0xe0] sm:$0xff] %vm1847, %v1843
      %1877 = vst.msk [vmem:[%s143 + $0xe8] sm:$0xff] %vm1847, %v1844
      %1878 = vst.msk [vmem:[%s143 + $0xf0] sm:$0xff] %vm1847, %v1845
      %1879 = vst.msk [vmem:[%s143 + $0xf8] sm:$0xff] %vm1847, %v1846
      %p1880 = scmp.lt.s32.totalorder %s13, 1
      %s1881 = scalar_select %p1880, %s13, 1
      %s1882 = smul.addr %s1881, 32
      %s1883 = smul.addr %s1882, 8
      %s1884 = scalar_lea.vmem %s2, %s1883
      // Predicated region
      $region29: #{latent_diffusion_forward.11} parent=27 // pred_check
        %p1885 = pneg %p78
      $region30: #{latent_diffusion_forward.11} parent=27 // pred_check_branch
        %1887 = sbr.rel (%p1885) target = $region32
      $region31: #{latent_diffusion_forward.11} parent=27 // pred_region
        _
      $region32: #{latent_diffusion_forward.11} parent=27 // pred_fallthru
        _
    $region28: #{latent_diffusion_forward.11} parent=5 // pred_fallthru
      _
    %p1888 = scmp.le.s32.totalorder 2, %s8
    // Predicated region
    $region33: #{latent_diffusion_forward.11} parent=5 // pred_check
      %p1889 = pneg %p1888
    $region34: #{latent_diffusion_forward.11} parent=5 // pred_check_branch
      %1891 = sbr.rel (%p1889) target = $region36
    $region35: #{latent_diffusion_forward.11} parent=5 // pred_region
      %s1892 = ssub.s32 %s8, 2
      // Predicated region
      $region37: #{latent_diffusion_forward.11} parent=35 // pred_check
        %p1893 = pneg %p84
      $region38: #{latent_diffusion_forward.11} parent=35 // pred_check_branch
        %1895 = sbr.rel (%p1893) target = $region40
      $region39: #{latent_diffusion_forward.11} parent=35 // pred_region
        %p1896 = scmp.lt.s32.totalorder %s14, 1
        %s1897 = scalar_select %p1896, %s14, 1
        %s1898 = smul.addr %s1897, 32
        %s1899 = smul.addr %s1898, 8
        %s1900 = scalar_lea.vmem %s2, %s1899
      $region40: #{latent_diffusion_forward.11} parent=35 // pred_fallthru
        _
    $region36: #{latent_diffusion_forward.11} parent=5 // pred_fallthru
      _
  $region6: #{latent_diffusion_forward.11} parent=0 // loop_footer
    %s12 = sadd.s32 1, %s8
  $region7: #{latent_diffusion_forward.11} parent=0 // loop_footer_branch
    %7 = sbr.rel target = $region3
  $region8: #{latent_diffusion_forward.11} parent=0 // loop_exit
    _

</llo_original>
